<compile_context>
chip_gen: v7x
topology: tpu7x:2x2x1
jax: 0.10.0
libtpu: 0.0.40
codegen_flags: <defaults>
</compile_context>

<pallas_src>
import functools
import math

import jax
import jax.numpy as jnp
from jax.experimental import pallas as pl
from jax.experimental.pallas import tpu as pltpu

BN_EPS = 1e-5
VMEM_LIMIT = 32 * 1024 * 1024        # explicit scoped-VMEM budget, safe on v5e/v6e/v7x
ELTWISE_TILE_BYTES = 2 * 1024 * 1024  # target per-block bytes for elementwise kernels


# ------------------------------ helpers ------------------------------------ #

def _round_up(x, m):
    return (x + m - 1) // m * m


def _pick_divisor_tile(total, target):
    """Largest divisor of `total` that is <= target (>=1)."""
    t = max(1, min(total, target))
    while total % t:
        t -= 1
    return t


# ----------------------------- Pallas kernels ------------------------------ #

def conv_matmul_stats_kernel(p_ref, w_ref, y_ref, ssum_ref, ssq_ref, acc_ref):
    """Tiled matmul (bf16 x bf16 -> f32) + per-tile BN partial statistics.

    p_ref: (TM, TK) bf16 im2col patches     w_ref: (TK, OCp) bf16 weights
    y_ref: (TM, OCp) f32 conv output        ssum/ssq_ref: (1, 8, OCp) partial stats
    acc_ref: (TM, OCp) f32 VMEM accumulator (persists across the K axis)
    """
    k = pl.program_id(1)

    @pl.when(k == 0)
    def _():
        acc_ref[...] = jnp.zeros_like(acc_ref)

    acc_ref[...] += jnp.dot(p_ref[...], w_ref[...],
                            preferred_element_type=jnp.float32)

    @pl.when(k == pl.num_programs(1) - 1)
    def _():
        y = acc_ref[...]
        y_ref[...] = y
        s1 = jnp.sum(y, axis=0, keepdims=True)        # (1, OCp)
        s2 = jnp.sum(y * y, axis=0, keepdims=True)    # (1, OCp)
        ssum_ref[...] = jnp.broadcast_to(s1[None], ssum_ref.shape)
        ssq_ref[...] = jnp.broadcast_to(s2[None], ssq_ref.shape)


def bn_relu_kernel(y_ref, scale_ref, shift_ref, o_ref):
    """Per-channel affine (folded BN) + ReLU, f32 math, bf16 output."""
    y = y_ref[...] * scale_ref[...] + shift_ref[...]
    o_ref[...] = jnp.maximum(y, 0.0).astype(o_ref.dtype)


def maxpool_kernel(x_ref, o_ref):
    """2x2/2 max pool. x_ref: (TR, 2, OW, 2, C) -> o_ref: (TR, OW, C)."""
    x = x_ref[...]
    o_ref[...] = jnp.max(jnp.max(x, axis=3), axis=1)


# ------------------------------ wrappers ----------------------------------- #

def _im2col(x_nhwc, kh, kw, stride, padding):
    """Plain-JAX glue: extract conv patches (bf16). Returns (N*OH*OW, KH*KW*C)."""
    x = jnp.pad(x_nhwc, ((0, 0), (padding, padding), (padding, padding), (0, 0)))
    n, h, w, c = x.shape
    oh = (h - kh) // stride + 1
    ow = (w - kw) // stride + 1
    cols = []
    for i in range(kh):
        for j in range(kw):
            cols.append(x[:, i:i + stride * oh:stride, j:j + stride * ow:stride, :])
    patches = jnp.stack(cols, axis=3)                 # (N, OH, OW, KH*KW, C)
    return patches.reshape(n * oh * ow, kh * kw * c), (n, oh, ow)


def conv_bn_relu(x_nhwc, params, kernel_size, stride, padding):
    """Conv2d (no bias) + BatchNorm2d (train-mode batch stats) + ReLU."""
    w, gamma, beta = params                 # w: (OC, IC, KH, KW) PyTorch layout
    oc, ic, kh, kw = w.shape

    patches, (n, oh, ow) = _im2col(x_nhwc.astype(jnp.bfloat16), kh, kw, stride, padding)
    m, k = patches.shape

    # --- tiling / padding (lane-dense: OC, K padded to 128; M to 8-aligned tile)
    ocp = _round_up(oc, 128)
    kp = _round_up(k, 128)
    tm = min(512, _round_up(m, 8))
    mp = _round_up(m, tm)
    tk = min(512, kp)
    while kp % tk:
        tk -= 128
    gm, gk = mp // tm, kp // tk

    patches = jnp.pad(patches, ((0, mp - m), (0, kp - k)))
    w_mat = jnp.transpose(w, (2, 3, 1, 0)).reshape(k, oc).astype(jnp.bfloat16)
    w_mat = jnp.pad(w_mat, ((0, kp - k), (0, ocp - oc)))

    # --- pass 1: tiled MXU matmul + per-M-tile partial channel stats
    y, ssum, ssq = pl.pallas_call(
        conv_matmul_stats_kernel,
        out_shape=(jax.ShapeDtypeStruct((mp, ocp), jnp.float32),
                   jax.ShapeDtypeStruct((gm, 8, ocp), jnp.float32),
                   jax.ShapeDtypeStruct((gm, 8, ocp), jnp.float32)),
        grid=(gm, gk),
        in_specs=[pl.BlockSpec((tm, tk), lambda i, kk: (i, kk)),
                  pl.BlockSpec((tk, ocp), lambda i, kk: (kk, 0))],
        out_specs=(pl.BlockSpec((tm, ocp), lambda i, kk: (i, 0)),
                   pl.BlockSpec((1, 8, ocp), lambda i, kk: (i, 0, 0)),
                   pl.BlockSpec((1, 8, ocp), lambda i, kk: (i, 0, 0))),
        scratch_shapes=[pltpu.VMEM((tm, ocp), jnp.float32)],
        compiler_params=pltpu.CompilerParams(
            dimension_semantics=("parallel", "arbitrary"),
            vmem_limit_bytes=VMEM_LIMIT),
    )(patches, w_mat)

    # --- tiny JAX reduction: batch mean/var over the true M rows, fold gamma/beta
    inv_m = 1.0 / float(m)
    mean = jnp.sum(ssum[:, 0, :], axis=0) * inv_m                    # (OCp,)
    var = jnp.maximum(jnp.sum(ssq[:, 0, :], axis=0) * inv_m - mean * mean, 0.0)
    inv_std = jax.lax.rsqrt(var + BN_EPS)
    gamma_p = jnp.pad(gamma, (0, ocp - oc))
    beta_p = jnp.pad(beta, (0, ocp - oc))
    scale = (gamma_p * inv_std).reshape(1, ocp).astype(jnp.float32)
    shift = (beta_p - mean * gamma_p * inv_std).reshape(1, ocp).astype(jnp.float32)

    # --- pass 2: tiled BN-apply + ReLU, bf16 activations out
    act = pl.pallas_call(
        bn_relu_kernel,
        out_shape=jax.ShapeDtypeStruct((mp, ocp), jnp.bfloat16),
        grid=(gm,),
        in_specs=[pl.BlockSpec((tm, ocp), lambda i: (i, 0)),
                  pl.BlockSpec((1, ocp), lambda i: (0, 0)),
                  pl.BlockSpec((1, ocp), lambda i: (0, 0))],
        out_specs=pl.BlockSpec((tm, ocp), lambda i: (i, 0)),
        compiler_params=pltpu.CompilerParams(
            dimension_semantics=("parallel",),
            vmem_limit_bytes=VMEM_LIMIT),
    )(y, scale, shift)

    return act[:m, :oc].reshape(n, oh, ow, oc)


def maxpool2x2(x_nhwc):
    n, h, w, c = x_nhwc.shape
    oh, ow = h // 2, w // 2
    x = x_nhwc[:, :2 * oh, :2 * ow, :]
    xr = x.reshape(n * oh, 2, ow, 2, c)          # free (layout-preserving) reshape
    rows = n * oh

    per_row_bytes = 2 * ow * 2 * c * x_nhwc.dtype.itemsize
    tr = _pick_divisor_tile(rows, max(1, ELTWISE_TILE_BYTES // per_row_bytes))

    out = pl.pallas_call(
        maxpool_kernel,
        out_shape=jax.ShapeDtypeStruct((rows, ow, c), x_nhwc.dtype),
        grid=(rows // tr,),
        in_specs=[pl.BlockSpec((tr, 2, ow, 2, c), lambda i: (i, 0, 0, 0, 0))],
        out_specs=pl.BlockSpec((tr, ow, c), lambda i: (i, 0, 0)),
        compiler_params=pltpu.CompilerParams(
            dimension_semantics=("parallel",),
            vmem_limit_bytes=VMEM_LIMIT),
    )(xr)
    return out.reshape(n, oh, ow, c)


# --------------------------- DarkNet construction --------------------------- #

def build_darknet(architecture_config, input_channels, key):
    """Parse the config exactly like the PyTorch module; init params deterministically."""
    layers = []   # list of ("conv", params, ks, stride, pad) or ("pool",)

    def add_conv(in_c, ks, out_c, stride, pad, key):
        fan_in = in_c * ks * ks
        bound = 1.0 / math.sqrt(float(fan_in))
        w = jax.random.uniform(key, (out_c, in_c, ks, ks), jnp.float32, -bound, bound)
        # Conv bias omitted: it cancels exactly under train-mode BatchNorm.
        gamma = jnp.ones((out_c,), jnp.float32)    # BatchNorm2d default weight
        beta = jnp.zeros((out_c,), jnp.float32)    # BatchNorm2d default bias
        layers.append(("conv", (w, gamma, beta), ks, stride, pad))
        return out_c

    in_c = input_channels
    for layer in architecture_config:
        if isinstance(layer, tuple):
            ks, out_c, stride, pad = layer
            key, sub = jax.random.split(key)
            in_c = add_conv(in_c, ks, out_c, stride, pad, sub)
        elif isinstance(layer, str):
            layers.append(("pool",))
        elif isinstance(layer, list):
            layer1, layer2, repeat = layer
            for _ in range(repeat):
                ks, out_c, stride, pad = layer1
                key, sub = jax.random.split(key)
                in_c = add_conv(in_c, ks, out_c, stride, pad, sub)
                ks, out_c, stride, pad = layer2
                key, sub = jax.random.split(key)
                in_c = add_conv(in_c, ks, out_c, stride, pad, sub)
    return layers


def darknet_forward(layers, x_nchw):
    # NCHW in -> NHWC bf16 internal -> NCHW f32 out
    x = jnp.transpose(x_nchw, (0, 2, 3, 1)).astype(jnp.bfloat16)
    for layer in layers:
        if layer[0] == "conv":
            _, params, ks, stride, pad = layer
            x = conv_bn_relu(x, params, ks, stride, pad)
        else:
            x = maxpool2x2(x)
    return jnp.transpose(x, (0, 3, 1, 2)).astype(jnp.float32)


# ----------------------------------- main ----------------------------------- #

if __name__ == "__main__":
    # Small synthetic DarkNet config (same grammar as the PyTorch module):
    #   tuple  -> (kernel_size, out_channels, stride, padding) conv block
    #   "M"    -> MaxPool2d(2, 2)
    #   list   -> [conv1, conv2, repeat]
    ARCH = [
        (3, 8, 1, 1),
        "M",
        [(1, 4, 1, 0), (3, 8, 1, 1), 2],
        (3, 16, 2, 1),
    ]

    key = jax.random.PRNGKey(0)
    key, pkey, xkey = jax.random.split(key, 3)

    layers = build_darknet(ARCH, input_channels=4, key=pkey)

    x = jax.random.normal(xkey, (2, 4, 16, 16), jnp.float32)   # NCHW, like PyTorch

    fwd = jax.jit(functools.partial(darknet_forward, layers))
    out = fwd(x)
    jax.block_until_ready(out)

    expected_shape = (2, 16, 4, 4)   # 16x16 -> conv -> pool(8x8) -> convs -> stride-2 conv(4x4)
    assert out.shape == expected_shape, (out.shape, expected_shape)
    assert bool(jnp.all(jnp.isfinite(out)))
    assert bool(jnp.all(out >= 0.0))   # final ReLU

    print("KERNEL_OK")
</pallas_src>

<mosaic_0001>
module attributes {stable_mosaic.version = 11 : i64} {
  func.func @conv_matmul_stats_kernel(%arg0: i32, %arg1: i32, %arg2: memref<512x128xbf16, #tpu.memory_space<vmem>>, %arg3: memref<128x128xbf16, #tpu.memory_space<vmem>>, %arg4: memref<512x128xf32, #tpu.memory_space<vmem>>, %arg5: memref<1x8x128xf32, #tpu.memory_space<vmem>>, %arg6: memref<1x8x128xf32, #tpu.memory_space<vmem>>, %arg7: memref<512x128xf32, #tpu.memory_space<vmem>>) attributes {dimension_semantics = [#tpu.dimension_semantics<parallel>, #tpu.dimension_semantics<arbitrary>], iteration_bounds = array<i64: 1, 1>, scalar_prefetch = 0 : i64, scratch_operands = 1 : i64, tpu.core_type = #tpu.core_type<tc>, window_params = [{transform_indices = @transform_0, window_bounds = array<i64: 512, 128>}, {transform_indices = @transform_1, window_bounds = array<i64: 128, 128>}, {transform_indices = @transform_2, window_bounds = array<i64: 512, 128>}, {transform_indices = @transform_3, window_bounds = array<i64: 1, 8, 128>}, {transform_indices = @transform_4, window_bounds = array<i64: 1, 8, 128>}]} {
    %c0_i32 = arith.constant 0 : i32
    %0 = arith.cmpi eq, %arg1, %c0_i32 : i32
    %1 = arith.extui %0 : i1 to i32
    %c0_i32_0 = arith.constant 0 : i32
    %2 = arith.cmpi ne, %1, %c0_i32_0 : i32
    scf.if %2 {
      %cst_10 = arith.constant 0.000000e+00 : f32
      %12 = vector.broadcast %cst_10 : f32 to vector<512x128xf32>
      %c0_11 = arith.constant 0 : index
      %c0_12 = arith.constant 0 : index
      %13 = vector.load %arg7[%c0_11, %c0_12] : memref<512x128xf32, #tpu.memory_space<vmem>>, vector<512x128xf32>
      tpu.vector_store %arg7[%c0_11, %c0_12], %12 {strides = array<i32>} : memref<512x128xf32, #tpu.memory_space<vmem>>, vector<512x128xf32>,
    } else {
    }
    %c0 = arith.constant 0 : index
    %c0_1 = arith.constant 0 : index
    %3 = vector.load %arg7[%c0, %c0_1] : memref<512x128xf32, #tpu.memory_space<vmem>>, vector<512x128xf32>
    %c0_2 = arith.constant 0 : index
    %c0_3 = arith.constant 0 : index
    %4 = vector.load %arg2[%c0_2, %c0_3] : memref<512x128xbf16, #tpu.memory_space<vmem>>, vector<512x128xbf16>
    %c0_4 = arith.constant 0 : index
    %c0_5 = arith.constant 0 : index
    %5 = vector.load %arg3[%c0_4, %c0_5] : memref<128x128xbf16, #tpu.memory_space<vmem>>, vector<128x128xbf16>
    %cst = arith.constant dense<0.000000e+00> : vector<512x128xf32>
    %6 = tpu.matmul %4, %5, %cst {dimension_numbers = #tpu.dot_dimension_numbers<[1], [0], [0], [1], [0, 0, 1, 1], [], []>} : vector<512x128xbf16>, vector<128x128xbf16>, vector<512x128xf32> -> vector<512x128xf32>
    %7 = arith.addf %3, %6 : vector<512x128xf32>
    %c0_6 = arith.constant 0 : index
    %c0_7 = arith.constant 0 : index
    %8 = vector.load %arg7[%c0_6, %c0_7] : memref<512x128xf32, #tpu.memory_space<vmem>>, vector<512x128xf32>
    tpu.vector_store %arg7[%c0_6, %c0_7], %7 {strides = array<i32>} : memref<512x128xf32, #tpu.memory_space<vmem>>, vector<512x128xf32>,
    %c0_i32_8 = arith.constant 0 : i32
    %9 = arith.cmpi eq, %arg1, %c0_i32_8 : i32
    %10 = arith.extui %9 : i1 to i32
    %c0_i32_9 = arith.constant 0 : i32
    %11 = arith.cmpi ne, %10, %c0_i32_9 : i32
    scf.if %11 {
      %c0_10 = arith.constant 0 : index
      %c0_11 = arith.constant 0 : index
      %12 = vector.load %arg7[%c0_10, %c0_11] : memref<512x128xf32, #tpu.memory_space<vmem>>, vector<512x128xf32>
      %c0_12 = arith.constant 0 : index
      %c0_13 = arith.constant 0 : index
      %13 = vector.load %arg4[%c0_12, %c0_13] : memref<512x128xf32, #tpu.memory_space<vmem>>, vector<512x128xf32>
      tpu.vector_store %arg4[%c0_12, %c0_13], %12 {strides = array<i32>} : memref<512x128xf32, #tpu.memory_space<vmem>>, vector<512x128xf32>,
      %cst_14 = arith.constant dense<0.000000e+00> : vector<128xf32>
      %14 = vector.multi_reduction <add>, %12, %cst_14 [0] : vector<512x128xf32> to vector<128xf32>
      %15 = vector.shape_cast %14 : vector<128xf32> to vector<1x128xf32>
      %16 = arith.mulf %12, %12 : vector<512x128xf32>
      %cst_15 = arith.constant dense<0.000000e+00> : vector<128xf32>
      %17 = vector.multi_reduction <add>, %16, %cst_15 [0] : vector<512x128xf32> to vector<128xf32>
      %18 = vector.shape_cast %17 : vector<128xf32> to vector<1x128xf32>
      %19 = vector.shape_cast %15 : vector<1x128xf32> to vector<1x1x128xf32>
      %20 = vector.shape_cast %19 : vector<1x1x128xf32> to vector<1x1x128xf32>
      %21 = vector.broadcast %20 : vector<1x1x128xf32> to vector<1x8x128xf32>
      %c0_16 = arith.constant 0 : index
      %c0_17 = arith.constant 0 : index
      %c0_18 = arith.constant 0 : index
      %22 = vector.load %arg5[%c0_16, %c0_17, %c0_18] : memref<1x8x128xf32, #tpu.memory_space<vmem>>, vector<1x8x128xf32>
      tpu.vector_store %arg5[%c0_16, %c0_17, %c0_18], %21 {strides = array<i32>} : memref<1x8x128xf32, #tpu.memory_space<vmem>>, vector<1x8x128xf32>,
      %23 = vector.shape_cast %18 : vector<1x128xf32> to vector<1x1x128xf32>
      %24 = vector.shape_cast %23 : vector<1x1x128xf32> to vector<1x1x128xf32>
      %25 = vector.broadcast %24 : vector<1x1x128xf32> to vector<1x8x128xf32>
      %c0_19 = arith.constant 0 : index
      %c0_20 = arith.constant 0 : index
      %c0_21 = arith.constant 0 : index
      %26 = vector.load %arg6[%c0_19, %c0_20, %c0_21] : memref<1x8x128xf32, #tpu.memory_space<vmem>>, vector<1x8x128xf32>
      tpu.vector_store %arg6[%c0_19, %c0_20, %c0_21], %25 {strides = array<i32>} : memref<1x8x128xf32, #tpu.memory_space<vmem>>, vector<1x8x128xf32>,
    } else {
    }
    return
  }
  func.func @transform_0(%arg0: i32, %arg1: i32) -> (i32, i32) {
    %c0_i32 = arith.constant 0 : i32
    return %arg0, %arg1 : i32, i32
  }
  func.func @transform_1(%arg0: i32, %arg1: i32) -> (i32, i32) {
    %c0_i32 = arith.constant 0 : i32
    %c0_i32_0 = arith.constant 0 : i32
    return %arg1, %c0_i32 : i32, i32
  }
  func.func @transform_2(%arg0: i32, %arg1: i32) -> (i32, i32) {
    %c0_i32 = arith.constant 0 : i32
    %c0_i32_0 = arith.constant 0 : i32
    return %arg0, %c0_i32 : i32, i32
  }
  func.func @transform_3(%arg0: i32, %arg1: i32) -> (i32, i32, i32) {
    %c0_i32 = arith.constant 0 : i32
    %c0_i32_0 = arith.constant 0 : i32
    %c0_i32_1 = arith.constant 0 : i32
    return %arg0, %c0_i32, %c0_i32_0 : i32, i32, i32
  }
  func.func @transform_4(%arg0: i32, %arg1: i32) -> (i32, i32, i32) {
    %c0_i32 = arith.constant 0 : i32
    %c0_i32_0 = arith.constant 0 : i32
    %c0_i32_1 = arith.constant 0 : i32
    return %arg0, %c0_i32, %c0_i32_0 : i32, i32, i32
  }
}

module attributes {stable_mosaic.version = 11 : i64} {
  func.func @bn_relu_kernel(%arg0: i32, %arg1: memref<512x128xf32, #tpu.memory_space<vmem>>, %arg2: memref<1x128xf32, #tpu.memory_space<vmem>>, %arg3: memref<1x128xf32, #tpu.memory_space<vmem>>, %arg4: memref<512x128xbf16, #tpu.memory_space<vmem>>) attributes {dimension_semantics = [#tpu.dimension_semantics<parallel>], iteration_bounds = array<i64: 1>, scalar_prefetch = 0 : i64, scratch_operands = 0 : i64, tpu.core_type = #tpu.core_type<tc>, window_params = [{transform_indices = @transform_0, window_bounds = array<i64: 512, 128>}, {pipeline_mode = #tpu.pipeline_mode<synchronous>, transform_indices = @transform_1, window_bounds = array<i64: 1, 128>}, {pipeline_mode = #tpu.pipeline_mode<synchronous>, transform_indices = @transform_2, window_bounds = array<i64: 1, 128>}, {transform_indices = @transform_3, window_bounds = array<i64: 512, 128>}]} {
    %c0 = arith.constant 0 : index
    %c0_0 = arith.constant 0 : index
    %0 = vector.load %arg1[%c0, %c0_0] : memref<512x128xf32, #tpu.memory_space<vmem>>, vector<512x128xf32>
    %c0_1 = arith.constant 0 : index
    %c0_2 = arith.constant 0 : index
    %1 = vector.load %arg2[%c0_1, %c0_2] : memref<1x128xf32, #tpu.memory_space<vmem>>, vector<1x128xf32>
    %2 = vector.broadcast %1 : vector<1x128xf32> to vector<512x128xf32>
    %3 = arith.mulf %0, %2 : vector<512x128xf32>
    %c0_3 = arith.constant 0 : index
    %c0_4 = arith.constant 0 : index
    %4 = vector.load %arg3[%c0_3, %c0_4] : memref<1x128xf32, #tpu.memory_space<vmem>>, vector<1x128xf32>
    %5 = vector.broadcast %4 : vector<1x128xf32> to vector<512x128xf32>
    %6 = arith.addf %3, %5 : vector<512x128xf32>
    %cst = arith.constant 0.000000e+00 : f32
    %7 = vector.broadcast %cst : f32 to vector<512x128xf32>
    %8 = arith.maximumf %6, %7 : vector<512x128xf32>
    %9 = arith.truncf %8 : vector<512x128xf32> to vector<512x128xbf16>
    %c0_5 = arith.constant 0 : index
    %c0_6 = arith.constant 0 : index
    %10 = vector.load %arg4[%c0_5, %c0_6] : memref<512x128xbf16, #tpu.memory_space<vmem>>, vector<512x128xbf16>
    tpu.vector_store %arg4[%c0_5, %c0_6], %9 {strides = array<i32>} : memref<512x128xbf16, #tpu.memory_space<vmem>>, vector<512x128xbf16>,
    return
  }
  func.func @transform_0(%arg0: i32) -> (i32, i32) {
    %c0_i32 = arith.constant 0 : i32
    %c0_i32_0 = arith.constant 0 : i32
    return %arg0, %c0_i32 : i32, i32
  }
  func.func @transform_1(%arg0: i32) -> (i32, i32) {
    %c0_i32 = arith.constant 0 : i32
    %c0_i32_0 = arith.constant 0 : i32
    %c0_i32_1 = arith.constant 0 : i32
    return %c0_i32, %c0_i32_0 : i32, i32
  }
  func.func @transform_2(%arg0: i32) -> (i32, i32) {
    %c0_i32 = arith.constant 0 : i32
    %c0_i32_0 = arith.constant 0 : i32
    %c0_i32_1 = arith.constant 0 : i32
    return %c0_i32, %c0_i32_0 : i32, i32
  }
  func.func @transform_3(%arg0: i32) -> (i32, i32) {
    %c0_i32 = arith.constant 0 : i32
    %c0_i32_0 = arith.constant 0 : i32
    return %arg0, %c0_i32 : i32, i32
  }
}

module attributes {stable_mosaic.version = 11 : i64} {
  func.func @maxpool_kernel(%arg0: i32, %arg1: memref<16x2x8x2x8xbf16, #tpu.memory_space<vmem>>, %arg2: memref<16x8x8xbf16, #tpu.memory_space<vmem>>) attributes {dimension_semantics = [#tpu.dimension_semantics<parallel>], iteration_bounds = array<i64: 1>, scalar_prefetch = 0 : i64, scratch_operands = 0 : i64, tpu.core_type = #tpu.core_type<tc>, window_params = [{transform_indices = @transform_0, window_bounds = array<i64: 16, 2, 8, 2, 8>}, {transform_indices = @transform_1, window_bounds = array<i64: 16, 8, 8>}]} {
    %c0 = arith.constant 0 : index
    %c0_0 = arith.constant 0 : index
    %c0_1 = arith.constant 0 : index
    %c0_2 = arith.constant 0 : index
    %c0_3 = arith.constant 0 : index
    %0 = vector.load %arg1[%c0, %c0_0, %c0_1, %c0_2, %c0_3] : memref<16x2x8x2x8xbf16, #tpu.memory_space<vmem>>, vector<16x2x8x2x8xbf16>
    %cst = arith.constant dense<0xFF80> : vector<16x2x8x8xbf16>
    %1 = vector.multi_reduction <maximumf>, %0, %cst [3] : vector<16x2x8x2x8xbf16> to vector<16x2x8x8xbf16>
    %cst_4 = arith.constant dense<0xFF80> : vector<16x8x8xbf16>
    %2 = vector.multi_reduction <maximumf>, %1, %cst_4 [1] : vector<16x2x8x8xbf16> to vector<16x8x8xbf16>
    %c0_5 = arith.constant 0 : index
    %c0_6 = arith.constant 0 : index
    %c0_7 = arith.constant 0 : index
    %3 = vector.load %arg2[%c0_5, %c0_6, %c0_7] : memref<16x8x8xbf16, #tpu.memory_space<vmem>>, vector<16x8x8xbf16>
    tpu.vector_store %arg2[%c0_5, %c0_6, %c0_7], %2 {strides = array<i32>} : memref<16x8x8xbf16, #tpu.memory_space<vmem>>, vector<16x8x8xbf16>,
    return
  }
  func.func @transform_0(%arg0: i32) -> (i32, i32, i32, i32, i32) {
    %c0_i32 = arith.constant 0 : i32
    %c0_i32_0 = arith.constant 0 : i32
    %c0_i32_1 = arith.constant 0 : i32
    %c0_i32_2 = arith.constant 0 : i32
    %c0_i32_3 = arith.constant 0 : i32
    return %arg0, %c0_i32, %c0_i32_0, %c0_i32_1, %c0_i32_2 : i32, i32, i32, i32, i32
  }
  func.func @transform_1(%arg0: i32) -> (i32, i32, i32) {
    %c0_i32 = arith.constant 0 : i32
    %c0_i32_0 = arith.constant 0 : i32
    %c0_i32_1 = arith.constant 0 : i32
    return %arg0, %c0_i32, %c0_i32_0 : i32, i32, i32
  }
}

module attributes {stable_mosaic.version = 11 : i64} {
  func.func @conv_matmul_stats_kernel(%arg0: i32, %arg1: i32, %arg2: memref<128x128xbf16, #tpu.memory_space<vmem>>, %arg3: memref<128x128xbf16, #tpu.memory_space<vmem>>, %arg4: memref<128x128xf32, #tpu.memory_space<vmem>>, %arg5: memref<1x8x128xf32, #tpu.memory_space<vmem>>, %arg6: memref<1x8x128xf32, #tpu.memory_space<vmem>>, %arg7: memref<128x128xf32, #tpu.memory_space<vmem>>) attributes {dimension_semantics = [#tpu.dimension_semantics<parallel>, #tpu.dimension_semantics<arbitrary>], iteration_bounds = array<i64: 1, 1>, scalar_prefetch = 0 : i64, scratch_operands = 1 : i64, tpu.core_type = #tpu.core_type<tc>, window_params = [{transform_indices = @transform_0, window_bounds = array<i64: 128, 128>}, {transform_indices = @transform_1, window_bounds = array<i64: 128, 128>}, {transform_indices = @transform_2, window_bounds = array<i64: 128, 128>}, {transform_indices = @transform_3, window_bounds = array<i64: 1, 8, 128>}, {transform_indices = @transform_4, window_bounds = array<i64: 1, 8, 128>}]} {
    %c0_i32 = arith.constant 0 : i32
    %0 = arith.cmpi eq, %arg1, %c0_i32 : i32
    %1 = arith.extui %0 : i1 to i32
    %c0_i32_0 = arith.constant 0 : i32
    %2 = arith.cmpi ne, %1, %c0_i32_0 : i32
    scf.if %2 {
      %cst_10 = arith.constant 0.000000e+00 : f32
      %12 = vector.broadcast %cst_10 : f32 to vector<128x128xf32>
      %c0_11 = arith.constant 0 : index
      %c0_12 = arith.constant 0 : index
      %13 = vector.load %arg7[%c0_11, %c0_12] : memref<128x128xf32, #tpu.memory_space<vmem>>, vector<128x128xf32>
      tpu.vector_store %arg7[%c0_11, %c0_12], %12 {strides = array<i32>} : memref<128x128xf32, #tpu.memory_space<vmem>>, vector<128x128xf32>,
    } else {
    }
    %c0 = arith.constant 0 : index
    %c0_1 = arith.constant 0 : index
    %3 = vector.load %arg7[%c0, %c0_1] : memref<128x128xf32, #tpu.memory_space<vmem>>, vector<128x128xf32>
    %c0_2 = arith.constant 0 : index
    %c0_3 = arith.constant 0 : index
    %4 = vector.load %arg2[%c0_2, %c0_3] : memref<128x128xbf16, #tpu.memory_space<vmem>>, vector<128x128xbf16>
    %c0_4 = arith.constant 0 : index
    %c0_5 = arith.constant 0 : index
    %5 = vector.load %arg3[%c0_4, %c0_5] : memref<128x128xbf16, #tpu.memory_space<vmem>>, vector<128x128xbf16>
    %cst = arith.constant dense<0.000000e+00> : vector<128x128xf32>
    %6 = tpu.matmul %4, %5, %cst {dimension_numbers = #tpu.dot_dimension_numbers<[1], [0], [0], [1], [0, 0, 1, 1], [], []>} : vector<128x128xbf16>, vector<128x128xbf16>, vector<128x128xf32> -> vector<128x128xf32>
    %7 = arith.addf %3, %6 : vector<128x128xf32>
    %c0_6 = arith.constant 0 : index
    %c0_7 = arith.constant 0 : index
    %8 = vector.load %arg7[%c0_6, %c0_7] : memref<128x128xf32, #tpu.memory_space<vmem>>, vector<128x128xf32>
    tpu.vector_store %arg7[%c0_6, %c0_7], %7 {strides = array<i32>} : memref<128x128xf32, #tpu.memory_space<vmem>>, vector<128x128xf32>,
    %c0_i32_8 = arith.constant 0 : i32
    %9 = arith.cmpi eq, %arg1, %c0_i32_8 : i32
    %10 = arith.extui %9 : i1 to i32
    %c0_i32_9 = arith.constant 0 : i32
    %11 = arith.cmpi ne, %10, %c0_i32_9 : i32
    scf.if %11 {
      %c0_10 = arith.constant 0 : index
      %c0_11 = arith.constant 0 : index
      %12 = vector.load %arg7[%c0_10, %c0_11] : memref<128x128xf32, #tpu.memory_space<vmem>>, vector<128x128xf32>
      %c0_12 = arith.constant 0 : index
      %c0_13 = arith.constant 0 : index
      %13 = vector.load %arg4[%c0_12, %c0_13] : memref<128x128xf32, #tpu.memory_space<vmem>>, vector<128x128xf32>
      tpu.vector_store %arg4[%c0_12, %c0_13], %12 {strides = array<i32>} : memref<128x128xf32, #tpu.memory_space<vmem>>, vector<128x128xf32>,
      %cst_14 = arith.constant dense<0.000000e+00> : vector<128xf32>
      %14 = vector.multi_reduction <add>, %12, %cst_14 [0] : vector<128x128xf32> to vector<128xf32>
      %15 = vector.shape_cast %14 : vector<128xf32> to vector<1x128xf32>
      %16 = arith.mulf %12, %12 : vector<128x128xf32>
      %cst_15 = arith.constant dense<0.000000e+00> : vector<128xf32>
      %17 = vector.multi_reduction <add>, %16, %cst_15 [0] : vector<128x128xf32> to vector<128xf32>
      %18 = vector.shape_cast %17 : vector<128xf32> to vector<1x128xf32>
      %19 = vector.shape_cast %15 : vector<1x128xf32> to vector<1x1x128xf32>
      %20 = vector.shape_cast %19 : vector<1x1x128xf32> to vector<1x1x128xf32>
      %21 = vector.broadcast %20 : vector<1x1x128xf32> to vector<1x8x128xf32>
      %c0_16 = arith.constant 0 : index
      %c0_17 = arith.constant 0 : index
      %c0_18 = arith.constant 0 : index
      %22 = vector.load %arg5[%c0_16, %c0_17, %c0_18] : memref<1x8x128xf32, #tpu.memory_space<vmem>>, vector<1x8x128xf32>
      tpu.vector_store %arg5[%c0_16, %c0_17, %c0_18], %21 {strides = array<i32>} : memref<1x8x128xf32, #tpu.memory_space<vmem>>, vector<1x8x128xf32>,
      %23 = vector.shape_cast %18 : vector<1x128xf32> to vector<1x1x128xf32>
      %24 = vector.shape_cast %23 : vector<1x1x128xf32> to vector<1x1x128xf32>
      %25 = vector.broadcast %24 : vector<1x1x128xf32> to vector<1x8x128xf32>
      %c0_19 = arith.constant 0 : index
      %c0_20 = arith.constant 0 : index
      %c0_21 = arith.constant 0 : index
      %26 = vector.load %arg6[%c0_19, %c0_20, %c0_21] : memref<1x8x128xf32, #tpu.memory_space<vmem>>, vector<1x8x128xf32>
      tpu.vector_store %arg6[%c0_19, %c0_20, %c0_21], %25 {strides = array<i32>} : memref<1x8x128xf32, #tpu.memory_space<vmem>>, vector<1x8x128xf32>,
    } else {
    }
    return
  }
  func.func @transform_0(%arg0: i32, %arg1: i32) -> (i32, i32) {
    %c0_i32 = arith.constant 0 : i32
    return %arg0, %arg1 : i32, i32
  }
  func.func @transform_1(%arg0: i32, %arg1: i32) -> (i32, i32) {
    %c0_i32 = arith.constant 0 : i32
    %c0_i32_0 = arith.constant 0 : i32
    return %arg1, %c0_i32 : i32, i32
  }
  func.func @transform_2(%arg0: i32, %arg1: i32) -> (i32, i32) {
    %c0_i32 = arith.constant 0 : i32
    %c0_i32_0 = arith.constant 0 : i32
    return %arg0, %c0_i32 : i32, i32
  }
  func.func @transform_3(%arg0: i32, %arg1: i32) -> (i32, i32, i32) {
    %c0_i32 = arith.constant 0 : i32
    %c0_i32_0 = arith.constant 0 : i32
    %c0_i32_1 = arith.constant 0 : i32
    return %arg0, %c0_i32, %c0_i32_0 : i32, i32, i32
  }
  func.func @transform_4(%arg0: i32, %arg1: i32) -> (i32, i32, i32) {
    %c0_i32 = arith.constant 0 : i32
    %c0_i32_0 = arith.constant 0 : i32
    %c0_i32_1 = arith.constant 0 : i32
    return %arg0, %c0_i32, %c0_i32_0 : i32, i32, i32
  }
}

module attributes {stable_mosaic.version = 11 : i64} {
  func.func @bn_relu_kernel(%arg0: i32, %arg1: memref<128x128xf32, #tpu.memory_space<vmem>>, %arg2: memref<1x128xf32, #tpu.memory_space<vmem>>, %arg3: memref<1x128xf32, #tpu.memory_space<vmem>>, %arg4: memref<128x128xbf16, #tpu.memory_space<vmem>>) attributes {dimension_semantics = [#tpu.dimension_semantics<parallel>], iteration_bounds = array<i64: 1>, scalar_prefetch = 0 : i64, scratch_operands = 0 : i64, tpu.core_type = #tpu.core_type<tc>, window_params = [{transform_indices = @transform_0, window_bounds = array<i64: 128, 128>}, {pipeline_mode = #tpu.pipeline_mode<synchronous>, transform_indices = @transform_1, window_bounds = array<i64: 1, 128>}, {pipeline_mode = #tpu.pipeline_mode<synchronous>, transform_indices = @transform_2, window_bounds = array<i64: 1, 128>}, {transform_indices = @transform_3, window_bounds = array<i64: 128, 128>}]} {
    %c0 = arith.constant 0 : index
    %c0_0 = arith.constant 0 : index
    %0 = vector.load %arg1[%c0, %c0_0] : memref<128x128xf32, #tpu.memory_space<vmem>>, vector<128x128xf32>
    %c0_1 = arith.constant 0 : index
    %c0_2 = arith.constant 0 : index
    %1 = vector.load %arg2[%c0_1, %c0_2] : memref<1x128xf32, #tpu.memory_space<vmem>>, vector<1x128xf32>
    %2 = vector.broadcast %1 : vector<1x128xf32> to vector<128x128xf32>
    %3 = arith.mulf %0, %2 : vector<128x128xf32>
    %c0_3 = arith.constant 0 : index
    %c0_4 = arith.constant 0 : index
    %4 = vector.load %arg3[%c0_3, %c0_4] : memref<1x128xf32, #tpu.memory_space<vmem>>, vector<1x128xf32>
    %5 = vector.broadcast %4 : vector<1x128xf32> to vector<128x128xf32>
    %6 = arith.addf %3, %5 : vector<128x128xf32>
    %cst = arith.constant 0.000000e+00 : f32
    %7 = vector.broadcast %cst : f32 to vector<128x128xf32>
    %8 = arith.maximumf %6, %7 : vector<128x128xf32>
    %9 = arith.truncf %8 : vector<128x128xf32> to vector<128x128xbf16>
    %c0_5 = arith.constant 0 : index
    %c0_6 = arith.constant 0 : index
    %10 = vector.load %arg4[%c0_5, %c0_6] : memref<128x128xbf16, #tpu.memory_space<vmem>>, vector<128x128xbf16>
    tpu.vector_store %arg4[%c0_5, %c0_6], %9 {strides = array<i32>} : memref<128x128xbf16, #tpu.memory_space<vmem>>, vector<128x128xbf16>,
    return
  }
  func.func @transform_0(%arg0: i32) -> (i32, i32) {
    %c0_i32 = arith.constant 0 : i32
    %c0_i32_0 = arith.constant 0 : i32
    return %arg0, %c0_i32 : i32, i32
  }
  func.func @transform_1(%arg0: i32) -> (i32, i32) {
    %c0_i32 = arith.constant 0 : i32
    %c0_i32_0 = arith.constant 0 : i32
    %c0_i32_1 = arith.constant 0 : i32
    return %c0_i32, %c0_i32_0 : i32, i32
  }
  func.func @transform_2(%arg0: i32) -> (i32, i32) {
    %c0_i32 = arith.constant 0 : i32
    %c0_i32_0 = arith.constant 0 : i32
    %c0_i32_1 = arith.constant 0 : i32
    return %c0_i32, %c0_i32_0 : i32, i32
  }
  func.func @transform_3(%arg0: i32) -> (i32, i32) {
    %c0_i32 = arith.constant 0 : i32
    %c0_i32_0 = arith.constant 0 : i32
    return %arg0, %c0_i32 : i32, i32
  }
}

module attributes {stable_mosaic.version = 11 : i64} {
  func.func @conv_matmul_stats_kernel(%arg0: i32, %arg1: i32, %arg2: memref<32x128xbf16, #tpu.memory_space<vmem>>, %arg3: memref<128x128xbf16, #tpu.memory_space<vmem>>, %arg4: memref<32x128xf32, #tpu.memory_space<vmem>>, %arg5: memref<1x8x128xf32, #tpu.memory_space<vmem>>, %arg6: memref<1x8x128xf32, #tpu.memory_space<vmem>>, %arg7: memref<32x128xf32, #tpu.memory_space<vmem>>) attributes {dimension_semantics = [#tpu.dimension_semantics<parallel>, #tpu.dimension_semantics<arbitrary>], iteration_bounds = array<i64: 1, 1>, scalar_prefetch = 0 : i64, scratch_operands = 1 : i64, tpu.core_type = #tpu.core_type<tc>, window_params = [{transform_indices = @transform_0, window_bounds = array<i64: 32, 128>}, {transform_indices = @transform_1, window_bounds = array<i64: 128, 128>}, {transform_indices = @transform_2, window_bounds = array<i64: 32, 128>}, {transform_indices = @transform_3, window_bounds = array<i64: 1, 8, 128>}, {transform_indices = @transform_4, window_bounds = array<i64: 1, 8, 128>}]} {
    %c0_i32 = arith.constant 0 : i32
    %0 = arith.cmpi eq, %arg1, %c0_i32 : i32
    %1 = arith.extui %0 : i1 to i32
    %c0_i32_0 = arith.constant 0 : i32
    %2 = arith.cmpi ne, %1, %c0_i32_0 : i32
    scf.if %2 {
      %cst_10 = arith.constant 0.000000e+00 : f32
      %12 = vector.broadcast %cst_10 : f32 to vector<32x128xf32>
      %c0_11 = arith.constant 0 : index
      %c0_12 = arith.constant 0 : index
      %13 = vector.load %arg7[%c0_11, %c0_12] : memref<32x128xf32, #tpu.memory_space<vmem>>, vector<32x128xf32>
      tpu.vector_store %arg7[%c0_11, %c0_12], %12 {strides = array<i32>} : memref<32x128xf32, #tpu.memory_space<vmem>>, vector<32x128xf32>,
    } else {
    }
    %c0 = arith.constant 0 : index
    %c0_1 = arith.constant 0 : index
    %3 = vector.load %arg7[%c0, %c0_1] : memref<32x128xf32, #tpu.memory_space<vmem>>, vector<32x128xf32>
    %c0_2 = arith.constant 0 : index
    %c0_3 = arith.constant 0 : index
    %4 = vector.load %arg2[%c0_2, %c0_3] : memref<32x128xbf16, #tpu.memory_space<vmem>>, vector<32x128xbf16>
    %c0_4 = arith.constant 0 : index
    %c0_5 = arith.constant 0 : index
    %5 = vector.load %arg3[%c0_4, %c0_5] : memref<128x128xbf16, #tpu.memory_space<vmem>>, vector<128x128xbf16>
    %cst = arith.constant dense<0.000000e+00> : vector<32x128xf32>
    %6 = tpu.matmul %4, %5, %cst {dimension_numbers = #tpu.dot_dimension_numbers<[1], [0], [0], [1], [0, 0, 1, 1], [], []>} : vector<32x128xbf16>, vector<128x128xbf16>, vector<32x128xf32> -> vector<32x128xf32>
    %7 = arith.addf %3, %6 : vector<32x128xf32>
    %c0_6 = arith.constant 0 : index
    %c0_7 = arith.constant 0 : index
    %8 = vector.load %arg7[%c0_6, %c0_7] : memref<32x128xf32, #tpu.memory_space<vmem>>, vector<32x128xf32>
    tpu.vector_store %arg7[%c0_6, %c0_7], %7 {strides = array<i32>} : memref<32x128xf32, #tpu.memory_space<vmem>>, vector<32x128xf32>,
    %c0_i32_8 = arith.constant 0 : i32
    %9 = arith.cmpi eq, %arg1, %c0_i32_8 : i32
    %10 = arith.extui %9 : i1 to i32
    %c0_i32_9 = arith.constant 0 : i32
    %11 = arith.cmpi ne, %10, %c0_i32_9 : i32
    scf.if %11 {
      %c0_10 = arith.constant 0 : index
      %c0_11 = arith.constant 0 : index
      %12 = vector.load %arg7[%c0_10, %c0_11] : memref<32x128xf32, #tpu.memory_space<vmem>>, vector<32x128xf32>
      %c0_12 = arith.constant 0 : index
      %c0_13 = arith.constant 0 : index
      %13 = vector.load %arg4[%c0_12, %c0_13] : memref<32x128xf32, #tpu.memory_space<vmem>>, vector<32x128xf32>
      tpu.vector_store %arg4[%c0_12, %c0_13], %12 {strides = array<i32>} : memref<32x128xf32, #tpu.memory_space<vmem>>, vector<32x128xf32>,
      %cst_14 = arith.constant dense<0.000000e+00> : vector<128xf32>
      %14 = vector.multi_reduction <add>, %12, %cst_14 [0] : vector<32x128xf32> to vector<128xf32>
      %15 = vector.shape_cast %14 : vector<128xf32> to vector<1x128xf32>
      %16 = arith.mulf %12, %12 : vector<32x128xf32>
      %cst_15 = arith.constant dense<0.000000e+00> : vector<128xf32>
      %17 = vector.multi_reduction <add>, %16, %cst_15 [0] : vector<32x128xf32> to vector<128xf32>
      %18 = vector.shape_cast %17 : vector<128xf32> to vector<1x128xf32>
      %19 = vector.shape_cast %15 : vector<1x128xf32> to vector<1x1x128xf32>
      %20 = vector.shape_cast %19 : vector<1x1x128xf32> to vector<1x1x128xf32>
      %21 = vector.broadcast %20 : vector<1x1x128xf32> to vector<1x8x128xf32>
      %c0_16 = arith.constant 0 : index
      %c0_17 = arith.constant 0 : index
      %c0_18 = arith.constant 0 : index
      %22 = vector.load %arg5[%c0_16, %c0_17, %c0_18] : memref<1x8x128xf32, #tpu.memory_space<vmem>>, vector<1x8x128xf32>
      tpu.vector_store %arg5[%c0_16, %c0_17, %c0_18], %21 {strides = array<i32>} : memref<1x8x128xf32, #tpu.memory_space<vmem>>, vector<1x8x128xf32>,
      %23 = vector.shape_cast %18 : vector<1x128xf32> to vector<1x1x128xf32>
      %24 = vector.shape_cast %23 : vector<1x1x128xf32> to vector<1x1x128xf32>
      %25 = vector.broadcast %24 : vector<1x1x128xf32> to vector<1x8x128xf32>
      %c0_19 = arith.constant 0 : index
      %c0_20 = arith.constant 0 : index
      %c0_21 = arith.constant 0 : index
      %26 = vector.load %arg6[%c0_19, %c0_20, %c0_21] : memref<1x8x128xf32, #tpu.memory_space<vmem>>, vector<1x8x128xf32>
      tpu.vector_store %arg6[%c0_19, %c0_20, %c0_21], %25 {strides = array<i32>} : memref<1x8x128xf32, #tpu.memory_space<vmem>>, vector<1x8x128xf32>,
    } else {
    }
    return
  }
  func.func @transform_0(%arg0: i32, %arg1: i32) -> (i32, i32) {
    %c0_i32 = arith.constant 0 : i32
    return %arg0, %arg1 : i32, i32
  }
  func.func @transform_1(%arg0: i32, %arg1: i32) -> (i32, i32) {
    %c0_i32 = arith.constant 0 : i32
    %c0_i32_0 = arith.constant 0 : i32
    return %arg1, %c0_i32 : i32, i32
  }
  func.func @transform_2(%arg0: i32, %arg1: i32) -> (i32, i32) {
    %c0_i32 = arith.constant 0 : i32
    %c0_i32_0 = arith.constant 0 : i32
    return %arg0, %c0_i32 : i32, i32
  }
  func.func @transform_3(%arg0: i32, %arg1: i32) -> (i32, i32, i32) {
    %c0_i32 = arith.constant 0 : i32
    %c0_i32_0 = arith.constant 0 : i32
    %c0_i32_1 = arith.constant 0 : i32
    return %arg0, %c0_i32, %c0_i32_0 : i32, i32, i32
  }
  func.func @transform_4(%arg0: i32, %arg1: i32) -> (i32, i32, i32) {
    %c0_i32 = arith.constant 0 : i32
    %c0_i32_0 = arith.constant 0 : i32
    %c0_i32_1 = arith.constant 0 : i32
    return %arg0, %c0_i32, %c0_i32_0 : i32, i32, i32
  }
}

module attributes {stable_mosaic.version = 11 : i64} {
  func.func @bn_relu_kernel(%arg0: i32, %arg1: memref<32x128xf32, #tpu.memory_space<vmem>>, %arg2: memref<1x128xf32, #tpu.memory_space<vmem>>, %arg3: memref<1x128xf32, #tpu.memory_space<vmem>>, %arg4: memref<32x128xbf16, #tpu.memory_space<vmem>>) attributes {dimension_semantics = [#tpu.dimension_semantics<parallel>], iteration_bounds = array<i64: 1>, scalar_prefetch = 0 : i64, scratch_operands = 0 : i64, tpu.core_type = #tpu.core_type<tc>, window_params = [{transform_indices = @transform_0, window_bounds = array<i64: 32, 128>}, {pipeline_mode = #tpu.pipeline_mode<synchronous>, transform_indices = @transform_1, window_bounds = array<i64: 1, 128>}, {pipeline_mode = #tpu.pipeline_mode<synchronous>, transform_indices = @transform_2, window_bounds = array<i64: 1, 128>}, {transform_indices = @transform_3, window_bounds = array<i64: 32, 128>}]} {
    %c0 = arith.constant 0 : index
    %c0_0 = arith.constant 0 : index
    %0 = vector.load %arg1[%c0, %c0_0] : memref<32x128xf32, #tpu.memory_space<vmem>>, vector<32x128xf32>
    %c0_1 = arith.constant 0 : index
    %c0_2 = arith.constant 0 : index
    %1 = vector.load %arg2[%c0_1, %c0_2] : memref<1x128xf32, #tpu.memory_space<vmem>>, vector<1x128xf32>
    %2 = vector.broadcast %1 : vector<1x128xf32> to vector<32x128xf32>
    %3 = arith.mulf %0, %2 : vector<32x128xf32>
    %c0_3 = arith.constant 0 : index
    %c0_4 = arith.constant 0 : index
    %4 = vector.load %arg3[%c0_3, %c0_4] : memref<1x128xf32, #tpu.memory_space<vmem>>, vector<1x128xf32>
    %5 = vector.broadcast %4 : vector<1x128xf32> to vector<32x128xf32>
    %6 = arith.addf %3, %5 : vector<32x128xf32>
    %cst = arith.constant 0.000000e+00 : f32
    %7 = vector.broadcast %cst : f32 to vector<32x128xf32>
    %8 = arith.maximumf %6, %7 : vector<32x128xf32>
    %9 = arith.truncf %8 : vector<32x128xf32> to vector<32x128xbf16>
    %c0_5 = arith.constant 0 : index
    %c0_6 = arith.constant 0 : index
    %10 = vector.load %arg4[%c0_5, %c0_6] : memref<32x128xbf16, #tpu.memory_space<vmem>>, vector<32x128xbf16>
    tpu.vector_store %arg4[%c0_5, %c0_6], %9 {strides = array<i32>} : memref<32x128xbf16, #tpu.memory_space<vmem>>, vector<32x128xbf16>,
    return
  }
  func.func @transform_0(%arg0: i32) -> (i32, i32) {
    %c0_i32 = arith.constant 0 : i32
    %c0_i32_0 = arith.constant 0 : i32
    return %arg0, %c0_i32 : i32, i32
  }
  func.func @transform_1(%arg0: i32) -> (i32, i32) {
    %c0_i32 = arith.constant 0 : i32
    %c0_i32_0 = arith.constant 0 : i32
    %c0_i32_1 = arith.constant 0 : i32
    return %c0_i32, %c0_i32_0 : i32, i32
  }
  func.func @transform_2(%arg0: i32) -> (i32, i32) {
    %c0_i32 = arith.constant 0 : i32
    %c0_i32_0 = arith.constant 0 : i32
    %c0_i32_1 = arith.constant 0 : i32
    return %c0_i32, %c0_i32_0 : i32, i32
  }
  func.func @transform_3(%arg0: i32) -> (i32, i32) {
    %c0_i32 = arith.constant 0 : i32
    %c0_i32_0 = arith.constant 0 : i32
    return %arg0, %c0_i32 : i32, i32
  }
}

</mosaic_0001>

<llo_original>
// kernel: darknet_forward.13
$region0: #{darknet_forward.13}
  #allocation0 [shape = 'u32[]', space=smem, size = 0x4, offset = 0x4, fixed_abs, tag = 'smem constant byte address 0x4 - core index']
  #allocation1 [shape = 'u32[144,128]{1,0:T(1,128)}', space=vmem, size = 0x12000, scoped, tag = 'internal scratch']
  #allocation2 [shape = 'f32[512,128]{1,0:T(8,128)}', space=vmem, size = 0x40000, scoped, tag = 'scratch operand']
  %s0 = inlined_call_operand.vmem [shape: bf16[512,128], index: 0, kind: input, shape index: {}]
  %s1 = inlined_call_operand.vmem [shape: bf16[128,128], index: 1, kind: input, shape index: {}]
  %s2 = inlined_call_operand.vmem [shape: f32[512,128], index: 2, kind: output, shape index: {0}]
  %s3 = inlined_call_operand.vmem [shape: f32[1,8,128], index: 3, kind: output, shape index: {1}]
  %s4 = inlined_call_operand.vmem [shape: f32[1,8,128], index: 4, kind: output, shape index: {2}]
  %5 = xla_tuple %s2, %s3, %s4
  %s6 = sld [smem:[#allocation0]]
  $region42: #{darknet_forward.13} parent=0
    _
  %s8 = ssub.s32 1, %s6
  %s9 = scalar_select 0, %s8, %s6
  // Predicated region
  $region2: #{darknet_forward.13} parent=0 // pred_check
    _
  $region3: #{darknet_forward.13} parent=0 // pred_check_branch
    %11 = sbr.rel (0) target = $region5
  $region4: #{darknet_forward.13} parent=0 // pred_region
    _
  $region5: #{darknet_forward.13} parent=0 // pred_fallthru
    _
  // Predicated region
  $region6: #{darknet_forward.13} parent=0 // pred_check
    _
  $region7: #{darknet_forward.13} parent=0 // pred_check_branch
    %13 = sbr.rel (0) target = $region9
  $region8: #{darknet_forward.13} parent=0 // pred_region
    _
  $region9: #{darknet_forward.13} parent=0 // pred_fallthru
    _
  %p15 = scmp.eq.s32.totalorder 0, 0
  // Predicated region
  $region10: #{darknet_forward.13} parent=0 // pred_check
    %p16 = pneg %p15
  $region11: #{darknet_forward.13} parent=0 // pred_check_branch
    %18 = sbr.rel (%p16) target = $region13
  $region12: #{darknet_forward.13} parent=0 // pred_region
    %19 = vst [vmem:[#allocation2] sm:$0xff] 0.0
    %20 = vst [vmem:[#allocation2 + $0x8] sm:$0xff] 0.0
    %21 = vst [vmem:[#allocation2 + $0x10] sm:$0xff] 0.0
    %22 = vst [vmem:[#allocation2 + $0x18] sm:$0xff] 0.0
    %23 = vst [vmem:[#allocation2 + $0x20] sm:$0xff] 0.0
    %24 = vst [vmem:[#allocation2 + $0x28] sm:$0xff] 0.0
    %25 = vst [vmem:[#allocation2 + $0x30] sm:$0xff] 0.0
    %26 = vst [vmem:[#allocation2 + $0x38] sm:$0xff] 0.0
    %27 = vst [vmem:[#allocation2 + $0x40] sm:$0xff] 0.0
    %28 = vst [vmem:[#allocation2 + $0x48] sm:$0xff] 0.0
    %29 = vst [vmem:[#allocation2 + $0x50] sm:$0xff] 0.0
    %30 = vst [vmem:[#allocation2 + $0x58] sm:$0xff] 0.0
    %31 = vst [vmem:[#allocation2 + $0x60] sm:$0xff] 0.0
    %32 = vst [vmem:[#allocation2 + $0x68] sm:$0xff] 0.0
    %33 = vst [vmem:[#allocation2 + $0x70] sm:$0xff] 0.0
    %34 = vst [vmem:[#allocation2 + $0x78] sm:$0xff] 0.0
    %35 = vst [vmem:[#allocation2 + $0x80] sm:$0xff] 0.0
    %36 = vst [vmem:[#allocation2 + $0x88] sm:$0xff] 0.0
    %37 = vst [vmem:[#allocation2 + $0x90] sm:$0xff] 0.0
    %38 = vst [vmem:[#allocation2 + $0x98] sm:$0xff] 0.0
    %39 = vst [vmem:[#allocation2 + $0xa0] sm:$0xff] 0.0
    %40 = vst [vmem:[#allocation2 + $0xa8] sm:$0xff] 0.0
    %41 = vst [vmem:[#allocation2 + $0xb0] sm:$0xff] 0.0
    %42 = vst [vmem:[#allocation2 + $0xb8] sm:$0xff] 0.0
    %43 = vst [vmem:[#allocation2 + $0xc0] sm:$0xff] 0.0
    %44 = vst [vmem:[#allocation2 + $0xc8] sm:$0xff] 0.0
    %45 = vst [vmem:[#allocation2 + $0xd0] sm:$0xff] 0.0
    %46 = vst [vmem:[#allocation2 + $0xd8] sm:$0xff] 0.0
    %47 = vst [vmem:[#allocation2 + $0xe0] sm:$0xff] 0.0
    %48 = vst [vmem:[#allocation2 + $0xe8] sm:$0xff] 0.0
    %49 = vst [vmem:[#allocation2 + $0xf0] sm:$0xff] 0.0
    %50 = vst [vmem:[#allocation2 + $0xf8] sm:$0xff] 0.0
    %51 = vst [vmem:[#allocation2 + $0x100] sm:$0xff] 0.0
    %52 = vst [vmem:[#allocation2 + $0x108] sm:$0xff] 0.0
    %53 = vst [vmem:[#allocation2 + $0x110] sm:$0xff] 0.0
    %54 = vst [vmem:[#allocation2 + $0x118] sm:$0xff] 0.0
    %55 = vst [vmem:[#allocation2 + $0x120] sm:$0xff] 0.0
    %56 = vst [vmem:[#allocation2 + $0x128] sm:$0xff] 0.0
    %57 = vst [vmem:[#allocation2 + $0x130] sm:$0xff] 0.0
    %58 = vst [vmem:[#allocation2 + $0x138] sm:$0xff] 0.0
    %59 = vst [vmem:[#allocation2 + $0x140] sm:$0xff] 0.0
    %60 = vst [vmem:[#allocation2 + $0x148] sm:$0xff] 0.0
    %61 = vst [vmem:[#allocation2 + $0x150] sm:$0xff] 0.0
    %62 = vst [vmem:[#allocation2 + $0x158] sm:$0xff] 0.0
    %63 = vst [vmem:[#allocation2 + $0x160] sm:$0xff] 0.0
    %64 = vst [vmem:[#allocation2 + $0x168] sm:$0xff] 0.0
    %65 = vst [vmem:[#allocation2 + $0x170] sm:$0xff] 0.0
    %66 = vst [vmem:[#allocation2 + $0x178] sm:$0xff] 0.0
    %67 = vst [vmem:[#allocation2 + $0x180] sm:$0xff] 0.0
    %68 = vst [vmem:[#allocation2 + $0x188] sm:$0xff] 0.0
    %69 = vst [vmem:[#allocation2 + $0x190] sm:$0xff] 0.0
    %70 = vst [vmem:[#allocation2 + $0x198] sm:$0xff] 0.0
    %71 = vst [vmem:[#allocation2 + $0x1a0] sm:$0xff] 0.0
    %72 = vst [vmem:[#allocation2 + $0x1a8] sm:$0xff] 0.0
    %73 = vst [vmem:[#allocation2 + $0x1b0] sm:$0xff] 0.0
    %74 = vst [vmem:[#allocation2 + $0x1b8] sm:$0xff] 0.0
    %75 = vst [vmem:[#allocation2 + $0x1c0] sm:$0xff] 0.0
    %76 = vst [vmem:[#allocation2 + $0x1c8] sm:$0xff] 0.0
    %77 = vst [vmem:[#allocation2 + $0x1d0] sm:$0xff] 0.0
    %78 = vst [vmem:[#allocation2 + $0x1d8] sm:$0xff] 0.0
    %79 = vst [vmem:[#allocation2 + $0x1e0] sm:$0xff] 0.0
    %80 = vst [vmem:[#allocation2 + $0x1e8] sm:$0xff] 0.0
    %81 = vst [vmem:[#allocation2 + $0x1f0] sm:$0xff] 0.0
    %82 = vst [vmem:[#allocation2 + $0x1f8] sm:$0xff] 0.0
  $region13: #{darknet_forward.13} parent=0 // pred_fallthru
    _
  %v83 = vld [vmem:[#allocation2] sm:$0xff]
  %v84 = vld [vmem:[#allocation2 + $0x8] sm:$0xff]
  %v85 = vld [vmem:[#allocation2 + $0x10] sm:$0xff]
  %v86 = vld [vmem:[#allocation2 + $0x18] sm:$0xff]
  %v87 = vld [vmem:[#allocation2 + $0x20] sm:$0xff]
  %v88 = vld [vmem:[#allocation2 + $0x28] sm:$0xff]
  %v89 = vld [vmem:[#allocation2 + $0x30] sm:$0xff]
  %v90 = vld [vmem:[#allocation2 + $0x38] sm:$0xff]
  %v91 = vld [vmem:[#allocation2 + $0x40] sm:$0xff]
  %v92 = vld [vmem:[#allocation2 + $0x48] sm:$0xff]
  %v93 = vld [vmem:[#allocation2 + $0x50] sm:$0xff]
  %v94 = vld [vmem:[#allocation2 + $0x58] sm:$0xff]
  %v95 = vld [vmem:[#allocation2 + $0x60] sm:$0xff]
  %v96 = vld [vmem:[#allocation2 + $0x68] sm:$0xff]
  %v97 = vld [vmem:[#allocation2 + $0x70] sm:$0xff]
  %v98 = vld [vmem:[#allocation2 + $0x78] sm:$0xff]
  %v99 = vld [vmem:[#allocation2 + $0x80] sm:$0xff]
  %v100 = vld [vmem:[#allocation2 + $0x88] sm:$0xff]
  %v101 = vld [vmem:[#allocation2 + $0x90] sm:$0xff]
  %v102 = vld [vmem:[#allocation2 + $0x98] sm:$0xff]
  %v103 = vld [vmem:[#allocation2 + $0xa0] sm:$0xff]
  %v104 = vld [vmem:[#allocation2 + $0xa8] sm:$0xff]
  %v105 = vld [vmem:[#allocation2 + $0xb0] sm:$0xff]
  %v106 = vld [vmem:[#allocation2 + $0xb8] sm:$0xff]
  %v107 = vld [vmem:[#allocation2 + $0xc0] sm:$0xff]
  %v108 = vld [vmem:[#allocation2 + $0xc8] sm:$0xff]
  %v109 = vld [vmem:[#allocation2 + $0xd0] sm:$0xff]
  %v110 = vld [vmem:[#allocation2 + $0xd8] sm:$0xff]
  %v111 = vld [vmem:[#allocation2 + $0xe0] sm:$0xff]
  %v112 = vld [vmem:[#allocation2 + $0xe8] sm:$0xff]
  %v113 = vld [vmem:[#allocation2 + $0xf0] sm:$0xff]
  %v114 = vld [vmem:[#allocation2 + $0xf8] sm:$0xff]
  %v115 = vld [vmem:[#allocation2 + $0x100] sm:$0xff]
  %v116 = vld [vmem:[#allocation2 + $0x108] sm:$0xff]
  %v117 = vld [vmem:[#allocation2 + $0x110] sm:$0xff]
  %v118 = vld [vmem:[#allocation2 + $0x118] sm:$0xff]
  %v119 = vld [vmem:[#allocation2 + $0x120] sm:$0xff]
  %v120 = vld [vmem:[#allocation2 + $0x128] sm:$0xff]
  %v121 = vld [vmem:[#allocation2 + $0x130] sm:$0xff]
  %v122 = vld [vmem:[#allocation2 + $0x138] sm:$0xff]
  %v123 = vld [vmem:[#allocation2 + $0x140] sm:$0xff]
  %v124 = vld [vmem:[#allocation2 + $0x148] sm:$0xff]
  %v125 = vld [vmem:[#allocation2 + $0x150] sm:$0xff]
  %v126 = vld [vmem:[#allocation2 + $0x158] sm:$0xff]
  %v127 = vld [vmem:[#allocation2 + $0x160] sm:$0xff]
  %v128 = vld [vmem:[#allocation2 + $0x168] sm:$0xff]
  %v129 = vld [vmem:[#allocation2 + $0x170] sm:$0xff]
  %v130 = vld [vmem:[#allocation2 + $0x178] sm:$0xff]
  %v131 = vld [vmem:[#allocation2 + $0x180] sm:$0xff]
  %v132 = vld [vmem:[#allocation2 + $0x188] sm:$0xff]
  %v133 = vld [vmem:[#allocation2 + $0x190] sm:$0xff]
  %v134 = vld [vmem:[#allocation2 + $0x198] sm:$0xff]
  %v135 = vld [vmem:[#allocation2 + $0x1a0] sm:$0xff]
  %v136 = vld [vmem:[#allocation2 + $0x1a8] sm:$0xff]
  %v137 = vld [vmem:[#allocation2 + $0x1b0] sm:$0xff]
  %v138 = vld [vmem:[#allocation2 + $0x1b8] sm:$0xff]
  %v139 = vld [vmem:[#allocation2 + $0x1c0] sm:$0xff]
  %v140 = vld [vmem:[#allocation2 + $0x1c8] sm:$0xff]
  %v141 = vld [vmem:[#allocation2 + $0x1d0] sm:$0xff]
  %v142 = vld [vmem:[#allocation2 + $0x1d8] sm:$0xff]
  %v143 = vld [vmem:[#allocation2 + $0x1e0] sm:$0xff]
  %v144 = vld [vmem:[#allocation2 + $0x1e8] sm:$0xff]
  %v145 = vld [vmem:[#allocation2 + $0x1f0] sm:$0xff]
  %v146 = vld [vmem:[#allocation2 + $0x1f8] sm:$0xff]
  %v147 = vld [vmem:[%s0] sm:$0xf]
  %v148 = vld [vmem:[%s0 + $0x4] sm:$0xf]
  %v149 = vld [vmem:[%s0 + $0x8] sm:$0xf]
  %v150 = vld [vmem:[%s0 + $0xc] sm:$0xf]
  %v151 = vld [vmem:[%s0 + $0x10] sm:$0xf]
  %v152 = vld [vmem:[%s0 + $0x14] sm:$0xf]
  %v153 = vld [vmem:[%s0 + $0x18] sm:$0xf]
  %v154 = vld [vmem:[%s0 + $0x1c] sm:$0xf]
  %v155 = vld [vmem:[%s0 + $0x20] sm:$0xf]
  %v156 = vld [vmem:[%s0 + $0x24] sm:$0xf]
  %v157 = vld [vmem:[%s0 + $0x28] sm:$0xf]
  %v158 = vld [vmem:[%s0 + $0x2c] sm:$0xf]
  %v159 = vld [vmem:[%s0 + $0x30] sm:$0xf]
  %v160 = vld [vmem:[%s0 + $0x34] sm:$0xf]
  %v161 = vld [vmem:[%s0 + $0x38] sm:$0xf]
  %v162 = vld [vmem:[%s0 + $0x3c] sm:$0xf]
  %v163 = vld [vmem:[%s0 + $0x40] sm:$0xf]
  %v164 = vld [vmem:[%s0 + $0x44] sm:$0xf]
  %v165 = vld [vmem:[%s0 + $0x48] sm:$0xf]
  %v166 = vld [vmem:[%s0 + $0x4c] sm:$0xf]
  %v167 = vld [vmem:[%s0 + $0x50] sm:$0xf]
  %v168 = vld [vmem:[%s0 + $0x54] sm:$0xf]
  %v169 = vld [vmem:[%s0 + $0x58] sm:$0xf]
  %v170 = vld [vmem:[%s0 + $0x5c] sm:$0xf]
  %v171 = vld [vmem:[%s0 + $0x60] sm:$0xf]
  %v172 = vld [vmem:[%s0 + $0x64] sm:$0xf]
  %v173 = vld [vmem:[%s0 + $0x68] sm:$0xf]
  %v174 = vld [vmem:[%s0 + $0x6c] sm:$0xf]
  %v175 = vld [vmem:[%s0 + $0x70] sm:$0xf]
  %v176 = vld [vmem:[%s0 + $0x74] sm:$0xf]
  %v177 = vld [vmem:[%s0 + $0x78] sm:$0xf]
  %v178 = vld [vmem:[%s0 + $0x7c] sm:$0xf]
  %v179 = vld [vmem:[%s0 + $0x80] sm:$0xf]
  %v180 = vld [vmem:[%s0 + $0x84] sm:$0xf]
  %v181 = vld [vmem:[%s0 + $0x88] sm:$0xf]
  %v182 = vld [vmem:[%s0 + $0x8c] sm:$0xf]
  %v183 = vld [vmem:[%s0 + $0x90] sm:$0xf]
  %v184 = vld [vmem:[%s0 + $0x94] sm:$0xf]
  %v185 = vld [vmem:[%s0 + $0x98] sm:$0xf]
  %v186 = vld [vmem:[%s0 + $0x9c] sm:$0xf]
  %v187 = vld [vmem:[%s0 + $0xa0] sm:$0xf]
  %v188 = vld [vmem:[%s0 + $0xa4] sm:$0xf]
  %v189 = vld [vmem:[%s0 + $0xa8] sm:$0xf]
  %v190 = vld [vmem:[%s0 + $0xac] sm:$0xf]
  %v191 = vld [vmem:[%s0 + $0xb0] sm:$0xf]
  %v192 = vld [vmem:[%s0 + $0xb4] sm:$0xf]
  %v193 = vld [vmem:[%s0 + $0xb8] sm:$0xf]
  %v194 = vld [vmem:[%s0 + $0xbc] sm:$0xf]
  %v195 = vld [vmem:[%s0 + $0xc0] sm:$0xf]
  %v196 = vld [vmem:[%s0 + $0xc4] sm:$0xf]
  %v197 = vld [vmem:[%s0 + $0xc8] sm:$0xf]
  %v198 = vld [vmem:[%s0 + $0xcc] sm:$0xf]
  %v199 = vld [vmem:[%s0 + $0xd0] sm:$0xf]
  %v200 = vld [vmem:[%s0 + $0xd4] sm:$0xf]
  %v201 = vld [vmem:[%s0 + $0xd8] sm:$0xf]
  %v202 = vld [vmem:[%s0 + $0xdc] sm:$0xf]
  %v203 = vld [vmem:[%s0 + $0xe0] sm:$0xf]
  %v204 = vld [vmem:[%s0 + $0xe4] sm:$0xf]
  %v205 = vld [vmem:[%s0 + $0xe8] sm:$0xf]
  %v206 = vld [vmem:[%s0 + $0xec] sm:$0xf]
  %v207 = vld [vmem:[%s0 + $0xf0] sm:$0xf]
  %v208 = vld [vmem:[%s0 + $0xf4] sm:$0xf]
  %v209 = vld [vmem:[%s0 + $0xf8] sm:$0xf]
  %v210 = vld [vmem:[%s0 + $0xfc] sm:$0xf]
  %v211 = vld [vmem:[%s1] sm:$0xf]
  %v212 = vld [vmem:[%s1 + $0x4] sm:$0xf]
  %v213 = vld [vmem:[%s1 + $0x8] sm:$0xf]
  %v214 = vld [vmem:[%s1 + $0xc] sm:$0xf]
  %v215 = vld [vmem:[%s1 + $0x10] sm:$0xf]
  %v216 = vld [vmem:[%s1 + $0x14] sm:$0xf]
  %v217 = vld [vmem:[%s1 + $0x18] sm:$0xf]
  %v218 = vld [vmem:[%s1 + $0x1c] sm:$0xf]
  %v219 = vld [vmem:[%s1 + $0x20] sm:$0xf]
  %v220 = vld [vmem:[%s1 + $0x24] sm:$0xf]
  %v221 = vld [vmem:[%s1 + $0x28] sm:$0xf]
  %v222 = vld [vmem:[%s1 + $0x2c] sm:$0xf]
  %v223 = vld [vmem:[%s1 + $0x30] sm:$0xf]
  %v224 = vld [vmem:[%s1 + $0x34] sm:$0xf]
  %v225 = vld [vmem:[%s1 + $0x38] sm:$0xf]
  %v226 = vld [vmem:[%s1 + $0x3c] sm:$0xf]
  %v291 = vunpack.c.l.b16 %v147
  %v292 = vunpack.c.l.b16 %v148
  %v293 = vunpack.c.l.b16 %v149
  %v294 = vunpack.c.l.b16 %v150
  %v295 = vunpack.c.l.b16 %v151
  %v296 = vunpack.c.l.b16 %v152
  %v297 = vunpack.c.l.b16 %v153
  %v298 = vunpack.c.l.b16 %v154
  %v299 = vunpack.c.l.b16 %v155
  %v300 = vunpack.c.l.b16 %v156
  %v301 = vunpack.c.l.b16 %v157
  %v302 = vunpack.c.l.b16 %v158
  %v303 = vunpack.c.l.b16 %v159
  %v304 = vunpack.c.l.b16 %v160
  %v305 = vunpack.c.l.b16 %v161
  %v306 = vunpack.c.l.b16 %v162
  %v307 = vunpack.c.l.b16 %v163
  %v308 = vunpack.c.l.b16 %v164
  %v309 = vunpack.c.l.b16 %v165
  %v310 = vunpack.c.l.b16 %v166
  %v311 = vunpack.c.l.b16 %v167
  %v312 = vunpack.c.l.b16 %v168
  %v313 = vunpack.c.l.b16 %v169
  %v314 = vunpack.c.l.b16 %v170
  %v315 = vunpack.c.l.b16 %v171
  %v316 = vunpack.c.l.b16 %v172
  %v317 = vunpack.c.l.b16 %v173
  %v318 = vunpack.c.l.b16 %v174
  %v319 = vunpack.c.l.b16 %v175
  %v320 = vunpack.c.l.b16 %v176
  %v321 = vunpack.c.l.b16 %v177
  %v322 = vunpack.c.l.b16 %v178
  %v323 = vunpack.c.l.b16 %v179
  %v324 = vunpack.c.l.b16 %v180
  %v325 = vunpack.c.l.b16 %v181
  %v326 = vunpack.c.l.b16 %v182
  %v327 = vunpack.c.l.b16 %v183
  %v328 = vunpack.c.l.b16 %v184
  %v329 = vunpack.c.l.b16 %v185
  %v330 = vunpack.c.l.b16 %v186
  %v331 = vunpack.c.l.b16 %v187
  %v332 = vunpack.c.l.b16 %v188
  %v333 = vunpack.c.l.b16 %v189
  %v334 = vunpack.c.l.b16 %v190
  %v335 = vunpack.c.l.b16 %v191
  %v336 = vunpack.c.l.b16 %v192
  %v337 = vunpack.c.l.b16 %v193
  %v338 = vunpack.c.l.b16 %v194
  %v339 = vunpack.c.l.b16 %v195
  %v340 = vunpack.c.l.b16 %v196
  %v341 = vunpack.c.l.b16 %v197
  %v342 = vunpack.c.l.b16 %v198
  %v343 = vunpack.c.l.b16 %v199
  %v344 = vunpack.c.l.b16 %v200
  %v345 = vunpack.c.l.b16 %v201
  %v346 = vunpack.c.l.b16 %v202
  %v347 = vunpack.c.l.b16 %v203
  %v348 = vunpack.c.l.b16 %v204
  %v349 = vunpack.c.l.b16 %v205
  %v350 = vunpack.c.l.b16 %v206
  %v351 = vunpack.c.l.b16 %v207
  %v352 = vunpack.c.l.b16 %v208
  %v353 = vunpack.c.l.b16 %v209
  %v354 = vunpack.c.l.b16 %v210
  %v355 = vpack.c.b16 %v292, %v291
  %v356 = vpack.c.b16 %v294, %v293
  %v357 = vpack.c.b16 %v296, %v295
  %v358 = vpack.c.b16 %v298, %v297
  %v359 = vpack.c.b16 %v300, %v299
  %v360 = vpack.c.b16 %v302, %v301
  %v361 = vpack.c.b16 %v304, %v303
  %v362 = vpack.c.b16 %v306, %v305
  %v363 = vpack.c.b16 %v308, %v307
  %v364 = vpack.c.b16 %v310, %v309
  %v365 = vpack.c.b16 %v312, %v311
  %v366 = vpack.c.b16 %v314, %v313
  %v367 = vpack.c.b16 %v316, %v315
  %v368 = vpack.c.b16 %v318, %v317
  %v369 = vpack.c.b16 %v320, %v319
  %v370 = vpack.c.b16 %v322, %v321
  %v371 = vpack.c.b16 %v324, %v323
  %v372 = vpack.c.b16 %v326, %v325
  %v373 = vpack.c.b16 %v328, %v327
  %v374 = vpack.c.b16 %v330, %v329
  %v375 = vpack.c.b16 %v332, %v331
  %v376 = vpack.c.b16 %v334, %v333
  %v377 = vpack.c.b16 %v336, %v335
  %v378 = vpack.c.b16 %v338, %v337
  %v379 = vpack.c.b16 %v340, %v339
  %v380 = vpack.c.b16 %v342, %v341
  %v381 = vpack.c.b16 %v344, %v343
  %v382 = vpack.c.b16 %v346, %v345
  %v383 = vpack.c.b16 %v348, %v347
  %v384 = vpack.c.b16 %v350, %v349
  %v385 = vpack.c.b16 %v352, %v351
  %v386 = vpack.c.b16 %v354, %v353
  %v435 = vunpack.c.l.b16 %v211
  %v436 = vunpack.c.l.b16 %v212
  %v437 = vunpack.c.l.b16 %v213
  %v438 = vunpack.c.l.b16 %v214
  %v439 = vunpack.c.l.b16 %v215
  %v440 = vunpack.c.l.b16 %v216
  %v441 = vunpack.c.l.b16 %v217
  %v442 = vunpack.c.l.b16 %v218
  %v443 = vunpack.c.l.b16 %v219
  %v444 = vunpack.c.l.b16 %v220
  %v445 = vunpack.c.l.b16 %v221
  %v446 = vunpack.c.l.b16 %v222
  %v447 = vunpack.c.l.b16 %v223
  %v448 = vunpack.c.l.b16 %v224
  %v449 = vunpack.c.l.b16 %v225
  %v450 = vunpack.c.l.b16 %v226
  %v451 = vpack.c.b16 %v436, %v435
  %v452 = vpack.c.b16 %v438, %v437
  %v453 = vpack.c.b16 %v440, %v439
  %v454 = vpack.c.b16 %v442, %v441
  %v455 = vpack.c.b16 %v444, %v443
  %v456 = vpack.c.b16 %v446, %v445
  %v457 = vpack.c.b16 %v448, %v447
  %v458 = vpack.c.b16 %v450, %v449
  %467 = vmatprep.subr.bf16.mxu0 0
  %468 = vmatpush1.bf16.msra.mxu0 %v451
  %469 = vmatprep.subr.bf16.mxu0 0
  %470 = vmatpush1.bf16.msra.mxu0 %v452
  %471 = vmatprep.subr.bf16.mxu0 0
  %472 = vmatpush1.bf16.msra.mxu0 %v453
  %473 = vmatprep.subr.bf16.mxu0 0
  %474 = vmatpush1.bf16.msra.mxu0 %v454
  %475 = vmatprep.subr.bf16.mxu0 0
  %476 = vmatpush1.bf16.msra.mxu0 %v455
  %477 = vmatprep.subr.bf16.mxu0 0
  %478 = vmatpush1.bf16.msra.mxu0 %v456
  %479 = vmatprep.subr.bf16.mxu0 0
  %480 = vmatpush1.bf16.msra.mxu0 %v457
  %481 = vmatprep.subr.bf16.mxu0 0
  %482 = vmatpush1.bf16.msra.mxu0 %v458
  %483 = vmatprep.subr.bf16.mxu0 0
  %484 = vmatpush1.bf16.msra.mxu0 0
  %485 = vmatprep.subr.bf16.mxu0 0
  %486 = vmatpush1.bf16.msra.mxu0 0
  %487 = vmatprep.subr.bf16.mxu0 0
  %488 = vmatpush1.bf16.msra.mxu0 0
  %489 = vmatprep.subr.bf16.mxu0 0
  %490 = vmatpush1.bf16.msra.mxu0 0
  %491 = vmatprep.subr.bf16.mxu0 0
  %492 = vmatpush1.bf16.msra.mxu0 0
  %493 = vmatprep.subr.bf16.mxu0 0
  %494 = vmatpush1.bf16.msra.mxu0 0
  %495 = vmatprep.subr.bf16.mxu0 0
  %496 = vmatpush1.bf16.msra.mxu0 0
  %497 = vmatprep.subr.bf16.mxu0 0
  %498 = vmatpush1.bf16.msra.mxu0 0
  %499 = vmatprep.mubr.bf16.mxu0 0
  %500 = vmatmul.mubr.bf16.gmra.mrb[0].mxu0 %v355
  %v501 = vpop.f32.mrb[0].mxu0
  %v502 = vadd.f32 0.0, %v501
  %v503 = vpop.f32.mrb[0].mxu0
  %v504 = vpop.f32.mrb[0].mxu0
  %v505 = vadd.f32 0.0, %v504
  %v506 = vpop.f32.mrb[0].mxu0
  %507 = vmatprep.mubr.bf16.mxu0 0
  %508 = vmatmul.mubr.bf16.gmra.mrb[0].mxu0 %v356
  %v509 = vpop.f32.mrb[0].mxu0
  %v510 = vadd.f32 0.0, %v509
  %v511 = vpop.f32.mrb[0].mxu0
  %v512 = vpop.f32.mrb[0].mxu0
  %v513 = vadd.f32 0.0, %v512
  %v514 = vpop.f32.mrb[0].mxu0
  %515 = vmatprep.mubr.bf16.mxu0 0
  %516 = vmatmul.mubr.bf16.gmra.mrb[0].mxu0 %v357
  %v517 = vpop.f32.mrb[0].mxu0
  %v518 = vadd.f32 0.0, %v517
  %v519 = vpop.f32.mrb[0].mxu0
  %v520 = vpop.f32.mrb[0].mxu0
  %v521 = vadd.f32 0.0, %v520
  %v522 = vpop.f32.mrb[0].mxu0
  %523 = vmatprep.mubr.bf16.mxu0 0
  %524 = vmatmul.mubr.bf16.gmra.mrb[0].mxu0 %v358
  %v525 = vpop.f32.mrb[0].mxu0
  %v526 = vadd.f32 0.0, %v525
  %v527 = vpop.f32.mrb[0].mxu0
  %v528 = vpop.f32.mrb[0].mxu0
  %v529 = vadd.f32 0.0, %v528
  %v530 = vpop.f32.mrb[0].mxu0
  %531 = vmatprep.mubr.bf16.mxu0 0
  %532 = vmatmul.mubr.bf16.gmra.mrb[0].mxu0 %v359
  %v533 = vpop.f32.mrb[0].mxu0
  %v534 = vadd.f32 0.0, %v533
  %v535 = vpop.f32.mrb[0].mxu0
  %v536 = vpop.f32.mrb[0].mxu0
  %v537 = vadd.f32 0.0, %v536
  %v538 = vpop.f32.mrb[0].mxu0
  %539 = vmatprep.mubr.bf16.mxu0 0
  %540 = vmatmul.mubr.bf16.gmra.mrb[0].mxu0 %v360
  %v541 = vpop.f32.mrb[0].mxu0
  %v542 = vadd.f32 0.0, %v541
  %v543 = vpop.f32.mrb[0].mxu0
  %v544 = vpop.f32.mrb[0].mxu0
  %v545 = vadd.f32 0.0, %v544
  %v546 = vpop.f32.mrb[0].mxu0
  %547 = vmatprep.mubr.bf16.mxu0 0
  %548 = vmatmul.mubr.bf16.gmra.mrb[0].mxu0 %v361
  %v549 = vpop.f32.mrb[0].mxu0
  %v550 = vadd.f32 0.0, %v549
  %v551 = vpop.f32.mrb[0].mxu0
  %v552 = vpop.f32.mrb[0].mxu0
  %v553 = vadd.f32 0.0, %v552
  %v554 = vpop.f32.mrb[0].mxu0
  %555 = vmatprep.mubr.bf16.mxu0 0
  %556 = vmatmul.mubr.bf16.gmra.mrb[0].mxu0 %v362
  %v557 = vpop.f32.mrb[0].mxu0
  %v558 = vadd.f32 0.0, %v557
  %v559 = vpop.f32.mrb[0].mxu0
  %v560 = vpop.f32.mrb[0].mxu0
  %v561 = vadd.f32 0.0, %v560
  %v562 = vpop.f32.mrb[0].mxu0
  %563 = vmatprep.mubr.bf16.mxu0 0
  %564 = vmatmul.mubr.bf16.gmra.mrb[0].mxu0 %v363
  %v565 = vpop.f32.mrb[0].mxu0
  %v566 = vadd.f32 0.0, %v565
  %v567 = vpop.f32.mrb[0].mxu0
  %v568 = vpop.f32.mrb[0].mxu0
  %v569 = vadd.f32 0.0, %v568
  %v570 = vpop.f32.mrb[0].mxu0
  %571 = vmatprep.mubr.bf16.mxu0 0
  %572 = vmatmul.mubr.bf16.gmra.mrb[0].mxu0 %v364
  %v573 = vpop.f32.mrb[0].mxu0
  %v574 = vadd.f32 0.0, %v573
  %v575 = vpop.f32.mrb[0].mxu0
  %v576 = vpop.f32.mrb[0].mxu0
  %v577 = vadd.f32 0.0, %v576
  %v578 = vpop.f32.mrb[0].mxu0
  %579 = vmatprep.mubr.bf16.mxu0 0
  %580 = vmatmul.mubr.bf16.gmra.mrb[0].mxu0 %v365
  %v581 = vpop.f32.mrb[0].mxu0
  %v582 = vadd.f32 0.0, %v581
  %v583 = vpop.f32.mrb[0].mxu0
  %v584 = vpop.f32.mrb[0].mxu0
  %v585 = vadd.f32 0.0, %v584
  %v586 = vpop.f32.mrb[0].mxu0
  %587 = vmatprep.mubr.bf16.mxu0 0
  %588 = vmatmul.mubr.bf16.gmra.mrb[0].mxu0 %v366
  %v589 = vpop.f32.mrb[0].mxu0
  %v590 = vadd.f32 0.0, %v589
  %v591 = vpop.f32.mrb[0].mxu0
  %v592 = vpop.f32.mrb[0].mxu0
  %v593 = vadd.f32 0.0, %v592
  %v594 = vpop.f32.mrb[0].mxu0
  %595 = vmatprep.mubr.bf16.mxu0 0
  %596 = vmatmul.mubr.bf16.gmra.mrb[0].mxu0 %v367
  %v597 = vpop.f32.mrb[0].mxu0
  %v598 = vadd.f32 0.0, %v597
  %v599 = vpop.f32.mrb[0].mxu0
  %v600 = vpop.f32.mrb[0].mxu0
  %v601 = vadd.f32 0.0, %v600
  %v602 = vpop.f32.mrb[0].mxu0
  %603 = vmatprep.mubr.bf16.mxu0 0
  %604 = vmatmul.mubr.bf16.gmra.mrb[0].mxu0 %v368
  %v605 = vpop.f32.mrb[0].mxu0
  %v606 = vadd.f32 0.0, %v605
  %v607 = vpop.f32.mrb[0].mxu0
  %v608 = vpop.f32.mrb[0].mxu0
  %v609 = vadd.f32 0.0, %v608
  %v610 = vpop.f32.mrb[0].mxu0
  %611 = vmatprep.mubr.bf16.mxu0 0
  %612 = vmatmul.mubr.bf16.gmra.mrb[0].mxu0 %v369
  %v613 = vpop.f32.mrb[0].mxu0
  %v614 = vadd.f32 0.0, %v613
  %v615 = vpop.f32.mrb[0].mxu0
  %v616 = vpop.f32.mrb[0].mxu0
  %v617 = vadd.f32 0.0, %v616
  %v618 = vpop.f32.mrb[0].mxu0
  %619 = vmatprep.mubr.bf16.mxu0 0
  %620 = vmatmul.mubr.bf16.gmra.mrb[0].mxu0 %v370
  %v621 = vpop.f32.mrb[0].mxu0
  %v622 = vadd.f32 0.0, %v621
  %v623 = vpop.f32.mrb[0].mxu0
  %v624 = vpop.f32.mrb[0].mxu0
  %v625 = vadd.f32 0.0, %v624
  %v626 = vpop.f32.mrb[0].mxu0
  %627 = vmatprep.mubr.bf16.mxu0 0
  %628 = vmatmul.mubr.bf16.gmra.mrb[0].mxu0 %v371
  %v629 = vpop.f32.mrb[0].mxu0
  %v630 = vadd.f32 0.0, %v629
  %v631 = vpop.f32.mrb[0].mxu0
  %v632 = vpop.f32.mrb[0].mxu0
  %v633 = vadd.f32 0.0, %v632
  %v634 = vpop.f32.mrb[0].mxu0
  %635 = vmatprep.mubr.bf16.mxu0 0
  %636 = vmatmul.mubr.bf16.gmra.mrb[0].mxu0 %v372
  %v637 = vpop.f32.mrb[0].mxu0
  %v638 = vadd.f32 0.0, %v637
  %v639 = vpop.f32.mrb[0].mxu0
  %v640 = vpop.f32.mrb[0].mxu0
  %v641 = vadd.f32 0.0, %v640
  %v642 = vpop.f32.mrb[0].mxu0
  %643 = vmatprep.mubr.bf16.mxu0 0
  %644 = vmatmul.mubr.bf16.gmra.mrb[0].mxu0 %v373
  %v645 = vpop.f32.mrb[0].mxu0
  %v646 = vadd.f32 0.0, %v645
  %v647 = vpop.f32.mrb[0].mxu0
  %v648 = vpop.f32.mrb[0].mxu0
  %v649 = vadd.f32 0.0, %v648
  %v650 = vpop.f32.mrb[0].mxu0
  %651 = vmatprep.mubr.bf16.mxu0 0
  %652 = vmatmul.mubr.bf16.gmra.mrb[0].mxu0 %v374
  %v653 = vpop.f32.mrb[0].mxu0
  %v654 = vadd.f32 0.0, %v653
  %v655 = vpop.f32.mrb[0].mxu0
  %v656 = vpop.f32.mrb[0].mxu0
  %v657 = vadd.f32 0.0, %v656
  %v658 = vpop.f32.mrb[0].mxu0
  %659 = vmatprep.mubr.bf16.mxu0 0
  %660 = vmatmul.mubr.bf16.gmra.mrb[0].mxu0 %v375
  %v661 = vpop.f32.mrb[0].mxu0
  %v662 = vadd.f32 0.0, %v661
  %v663 = vpop.f32.mrb[0].mxu0
  %v664 = vpop.f32.mrb[0].mxu0
  %v665 = vadd.f32 0.0, %v664
  %v666 = vpop.f32.mrb[0].mxu0
  %667 = vmatprep.mubr.bf16.mxu0 0
  %668 = vmatmul.mubr.bf16.gmra.mrb[0].mxu0 %v376
  %v669 = vpop.f32.mrb[0].mxu0
  %v670 = vadd.f32 0.0, %v669
  %v671 = vpop.f32.mrb[0].mxu0
  %v672 = vpop.f32.mrb[0].mxu0
  %v673 = vadd.f32 0.0, %v672
  %v674 = vpop.f32.mrb[0].mxu0
  %675 = vmatprep.mubr.bf16.mxu0 0
  %676 = vmatmul.mubr.bf16.gmra.mrb[0].mxu0 %v377
  %v677 = vpop.f32.mrb[0].mxu0
  %v678 = vadd.f32 0.0, %v677
  %v679 = vpop.f32.mrb[0].mxu0
  %v680 = vpop.f32.mrb[0].mxu0
  %v681 = vadd.f32 0.0, %v680
  %v682 = vpop.f32.mrb[0].mxu0
  %683 = vmatprep.mubr.bf16.mxu0 0
  %684 = vmatmul.mubr.bf16.gmra.mrb[0].mxu0 %v378
  %v685 = vpop.f32.mrb[0].mxu0
  %v686 = vadd.f32 0.0, %v685
  %v687 = vpop.f32.mrb[0].mxu0
  %v688 = vpop.f32.mrb[0].mxu0
  %v689 = vadd.f32 0.0, %v688
  %v690 = vpop.f32.mrb[0].mxu0
  %691 = vmatprep.mubr.bf16.mxu0 0
  %692 = vmatmul.mubr.bf16.gmra.mrb[0].mxu0 %v379
  %v693 = vpop.f32.mrb[0].mxu0
  %v694 = vadd.f32 0.0, %v693
  %v695 = vpop.f32.mrb[0].mxu0
  %v696 = vpop.f32.mrb[0].mxu0
  %v697 = vadd.f32 0.0, %v696
  %v698 = vpop.f32.mrb[0].mxu0
  %699 = vmatprep.mubr.bf16.mxu0 0
  %700 = vmatmul.mubr.bf16.gmra.mrb[0].mxu0 %v380
  %v701 = vpop.f32.mrb[0].mxu0
  %v702 = vadd.f32 0.0, %v701
  %v703 = vpop.f32.mrb[0].mxu0
  %v704 = vpop.f32.mrb[0].mxu0
  %v705 = vadd.f32 0.0, %v704
  %v706 = vpop.f32.mrb[0].mxu0
  %707 = vmatprep.mubr.bf16.mxu0 0
  %708 = vmatmul.mubr.bf16.gmra.mrb[0].mxu0 %v381
  %v709 = vpop.f32.mrb[0].mxu0
  %v710 = vadd.f32 0.0, %v709
  %v711 = vpop.f32.mrb[0].mxu0
  %v712 = vpop.f32.mrb[0].mxu0
  %v713 = vadd.f32 0.0, %v712
  %v714 = vpop.f32.mrb[0].mxu0
  %715 = vmatprep.mubr.bf16.mxu0 0
  %716 = vmatmul.mubr.bf16.gmra.mrb[0].mxu0 %v382
  %v717 = vpop.f32.mrb[0].mxu0
  %v718 = vadd.f32 0.0, %v717
  %v719 = vpop.f32.mrb[0].mxu0
  %v720 = vpop.f32.mrb[0].mxu0
  %v721 = vadd.f32 0.0, %v720
  %v722 = vpop.f32.mrb[0].mxu0
  %723 = vmatprep.mubr.bf16.mxu0 0
  %724 = vmatmul.mubr.bf16.gmra.mrb[0].mxu0 %v383
  %v725 = vpop.f32.mrb[0].mxu0
  %v726 = vadd.f32 0.0, %v725
  %v727 = vpop.f32.mrb[0].mxu0
  %v728 = vpop.f32.mrb[0].mxu0
  %v729 = vadd.f32 0.0, %v728
  %v730 = vpop.f32.mrb[0].mxu0
  %731 = vmatprep.mubr.bf16.mxu0 0
  %732 = vmatmul.mubr.bf16.gmra.mrb[0].mxu0 %v384
  %v733 = vpop.f32.mrb[0].mxu0
  %v734 = vadd.f32 0.0, %v733
  %v735 = vpop.f32.mrb[0].mxu0
  %v736 = vpop.f32.mrb[0].mxu0
  %v737 = vadd.f32 0.0, %v736
  %v738 = vpop.f32.mrb[0].mxu0
  %739 = vmatprep.mubr.bf16.mxu0 0
  %740 = vmatmul.mubr.bf16.gmra.mrb[0].mxu0 %v385
  %v741 = vpop.f32.mrb[0].mxu0
  %v742 = vadd.f32 0.0, %v741
  %v743 = vpop.f32.mrb[0].mxu0
  %v744 = vpop.f32.mrb[0].mxu0
  %v745 = vadd.f32 0.0, %v744
  %v746 = vpop.f32.mrb[0].mxu0
  %747 = vmatprep.mubr.bf16.mxu0 0
  %748 = vmatmul.mubr.bf16.gmra.mrb[0].mxu0 %v386
  %v749 = vpop.f32.mrb[0].mxu0
  %v750 = vadd.f32 0.0, %v749
  %v751 = vpop.f32.mrb[0].mxu0
  %v752 = vpop.f32.mrb[0].mxu0
  %v753 = vadd.f32 0.0, %v752
  %v754 = vpop.f32.mrb[0].mxu0
  %755 = vdwg.mxu0
  %v756 = vadd.f32 %v83, %v502
  %v757 = vadd.f32 %v84, %v505
  %v758 = vadd.f32 %v85, %v510
  %v759 = vadd.f32 %v86, %v513
  %v760 = vadd.f32 %v87, %v518
  %v761 = vadd.f32 %v88, %v521
  %v762 = vadd.f32 %v89, %v526
  %v763 = vadd.f32 %v90, %v529
  %v764 = vadd.f32 %v91, %v534
  %v765 = vadd.f32 %v92, %v537
  %v766 = vadd.f32 %v93, %v542
  %v767 = vadd.f32 %v94, %v545
  %v768 = vadd.f32 %v95, %v550
  %v769 = vadd.f32 %v96, %v553
  %v770 = vadd.f32 %v97, %v558
  %v771 = vadd.f32 %v98, %v561
  %v772 = vadd.f32 %v99, %v566
  %v773 = vadd.f32 %v100, %v569
  %v774 = vadd.f32 %v101, %v574
  %v775 = vadd.f32 %v102, %v577
  %v776 = vadd.f32 %v103, %v582
  %v777 = vadd.f32 %v104, %v585
  %v778 = vadd.f32 %v105, %v590
  %v779 = vadd.f32 %v106, %v593
  %v780 = vadd.f32 %v107, %v598
  %v781 = vadd.f32 %v108, %v601
  %v782 = vadd.f32 %v109, %v606
  %v783 = vadd.f32 %v110, %v609
  %v784 = vadd.f32 %v111, %v614
  %v785 = vadd.f32 %v112, %v617
  %v786 = vadd.f32 %v113, %v622
  %v787 = vadd.f32 %v114, %v625
  %v788 = vadd.f32 %v115, %v630
  %v789 = vadd.f32 %v116, %v633
  %v790 = vadd.f32 %v117, %v638
  %v791 = vadd.f32 %v118, %v641
  %v792 = vadd.f32 %v119, %v646
  %v793 = vadd.f32 %v120, %v649
  %v794 = vadd.f32 %v121, %v654
  %v795 = vadd.f32 %v122, %v657
  %v796 = vadd.f32 %v123, %v662
  %v797 = vadd.f32 %v124, %v665
  %v798 = vadd.f32 %v125, %v670
  %v799 = vadd.f32 %v126, %v673
  %v800 = vadd.f32 %v127, %v678
  %v801 = vadd.f32 %v128, %v681
  %v802 = vadd.f32 %v129, %v686
  %v803 = vadd.f32 %v130, %v689
  %v804 = vadd.f32 %v131, %v694
  %v805 = vadd.f32 %v132, %v697
  %v806 = vadd.f32 %v133, %v702
  %v807 = vadd.f32 %v134, %v705
  %v808 = vadd.f32 %v135, %v710
  %v809 = vadd.f32 %v136, %v713
  %v810 = vadd.f32 %v137, %v718
  %v811 = vadd.f32 %v138, %v721
  %v812 = vadd.f32 %v139, %v726
  %v813 = vadd.f32 %v140, %v729
  %v814 = vadd.f32 %v141, %v734
  %v815 = vadd.f32 %v142, %v737
  %v816 = vadd.f32 %v143, %v742
  %v817 = vadd.f32 %v144, %v745
  %v818 = vadd.f32 %v145, %v750
  %v819 = vadd.f32 %v146, %v753
  %820 = vst [vmem:[#allocation2] sm:$0xff] %v756
  %821 = vst [vmem:[#allocation2 + $0x8] sm:$0xff] %v757
  %822 = vst [vmem:[#allocation2 + $0x10] sm:$0xff] %v758
  %823 = vst [vmem:[#allocation2 + $0x18] sm:$0xff] %v759
  %824 = vst [vmem:[#allocation2 + $0x20] sm:$0xff] %v760
  %825 = vst [vmem:[#allocation2 + $0x28] sm:$0xff] %v761
  %826 = vst [vmem:[#allocation2 + $0x30] sm:$0xff] %v762
  %827 = vst [vmem:[#allocation2 + $0x38] sm:$0xff] %v763
  %828 = vst [vmem:[#allocation2 + $0x40] sm:$0xff] %v764
  %829 = vst [vmem:[#allocation2 + $0x48] sm:$0xff] %v765
  %830 = vst [vmem:[#allocation2 + $0x50] sm:$0xff] %v766
  %831 = vst [vmem:[#allocation2 + $0x58] sm:$0xff] %v767
  %832 = vst [vmem:[#allocation2 + $0x60] sm:$0xff] %v768
  %833 = vst [vmem:[#allocation2 + $0x68] sm:$0xff] %v769
  %834 = vst [vmem:[#allocation2 + $0x70] sm:$0xff] %v770
  %835 = vst [vmem:[#allocation2 + $0x78] sm:$0xff] %v771
  %836 = vst [vmem:[#allocation2 + $0x80] sm:$0xff] %v772
  %837 = vst [vmem:[#allocation2 + $0x88] sm:$0xff] %v773
  %838 = vst [vmem:[#allocation2 + $0x90] sm:$0xff] %v774
  %839 = vst [vmem:[#allocation2 + $0x98] sm:$0xff] %v775
  %840 = vst [vmem:[#allocation2 + $0xa0] sm:$0xff] %v776
  %841 = vst [vmem:[#allocation2 + $0xa8] sm:$0xff] %v777
  %842 = vst [vmem:[#allocation2 + $0xb0] sm:$0xff] %v778
  %843 = vst [vmem:[#allocation2 + $0xb8] sm:$0xff] %v779
  %844 = vst [vmem:[#allocation2 + $0xc0] sm:$0xff] %v780
  %845 = vst [vmem:[#allocation2 + $0xc8] sm:$0xff] %v781
  %846 = vst [vmem:[#allocation2 + $0xd0] sm:$0xff] %v782
  %847 = vst [vmem:[#allocation2 + $0xd8] sm:$0xff] %v783
  %848 = vst [vmem:[#allocation2 + $0xe0] sm:$0xff] %v784
  %849 = vst [vmem:[#allocation2 + $0xe8] sm:$0xff] %v785
  %850 = vst [vmem:[#allocation2 + $0xf0] sm:$0xff] %v786
  %851 = vst [vmem:[#allocation2 + $0xf8] sm:$0xff] %v787
  %852 = vst [vmem:[#allocation2 + $0x100] sm:$0xff] %v788
  %853 = vst [vmem:[#allocation2 + $0x108] sm:$0xff] %v789
  %854 = vst [vmem:[#allocation2 + $0x110] sm:$0xff] %v790
  %855 = vst [vmem:[#allocation2 + $0x118] sm:$0xff] %v791
  %856 = vst [vmem:[#allocation2 + $0x120] sm:$0xff] %v792
  %857 = vst [vmem:[#allocation2 + $0x128] sm:$0xff] %v793
  %858 = vst [vmem:[#allocation2 + $0x130] sm:$0xff] %v794
  %859 = vst [vmem:[#allocation2 + $0x138] sm:$0xff] %v795
  %860 = vst [vmem:[#allocation2 + $0x140] sm:$0xff] %v796
  %861 = vst [vmem:[#allocation2 + $0x148] sm:$0xff] %v797
  %862 = vst [vmem:[#allocation2 + $0x150] sm:$0xff] %v798
  %863 = vst [vmem:[#allocation2 + $0x158] sm:$0xff] %v799
  %864 = vst [vmem:[#allocation2 + $0x160] sm:$0xff] %v800
  %865 = vst [vmem:[#allocation2 + $0x168] sm:$0xff] %v801
  %866 = vst [vmem:[#allocation2 + $0x170] sm:$0xff] %v802
  %867 = vst [vmem:[#allocation2 + $0x178] sm:$0xff] %v803
  %868 = vst [vmem:[#allocation2 + $0x180] sm:$0xff] %v804
  %869 = vst [vmem:[#allocation2 + $0x188] sm:$0xff] %v805
  %870 = vst [vmem:[#allocation2 + $0x190] sm:$0xff] %v806
  %871 = vst [vmem:[#allocation2 + $0x198] sm:$0xff] %v807
  %872 = vst [vmem:[#allocation2 + $0x1a0] sm:$0xff] %v808
  %873 = vst [vmem:[#allocation2 + $0x1a8] sm:$0xff] %v809
  %874 = vst [vmem:[#allocation2 + $0x1b0] sm:$0xff] %v810
  %875 = vst [vmem:[#allocation2 + $0x1b8] sm:$0xff] %v811
  %876 = vst [vmem:[#allocation2 + $0x1c0] sm:$0xff] %v812
  %877 = vst [vmem:[#allocation2 + $0x1c8] sm:$0xff] %v813
  %878 = vst [vmem:[#allocation2 + $0x1d0] sm:$0xff] %v814
  %879 = vst [vmem:[#allocation2 + $0x1d8] sm:$0xff] %v815
  %880 = vst [vmem:[#allocation2 + $0x1e0] sm:$0xff] %v816
  %881 = vst [vmem:[#allocation2 + $0x1e8] sm:$0xff] %v817
  %882 = vst [vmem:[#allocation2 + $0x1f0] sm:$0xff] %v818
  %883 = vst [vmem:[#allocation2 + $0x1f8] sm:$0xff] %v819
  // Predicated region
  $region14: #{darknet_forward.13} parent=0 // pred_check
    %p884 = pneg %p15
  $region15: #{darknet_forward.13} parent=0 // pred_check_branch
    %886 = sbr.rel (%p884) target = $region17
  $region16: #{darknet_forward.13} parent=0 // pred_region
    %v887 = vld [vmem:[#allocation2] sm:$0xff]
    %v888 = vld [vmem:[#allocation2 + $0x8] sm:$0xff]
    %v889 = vld [vmem:[#allocation2 + $0x10] sm:$0xff]
    %v890 = vld [vmem:[#allocation2 + $0x18] sm:$0xff]
    %v891 = vld [vmem:[#allocation2 + $0x20] sm:$0xff]
    %v892 = vld [vmem:[#allocation2 + $0x28] sm:$0xff]
    %v893 = vld [vmem:[#allocation2 + $0x30] sm:$0xff]
    %v894 = vld [vmem:[#allocation2 + $0x38] sm:$0xff]
    %v895 = vld [vmem:[#allocation2 + $0x40] sm:$0xff]
    %v896 = vld [vmem:[#allocation2 + $0x48] sm:$0xff]
    %v897 = vld [vmem:[#allocation2 + $0x50] sm:$0xff]
    %v898 = vld [vmem:[#allocation2 + $0x58] sm:$0xff]
    %v899 = vld [vmem:[#allocation2 + $0x60] sm:$0xff]
    %v900 = vld [vmem:[#allocation2 + $0x68] sm:$0xff]
    %v901 = vld [vmem:[#allocation2 + $0x70] sm:$0xff]
    %v902 = vld [vmem:[#allocation2 + $0x78] sm:$0xff]
    %v903 = vld [vmem:[#allocation2 + $0x80] sm:$0xff]
    %v904 = vld [vmem:[#allocation2 + $0x88] sm:$0xff]
    %v905 = vld [vmem:[#allocation2 + $0x90] sm:$0xff]
    %v906 = vld [vmem:[#allocation2 + $0x98] sm:$0xff]
    %v907 = vld [vmem:[#allocation2 + $0xa0] sm:$0xff]
    %v908 = vld [vmem:[#allocation2 + $0xa8] sm:$0xff]
    %v909 = vld [vmem:[#allocation2 + $0xb0] sm:$0xff]
    %v910 = vld [vmem:[#allocation2 + $0xb8] sm:$0xff]
    %v911 = vld [vmem:[#allocation2 + $0xc0] sm:$0xff]
    %v912 = vld [vmem:[#allocation2 + $0xc8] sm:$0xff]
    %v913 = vld [vmem:[#allocation2 + $0xd0] sm:$0xff]
    %v914 = vld [vmem:[#allocation2 + $0xd8] sm:$0xff]
    %v915 = vld [vmem:[#allocation2 + $0xe0] sm:$0xff]
    %v916 = vld [vmem:[#allocation2 + $0xe8] sm:$0xff]
    %v917 = vld [vmem:[#allocation2 + $0xf0] sm:$0xff]
    %v918 = vld [vmem:[#allocation2 + $0xf8] sm:$0xff]
    %v919 = vld [vmem:[#allocation2 + $0x100] sm:$0xff]
    %v920 = vld [vmem:[#allocation2 + $0x108] sm:$0xff]
    %v921 = vld [vmem:[#allocation2 + $0x110] sm:$0xff]
    %v922 = vld [vmem:[#allocation2 + $0x118] sm:$0xff]
    %v923 = vld [vmem:[#allocation2 + $0x120] sm:$0xff]
    %v924 = vld [vmem:[#allocation2 + $0x128] sm:$0xff]
    %v925 = vld [vmem:[#allocation2 + $0x130] sm:$0xff]
    %v926 = vld [vmem:[#allocation2 + $0x138] sm:$0xff]
    %v927 = vld [vmem:[#allocation2 + $0x140] sm:$0xff]
    %v928 = vld [vmem:[#allocation2 + $0x148] sm:$0xff]
    %v929 = vld [vmem:[#allocation2 + $0x150] sm:$0xff]
    %v930 = vld [vmem:[#allocation2 + $0x158] sm:$0xff]
    %v931 = vld [vmem:[#allocation2 + $0x160] sm:$0xff]
    %v932 = vld [vmem:[#allocation2 + $0x168] sm:$0xff]
    %v933 = vld [vmem:[#allocation2 + $0x170] sm:$0xff]
    %v934 = vld [vmem:[#allocation2 + $0x178] sm:$0xff]
    %v935 = vld [vmem:[#allocation2 + $0x180] sm:$0xff]
    %v936 = vld [vmem:[#allocation2 + $0x188] sm:$0xff]
    %v937 = vld [vmem:[#allocation2 + $0x190] sm:$0xff]
    %v938 = vld [vmem:[#allocation2 + $0x198] sm:$0xff]
    %v939 = vld [vmem:[#allocation2 + $0x1a0] sm:$0xff]
    %v940 = vld [vmem:[#allocation2 + $0x1a8] sm:$0xff]
    %v941 = vld [vmem:[#allocation2 + $0x1b0] sm:$0xff]
    %v942 = vld [vmem:[#allocation2 + $0x1b8] sm:$0xff]
    %v943 = vld [vmem:[#allocation2 + $0x1c0] sm:$0xff]
    %v944 = vld [vmem:[#allocation2 + $0x1c8] sm:$0xff]
    %v945 = vld [vmem:[#allocation2 + $0x1d0] sm:$0xff]
    %v946 = vld [vmem:[#allocation2 + $0x1d8] sm:$0xff]
    %v947 = vld [vmem:[#allocation2 + $0x1e0] sm:$0xff]
    %v948 = vld [vmem:[#allocation2 + $0x1e8] sm:$0xff]
    %v949 = vld [vmem:[#allocation2 + $0x1f0] sm:$0xff]
    %v950 = vld [vmem:[#allocation2 + $0x1f8] sm:$0xff]
    %951 = vst [vmem:[%s2] sm:$0xff] %v887
    %952 = vst [vmem:[%s2 + $0x8] sm:$0xff] %v888
    %953 = vst [vmem:[%s2 + $0x10] sm:$0xff] %v889
    %954 = vst [vmem:[%s2 + $0x18] sm:$0xff] %v890
    %955 = vst [vmem:[%s2 + $0x20] sm:$0xff] %v891
    %956 = vst [vmem:[%s2 + $0x28] sm:$0xff] %v892
    %957 = vst [vmem:[%s2 + $0x30] sm:$0xff] %v893
    %958 = vst [vmem:[%s2 + $0x38] sm:$0xff] %v894
    %959 = vst [vmem:[%s2 + $0x40] sm:$0xff] %v895
    %960 = vst [vmem:[%s2 + $0x48] sm:$0xff] %v896
    %961 = vst [vmem:[%s2 + $0x50] sm:$0xff] %v897
    %962 = vst [vmem:[%s2 + $0x58] sm:$0xff] %v898
    %963 = vst [vmem:[%s2 + $0x60] sm:$0xff] %v899
    %964 = vst [vmem:[%s2 + $0x68] sm:$0xff] %v900
    %965 = vst [vmem:[%s2 + $0x70] sm:$0xff] %v901
    %966 = vst [vmem:[%s2 + $0x78] sm:$0xff] %v902
    %967 = vst [vmem:[%s2 + $0x80] sm:$0xff] %v903
    %968 = vst [vmem:[%s2 + $0x88] sm:$0xff] %v904
    %969 = vst [vmem:[%s2 + $0x90] sm:$0xff] %v905
    %970 = vst [vmem:[%s2 + $0x98] sm:$0xff] %v906
    %971 = vst [vmem:[%s2 + $0xa0] sm:$0xff] %v907
    %972 = vst [vmem:[%s2 + $0xa8] sm:$0xff] %v908
    %973 = vst [vmem:[%s2 + $0xb0] sm:$0xff] %v909
    %974 = vst [vmem:[%s2 + $0xb8] sm:$0xff] %v910
    %975 = vst [vmem:[%s2 + $0xc0] sm:$0xff] %v911
    %976 = vst [vmem:[%s2 + $0xc8] sm:$0xff] %v912
    %977 = vst [vmem:[%s2 + $0xd0] sm:$0xff] %v913
    %978 = vst [vmem:[%s2 + $0xd8] sm:$0xff] %v914
    %979 = vst [vmem:[%s2 + $0xe0] sm:$0xff] %v915
    %980 = vst [vmem:[%s2 + $0xe8] sm:$0xff] %v916
    %981 = vst [vmem:[%s2 + $0xf0] sm:$0xff] %v917
    %982 = vst [vmem:[%s2 + $0xf8] sm:$0xff] %v918
    %983 = vst [vmem:[%s2 + $0x100] sm:$0xff] %v919
    %984 = vst [vmem:[%s2 + $0x108] sm:$0xff] %v920
    %985 = vst [vmem:[%s2 + $0x110] sm:$0xff] %v921
    %986 = vst [vmem:[%s2 + $0x118] sm:$0xff] %v922
    %987 = vst [vmem:[%s2 + $0x120] sm:$0xff] %v923
    %988 = vst [vmem:[%s2 + $0x128] sm:$0xff] %v924
    %989 = vst [vmem:[%s2 + $0x130] sm:$0xff] %v925
    %990 = vst [vmem:[%s2 + $0x138] sm:$0xff] %v926
    %991 = vst [vmem:[%s2 + $0x140] sm:$0xff] %v927
    %992 = vst [vmem:[%s2 + $0x148] sm:$0xff] %v928
    %993 = vst [vmem:[%s2 + $0x150] sm:$0xff] %v929
    %994 = vst [vmem:[%s2 + $0x158] sm:$0xff] %v930
    %995 = vst [vmem:[%s2 + $0x160] sm:$0xff] %v931
    %996 = vst [vmem:[%s2 + $0x168] sm:$0xff] %v932
    %997 = vst [vmem:[%s2 + $0x170] sm:$0xff] %v933
    %998 = vst [vmem:[%s2 + $0x178] sm:$0xff] %v934
    %999 = vst [vmem:[%s2 + $0x180] sm:$0xff] %v935
    %1000 = vst [vmem:[%s2 + $0x188] sm:$0xff] %v936
    %1001 = vst [vmem:[%s2 + $0x190] sm:$0xff] %v937
    %1002 = vst [vmem:[%s2 + $0x198] sm:$0xff] %v938
    %1003 = vst [vmem:[%s2 + $0x1a0] sm:$0xff] %v939
    %1004 = vst [vmem:[%s2 + $0x1a8] sm:$0xff] %v940
    %1005 = vst [vmem:[%s2 + $0x1b0] sm:$0xff] %v941
    %1006 = vst [vmem:[%s2 + $0x1b8] sm:$0xff] %v942
    %1007 = vst [vmem:[%s2 + $0x1c0] sm:$0xff] %v943
    %1008 = vst [vmem:[%s2 + $0x1c8] sm:$0xff] %v944
    %1009 = vst [vmem:[%s2 + $0x1d0] sm:$0xff] %v945
    %1010 = vst [vmem:[%s2 + $0x1d8] sm:$0xff] %v946
    %1011 = vst [vmem:[%s2 + $0x1e0] sm:$0xff] %v947
    %1012 = vst [vmem:[%s2 + $0x1e8] sm:$0xff] %v948
    %1013 = vst [vmem:[%s2 + $0x1f0] sm:$0xff] %v949
    %1014 = vst [vmem:[%s2 + $0x1f8] sm:$0xff] %v950
    %v1015 = vadd.f32 %v887, %v888
    %v1016 = vadd.f32 %v1015, %v889
    %v1017 = vadd.f32 %v1016, %v890
    %v1018 = vadd.f32 %v1017, %v891
    %v1019 = vadd.f32 %v1018, %v892
    %v1020 = vadd.f32 %v1019, %v893
    %v1021 = vadd.f32 %v1020, %v894
    %v1022 = vadd.f32 %v1021, %v895
    %v1023 = vadd.f32 %v1022, %v896
    %v1024 = vadd.f32 %v1023, %v897
    %v1025 = vadd.f32 %v1024, %v898
    %v1026 = vadd.f32 %v1025, %v899
    %v1027 = vadd.f32 %v1026, %v900
    %v1028 = vadd.f32 %v1027, %v901
    %v1029 = vadd.f32 %v1028, %v902
    %v1030 = vadd.f32 %v1029, %v903
    %v1031 = vadd.f32 %v1030, %v904
    %v1032 = vadd.f32 %v1031, %v905
    %v1033 = vadd.f32 %v1032, %v906
    %v1034 = vadd.f32 %v1033, %v907
    %v1035 = vadd.f32 %v1034, %v908
    %v1036 = vadd.f32 %v1035, %v909
    %v1037 = vadd.f32 %v1036, %v910
    %v1038 = vadd.f32 %v1037, %v911
    %v1039 = vadd.f32 %v1038, %v912
    %v1040 = vadd.f32 %v1039, %v913
    %v1041 = vadd.f32 %v1040, %v914
    %v1042 = vadd.f32 %v1041, %v915
    %v1043 = vadd.f32 %v1042, %v916
    %v1044 = vadd.f32 %v1043, %v917
    %v1045 = vadd.f32 %v1044, %v918
    %v1046 = vadd.f32 %v1045, %v919
    %v1047 = vadd.f32 %v1046, %v920
    %v1048 = vadd.f32 %v1047, %v921
    %v1049 = vadd.f32 %v1048, %v922
    %v1050 = vadd.f32 %v1049, %v923
    %v1051 = vadd.f32 %v1050, %v924
    %v1052 = vadd.f32 %v1051, %v925
    %v1053 = vadd.f32 %v1052, %v926
    %v1054 = vadd.f32 %v1053, %v927
    %v1055 = vadd.f32 %v1054, %v928
    %v1056 = vadd.f32 %v1055, %v929
    %v1057 = vadd.f32 %v1056, %v930
    %v1058 = vadd.f32 %v1057, %v931
    %v1059 = vadd.f32 %v1058, %v932
    %v1060 = vadd.f32 %v1059, %v933
    %v1061 = vadd.f32 %v1060, %v934
    %v1062 = vadd.f32 %v1061, %v935
    %v1063 = vadd.f32 %v1062, %v936
    %v1064 = vadd.f32 %v1063, %v937
    %v1065 = vadd.f32 %v1064, %v938
    %v1066 = vadd.f32 %v1065, %v939
    %v1067 = vadd.f32 %v1066, %v940
    %v1068 = vadd.f32 %v1067, %v941
    %v1069 = vadd.f32 %v1068, %v942
    %v1070 = vadd.f32 %v1069, %v943
    %v1071 = vadd.f32 %v1070, %v944
    %v1072 = vadd.f32 %v1071, %v945
    %v1073 = vadd.f32 %v1072, %v946
    %v1074 = vadd.f32 %v1073, %v947
    %v1075 = vadd.f32 %v1074, %v948
    %v1076 = vadd.f32 %v1075, %v949
    %v1077 = vadd.f32 %v1076, %v950
    %v1078 = vrot.slane %v1077, 4
    %v1079 = vadd.f32 %v1077, %v1078
    %v1080 = vrot.slane %v1079, 2
    %v1081 = vadd.f32 %v1079, %v1080
    %v1082 = vrot.slane %v1081, 1
    %v1083 = vadd.f32 %v1081, %v1082
    %v1084 = vmul.f32 %v887, %v887
    %v1085 = vmul.f32 %v888, %v888
    %v1086 = vmul.f32 %v889, %v889
    %v1087 = vmul.f32 %v890, %v890
    %v1088 = vmul.f32 %v891, %v891
    %v1089 = vmul.f32 %v892, %v892
    %v1090 = vmul.f32 %v893, %v893
    %v1091 = vmul.f32 %v894, %v894
    %v1092 = vmul.f32 %v895, %v895
    %v1093 = vmul.f32 %v896, %v896
    %v1094 = vmul.f32 %v897, %v897
    %v1095 = vmul.f32 %v898, %v898
    %v1096 = vmul.f32 %v899, %v899
    %v1097 = vmul.f32 %v900, %v900
    %v1098 = vmul.f32 %v901, %v901
    %v1099 = vmul.f32 %v902, %v902
    %v1100 = vmul.f32 %v903, %v903
    %v1101 = vmul.f32 %v904, %v904
    %v1102 = vmul.f32 %v905, %v905
    %v1103 = vmul.f32 %v906, %v906
    %v1104 = vmul.f32 %v907, %v907
    %v1105 = vmul.f32 %v908, %v908
    %v1106 = vmul.f32 %v909, %v909
    %v1107 = vmul.f32 %v910, %v910
    %v1108 = vmul.f32 %v911, %v911
    %v1109 = vmul.f32 %v912, %v912
    %v1110 = vmul.f32 %v913, %v913
    %v1111 = vmul.f32 %v914, %v914
    %v1112 = vmul.f32 %v915, %v915
    %v1113 = vmul.f32 %v916, %v916
    %v1114 = vmul.f32 %v917, %v917
    %v1115 = vmul.f32 %v918, %v918
    %v1116 = vmul.f32 %v919, %v919
    %v1117 = vmul.f32 %v920, %v920
    %v1118 = vmul.f32 %v921, %v921
    %v1119 = vmul.f32 %v922, %v922
    %v1120 = vmul.f32 %v923, %v923
    %v1121 = vmul.f32 %v924, %v924
    %v1122 = vmul.f32 %v925, %v925
    %v1123 = vmul.f32 %v926, %v926
    %v1124 = vmul.f32 %v927, %v927
    %v1125 = vmul.f32 %v928, %v928
    %v1126 = vmul.f32 %v929, %v929
    %v1127 = vmul.f32 %v930, %v930
    %v1128 = vmul.f32 %v931, %v931
    %v1129 = vmul.f32 %v932, %v932
    %v1130 = vmul.f32 %v933, %v933
    %v1131 = vmul.f32 %v934, %v934
    %v1132 = vmul.f32 %v935, %v935
    %v1133 = vmul.f32 %v936, %v936
    %v1134 = vmul.f32 %v937, %v937
    %v1135 = vmul.f32 %v938, %v938
    %v1136 = vmul.f32 %v939, %v939
    %v1137 = vmul.f32 %v940, %v940
    %v1138 = vmul.f32 %v941, %v941
    %v1139 = vmul.f32 %v942, %v942
    %v1140 = vmul.f32 %v943, %v943
    %v1141 = vmul.f32 %v944, %v944
    %v1142 = vmul.f32 %v945, %v945
    %v1143 = vmul.f32 %v946, %v946
    %v1144 = vmul.f32 %v947, %v947
    %v1145 = vmul.f32 %v948, %v948
    %v1146 = vmul.f32 %v949, %v949
    %v1147 = vmul.f32 %v950, %v950
    %v1148 = vadd.f32 %v1084, %v1085
    %v1149 = vadd.f32 %v1148, %v1086
    %v1150 = vadd.f32 %v1149, %v1087
    %v1151 = vadd.f32 %v1150, %v1088
    %v1152 = vadd.f32 %v1151, %v1089
    %v1153 = vadd.f32 %v1152, %v1090
    %v1154 = vadd.f32 %v1153, %v1091
    %v1155 = vadd.f32 %v1154, %v1092
    %v1156 = vadd.f32 %v1155, %v1093
    %v1157 = vadd.f32 %v1156, %v1094
    %v1158 = vadd.f32 %v1157, %v1095
    %v1159 = vadd.f32 %v1158, %v1096
    %v1160 = vadd.f32 %v1159, %v1097
    %v1161 = vadd.f32 %v1160, %v1098
    %v1162 = vadd.f32 %v1161, %v1099
    %v1163 = vadd.f32 %v1162, %v1100
    %v1164 = vadd.f32 %v1163, %v1101
    %v1165 = vadd.f32 %v1164, %v1102
    %v1166 = vadd.f32 %v1165, %v1103
    %v1167 = vadd.f32 %v1166, %v1104
    %v1168 = vadd.f32 %v1167, %v1105
    %v1169 = vadd.f32 %v1168, %v1106
    %v1170 = vadd.f32 %v1169, %v1107
    %v1171 = vadd.f32 %v1170, %v1108
    %v1172 = vadd.f32 %v1171, %v1109
    %v1173 = vadd.f32 %v1172, %v1110
    %v1174 = vadd.f32 %v1173, %v1111
    %v1175 = vadd.f32 %v1174, %v1112
    %v1176 = vadd.f32 %v1175, %v1113
    %v1177 = vadd.f32 %v1176, %v1114
    %v1178 = vadd.f32 %v1177, %v1115
    %v1179 = vadd.f32 %v1178, %v1116
    %v1180 = vadd.f32 %v1179, %v1117
    %v1181 = vadd.f32 %v1180, %v1118
    %v1182 = vadd.f32 %v1181, %v1119
    %v1183 = vadd.f32 %v1182, %v1120
    %v1184 = vadd.f32 %v1183, %v1121
    %v1185 = vadd.f32 %v1184, %v1122
    %v1186 = vadd.f32 %v1185, %v1123
    %v1187 = vadd.f32 %v1186, %v1124
    %v1188 = vadd.f32 %v1187, %v1125
    %v1189 = vadd.f32 %v1188, %v1126
    %v1190 = vadd.f32 %v1189, %v1127
    %v1191 = vadd.f32 %v1190, %v1128
    %v1192 = vadd.f32 %v1191, %v1129
    %v1193 = vadd.f32 %v1192, %v1130
    %v1194 = vadd.f32 %v1193, %v1131
    %v1195 = vadd.f32 %v1194, %v1132
    %v1196 = vadd.f32 %v1195, %v1133
    %v1197 = vadd.f32 %v1196, %v1134
    %v1198 = vadd.f32 %v1197, %v1135
    %v1199 = vadd.f32 %v1198, %v1136
    %v1200 = vadd.f32 %v1199, %v1137
    %v1201 = vadd.f32 %v1200, %v1138
    %v1202 = vadd.f32 %v1201, %v1139
    %v1203 = vadd.f32 %v1202, %v1140
    %v1204 = vadd.f32 %v1203, %v1141
    %v1205 = vadd.f32 %v1204, %v1142
    %v1206 = vadd.f32 %v1205, %v1143
    %v1207 = vadd.f32 %v1206, %v1144
    %v1208 = vadd.f32 %v1207, %v1145
    %v1209 = vadd.f32 %v1208, %v1146
    %v1210 = vadd.f32 %v1209, %v1147
    %v1211 = vrot.slane %v1210, 4
    %v1212 = vadd.f32 %v1210, %v1211
    %v1213 = vrot.slane %v1212, 2
    %v1214 = vadd.f32 %v1212, %v1213
    %v1215 = vrot.slane %v1214, 1
    %v1216 = vadd.f32 %v1214, %v1215
    %1217 = vst [vmem:[%s3] sm:$0xff] %v1083
    %1218 = vst [vmem:[%s4] sm:$0xff] %v1216
  $region17: #{darknet_forward.13} parent=0 // pred_fallthru
    _
  // Predicated region
  $region18: #{darknet_forward.13} parent=0 // pred_check
    _
  $region19: #{darknet_forward.13} parent=0 // pred_check_branch
    %1220 = sbr.rel (0) target = $region21
  $region20: #{darknet_forward.13} parent=0 // pred_region
    _
  $region21: #{darknet_forward.13} parent=0 // pred_fallthru
    _
  // Predicated region
  $region22: #{darknet_forward.13} parent=0 // pred_check
    _
  $region23: #{darknet_forward.13} parent=0 // pred_check_branch
    %1222 = sbr.rel (0) target = $region25
  $region24: #{darknet_forward.13} parent=0 // pred_region
    _
  $region25: #{darknet_forward.13} parent=0 // pred_fallthru
    _
  // Predicated region
  $region26: #{darknet_forward.13} parent=0 // pred_check
    _
  $region27: #{darknet_forward.13} parent=0 // pred_check_branch
    %1224 = sbr.rel (0) target = $region29
  $region28: #{darknet_forward.13} parent=0 // pred_region
    _
  $region29: #{darknet_forward.13} parent=0 // pred_fallthru
    _
  // Predicated region
  $region30: #{darknet_forward.13} parent=0 // pred_check
    _
  $region31: #{darknet_forward.13} parent=0 // pred_check_branch
    %1226 = sbr.rel (0) target = $region33
  $region32: #{darknet_forward.13} parent=0 // pred_region
    _
  $region33: #{darknet_forward.13} parent=0 // pred_fallthru
    _
  // Predicated region
  $region34: #{darknet_forward.13} parent=0 // pred_check
    _
  $region35: #{darknet_forward.13} parent=0 // pred_check_branch
    %1228 = sbr.rel (0) target = $region37
  $region36: #{darknet_forward.13} parent=0 // pred_region
    _
  $region37: #{darknet_forward.13} parent=0 // pred_fallthru
    _
  // Predicated region
  $region38: #{darknet_forward.13} parent=0 // pred_check
    _
  $region39: #{darknet_forward.13} parent=0 // pred_check_branch
    %1230 = sbr.rel (0) target = $region41
  $region40: #{darknet_forward.13} parent=0 // pred_region
    _
  $region41: #{darknet_forward.13} parent=0 // pred_fallthru
    _

// kernel: darknet_forward.14
$region0: #{darknet_forward.14}
  #allocation0 [shape = 'u32[]', space=smem, size = 0x4, offset = 0x4, fixed_abs, tag = 'smem constant byte address 0x4 - core index']
  #allocation1 [shape = 'u32[144,128]{1,0:T(1,128)}', space=vmem, size = 0x12000, scoped, tag = 'internal scratch']
  %s0 = inlined_call_operand.vmem [shape: f32[512,128], index: 0, kind: input, shape index: {}]
  %s1 = inlined_call_operand.vmem [shape: f32[1,128], index: 1, kind: input, shape index: {}]
  %s2 = inlined_call_operand.vmem [shape: f32[1,128], index: 2, kind: input, shape index: {}]
  %s3 = inlined_call_operand.vmem [shape: bf16[512,128], index: 3, kind: output, shape index: {}]
  %s4 = sld [smem:[#allocation0]]
  $region22: #{darknet_forward.14} parent=0
    _
  %s6 = ssub.s32 1, %s4
  %s7 = scalar_select 0, %s6, %s4
  // Predicated region
  $region2: #{darknet_forward.14} parent=0 // pred_check
    _
  $region3: #{darknet_forward.14} parent=0 // pred_check_branch
    %9 = sbr.rel (0) target = $region5
  $region4: #{darknet_forward.14} parent=0 // pred_region
    _
  $region5: #{darknet_forward.14} parent=0 // pred_fallthru
    _
  // Predicated region
  $region6: #{darknet_forward.14} parent=0 // pred_check
    _
  $region7: #{darknet_forward.14} parent=0 // pred_check_branch
    %11 = sbr.rel (0) target = $region9
  $region8: #{darknet_forward.14} parent=0 // pred_region
    _
  $region9: #{darknet_forward.14} parent=0 // pred_fallthru
    _
  // Predicated region
  $region10: #{darknet_forward.14} parent=0 // pred_check
    _
  $region11: #{darknet_forward.14} parent=0 // pred_check_branch
    %13 = sbr.rel (0) target = $region13
  $region12: #{darknet_forward.14} parent=0 // pred_region
    _
  $region13: #{darknet_forward.14} parent=0 // pred_fallthru
    _
  %v14 = vld [vmem:[%s0] sm:$0xff]
  %v15 = vld [vmem:[%s0 + $0x8] sm:$0xff]
  %v16 = vld [vmem:[%s0 + $0x10] sm:$0xff]
  %v17 = vld [vmem:[%s0 + $0x18] sm:$0xff]
  %v18 = vld [vmem:[%s0 + $0x20] sm:$0xff]
  %v19 = vld [vmem:[%s0 + $0x28] sm:$0xff]
  %v20 = vld [vmem:[%s0 + $0x30] sm:$0xff]
  %v21 = vld [vmem:[%s0 + $0x38] sm:$0xff]
  %v22 = vld [vmem:[%s0 + $0x40] sm:$0xff]
  %v23 = vld [vmem:[%s0 + $0x48] sm:$0xff]
  %v24 = vld [vmem:[%s0 + $0x50] sm:$0xff]
  %v25 = vld [vmem:[%s0 + $0x58] sm:$0xff]
  %v26 = vld [vmem:[%s0 + $0x60] sm:$0xff]
  %v27 = vld [vmem:[%s0 + $0x68] sm:$0xff]
  %v28 = vld [vmem:[%s0 + $0x70] sm:$0xff]
  %v29 = vld [vmem:[%s0 + $0x78] sm:$0xff]
  %v30 = vld [vmem:[%s0 + $0x80] sm:$0xff]
  %v31 = vld [vmem:[%s0 + $0x88] sm:$0xff]
  %v32 = vld [vmem:[%s0 + $0x90] sm:$0xff]
  %v33 = vld [vmem:[%s0 + $0x98] sm:$0xff]
  %v34 = vld [vmem:[%s0 + $0xa0] sm:$0xff]
  %v35 = vld [vmem:[%s0 + $0xa8] sm:$0xff]
  %v36 = vld [vmem:[%s0 + $0xb0] sm:$0xff]
  %v37 = vld [vmem:[%s0 + $0xb8] sm:$0xff]
  %v38 = vld [vmem:[%s0 + $0xc0] sm:$0xff]
  %v39 = vld [vmem:[%s0 + $0xc8] sm:$0xff]
  %v40 = vld [vmem:[%s0 + $0xd0] sm:$0xff]
  %v41 = vld [vmem:[%s0 + $0xd8] sm:$0xff]
  %v42 = vld [vmem:[%s0 + $0xe0] sm:$0xff]
  %v43 = vld [vmem:[%s0 + $0xe8] sm:$0xff]
  %v44 = vld [vmem:[%s0 + $0xf0] sm:$0xff]
  %v45 = vld [vmem:[%s0 + $0xf8] sm:$0xff]
  %v46 = vld [vmem:[%s0 + $0x100] sm:$0xff]
  %v47 = vld [vmem:[%s0 + $0x108] sm:$0xff]
  %v48 = vld [vmem:[%s0 + $0x110] sm:$0xff]
  %v49 = vld [vmem:[%s0 + $0x118] sm:$0xff]
  %v50 = vld [vmem:[%s0 + $0x120] sm:$0xff]
  %v51 = vld [vmem:[%s0 + $0x128] sm:$0xff]
  %v52 = vld [vmem:[%s0 + $0x130] sm:$0xff]
  %v53 = vld [vmem:[%s0 + $0x138] sm:$0xff]
  %v54 = vld [vmem:[%s0 + $0x140] sm:$0xff]
  %v55 = vld [vmem:[%s0 + $0x148] sm:$0xff]
  %v56 = vld [vmem:[%s0 + $0x150] sm:$0xff]
  %v57 = vld [vmem:[%s0 + $0x158] sm:$0xff]
  %v58 = vld [vmem:[%s0 + $0x160] sm:$0xff]
  %v59 = vld [vmem:[%s0 + $0x168] sm:$0xff]
  %v60 = vld [vmem:[%s0 + $0x170] sm:$0xff]
  %v61 = vld [vmem:[%s0 + $0x178] sm:$0xff]
  %v62 = vld [vmem:[%s0 + $0x180] sm:$0xff]
  %v63 = vld [vmem:[%s0 + $0x188] sm:$0xff]
  %v64 = vld [vmem:[%s0 + $0x190] sm:$0xff]
  %v65 = vld [vmem:[%s0 + $0x198] sm:$0xff]
  %v66 = vld [vmem:[%s0 + $0x1a0] sm:$0xff]
  %v67 = vld [vmem:[%s0 + $0x1a8] sm:$0xff]
  %v68 = vld [vmem:[%s0 + $0x1b0] sm:$0xff]
  %v69 = vld [vmem:[%s0 + $0x1b8] sm:$0xff]
  %v70 = vld [vmem:[%s0 + $0x1c0] sm:$0xff]
  %v71 = vld [vmem:[%s0 + $0x1c8] sm:$0xff]
  %v72 = vld [vmem:[%s0 + $0x1d0] sm:$0xff]
  %v73 = vld [vmem:[%s0 + $0x1d8] sm:$0xff]
  %v74 = vld [vmem:[%s0 + $0x1e0] sm:$0xff]
  %v75 = vld [vmem:[%s0 + $0x1e8] sm:$0xff]
  %v76 = vld [vmem:[%s0 + $0x1f0] sm:$0xff]
  %v77 = vld [vmem:[%s0 + $0x1f8] sm:$0xff]
  %v78 = vld [vmem:[%s1] sm:$0x1]
  %v80 = vlaneseq
  %v81 = vshrl.u32 %v80, 7
  %v82 = vsub.s32 0, %v81
  %v83 = vrot.slane %v78, %v82
  %v85 = vmul.f32 %v14, %v83
  %v86 = vmul.f32 %v15, %v83
  %v87 = vmul.f32 %v16, %v83
  %v88 = vmul.f32 %v17, %v83
  %v89 = vmul.f32 %v18, %v83
  %v90 = vmul.f32 %v19, %v83
  %v91 = vmul.f32 %v20, %v83
  %v92 = vmul.f32 %v21, %v83
  %v93 = vmul.f32 %v22, %v83
  %v94 = vmul.f32 %v23, %v83
  %v95 = vmul.f32 %v24, %v83
  %v96 = vmul.f32 %v25, %v83
  %v97 = vmul.f32 %v26, %v83
  %v98 = vmul.f32 %v27, %v83
  %v99 = vmul.f32 %v28, %v83
  %v100 = vmul.f32 %v29, %v83
  %v101 = vmul.f32 %v30, %v83
  %v102 = vmul.f32 %v31, %v83
  %v103 = vmul.f32 %v32, %v83
  %v104 = vmul.f32 %v33, %v83
  %v105 = vmul.f32 %v34, %v83
  %v106 = vmul.f32 %v35, %v83
  %v107 = vmul.f32 %v36, %v83
  %v108 = vmul.f32 %v37, %v83
  %v109 = vmul.f32 %v38, %v83
  %v110 = vmul.f32 %v39, %v83
  %v111 = vmul.f32 %v40, %v83
  %v112 = vmul.f32 %v41, %v83
  %v113 = vmul.f32 %v42, %v83
  %v114 = vmul.f32 %v43, %v83
  %v115 = vmul.f32 %v44, %v83
  %v116 = vmul.f32 %v45, %v83
  %v117 = vmul.f32 %v46, %v83
  %v118 = vmul.f32 %v47, %v83
  %v119 = vmul.f32 %v48, %v83
  %v120 = vmul.f32 %v49, %v83
  %v121 = vmul.f32 %v50, %v83
  %v122 = vmul.f32 %v51, %v83
  %v123 = vmul.f32 %v52, %v83
  %v124 = vmul.f32 %v53, %v83
  %v125 = vmul.f32 %v54, %v83
  %v126 = vmul.f32 %v55, %v83
  %v127 = vmul.f32 %v56, %v83
  %v128 = vmul.f32 %v57, %v83
  %v129 = vmul.f32 %v58, %v83
  %v130 = vmul.f32 %v59, %v83
  %v131 = vmul.f32 %v60, %v83
  %v132 = vmul.f32 %v61, %v83
  %v133 = vmul.f32 %v62, %v83
  %v134 = vmul.f32 %v63, %v83
  %v135 = vmul.f32 %v64, %v83
  %v136 = vmul.f32 %v65, %v83
  %v137 = vmul.f32 %v66, %v83
  %v138 = vmul.f32 %v67, %v83
  %v139 = vmul.f32 %v68, %v83
  %v140 = vmul.f32 %v69, %v83
  %v141 = vmul.f32 %v70, %v83
  %v142 = vmul.f32 %v71, %v83
  %v143 = vmul.f32 %v72, %v83
  %v144 = vmul.f32 %v73, %v83
  %v145 = vmul.f32 %v74, %v83
  %v146 = vmul.f32 %v75, %v83
  %v147 = vmul.f32 %v76, %v83
  %v148 = vmul.f32 %v77, %v83
  %v149 = vld [vmem:[%s2] sm:$0x1]
  %v151 = vlaneseq
  %v152 = vshrl.u32 %v151, 7
  %v153 = vsub.s32 0, %v152
  %v154 = vrot.slane %v149, %v153
  %v156 = vadd.f32 %v85, %v154
  %v157 = vadd.f32 %v86, %v154
  %v158 = vadd.f32 %v87, %v154
  %v159 = vadd.f32 %v88, %v154
  %v160 = vadd.f32 %v89, %v154
  %v161 = vadd.f32 %v90, %v154
  %v162 = vadd.f32 %v91, %v154
  %v163 = vadd.f32 %v92, %v154
  %v164 = vadd.f32 %v93, %v154
  %v165 = vadd.f32 %v94, %v154
  %v166 = vadd.f32 %v95, %v154
  %v167 = vadd.f32 %v96, %v154
  %v168 = vadd.f32 %v97, %v154
  %v169 = vadd.f32 %v98, %v154
  %v170 = vadd.f32 %v99, %v154
  %v171 = vadd.f32 %v100, %v154
  %v172 = vadd.f32 %v101, %v154
  %v173 = vadd.f32 %v102, %v154
  %v174 = vadd.f32 %v103, %v154
  %v175 = vadd.f32 %v104, %v154
  %v176 = vadd.f32 %v105, %v154
  %v177 = vadd.f32 %v106, %v154
  %v178 = vadd.f32 %v107, %v154
  %v179 = vadd.f32 %v108, %v154
  %v180 = vadd.f32 %v109, %v154
  %v181 = vadd.f32 %v110, %v154
  %v182 = vadd.f32 %v111, %v154
  %v183 = vadd.f32 %v112, %v154
  %v184 = vadd.f32 %v113, %v154
  %v185 = vadd.f32 %v114, %v154
  %v186 = vadd.f32 %v115, %v154
  %v187 = vadd.f32 %v116, %v154
  %v188 = vadd.f32 %v117, %v154
  %v189 = vadd.f32 %v118, %v154
  %v190 = vadd.f32 %v119, %v154
  %v191 = vadd.f32 %v120, %v154
  %v192 = vadd.f32 %v121, %v154
  %v193 = vadd.f32 %v122, %v154
  %v194 = vadd.f32 %v123, %v154
  %v195 = vadd.f32 %v124, %v154
  %v196 = vadd.f32 %v125, %v154
  %v197 = vadd.f32 %v126, %v154
  %v198 = vadd.f32 %v127, %v154
  %v199 = vadd.f32 %v128, %v154
  %v200 = vadd.f32 %v129, %v154
  %v201 = vadd.f32 %v130, %v154
  %v202 = vadd.f32 %v131, %v154
  %v203 = vadd.f32 %v132, %v154
  %v204 = vadd.f32 %v133, %v154
  %v205 = vadd.f32 %v134, %v154
  %v206 = vadd.f32 %v135, %v154
  %v207 = vadd.f32 %v136, %v154
  %v208 = vadd.f32 %v137, %v154
  %v209 = vadd.f32 %v138, %v154
  %v210 = vadd.f32 %v139, %v154
  %v211 = vadd.f32 %v140, %v154
  %v212 = vadd.f32 %v141, %v154
  %v213 = vadd.f32 %v142, %v154
  %v214 = vadd.f32 %v143, %v154
  %v215 = vadd.f32 %v144, %v154
  %v216 = vadd.f32 %v145, %v154
  %v217 = vadd.f32 %v146, %v154
  %v218 = vadd.f32 %v147, %v154
  %v219 = vadd.f32 %v148, %v154
  %v220 = vmax.f32 %v156, 0.0
  %v221 = vmax.f32 %v157, 0.0
  %v222 = vmax.f32 %v158, 0.0
  %v223 = vmax.f32 %v159, 0.0
  %v224 = vmax.f32 %v160, 0.0
  %v225 = vmax.f32 %v161, 0.0
  %v226 = vmax.f32 %v162, 0.0
  %v227 = vmax.f32 %v163, 0.0
  %v228 = vmax.f32 %v164, 0.0
  %v229 = vmax.f32 %v165, 0.0
  %v230 = vmax.f32 %v166, 0.0
  %v231 = vmax.f32 %v167, 0.0
  %v232 = vmax.f32 %v168, 0.0
  %v233 = vmax.f32 %v169, 0.0
  %v234 = vmax.f32 %v170, 0.0
  %v235 = vmax.f32 %v171, 0.0
  %v236 = vmax.f32 %v172, 0.0
  %v237 = vmax.f32 %v173, 0.0
  %v238 = vmax.f32 %v174, 0.0
  %v239 = vmax.f32 %v175, 0.0
  %v240 = vmax.f32 %v176, 0.0
  %v241 = vmax.f32 %v177, 0.0
  %v242 = vmax.f32 %v178, 0.0
  %v243 = vmax.f32 %v179, 0.0
  %v244 = vmax.f32 %v180, 0.0
  %v245 = vmax.f32 %v181, 0.0
  %v246 = vmax.f32 %v182, 0.0
  %v247 = vmax.f32 %v183, 0.0
  %v248 = vmax.f32 %v184, 0.0
  %v249 = vmax.f32 %v185, 0.0
  %v250 = vmax.f32 %v186, 0.0
  %v251 = vmax.f32 %v187, 0.0
  %v252 = vmax.f32 %v188, 0.0
  %v253 = vmax.f32 %v189, 0.0
  %v254 = vmax.f32 %v190, 0.0
  %v255 = vmax.f32 %v191, 0.0
  %v256 = vmax.f32 %v192, 0.0
  %v257 = vmax.f32 %v193, 0.0
  %v258 = vmax.f32 %v194, 0.0
  %v259 = vmax.f32 %v195, 0.0
  %v260 = vmax.f32 %v196, 0.0
  %v261 = vmax.f32 %v197, 0.0
  %v262 = vmax.f32 %v198, 0.0
  %v263 = vmax.f32 %v199, 0.0
  %v264 = vmax.f32 %v200, 0.0
  %v265 = vmax.f32 %v201, 0.0
  %v266 = vmax.f32 %v202, 0.0
  %v267 = vmax.f32 %v203, 0.0
  %v268 = vmax.f32 %v204, 0.0
  %v269 = vmax.f32 %v205, 0.0
  %v270 = vmax.f32 %v206, 0.0
  %v271 = vmax.f32 %v207, 0.0
  %v272 = vmax.f32 %v208, 0.0
  %v273 = vmax.f32 %v209, 0.0
  %v274 = vmax.f32 %v210, 0.0
  %v275 = vmax.f32 %v211, 0.0
  %v276 = vmax.f32 %v212, 0.0
  %v277 = vmax.f32 %v213, 0.0
  %v278 = vmax.f32 %v214, 0.0
  %v279 = vmax.f32 %v215, 0.0
  %v280 = vmax.f32 %v216, 0.0
  %v281 = vmax.f32 %v217, 0.0
  %v282 = vmax.f32 %v218, 0.0
  %v283 = vmax.f32 %v219, 0.0
  %v284 = vpack.c.bf16 %v221, %v220
  %v285 = vpack.c.bf16 %v223, %v222
  %v286 = vpack.c.bf16 %v225, %v224
  %v287 = vpack.c.bf16 %v227, %v226
  %v288 = vpack.c.bf16 %v229, %v228
  %v289 = vpack.c.bf16 %v231, %v230
  %v290 = vpack.c.bf16 %v233, %v232
  %v291 = vpack.c.bf16 %v235, %v234
  %v292 = vpack.c.bf16 %v237, %v236
  %v293 = vpack.c.bf16 %v239, %v238
  %v294 = vpack.c.bf16 %v241, %v240
  %v295 = vpack.c.bf16 %v243, %v242
  %v296 = vpack.c.bf16 %v245, %v244
  %v297 = vpack.c.bf16 %v247, %v246
  %v298 = vpack.c.bf16 %v249, %v248
  %v299 = vpack.c.bf16 %v251, %v250
  %v300 = vpack.c.bf16 %v253, %v252
  %v301 = vpack.c.bf16 %v255, %v254
  %v302 = vpack.c.bf16 %v257, %v256
  %v303 = vpack.c.bf16 %v259, %v258
  %v304 = vpack.c.bf16 %v261, %v260
  %v305 = vpack.c.bf16 %v263, %v262
  %v306 = vpack.c.bf16 %v265, %v264
  %v307 = vpack.c.bf16 %v267, %v266
  %v308 = vpack.c.bf16 %v269, %v268
  %v309 = vpack.c.bf16 %v271, %v270
  %v310 = vpack.c.bf16 %v273, %v272
  %v311 = vpack.c.bf16 %v275, %v274
  %v312 = vpack.c.bf16 %v277, %v276
  %v313 = vpack.c.bf16 %v279, %v278
  %v314 = vpack.c.bf16 %v281, %v280
  %v315 = vpack.c.bf16 %v283, %v282
  %v348 = vunpack.c.l.b16 %v284
  %v349 = vunpack.c.h.b16 %v284
  %v350 = vunpack.c.l.b16 %v285
  %v351 = vunpack.c.h.b16 %v285
  %v352 = vunpack.c.l.b16 %v286
  %v353 = vunpack.c.h.b16 %v286
  %v354 = vunpack.c.l.b16 %v287
  %v355 = vunpack.c.h.b16 %v287
  %v356 = vunpack.c.l.b16 %v288
  %v357 = vunpack.c.h.b16 %v288
  %v358 = vunpack.c.l.b16 %v289
  %v359 = vunpack.c.h.b16 %v289
  %v360 = vunpack.c.l.b16 %v290
  %v361 = vunpack.c.h.b16 %v290
  %v362 = vunpack.c.l.b16 %v291
  %v363 = vunpack.c.h.b16 %v291
  %v364 = vunpack.c.l.b16 %v292
  %v365 = vunpack.c.h.b16 %v292
  %v366 = vunpack.c.l.b16 %v293
  %v367 = vunpack.c.h.b16 %v293
  %v368 = vunpack.c.l.b16 %v294
  %v369 = vunpack.c.h.b16 %v294
  %v370 = vunpack.c.l.b16 %v295
  %v371 = vunpack.c.h.b16 %v295
  %v372 = vunpack.c.l.b16 %v296
  %v373 = vunpack.c.h.b16 %v296
  %v374 = vunpack.c.l.b16 %v297
  %v375 = vunpack.c.h.b16 %v297
  %v376 = vunpack.c.l.b16 %v298
  %v377 = vunpack.c.h.b16 %v298
  %v378 = vunpack.c.l.b16 %v299
  %v379 = vunpack.c.h.b16 %v299
  %v380 = vunpack.c.l.b16 %v300
  %v381 = vunpack.c.h.b16 %v300
  %v382 = vunpack.c.l.b16 %v301
  %v383 = vunpack.c.h.b16 %v301
  %v384 = vunpack.c.l.b16 %v302
  %v385 = vunpack.c.h.b16 %v302
  %v386 = vunpack.c.l.b16 %v303
  %v387 = vunpack.c.h.b16 %v303
  %v388 = vunpack.c.l.b16 %v304
  %v389 = vunpack.c.h.b16 %v304
  %v390 = vunpack.c.l.b16 %v305
  %v391 = vunpack.c.h.b16 %v305
  %v392 = vunpack.c.l.b16 %v306
  %v393 = vunpack.c.h.b16 %v306
  %v394 = vunpack.c.l.b16 %v307
  %v395 = vunpack.c.h.b16 %v307
  %v396 = vunpack.c.l.b16 %v308
  %v397 = vunpack.c.h.b16 %v308
  %v398 = vunpack.c.l.b16 %v309
  %v399 = vunpack.c.h.b16 %v309
  %v400 = vunpack.c.l.b16 %v310
  %v401 = vunpack.c.h.b16 %v310
  %v402 = vunpack.c.l.b16 %v311
  %v403 = vunpack.c.h.b16 %v311
  %v404 = vunpack.c.l.b16 %v312
  %v405 = vunpack.c.h.b16 %v312
  %v406 = vunpack.c.l.b16 %v313
  %v407 = vunpack.c.h.b16 %v313
  %v408 = vunpack.c.l.b16 %v314
  %v409 = vunpack.c.h.b16 %v314
  %v410 = vunpack.c.l.b16 %v315
  %v411 = vunpack.c.h.b16 %v315
  %v412 = vpack.c.b16 %v348, %v348
  %v413 = vpack.c.b16 %v349, %v349
  %v414 = vpack.c.b16 %v350, %v350
  %v415 = vpack.c.b16 %v351, %v351
  %v416 = vpack.c.b16 %v352, %v352
  %v417 = vpack.c.b16 %v353, %v353
  %v418 = vpack.c.b16 %v354, %v354
  %v419 = vpack.c.b16 %v355, %v355
  %v420 = vpack.c.b16 %v356, %v356
  %v421 = vpack.c.b16 %v357, %v357
  %v422 = vpack.c.b16 %v358, %v358
  %v423 = vpack.c.b16 %v359, %v359
  %v424 = vpack.c.b16 %v360, %v360
  %v425 = vpack.c.b16 %v361, %v361
  %v426 = vpack.c.b16 %v362, %v362
  %v427 = vpack.c.b16 %v363, %v363
  %v428 = vpack.c.b16 %v364, %v364
  %v429 = vpack.c.b16 %v365, %v365
  %v430 = vpack.c.b16 %v366, %v366
  %v431 = vpack.c.b16 %v367, %v367
  %v432 = vpack.c.b16 %v368, %v368
  %v433 = vpack.c.b16 %v369, %v369
  %v434 = vpack.c.b16 %v370, %v370
  %v435 = vpack.c.b16 %v371, %v371
  %v436 = vpack.c.b16 %v372, %v372
  %v437 = vpack.c.b16 %v373, %v373
  %v438 = vpack.c.b16 %v374, %v374
  %v439 = vpack.c.b16 %v375, %v375
  %v440 = vpack.c.b16 %v376, %v376
  %v441 = vpack.c.b16 %v377, %v377
  %v442 = vpack.c.b16 %v378, %v378
  %v443 = vpack.c.b16 %v379, %v379
  %v444 = vpack.c.b16 %v380, %v380
  %v445 = vpack.c.b16 %v381, %v381
  %v446 = vpack.c.b16 %v382, %v382
  %v447 = vpack.c.b16 %v383, %v383
  %v448 = vpack.c.b16 %v384, %v384
  %v449 = vpack.c.b16 %v385, %v385
  %v450 = vpack.c.b16 %v386, %v386
  %v451 = vpack.c.b16 %v387, %v387
  %v452 = vpack.c.b16 %v388, %v388
  %v453 = vpack.c.b16 %v389, %v389
  %v454 = vpack.c.b16 %v390, %v390
  %v455 = vpack.c.b16 %v391, %v391
  %v456 = vpack.c.b16 %v392, %v392
  %v457 = vpack.c.b16 %v393, %v393
  %v458 = vpack.c.b16 %v394, %v394
  %v459 = vpack.c.b16 %v395, %v395
  %v460 = vpack.c.b16 %v396, %v396
  %v461 = vpack.c.b16 %v397, %v397
  %v462 = vpack.c.b16 %v398, %v398
  %v463 = vpack.c.b16 %v399, %v399
  %v464 = vpack.c.b16 %v400, %v400
  %v465 = vpack.c.b16 %v401, %v401
  %v466 = vpack.c.b16 %v402, %v402
  %v467 = vpack.c.b16 %v403, %v403
  %v468 = vpack.c.b16 %v404, %v404
  %v469 = vpack.c.b16 %v405, %v405
  %v470 = vpack.c.b16 %v406, %v406
  %v471 = vpack.c.b16 %v407, %v407
  %v472 = vpack.c.b16 %v408, %v408
  %v473 = vpack.c.b16 %v409, %v409
  %v474 = vpack.c.b16 %v410, %v410
  %v475 = vpack.c.b16 %v411, %v411
  %540 = vst [vmem:[%s3] sm:$0xf] %v412
  %541 = vst [vmem:[%s3 + $0x4] sm:$0xf] %v413
  %542 = vst [vmem:[%s3 + $0x8] sm:$0xf] %v414
  %543 = vst [vmem:[%s3 + $0xc] sm:$0xf] %v415
  %544 = vst [vmem:[%s3 + $0x10] sm:$0xf] %v416
  %545 = vst [vmem:[%s3 + $0x14] sm:$0xf] %v417
  %546 = vst [vmem:[%s3 + $0x18] sm:$0xf] %v418
  %547 = vst [vmem:[%s3 + $0x1c] sm:$0xf] %v419
  %548 = vst [vmem:[%s3 + $0x20] sm:$0xf] %v420
  %549 = vst [vmem:[%s3 + $0x24] sm:$0xf] %v421
  %550 = vst [vmem:[%s3 + $0x28] sm:$0xf] %v422
  %551 = vst [vmem:[%s3 + $0x2c] sm:$0xf] %v423
  %552 = vst [vmem:[%s3 + $0x30] sm:$0xf] %v424
  %553 = vst [vmem:[%s3 + $0x34] sm:$0xf] %v425
  %554 = vst [vmem:[%s3 + $0x38] sm:$0xf] %v426
  %555 = vst [vmem:[%s3 + $0x3c] sm:$0xf] %v427
  %556 = vst [vmem:[%s3 + $0x40] sm:$0xf] %v428
  %557 = vst [vmem:[%s3 + $0x44] sm:$0xf] %v429
  %558 = vst [vmem:[%s3 + $0x48] sm:$0xf] %v430
  %559 = vst [vmem:[%s3 + $0x4c] sm:$0xf] %v431
  %560 = vst [vmem:[%s3 + $0x50] sm:$0xf] %v432
  %561 = vst [vmem:[%s3 + $0x54] sm:$0xf] %v433
  %562 = vst [vmem:[%s3 + $0x58] sm:$0xf] %v434
  %563 = vst [vmem:[%s3 + $0x5c] sm:$0xf] %v435
  %564 = vst [vmem:[%s3 + $0x60] sm:$0xf] %v436
  %565 = vst [vmem:[%s3 + $0x64] sm:$0xf] %v437
  %566 = vst [vmem:[%s3 + $0x68] sm:$0xf] %v438
  %567 = vst [vmem:[%s3 + $0x6c] sm:$0xf] %v439
  %568 = vst [vmem:[%s3 + $0x70] sm:$0xf] %v440
  %569 = vst [vmem:[%s3 + $0x74] sm:$0xf] %v441
  %570 = vst [vmem:[%s3 + $0x78] sm:$0xf] %v442
  %571 = vst [vmem:[%s3 + $0x7c] sm:$0xf] %v443
  %572 = vst [vmem:[%s3 + $0x80] sm:$0xf] %v444
  %573 = vst [vmem:[%s3 + $0x84] sm:$0xf] %v445
  %574 = vst [vmem:[%s3 + $0x88] sm:$0xf] %v446
  %575 = vst [vmem:[%s3 + $0x8c] sm:$0xf] %v447
  %576 = vst [vmem:[%s3 + $0x90] sm:$0xf] %v448
  %577 = vst [vmem:[%s3 + $0x94] sm:$0xf] %v449
  %578 = vst [vmem:[%s3 + $0x98] sm:$0xf] %v450
  %579 = vst [vmem:[%s3 + $0x9c] sm:$0xf] %v451
  %580 = vst [vmem:[%s3 + $0xa0] sm:$0xf] %v452
  %581 = vst [vmem:[%s3 + $0xa4] sm:$0xf] %v453
  %582 = vst [vmem:[%s3 + $0xa8] sm:$0xf] %v454
  %583 = vst [vmem:[%s3 + $0xac] sm:$0xf] %v455
  %584 = vst [vmem:[%s3 + $0xb0] sm:$0xf] %v456
  %585 = vst [vmem:[%s3 + $0xb4] sm:$0xf] %v457
  %586 = vst [vmem:[%s3 + $0xb8] sm:$0xf] %v458
  %587 = vst [vmem:[%s3 + $0xbc] sm:$0xf] %v459
  %588 = vst [vmem:[%s3 + $0xc0] sm:$0xf] %v460
  %589 = vst [vmem:[%s3 + $0xc4] sm:$0xf] %v461
  %590 = vst [vmem:[%s3 + $0xc8] sm:$0xf] %v462
  %591 = vst [vmem:[%s3 + $0xcc] sm:$0xf] %v463
  %592 = vst [vmem:[%s3 + $0xd0] sm:$0xf] %v464
  %593 = vst [vmem:[%s3 + $0xd4] sm:$0xf] %v465
  %594 = vst [vmem:[%s3 + $0xd8] sm:$0xf] %v466
  %595 = vst [vmem:[%s3 + $0xdc] sm:$0xf] %v467
  %596 = vst [vmem:[%s3 + $0xe0] sm:$0xf] %v468
  %597 = vst [vmem:[%s3 + $0xe4] sm:$0xf] %v469
  %598 = vst [vmem:[%s3 + $0xe8] sm:$0xf] %v470
  %599 = vst [vmem:[%s3 + $0xec] sm:$0xf] %v471
  %600 = vst [vmem:[%s3 + $0xf0] sm:$0xf] %v472
  %601 = vst [vmem:[%s3 + $0xf4] sm:$0xf] %v473
  %602 = vst [vmem:[%s3 + $0xf8] sm:$0xf] %v474
  %603 = vst [vmem:[%s3 + $0xfc] sm:$0xf] %v475
  // Predicated region
  $region14: #{darknet_forward.14} parent=0 // pred_check
    _
  $region15: #{darknet_forward.14} parent=0 // pred_check_branch
    %605 = sbr.rel (0) target = $region17
  $region16: #{darknet_forward.14} parent=0 // pred_region
    _
  $region17: #{darknet_forward.14} parent=0 // pred_fallthru
    _
  // Predicated region
  $region18: #{darknet_forward.14} parent=0 // pred_check
    _
  $region19: #{darknet_forward.14} parent=0 // pred_check_branch
    %607 = sbr.rel (0) target = $region21
  $region20: #{darknet_forward.14} parent=0 // pred_region
    _
  $region21: #{darknet_forward.14} parent=0 // pred_fallthru
    _

// kernel: darknet_forward.16
$region0: #{darknet_forward.16}
  #allocation0 [shape = 'u32[]', space=smem, size = 0x4, offset = 0x4, fixed_abs, tag = 'smem constant byte address 0x4 - core index']
  #allocation1 [shape = 'u32[144,128]{1,0:T(1,128)}', space=vmem, size = 0x12000, scoped, tag = 'internal scratch']
  #allocation2 [shape = 'f32[128,128]{1,0:T(8,128)}', space=vmem, size = 0x10000, scoped, tag = 'scratch operand']
  %s0 = inlined_call_operand.vmem [shape: bf16[128,128], index: 0, kind: input, shape index: {}]
  %s1 = inlined_call_operand.vmem [shape: bf16[128,128], index: 1, kind: input, shape index: {}]
  %s2 = inlined_call_operand.vmem [shape: f32[128,128], index: 2, kind: output, shape index: {0}]
  %s3 = inlined_call_operand.vmem [shape: f32[1,8,128], index: 3, kind: output, shape index: {1}]
  %s4 = inlined_call_operand.vmem [shape: f32[1,8,128], index: 4, kind: output, shape index: {2}]
  %5 = xla_tuple %s2, %s3, %s4
  %s6 = sld [smem:[#allocation0]]
  $region42: #{darknet_forward.16} parent=0
    _
  %s8 = ssub.s32 1, %s6
  %s9 = scalar_select 0, %s8, %s6
  // Predicated region
  $region2: #{darknet_forward.16} parent=0 // pred_check
    _
  $region3: #{darknet_forward.16} parent=0 // pred_check_branch
    %11 = sbr.rel (0) target = $region5
  $region4: #{darknet_forward.16} parent=0 // pred_region
    _
  $region5: #{darknet_forward.16} parent=0 // pred_fallthru
    _
  // Predicated region
  $region6: #{darknet_forward.16} parent=0 // pred_check
    _
  $region7: #{darknet_forward.16} parent=0 // pred_check_branch
    %13 = sbr.rel (0) target = $region9
  $region8: #{darknet_forward.16} parent=0 // pred_region
    _
  $region9: #{darknet_forward.16} parent=0 // pred_fallthru
    _
  %p15 = scmp.eq.s32.totalorder 0, 0
  // Predicated region
  $region10: #{darknet_forward.16} parent=0 // pred_check
    %p16 = pneg %p15
  $region11: #{darknet_forward.16} parent=0 // pred_check_branch
    %18 = sbr.rel (%p16) target = $region13
  $region12: #{darknet_forward.16} parent=0 // pred_region
    %19 = vst [vmem:[#allocation2] sm:$0xff] 0.0
    %20 = vst [vmem:[#allocation2 + $0x8] sm:$0xff] 0.0
    %21 = vst [vmem:[#allocation2 + $0x10] sm:$0xff] 0.0
    %22 = vst [vmem:[#allocation2 + $0x18] sm:$0xff] 0.0
    %23 = vst [vmem:[#allocation2 + $0x20] sm:$0xff] 0.0
    %24 = vst [vmem:[#allocation2 + $0x28] sm:$0xff] 0.0
    %25 = vst [vmem:[#allocation2 + $0x30] sm:$0xff] 0.0
    %26 = vst [vmem:[#allocation2 + $0x38] sm:$0xff] 0.0
    %27 = vst [vmem:[#allocation2 + $0x40] sm:$0xff] 0.0
    %28 = vst [vmem:[#allocation2 + $0x48] sm:$0xff] 0.0
    %29 = vst [vmem:[#allocation2 + $0x50] sm:$0xff] 0.0
    %30 = vst [vmem:[#allocation2 + $0x58] sm:$0xff] 0.0
    %31 = vst [vmem:[#allocation2 + $0x60] sm:$0xff] 0.0
    %32 = vst [vmem:[#allocation2 + $0x68] sm:$0xff] 0.0
    %33 = vst [vmem:[#allocation2 + $0x70] sm:$0xff] 0.0
    %34 = vst [vmem:[#allocation2 + $0x78] sm:$0xff] 0.0
  $region13: #{darknet_forward.16} parent=0 // pred_fallthru
    _
  %v35 = vld [vmem:[#allocation2] sm:$0xff]
  %v36 = vld [vmem:[#allocation2 + $0x8] sm:$0xff]
  %v37 = vld [vmem:[#allocation2 + $0x10] sm:$0xff]
  %v38 = vld [vmem:[#allocation2 + $0x18] sm:$0xff]
  %v39 = vld [vmem:[#allocation2 + $0x20] sm:$0xff]
  %v40 = vld [vmem:[#allocation2 + $0x28] sm:$0xff]
  %v41 = vld [vmem:[#allocation2 + $0x30] sm:$0xff]
  %v42 = vld [vmem:[#allocation2 + $0x38] sm:$0xff]
  %v43 = vld [vmem:[#allocation2 + $0x40] sm:$0xff]
  %v44 = vld [vmem:[#allocation2 + $0x48] sm:$0xff]
  %v45 = vld [vmem:[#allocation2 + $0x50] sm:$0xff]
  %v46 = vld [vmem:[#allocation2 + $0x58] sm:$0xff]
  %v47 = vld [vmem:[#allocation2 + $0x60] sm:$0xff]
  %v48 = vld [vmem:[#allocation2 + $0x68] sm:$0xff]
  %v49 = vld [vmem:[#allocation2 + $0x70] sm:$0xff]
  %v50 = vld [vmem:[#allocation2 + $0x78] sm:$0xff]
  %v51 = vld [vmem:[%s0] sm:$0xf]
  %v52 = vld [vmem:[%s0 + $0x4] sm:$0xf]
  %v53 = vld [vmem:[%s0 + $0x8] sm:$0xf]
  %v54 = vld [vmem:[%s0 + $0xc] sm:$0xf]
  %v55 = vld [vmem:[%s0 + $0x10] sm:$0xf]
  %v56 = vld [vmem:[%s0 + $0x14] sm:$0xf]
  %v57 = vld [vmem:[%s0 + $0x18] sm:$0xf]
  %v58 = vld [vmem:[%s0 + $0x1c] sm:$0xf]
  %v59 = vld [vmem:[%s0 + $0x20] sm:$0xf]
  %v60 = vld [vmem:[%s0 + $0x24] sm:$0xf]
  %v61 = vld [vmem:[%s0 + $0x28] sm:$0xf]
  %v62 = vld [vmem:[%s0 + $0x2c] sm:$0xf]
  %v63 = vld [vmem:[%s0 + $0x30] sm:$0xf]
  %v64 = vld [vmem:[%s0 + $0x34] sm:$0xf]
  %v65 = vld [vmem:[%s0 + $0x38] sm:$0xf]
  %v66 = vld [vmem:[%s0 + $0x3c] sm:$0xf]
  %v67 = vld [vmem:[%s1] sm:$0xf]
  %v68 = vld [vmem:[%s1 + $0x4] sm:$0xf]
  %v69 = vld [vmem:[%s1 + $0x8] sm:$0xf]
  %v70 = vld [vmem:[%s1 + $0xc] sm:$0xf]
  %v71 = vld [vmem:[%s1 + $0x10] sm:$0xf]
  %v72 = vld [vmem:[%s1 + $0x14] sm:$0xf]
  %v73 = vld [vmem:[%s1 + $0x18] sm:$0xf]
  %v74 = vld [vmem:[%s1 + $0x1c] sm:$0xf]
  %v75 = vld [vmem:[%s1 + $0x20] sm:$0xf]
  %v76 = vld [vmem:[%s1 + $0x24] sm:$0xf]
  %v77 = vld [vmem:[%s1 + $0x28] sm:$0xf]
  %v78 = vld [vmem:[%s1 + $0x2c] sm:$0xf]
  %v79 = vld [vmem:[%s1 + $0x30] sm:$0xf]
  %v80 = vld [vmem:[%s1 + $0x34] sm:$0xf]
  %v81 = vld [vmem:[%s1 + $0x38] sm:$0xf]
  %v82 = vld [vmem:[%s1 + $0x3c] sm:$0xf]
  %v99 = vunpack.c.l.b16 %v51
  %v100 = vunpack.c.l.b16 %v52
  %v101 = vunpack.c.l.b16 %v53
  %v102 = vunpack.c.l.b16 %v54
  %v103 = vunpack.c.l.b16 %v55
  %v104 = vunpack.c.l.b16 %v56
  %v105 = vunpack.c.l.b16 %v57
  %v106 = vunpack.c.l.b16 %v58
  %v107 = vunpack.c.l.b16 %v59
  %v108 = vunpack.c.l.b16 %v60
  %v109 = vunpack.c.l.b16 %v61
  %v110 = vunpack.c.l.b16 %v62
  %v111 = vunpack.c.l.b16 %v63
  %v112 = vunpack.c.l.b16 %v64
  %v113 = vunpack.c.l.b16 %v65
  %v114 = vunpack.c.l.b16 %v66
  %v115 = vpack.c.b16 %v100, %v99
  %v116 = vpack.c.b16 %v102, %v101
  %v117 = vpack.c.b16 %v104, %v103
  %v118 = vpack.c.b16 %v106, %v105
  %v119 = vpack.c.b16 %v108, %v107
  %v120 = vpack.c.b16 %v110, %v109
  %v121 = vpack.c.b16 %v112, %v111
  %v122 = vpack.c.b16 %v114, %v113
  %v147 = vunpack.c.l.b16 %v67
  %v148 = vunpack.c.l.b16 %v68
  %v149 = vunpack.c.l.b16 %v69
  %v150 = vunpack.c.l.b16 %v70
  %v151 = vunpack.c.l.b16 %v71
  %v152 = vunpack.c.l.b16 %v72
  %v153 = vunpack.c.l.b16 %v73
  %v154 = vunpack.c.l.b16 %v74
  %v155 = vunpack.c.l.b16 %v75
  %v156 = vunpack.c.l.b16 %v76
  %v157 = vunpack.c.l.b16 %v77
  %v158 = vunpack.c.l.b16 %v78
  %v159 = vunpack.c.l.b16 %v79
  %v160 = vunpack.c.l.b16 %v80
  %v161 = vunpack.c.l.b16 %v81
  %v162 = vunpack.c.l.b16 %v82
  %v163 = vpack.c.b16 %v148, %v147
  %v164 = vpack.c.b16 %v150, %v149
  %v165 = vpack.c.b16 %v152, %v151
  %v166 = vpack.c.b16 %v154, %v153
  %v167 = vpack.c.b16 %v156, %v155
  %v168 = vpack.c.b16 %v158, %v157
  %v169 = vpack.c.b16 %v160, %v159
  %v170 = vpack.c.b16 %v162, %v161
  %179 = vmatprep.subr.bf16.mxu0 0
  %180 = vmatpush1.bf16.msra.mxu0 %v163
  %181 = vmatprep.subr.bf16.mxu0 0
  %182 = vmatpush1.bf16.msra.mxu0 %v164
  %183 = vmatprep.subr.bf16.mxu0 0
  %184 = vmatpush1.bf16.msra.mxu0 %v165
  %185 = vmatprep.subr.bf16.mxu0 0
  %186 = vmatpush1.bf16.msra.mxu0 %v166
  %187 = vmatprep.subr.bf16.mxu0 0
  %188 = vmatpush1.bf16.msra.mxu0 %v167
  %189 = vmatprep.subr.bf16.mxu0 0
  %190 = vmatpush1.bf16.msra.mxu0 %v168
  %191 = vmatprep.subr.bf16.mxu0 0
  %192 = vmatpush1.bf16.msra.mxu0 %v169
  %193 = vmatprep.subr.bf16.mxu0 0
  %194 = vmatpush1.bf16.msra.mxu0 %v170
  %195 = vmatprep.subr.bf16.mxu0 0
  %196 = vmatpush1.bf16.msra.mxu0 0
  %197 = vmatprep.subr.bf16.mxu0 0
  %198 = vmatpush1.bf16.msra.mxu0 0
  %199 = vmatprep.subr.bf16.mxu0 0
  %200 = vmatpush1.bf16.msra.mxu0 0
  %201 = vmatprep.subr.bf16.mxu0 0
  %202 = vmatpush1.bf16.msra.mxu0 0
  %203 = vmatprep.subr.bf16.mxu0 0
  %204 = vmatpush1.bf16.msra.mxu0 0
  %205 = vmatprep.subr.bf16.mxu0 0
  %206 = vmatpush1.bf16.msra.mxu0 0
  %207 = vmatprep.subr.bf16.mxu0 0
  %208 = vmatpush1.bf16.msra.mxu0 0
  %209 = vmatprep.subr.bf16.mxu0 0
  %210 = vmatpush1.bf16.msra.mxu0 0
  %211 = vmatprep.mubr.bf16.mxu0 0
  %212 = vmatmul.mubr.bf16.gmra.mrb[0].mxu0 %v115
  %v213 = vpop.f32.mrb[0].mxu0
  %v214 = vadd.f32 0.0, %v213
  %v215 = vpop.f32.mrb[0].mxu0
  %v216 = vpop.f32.mrb[0].mxu0
  %v217 = vadd.f32 0.0, %v216
  %v218 = vpop.f32.mrb[0].mxu0
  %219 = vmatprep.mubr.bf16.mxu0 0
  %220 = vmatmul.mubr.bf16.gmra.mrb[0].mxu0 %v116
  %v221 = vpop.f32.mrb[0].mxu0
  %v222 = vadd.f32 0.0, %v221
  %v223 = vpop.f32.mrb[0].mxu0
  %v224 = vpop.f32.mrb[0].mxu0
  %v225 = vadd.f32 0.0, %v224
  %v226 = vpop.f32.mrb[0].mxu0
  %227 = vmatprep.mubr.bf16.mxu0 0
  %228 = vmatmul.mubr.bf16.gmra.mrb[0].mxu0 %v117
  %v229 = vpop.f32.mrb[0].mxu0
  %v230 = vadd.f32 0.0, %v229
  %v231 = vpop.f32.mrb[0].mxu0
  %v232 = vpop.f32.mrb[0].mxu0
  %v233 = vadd.f32 0.0, %v232
  %v234 = vpop.f32.mrb[0].mxu0
  %235 = vmatprep.mubr.bf16.mxu0 0
  %236 = vmatmul.mubr.bf16.gmra.mrb[0].mxu0 %v118
  %v237 = vpop.f32.mrb[0].mxu0
  %v238 = vadd.f32 0.0, %v237
  %v239 = vpop.f32.mrb[0].mxu0
  %v240 = vpop.f32.mrb[0].mxu0
  %v241 = vadd.f32 0.0, %v240
  %v242 = vpop.f32.mrb[0].mxu0
  %243 = vmatprep.mubr.bf16.mxu0 0
  %244 = vmatmul.mubr.bf16.gmra.mrb[0].mxu0 %v119
  %v245 = vpop.f32.mrb[0].mxu0
  %v246 = vadd.f32 0.0, %v245
  %v247 = vpop.f32.mrb[0].mxu0
  %v248 = vpop.f32.mrb[0].mxu0
  %v249 = vadd.f32 0.0, %v248
  %v250 = vpop.f32.mrb[0].mxu0
  %251 = vmatprep.mubr.bf16.mxu0 0
  %252 = vmatmul.mubr.bf16.gmra.mrb[0].mxu0 %v120
  %v253 = vpop.f32.mrb[0].mxu0
  %v254 = vadd.f32 0.0, %v253
  %v255 = vpop.f32.mrb[0].mxu0
  %v256 = vpop.f32.mrb[0].mxu0
  %v257 = vadd.f32 0.0, %v256
  %v258 = vpop.f32.mrb[0].mxu0
  %259 = vmatprep.mubr.bf16.mxu0 0
  %260 = vmatmul.mubr.bf16.gmra.mrb[0].mxu0 %v121
  %v261 = vpop.f32.mrb[0].mxu0
  %v262 = vadd.f32 0.0, %v261
  %v263 = vpop.f32.mrb[0].mxu0
  %v264 = vpop.f32.mrb[0].mxu0
  %v265 = vadd.f32 0.0, %v264
  %v266 = vpop.f32.mrb[0].mxu0
  %267 = vmatprep.mubr.bf16.mxu0 0
  %268 = vmatmul.mubr.bf16.gmra.mrb[0].mxu0 %v122
  %v269 = vpop.f32.mrb[0].mxu0
  %v270 = vadd.f32 0.0, %v269
  %v271 = vpop.f32.mrb[0].mxu0
  %v272 = vpop.f32.mrb[0].mxu0
  %v273 = vadd.f32 0.0, %v272
  %v274 = vpop.f32.mrb[0].mxu0
  %275 = vdwg.mxu0
  %v276 = vadd.f32 %v35, %v214
  %v277 = vadd.f32 %v36, %v217
  %v278 = vadd.f32 %v37, %v222
  %v279 = vadd.f32 %v38, %v225
  %v280 = vadd.f32 %v39, %v230
  %v281 = vadd.f32 %v40, %v233
  %v282 = vadd.f32 %v41, %v238
  %v283 = vadd.f32 %v42, %v241
  %v284 = vadd.f32 %v43, %v246
  %v285 = vadd.f32 %v44, %v249
  %v286 = vadd.f32 %v45, %v254
  %v287 = vadd.f32 %v46, %v257
  %v288 = vadd.f32 %v47, %v262
  %v289 = vadd.f32 %v48, %v265
  %v290 = vadd.f32 %v49, %v270
  %v291 = vadd.f32 %v50, %v273
  %292 = vst [vmem:[#allocation2] sm:$0xff] %v276
  %293 = vst [vmem:[#allocation2 + $0x8] sm:$0xff] %v277
  %294 = vst [vmem:[#allocation2 + $0x10] sm:$0xff] %v278
  %295 = vst [vmem:[#allocation2 + $0x18] sm:$0xff] %v279
  %296 = vst [vmem:[#allocation2 + $0x20] sm:$0xff] %v280
  %297 = vst [vmem:[#allocation2 + $0x28] sm:$0xff] %v281
  %298 = vst [vmem:[#allocation2 + $0x30] sm:$0xff] %v282
  %299 = vst [vmem:[#allocation2 + $0x38] sm:$0xff] %v283
  %300 = vst [vmem:[#allocation2 + $0x40] sm:$0xff] %v284
  %301 = vst [vmem:[#allocation2 + $0x48] sm:$0xff] %v285
  %302 = vst [vmem:[#allocation2 + $0x50] sm:$0xff] %v286
  %303 = vst [vmem:[#allocation2 + $0x58] sm:$0xff] %v287
  %304 = vst [vmem:[#allocation2 + $0x60] sm:$0xff] %v288
  %305 = vst [vmem:[#allocation2 + $0x68] sm:$0xff] %v289
  %306 = vst [vmem:[#allocation2 + $0x70] sm:$0xff] %v290
  %307 = vst [vmem:[#allocation2 + $0x78] sm:$0xff] %v291
  // Predicated region
  $region14: #{darknet_forward.16} parent=0 // pred_check
    %p308 = pneg %p15
  $region15: #{darknet_forward.16} parent=0 // pred_check_branch
    %310 = sbr.rel (%p308) target = $region17
  $region16: #{darknet_forward.16} parent=0 // pred_region
    %v311 = vld [vmem:[#allocation2] sm:$0xff]
    %v312 = vld [vmem:[#allocation2 + $0x8] sm:$0xff]
    %v313 = vld [vmem:[#allocation2 + $0x10] sm:$0xff]
    %v314 = vld [vmem:[#allocation2 + $0x18] sm:$0xff]
    %v315 = vld [vmem:[#allocation2 + $0x20] sm:$0xff]
    %v316 = vld [vmem:[#allocation2 + $0x28] sm:$0xff]
    %v317 = vld [vmem:[#allocation2 + $0x30] sm:$0xff]
    %v318 = vld [vmem:[#allocation2 + $0x38] sm:$0xff]
    %v319 = vld [vmem:[#allocation2 + $0x40] sm:$0xff]
    %v320 = vld [vmem:[#allocation2 + $0x48] sm:$0xff]
    %v321 = vld [vmem:[#allocation2 + $0x50] sm:$0xff]
    %v322 = vld [vmem:[#allocation2 + $0x58] sm:$0xff]
    %v323 = vld [vmem:[#allocation2 + $0x60] sm:$0xff]
    %v324 = vld [vmem:[#allocation2 + $0x68] sm:$0xff]
    %v325 = vld [vmem:[#allocation2 + $0x70] sm:$0xff]
    %v326 = vld [vmem:[#allocation2 + $0x78] sm:$0xff]
    %327 = vst [vmem:[%s2] sm:$0xff] %v311
    %328 = vst [vmem:[%s2 + $0x8] sm:$0xff] %v312
    %329 = vst [vmem:[%s2 + $0x10] sm:$0xff] %v313
    %330 = vst [vmem:[%s2 + $0x18] sm:$0xff] %v314
    %331 = vst [vmem:[%s2 + $0x20] sm:$0xff] %v315
    %332 = vst [vmem:[%s2 + $0x28] sm:$0xff] %v316
    %333 = vst [vmem:[%s2 + $0x30] sm:$0xff] %v317
    %334 = vst [vmem:[%s2 + $0x38] sm:$0xff] %v318
    %335 = vst [vmem:[%s2 + $0x40] sm:$0xff] %v319
    %336 = vst [vmem:[%s2 + $0x48] sm:$0xff] %v320
    %337 = vst [vmem:[%s2 + $0x50] sm:$0xff] %v321
    %338 = vst [vmem:[%s2 + $0x58] sm:$0xff] %v322
    %339 = vst [vmem:[%s2 + $0x60] sm:$0xff] %v323
    %340 = vst [vmem:[%s2 + $0x68] sm:$0xff] %v324
    %341 = vst [vmem:[%s2 + $0x70] sm:$0xff] %v325
    %342 = vst [vmem:[%s2 + $0x78] sm:$0xff] %v326
    %v343 = vadd.f32 %v311, %v312
    %v344 = vadd.f32 %v343, %v313
    %v345 = vadd.f32 %v344, %v314
    %v346 = vadd.f32 %v345, %v315
    %v347 = vadd.f32 %v346, %v316
    %v348 = vadd.f32 %v347, %v317
    %v349 = vadd.f32 %v348, %v318
    %v350 = vadd.f32 %v349, %v319
    %v351 = vadd.f32 %v350, %v320
    %v352 = vadd.f32 %v351, %v321
    %v353 = vadd.f32 %v352, %v322
    %v354 = vadd.f32 %v353, %v323
    %v355 = vadd.f32 %v354, %v324
    %v356 = vadd.f32 %v355, %v325
    %v357 = vadd.f32 %v356, %v326
    %v358 = vrot.slane %v357, 4
    %v359 = vadd.f32 %v357, %v358
    %v360 = vrot.slane %v359, 2
    %v361 = vadd.f32 %v359, %v360
    %v362 = vrot.slane %v361, 1
    %v363 = vadd.f32 %v361, %v362
    %v364 = vmul.f32 %v311, %v311
    %v365 = vmul.f32 %v312, %v312
    %v366 = vmul.f32 %v313, %v313
    %v367 = vmul.f32 %v314, %v314
    %v368 = vmul.f32 %v315, %v315
    %v369 = vmul.f32 %v316, %v316
    %v370 = vmul.f32 %v317, %v317
    %v371 = vmul.f32 %v318, %v318
    %v372 = vmul.f32 %v319, %v319
    %v373 = vmul.f32 %v320, %v320
    %v374 = vmul.f32 %v321, %v321
    %v375 = vmul.f32 %v322, %v322
    %v376 = vmul.f32 %v323, %v323
    %v377 = vmul.f32 %v324, %v324
    %v378 = vmul.f32 %v325, %v325
    %v379 = vmul.f32 %v326, %v326
    %v380 = vadd.f32 %v364, %v365
    %v381 = vadd.f32 %v380, %v366
    %v382 = vadd.f32 %v381, %v367
    %v383 = vadd.f32 %v382, %v368
    %v384 = vadd.f32 %v383, %v369
    %v385 = vadd.f32 %v384, %v370
    %v386 = vadd.f32 %v385, %v371
    %v387 = vadd.f32 %v386, %v372
    %v388 = vadd.f32 %v387, %v373
    %v389 = vadd.f32 %v388, %v374
    %v390 = vadd.f32 %v389, %v375
    %v391 = vadd.f32 %v390, %v376
    %v392 = vadd.f32 %v391, %v377
    %v393 = vadd.f32 %v392, %v378
    %v394 = vadd.f32 %v393, %v379
    %v395 = vrot.slane %v394, 4
    %v396 = vadd.f32 %v394, %v395
    %v397 = vrot.slane %v396, 2
    %v398 = vadd.f32 %v396, %v397
    %v399 = vrot.slane %v398, 1
    %v400 = vadd.f32 %v398, %v399
    %401 = vst [vmem:[%s3] sm:$0xff] %v363
    %402 = vst [vmem:[%s4] sm:$0xff] %v400
  $region17: #{darknet_forward.16} parent=0 // pred_fallthru
    _
  // Predicated region
  $region18: #{darknet_forward.16} parent=0 // pred_check
    _
  $region19: #{darknet_forward.16} parent=0 // pred_check_branch
    %404 = sbr.rel (0) target = $region21
  $region20: #{darknet_forward.16} parent=0 // pred_region
    _
  $region21: #{darknet_forward.16} parent=0 // pred_fallthru
    _
  // Predicated region
  $region22: #{darknet_forward.16} parent=0 // pred_check
    _
  $region23: #{darknet_forward.16} parent=0 // pred_check_branch
    %406 = sbr.rel (0) target = $region25
  $region24: #{darknet_forward.16} parent=0 // pred_region
    _
  $region25: #{darknet_forward.16} parent=0 // pred_fallthru
    _
  // Predicated region
  $region26: #{darknet_forward.16} parent=0 // pred_check
    _
  $region27: #{darknet_forward.16} parent=0 // pred_check_branch
    %408 = sbr.rel (0) target = $region29
  $region28: #{darknet_forward.16} parent=0 // pred_region
    _
  $region29: #{darknet_forward.16} parent=0 // pred_fallthru
    _
  // Predicated region
  $region30: #{darknet_forward.16} parent=0 // pred_check
    _
  $region31: #{darknet_forward.16} parent=0 // pred_check_branch
    %410 = sbr.rel (0) target = $region33
  $region32: #{darknet_forward.16} parent=0 // pred_region
    _
  $region33: #{darknet_forward.16} parent=0 // pred_fallthru
    _
  // Predicated region
  $region34: #{darknet_forward.16} parent=0 // pred_check
    _
  $region35: #{darknet_forward.16} parent=0 // pred_check_branch
    %412 = sbr.rel (0) target = $region37
  $region36: #{darknet_forward.16} parent=0 // pred_region
    _
  $region37: #{darknet_forward.16} parent=0 // pred_fallthru
    _
  // Predicated region
  $region38: #{darknet_forward.16} parent=0 // pred_check
    _
  $region39: #{darknet_forward.16} parent=0 // pred_check_branch
    %414 = sbr.rel (0) target = $region41
  $region40: #{darknet_forward.16} parent=0 // pred_region
    _
  $region41: #{darknet_forward.16} parent=0 // pred_fallthru
    _

// kernel: darknet_forward.17
$region0: #{darknet_forward.17}
  #allocation0 [shape = 'u32[]', space=smem, size = 0x4, offset = 0x4, fixed_abs, tag = 'smem constant byte address 0x4 - core index']
  #allocation1 [shape = 'u32[144,128]{1,0:T(1,128)}', space=vmem, size = 0x12000, scoped, tag = 'internal scratch']
  %s0 = inlined_call_operand.vmem [shape: f32[128,128], index: 0, kind: input, shape index: {}]
  %s1 = inlined_call_operand.vmem [shape: f32[1,128], index: 1, kind: input, shape index: {}]
  %s2 = inlined_call_operand.vmem [shape: f32[1,128], index: 2, kind: input, shape index: {}]
  %s3 = inlined_call_operand.vmem [shape: bf16[128,128], index: 3, kind: output, shape index: {}]
  %s4 = sld [smem:[#allocation0]]
  $region22: #{darknet_forward.17} parent=0
    _
  %s6 = ssub.s32 1, %s4
  %s7 = scalar_select 0, %s6, %s4
  // Predicated region
  $region2: #{darknet_forward.17} parent=0 // pred_check
    _
  $region3: #{darknet_forward.17} parent=0 // pred_check_branch
    %9 = sbr.rel (0) target = $region5
  $region4: #{darknet_forward.17} parent=0 // pred_region
    _
  $region5: #{darknet_forward.17} parent=0 // pred_fallthru
    _
  // Predicated region
  $region6: #{darknet_forward.17} parent=0 // pred_check
    _
  $region7: #{darknet_forward.17} parent=0 // pred_check_branch
    %11 = sbr.rel (0) target = $region9
  $region8: #{darknet_forward.17} parent=0 // pred_region
    _
  $region9: #{darknet_forward.17} parent=0 // pred_fallthru
    _
  // Predicated region
  $region10: #{darknet_forward.17} parent=0 // pred_check
    _
  $region11: #{darknet_forward.17} parent=0 // pred_check_branch
    %13 = sbr.rel (0) target = $region13
  $region12: #{darknet_forward.17} parent=0 // pred_region
    _
  $region13: #{darknet_forward.17} parent=0 // pred_fallthru
    _
  %v14 = vld [vmem:[%s0] sm:$0xff]
  %v15 = vld [vmem:[%s0 + $0x8] sm:$0xff]
  %v16 = vld [vmem:[%s0 + $0x10] sm:$0xff]
  %v17 = vld [vmem:[%s0 + $0x18] sm:$0xff]
  %v18 = vld [vmem:[%s0 + $0x20] sm:$0xff]
  %v19 = vld [vmem:[%s0 + $0x28] sm:$0xff]
  %v20 = vld [vmem:[%s0 + $0x30] sm:$0xff]
  %v21 = vld [vmem:[%s0 + $0x38] sm:$0xff]
  %v22 = vld [vmem:[%s0 + $0x40] sm:$0xff]
  %v23 = vld [vmem:[%s0 + $0x48] sm:$0xff]
  %v24 = vld [vmem:[%s0 + $0x50] sm:$0xff]
  %v25 = vld [vmem:[%s0 + $0x58] sm:$0xff]
  %v26 = vld [vmem:[%s0 + $0x60] sm:$0xff]
  %v27 = vld [vmem:[%s0 + $0x68] sm:$0xff]
  %v28 = vld [vmem:[%s0 + $0x70] sm:$0xff]
  %v29 = vld [vmem:[%s0 + $0x78] sm:$0xff]
  %v30 = vld [vmem:[%s1] sm:$0x1]
  %v32 = vlaneseq
  %v33 = vshrl.u32 %v32, 7
  %v34 = vsub.s32 0, %v33
  %v35 = vrot.slane %v30, %v34
  %v37 = vmul.f32 %v14, %v35
  %v38 = vmul.f32 %v15, %v35
  %v39 = vmul.f32 %v16, %v35
  %v40 = vmul.f32 %v17, %v35
  %v41 = vmul.f32 %v18, %v35
  %v42 = vmul.f32 %v19, %v35
  %v43 = vmul.f32 %v20, %v35
  %v44 = vmul.f32 %v21, %v35
  %v45 = vmul.f32 %v22, %v35
  %v46 = vmul.f32 %v23, %v35
  %v47 = vmul.f32 %v24, %v35
  %v48 = vmul.f32 %v25, %v35
  %v49 = vmul.f32 %v26, %v35
  %v50 = vmul.f32 %v27, %v35
  %v51 = vmul.f32 %v28, %v35
  %v52 = vmul.f32 %v29, %v35
  %v53 = vld [vmem:[%s2] sm:$0x1]
  %v55 = vlaneseq
  %v56 = vshrl.u32 %v55, 7
  %v57 = vsub.s32 0, %v56
  %v58 = vrot.slane %v53, %v57
  %v60 = vadd.f32 %v37, %v58
  %v61 = vadd.f32 %v38, %v58
  %v62 = vadd.f32 %v39, %v58
  %v63 = vadd.f32 %v40, %v58
  %v64 = vadd.f32 %v41, %v58
  %v65 = vadd.f32 %v42, %v58
  %v66 = vadd.f32 %v43, %v58
  %v67 = vadd.f32 %v44, %v58
  %v68 = vadd.f32 %v45, %v58
  %v69 = vadd.f32 %v46, %v58
  %v70 = vadd.f32 %v47, %v58
  %v71 = vadd.f32 %v48, %v58
  %v72 = vadd.f32 %v49, %v58
  %v73 = vadd.f32 %v50, %v58
  %v74 = vadd.f32 %v51, %v58
  %v75 = vadd.f32 %v52, %v58
  %v76 = vmax.f32 %v60, 0.0
  %v77 = vmax.f32 %v61, 0.0
  %v78 = vmax.f32 %v62, 0.0
  %v79 = vmax.f32 %v63, 0.0
  %v80 = vmax.f32 %v64, 0.0
  %v81 = vmax.f32 %v65, 0.0
  %v82 = vmax.f32 %v66, 0.0
  %v83 = vmax.f32 %v67, 0.0
  %v84 = vmax.f32 %v68, 0.0
  %v85 = vmax.f32 %v69, 0.0
  %v86 = vmax.f32 %v70, 0.0
  %v87 = vmax.f32 %v71, 0.0
  %v88 = vmax.f32 %v72, 0.0
  %v89 = vmax.f32 %v73, 0.0
  %v90 = vmax.f32 %v74, 0.0
  %v91 = vmax.f32 %v75, 0.0
  %v92 = vpack.c.bf16 %v77, %v76
  %v93 = vpack.c.bf16 %v79, %v78
  %v94 = vpack.c.bf16 %v81, %v80
  %v95 = vpack.c.bf16 %v83, %v82
  %v96 = vpack.c.bf16 %v85, %v84
  %v97 = vpack.c.bf16 %v87, %v86
  %v98 = vpack.c.bf16 %v89, %v88
  %v99 = vpack.c.bf16 %v91, %v90
  %v108 = vunpack.c.l.b16 %v92
  %v109 = vunpack.c.h.b16 %v92
  %v110 = vunpack.c.l.b16 %v93
  %v111 = vunpack.c.h.b16 %v93
  %v112 = vunpack.c.l.b16 %v94
  %v113 = vunpack.c.h.b16 %v94
  %v114 = vunpack.c.l.b16 %v95
  %v115 = vunpack.c.h.b16 %v95
  %v116 = vunpack.c.l.b16 %v96
  %v117 = vunpack.c.h.b16 %v96
  %v118 = vunpack.c.l.b16 %v97
  %v119 = vunpack.c.h.b16 %v97
  %v120 = vunpack.c.l.b16 %v98
  %v121 = vunpack.c.h.b16 %v98
  %v122 = vunpack.c.l.b16 %v99
  %v123 = vunpack.c.h.b16 %v99
  %v124 = vpack.c.b16 %v108, %v108
  %v125 = vpack.c.b16 %v109, %v109
  %v126 = vpack.c.b16 %v110, %v110
  %v127 = vpack.c.b16 %v111, %v111
  %v128 = vpack.c.b16 %v112, %v112
  %v129 = vpack.c.b16 %v113, %v113
  %v130 = vpack.c.b16 %v114, %v114
  %v131 = vpack.c.b16 %v115, %v115
  %v132 = vpack.c.b16 %v116, %v116
  %v133 = vpack.c.b16 %v117, %v117
  %v134 = vpack.c.b16 %v118, %v118
  %v135 = vpack.c.b16 %v119, %v119
  %v136 = vpack.c.b16 %v120, %v120
  %v137 = vpack.c.b16 %v121, %v121
  %v138 = vpack.c.b16 %v122, %v122
  %v139 = vpack.c.b16 %v123, %v123
  %156 = vst [vmem:[%s3] sm:$0xf] %v124
  %157 = vst [vmem:[%s3 + $0x4] sm:$0xf] %v125
  %158 = vst [vmem:[%s3 + $0x8] sm:$0xf] %v126
  %159 = vst [vmem:[%s3 + $0xc] sm:$0xf] %v127
  %160 = vst [vmem:[%s3 + $0x10] sm:$0xf] %v128
  %161 = vst [vmem:[%s3 + $0x14] sm:$0xf] %v129
  %162 = vst [vmem:[%s3 + $0x18] sm:$0xf] %v130
  %163 = vst [vmem:[%s3 + $0x1c] sm:$0xf] %v131
  %164 = vst [vmem:[%s3 + $0x20] sm:$0xf] %v132
  %165 = vst [vmem:[%s3 + $0x24] sm:$0xf] %v133
  %166 = vst [vmem:[%s3 + $0x28] sm:$0xf] %v134
  %167 = vst [vmem:[%s3 + $0x2c] sm:$0xf] %v135
  %168 = vst [vmem:[%s3 + $0x30] sm:$0xf] %v136
  %169 = vst [vmem:[%s3 + $0x34] sm:$0xf] %v137
  %170 = vst [vmem:[%s3 + $0x38] sm:$0xf] %v138
  %171 = vst [vmem:[%s3 + $0x3c] sm:$0xf] %v139
  // Predicated region
  $region14: #{darknet_forward.17} parent=0 // pred_check
    _
  $region15: #{darknet_forward.17} parent=0 // pred_check_branch
    %173 = sbr.rel (0) target = $region17
  $region16: #{darknet_forward.17} parent=0 // pred_region
    _
  $region17: #{darknet_forward.17} parent=0 // pred_fallthru
    _
  // Predicated region
  $region18: #{darknet_forward.17} parent=0 // pred_check
    _
  $region19: #{darknet_forward.17} parent=0 // pred_check_branch
    %175 = sbr.rel (0) target = $region21
  $region20: #{darknet_forward.17} parent=0 // pred_region
    _
  $region21: #{darknet_forward.17} parent=0 // pred_fallthru
    _

// kernel: darknet_forward.15
$region0: #{darknet_forward.15}
  #allocation0 [shape = 'u32[]', space=smem, size = 0x4, offset = 0x4, fixed_abs, tag = 'smem constant byte address 0x4 - core index']
  #allocation1 [shape = 'u32[144,128]{1,0:T(1,128)}', space=vmem, size = 0x12000, scoped, tag = 'internal scratch']
  %s0 = inlined_call_operand.vmem [shape: bf16[16,2,8,2,8], index: 0, kind: input, shape index: {}]
  %s1 = inlined_call_operand.vmem [shape: bf16[16,8,8], index: 1, kind: output, shape index: {}]
  %s2 = sld [smem:[#allocation0]]
  $region14: #{darknet_forward.15} parent=0
    _
  %s4 = ssub.s32 1, %s2
  %s5 = scalar_select 0, %s4, %s2
  // Predicated region
  $region2: #{darknet_forward.15} parent=0 // pred_check
    _
  $region3: #{darknet_forward.15} parent=0 // pred_check_branch
    %7 = sbr.rel (0) target = $region5
  $region4: #{darknet_forward.15} parent=0 // pred_region
    _
  $region5: #{darknet_forward.15} parent=0 // pred_fallthru
    _
  %v9 = vld [vmem:[%s0] sm:$0x1]
  %v10 = vld [vmem:[%s0 + $0x1] sm:$0x1]
  %v11 = vld [vmem:[%s0 + $0x2] sm:$0x1]
  %v12 = vld [vmem:[%s0 + $0x3] sm:$0x1]
  %v13 = vld [vmem:[%s0 + $0x4] sm:$0x1]
  %v14 = vld [vmem:[%s0 + $0x5] sm:$0x1]
  %v15 = vld [vmem:[%s0 + $0x6] sm:$0x1]
  %v16 = vld [vmem:[%s0 + $0x7] sm:$0x1]
  %v17 = vld [vmem:[%s0 + $0x8] sm:$0x1]
  %v18 = vld [vmem:[%s0 + $0x9] sm:$0x1]
  %v19 = vld [vmem:[%s0 + $0xa] sm:$0x1]
  %v20 = vld [vmem:[%s0 + $0xb] sm:$0x1]
  %v21 = vld [vmem:[%s0 + $0xc] sm:$0x1]
  %v22 = vld [vmem:[%s0 + $0xd] sm:$0x1]
  %v23 = vld [vmem:[%s0 + $0xe] sm:$0x1]
  %v24 = vld [vmem:[%s0 + $0xf] sm:$0x1]
  %v25 = vld [vmem:[%s0 + $0x10] sm:$0x1]
  %v26 = vld [vmem:[%s0 + $0x11] sm:$0x1]
  %v27 = vld [vmem:[%s0 + $0x12] sm:$0x1]
  %v28 = vld [vmem:[%s0 + $0x13] sm:$0x1]
  %v29 = vld [vmem:[%s0 + $0x14] sm:$0x1]
  %v30 = vld [vmem:[%s0 + $0x15] sm:$0x1]
  %v31 = vld [vmem:[%s0 + $0x16] sm:$0x1]
  %v32 = vld [vmem:[%s0 + $0x17] sm:$0x1]
  %v33 = vld [vmem:[%s0 + $0x18] sm:$0x1]
  %v34 = vld [vmem:[%s0 + $0x19] sm:$0x1]
  %v35 = vld [vmem:[%s0 + $0x1a] sm:$0x1]
  %v36 = vld [vmem:[%s0 + $0x1b] sm:$0x1]
  %v37 = vld [vmem:[%s0 + $0x1c] sm:$0x1]
  %v38 = vld [vmem:[%s0 + $0x1d] sm:$0x1]
  %v39 = vld [vmem:[%s0 + $0x1e] sm:$0x1]
  %v40 = vld [vmem:[%s0 + $0x1f] sm:$0x1]
  %v41 = vld [vmem:[%s0 + $0x20] sm:$0x1]
  %v42 = vld [vmem:[%s0 + $0x21] sm:$0x1]
  %v43 = vld [vmem:[%s0 + $0x22] sm:$0x1]
  %v44 = vld [vmem:[%s0 + $0x23] sm:$0x1]
  %v45 = vld [vmem:[%s0 + $0x24] sm:$0x1]
  %v46 = vld [vmem:[%s0 + $0x25] sm:$0x1]
  %v47 = vld [vmem:[%s0 + $0x26] sm:$0x1]
  %v48 = vld [vmem:[%s0 + $0x27] sm:$0x1]
  %v49 = vld [vmem:[%s0 + $0x28] sm:$0x1]
  %v50 = vld [vmem:[%s0 + $0x29] sm:$0x1]
  %v51 = vld [vmem:[%s0 + $0x2a] sm:$0x1]
  %v52 = vld [vmem:[%s0 + $0x2b] sm:$0x1]
  %v53 = vld [vmem:[%s0 + $0x2c] sm:$0x1]
  %v54 = vld [vmem:[%s0 + $0x2d] sm:$0x1]
  %v55 = vld [vmem:[%s0 + $0x2e] sm:$0x1]
  %v56 = vld [vmem:[%s0 + $0x2f] sm:$0x1]
  %v57 = vld [vmem:[%s0 + $0x30] sm:$0x1]
  %v58 = vld [vmem:[%s0 + $0x31] sm:$0x1]
  %v59 = vld [vmem:[%s0 + $0x32] sm:$0x1]
  %v60 = vld [vmem:[%s0 + $0x33] sm:$0x1]
  %v61 = vld [vmem:[%s0 + $0x34] sm:$0x1]
  %v62 = vld [vmem:[%s0 + $0x35] sm:$0x1]
  %v63 = vld [vmem:[%s0 + $0x36] sm:$0x1]
  %v64 = vld [vmem:[%s0 + $0x37] sm:$0x1]
  %v65 = vld [vmem:[%s0 + $0x38] sm:$0x1]
  %v66 = vld [vmem:[%s0 + $0x39] sm:$0x1]
  %v67 = vld [vmem:[%s0 + $0x3a] sm:$0x1]
  %v68 = vld [vmem:[%s0 + $0x3b] sm:$0x1]
  %v69 = vld [vmem:[%s0 + $0x3c] sm:$0x1]
  %v70 = vld [vmem:[%s0 + $0x3d] sm:$0x1]
  %v71 = vld [vmem:[%s0 + $0x3e] sm:$0x1]
  %v72 = vld [vmem:[%s0 + $0x3f] sm:$0x1]
  %v73 = vld [vmem:[%s0 + $0x40] sm:$0x1]
  %v74 = vld [vmem:[%s0 + $0x41] sm:$0x1]
  %v75 = vld [vmem:[%s0 + $0x42] sm:$0x1]
  %v76 = vld [vmem:[%s0 + $0x43] sm:$0x1]
  %v77 = vld [vmem:[%s0 + $0x44] sm:$0x1]
  %v78 = vld [vmem:[%s0 + $0x45] sm:$0x1]
  %v79 = vld [vmem:[%s0 + $0x46] sm:$0x1]
  %v80 = vld [vmem:[%s0 + $0x47] sm:$0x1]
  %v81 = vld [vmem:[%s0 + $0x48] sm:$0x1]
  %v82 = vld [vmem:[%s0 + $0x49] sm:$0x1]
  %v83 = vld [vmem:[%s0 + $0x4a] sm:$0x1]
  %v84 = vld [vmem:[%s0 + $0x4b] sm:$0x1]
  %v85 = vld [vmem:[%s0 + $0x4c] sm:$0x1]
  %v86 = vld [vmem:[%s0 + $0x4d] sm:$0x1]
  %v87 = vld [vmem:[%s0 + $0x4e] sm:$0x1]
  %v88 = vld [vmem:[%s0 + $0x4f] sm:$0x1]
  %v89 = vld [vmem:[%s0 + $0x50] sm:$0x1]
  %v90 = vld [vmem:[%s0 + $0x51] sm:$0x1]
  %v91 = vld [vmem:[%s0 + $0x52] sm:$0x1]
  %v92 = vld [vmem:[%s0 + $0x53] sm:$0x1]
  %v93 = vld [vmem:[%s0 + $0x54] sm:$0x1]
  %v94 = vld [vmem:[%s0 + $0x55] sm:$0x1]
  %v95 = vld [vmem:[%s0 + $0x56] sm:$0x1]
  %v96 = vld [vmem:[%s0 + $0x57] sm:$0x1]
  %v97 = vld [vmem:[%s0 + $0x58] sm:$0x1]
  %v98 = vld [vmem:[%s0 + $0x59] sm:$0x1]
  %v99 = vld [vmem:[%s0 + $0x5a] sm:$0x1]
  %v100 = vld [vmem:[%s0 + $0x5b] sm:$0x1]
  %v101 = vld [vmem:[%s0 + $0x5c] sm:$0x1]
  %v102 = vld [vmem:[%s0 + $0x5d] sm:$0x1]
  %v103 = vld [vmem:[%s0 + $0x5e] sm:$0x1]
  %v104 = vld [vmem:[%s0 + $0x5f] sm:$0x1]
  %v105 = vld [vmem:[%s0 + $0x60] sm:$0x1]
  %v106 = vld [vmem:[%s0 + $0x61] sm:$0x1]
  %v107 = vld [vmem:[%s0 + $0x62] sm:$0x1]
  %v108 = vld [vmem:[%s0 + $0x63] sm:$0x1]
  %v109 = vld [vmem:[%s0 + $0x64] sm:$0x1]
  %v110 = vld [vmem:[%s0 + $0x65] sm:$0x1]
  %v111 = vld [vmem:[%s0 + $0x66] sm:$0x1]
  %v112 = vld [vmem:[%s0 + $0x67] sm:$0x1]
  %v113 = vld [vmem:[%s0 + $0x68] sm:$0x1]
  %v114 = vld [vmem:[%s0 + $0x69] sm:$0x1]
  %v115 = vld [vmem:[%s0 + $0x6a] sm:$0x1]
  %v116 = vld [vmem:[%s0 + $0x6b] sm:$0x1]
  %v117 = vld [vmem:[%s0 + $0x6c] sm:$0x1]
  %v118 = vld [vmem:[%s0 + $0x6d] sm:$0x1]
  %v119 = vld [vmem:[%s0 + $0x6e] sm:$0x1]
  %v120 = vld [vmem:[%s0 + $0x6f] sm:$0x1]
  %v121 = vld [vmem:[%s0 + $0x70] sm:$0x1]
  %v122 = vld [vmem:[%s0 + $0x71] sm:$0x1]
  %v123 = vld [vmem:[%s0 + $0x72] sm:$0x1]
  %v124 = vld [vmem:[%s0 + $0x73] sm:$0x1]
  %v125 = vld [vmem:[%s0 + $0x74] sm:$0x1]
  %v126 = vld [vmem:[%s0 + $0x75] sm:$0x1]
  %v127 = vld [vmem:[%s0 + $0x76] sm:$0x1]
  %v128 = vld [vmem:[%s0 + $0x77] sm:$0x1]
  %v129 = vld [vmem:[%s0 + $0x78] sm:$0x1]
  %v130 = vld [vmem:[%s0 + $0x79] sm:$0x1]
  %v131 = vld [vmem:[%s0 + $0x7a] sm:$0x1]
  %v132 = vld [vmem:[%s0 + $0x7b] sm:$0x1]
  %v133 = vld [vmem:[%s0 + $0x7c] sm:$0x1]
  %v134 = vld [vmem:[%s0 + $0x7d] sm:$0x1]
  %v135 = vld [vmem:[%s0 + $0x7e] sm:$0x1]
  %v136 = vld [vmem:[%s0 + $0x7f] sm:$0x1]
  %v137 = vld [vmem:[%s0 + $0x80] sm:$0x1]
  %v138 = vld [vmem:[%s0 + $0x81] sm:$0x1]
  %v139 = vld [vmem:[%s0 + $0x82] sm:$0x1]
  %v140 = vld [vmem:[%s0 + $0x83] sm:$0x1]
  %v141 = vld [vmem:[%s0 + $0x84] sm:$0x1]
  %v142 = vld [vmem:[%s0 + $0x85] sm:$0x1]
  %v143 = vld [vmem:[%s0 + $0x86] sm:$0x1]
  %v144 = vld [vmem:[%s0 + $0x87] sm:$0x1]
  %v145 = vld [vmem:[%s0 + $0x88] sm:$0x1]
  %v146 = vld [vmem:[%s0 + $0x89] sm:$0x1]
  %v147 = vld [vmem:[%s0 + $0x8a] sm:$0x1]
  %v148 = vld [vmem:[%s0 + $0x8b] sm:$0x1]
  %v149 = vld [vmem:[%s0 + $0x8c] sm:$0x1]
  %v150 = vld [vmem:[%s0 + $0x8d] sm:$0x1]
  %v151 = vld [vmem:[%s0 + $0x8e] sm:$0x1]
  %v152 = vld [vmem:[%s0 + $0x8f] sm:$0x1]
  %v153 = vld [vmem:[%s0 + $0x90] sm:$0x1]
  %v154 = vld [vmem:[%s0 + $0x91] sm:$0x1]
  %v155 = vld [vmem:[%s0 + $0x92] sm:$0x1]
  %v156 = vld [vmem:[%s0 + $0x93] sm:$0x1]
  %v157 = vld [vmem:[%s0 + $0x94] sm:$0x1]
  %v158 = vld [vmem:[%s0 + $0x95] sm:$0x1]
  %v159 = vld [vmem:[%s0 + $0x96] sm:$0x1]
  %v160 = vld [vmem:[%s0 + $0x97] sm:$0x1]
  %v161 = vld [vmem:[%s0 + $0x98] sm:$0x1]
  %v162 = vld [vmem:[%s0 + $0x99] sm:$0x1]
  %v163 = vld [vmem:[%s0 + $0x9a] sm:$0x1]
  %v164 = vld [vmem:[%s0 + $0x9b] sm:$0x1]
  %v165 = vld [vmem:[%s0 + $0x9c] sm:$0x1]
  %v166 = vld [vmem:[%s0 + $0x9d] sm:$0x1]
  %v167 = vld [vmem:[%s0 + $0x9e] sm:$0x1]
  %v168 = vld [vmem:[%s0 + $0x9f] sm:$0x1]
  %v169 = vld [vmem:[%s0 + $0xa0] sm:$0x1]
  %v170 = vld [vmem:[%s0 + $0xa1] sm:$0x1]
  %v171 = vld [vmem:[%s0 + $0xa2] sm:$0x1]
  %v172 = vld [vmem:[%s0 + $0xa3] sm:$0x1]
  %v173 = vld [vmem:[%s0 + $0xa4] sm:$0x1]
  %v174 = vld [vmem:[%s0 + $0xa5] sm:$0x1]
  %v175 = vld [vmem:[%s0 + $0xa6] sm:$0x1]
  %v176 = vld [vmem:[%s0 + $0xa7] sm:$0x1]
  %v177 = vld [vmem:[%s0 + $0xa8] sm:$0x1]
  %v178 = vld [vmem:[%s0 + $0xa9] sm:$0x1]
  %v179 = vld [vmem:[%s0 + $0xaa] sm:$0x1]
  %v180 = vld [vmem:[%s0 + $0xab] sm:$0x1]
  %v181 = vld [vmem:[%s0 + $0xac] sm:$0x1]
  %v182 = vld [vmem:[%s0 + $0xad] sm:$0x1]
  %v183 = vld [vmem:[%s0 + $0xae] sm:$0x1]
  %v184 = vld [vmem:[%s0 + $0xaf] sm:$0x1]
  %v185 = vld [vmem:[%s0 + $0xb0] sm:$0x1]
  %v186 = vld [vmem:[%s0 + $0xb1] sm:$0x1]
  %v187 = vld [vmem:[%s0 + $0xb2] sm:$0x1]
  %v188 = vld [vmem:[%s0 + $0xb3] sm:$0x1]
  %v189 = vld [vmem:[%s0 + $0xb4] sm:$0x1]
  %v190 = vld [vmem:[%s0 + $0xb5] sm:$0x1]
  %v191 = vld [vmem:[%s0 + $0xb6] sm:$0x1]
  %v192 = vld [vmem:[%s0 + $0xb7] sm:$0x1]
  %v193 = vld [vmem:[%s0 + $0xb8] sm:$0x1]
  %v194 = vld [vmem:[%s0 + $0xb9] sm:$0x1]
  %v195 = vld [vmem:[%s0 + $0xba] sm:$0x1]
  %v196 = vld [vmem:[%s0 + $0xbb] sm:$0x1]
  %v197 = vld [vmem:[%s0 + $0xbc] sm:$0x1]
  %v198 = vld [vmem:[%s0 + $0xbd] sm:$0x1]
  %v199 = vld [vmem:[%s0 + $0xbe] sm:$0x1]
  %v200 = vld [vmem:[%s0 + $0xbf] sm:$0x1]
  %v201 = vld [vmem:[%s0 + $0xc0] sm:$0x1]
  %v202 = vld [vmem:[%s0 + $0xc1] sm:$0x1]
  %v203 = vld [vmem:[%s0 + $0xc2] sm:$0x1]
  %v204 = vld [vmem:[%s0 + $0xc3] sm:$0x1]
  %v205 = vld [vmem:[%s0 + $0xc4] sm:$0x1]
  %v206 = vld [vmem:[%s0 + $0xc5] sm:$0x1]
  %v207 = vld [vmem:[%s0 + $0xc6] sm:$0x1]
  %v208 = vld [vmem:[%s0 + $0xc7] sm:$0x1]
  %v209 = vld [vmem:[%s0 + $0xc8] sm:$0x1]
  %v210 = vld [vmem:[%s0 + $0xc9] sm:$0x1]
  %v211 = vld [vmem:[%s0 + $0xca] sm:$0x1]
  %v212 = vld [vmem:[%s0 + $0xcb] sm:$0x1]
  %v213 = vld [vmem:[%s0 + $0xcc] sm:$0x1]
  %v214 = vld [vmem:[%s0 + $0xcd] sm:$0x1]
  %v215 = vld [vmem:[%s0 + $0xce] sm:$0x1]
  %v216 = vld [vmem:[%s0 + $0xcf] sm:$0x1]
  %v217 = vld [vmem:[%s0 + $0xd0] sm:$0x1]
  %v218 = vld [vmem:[%s0 + $0xd1] sm:$0x1]
  %v219 = vld [vmem:[%s0 + $0xd2] sm:$0x1]
  %v220 = vld [vmem:[%s0 + $0xd3] sm:$0x1]
  %v221 = vld [vmem:[%s0 + $0xd4] sm:$0x1]
  %v222 = vld [vmem:[%s0 + $0xd5] sm:$0x1]
  %v223 = vld [vmem:[%s0 + $0xd6] sm:$0x1]
  %v224 = vld [vmem:[%s0 + $0xd7] sm:$0x1]
  %v225 = vld [vmem:[%s0 + $0xd8] sm:$0x1]
  %v226 = vld [vmem:[%s0 + $0xd9] sm:$0x1]
  %v227 = vld [vmem:[%s0 + $0xda] sm:$0x1]
  %v228 = vld [vmem:[%s0 + $0xdb] sm:$0x1]
  %v229 = vld [vmem:[%s0 + $0xdc] sm:$0x1]
  %v230 = vld [vmem:[%s0 + $0xdd] sm:$0x1]
  %v231 = vld [vmem:[%s0 + $0xde] sm:$0x1]
  %v232 = vld [vmem:[%s0 + $0xdf] sm:$0x1]
  %v233 = vld [vmem:[%s0 + $0xe0] sm:$0x1]
  %v234 = vld [vmem:[%s0 + $0xe1] sm:$0x1]
  %v235 = vld [vmem:[%s0 + $0xe2] sm:$0x1]
  %v236 = vld [vmem:[%s0 + $0xe3] sm:$0x1]
  %v237 = vld [vmem:[%s0 + $0xe4] sm:$0x1]
  %v238 = vld [vmem:[%s0 + $0xe5] sm:$0x1]
  %v239 = vld [vmem:[%s0 + $0xe6] sm:$0x1]
  %v240 = vld [vmem:[%s0 + $0xe7] sm:$0x1]
  %v241 = vld [vmem:[%s0 + $0xe8] sm:$0x1]
  %v242 = vld [vmem:[%s0 + $0xe9] sm:$0x1]
  %v243 = vld [vmem:[%s0 + $0xea] sm:$0x1]
  %v244 = vld [vmem:[%s0 + $0xeb] sm:$0x1]
  %v245 = vld [vmem:[%s0 + $0xec] sm:$0x1]
  %v246 = vld [vmem:[%s0 + $0xed] sm:$0x1]
  %v247 = vld [vmem:[%s0 + $0xee] sm:$0x1]
  %v248 = vld [vmem:[%s0 + $0xef] sm:$0x1]
  %v249 = vld [vmem:[%s0 + $0xf0] sm:$0x1]
  %v250 = vld [vmem:[%s0 + $0xf1] sm:$0x1]
  %v251 = vld [vmem:[%s0 + $0xf2] sm:$0x1]
  %v252 = vld [vmem:[%s0 + $0xf3] sm:$0x1]
  %v253 = vld [vmem:[%s0 + $0xf4] sm:$0x1]
  %v254 = vld [vmem:[%s0 + $0xf5] sm:$0x1]
  %v255 = vld [vmem:[%s0 + $0xf6] sm:$0x1]
  %v256 = vld [vmem:[%s0 + $0xf7] sm:$0x1]
  %v257 = vld [vmem:[%s0 + $0xf8] sm:$0x1]
  %v258 = vld [vmem:[%s0 + $0xf9] sm:$0x1]
  %v259 = vld [vmem:[%s0 + $0xfa] sm:$0x1]
  %v260 = vld [vmem:[%s0 + $0xfb] sm:$0x1]
  %v261 = vld [vmem:[%s0 + $0xfc] sm:$0x1]
  %v262 = vld [vmem:[%s0 + $0xfd] sm:$0x1]
  %v263 = vld [vmem:[%s0 + $0xfe] sm:$0x1]
  %v264 = vld [vmem:[%s0 + $0xff] sm:$0x1]
  %vm265 = vcmask 57344
  %v268 = vsel %vm265, %v9, 4286644096
  %v270 = vunpack.i.l.bf16 %v268
  %v271 = vunpack.i.h.bf16 %v268
  %v272 = vmax.f32 %v270, %v271
  %v273 = vrot.slane %v272, 4
  %v274 = vmax.f32 %v272, %v273
  %v275 = vrot.slane %v274, 2
  %v276 = vmax.f32 %v274, %v275
  %v277 = vrot.slane %v276, 1
  %v278 = vmax.f32 %v276, %v277
  %v279 = vpack.i.bf16 %v278, %v278
  %v281 = vsel %vm265, %v10, 4286644096
  %v283 = vunpack.i.l.bf16 %v281
  %v284 = vunpack.i.h.bf16 %v281
  %v285 = vmax.f32 %v283, %v284
  %v286 = vrot.slane %v285, 4
  %v287 = vmax.f32 %v285, %v286
  %v288 = vrot.slane %v287, 2
  %v289 = vmax.f32 %v287, %v288
  %v290 = vrot.slane %v289, 1
  %v291 = vmax.f32 %v289, %v290
  %v292 = vpack.i.bf16 %v291, %v291
  %v294 = vsel %vm265, %v11, 4286644096
  %v296 = vunpack.i.l.bf16 %v294
  %v297 = vunpack.i.h.bf16 %v294
  %v298 = vmax.f32 %v296, %v297
  %v299 = vrot.slane %v298, 4
  %v300 = vmax.f32 %v298, %v299
  %v301 = vrot.slane %v300, 2
  %v302 = vmax.f32 %v300, %v301
  %v303 = vrot.slane %v302, 1
  %v304 = vmax.f32 %v302, %v303
  %v305 = vpack.i.bf16 %v304, %v304
  %v307 = vsel %vm265, %v12, 4286644096
  %v309 = vunpack.i.l.bf16 %v307
  %v310 = vunpack.i.h.bf16 %v307
  %v311 = vmax.f32 %v309, %v310
  %v312 = vrot.slane %v311, 4
  %v313 = vmax.f32 %v311, %v312
  %v314 = vrot.slane %v313, 2
  %v315 = vmax.f32 %v313, %v314
  %v316 = vrot.slane %v315, 1
  %v317 = vmax.f32 %v315, %v316
  %v318 = vpack.i.bf16 %v317, %v317
  %v320 = vsel %vm265, %v13, 4286644096
  %v322 = vunpack.i.l.bf16 %v320
  %v323 = vunpack.i.h.bf16 %v320
  %v324 = vmax.f32 %v322, %v323
  %v325 = vrot.slane %v324, 4
  %v326 = vmax.f32 %v324, %v325
  %v327 = vrot.slane %v326, 2
  %v328 = vmax.f32 %v326, %v327
  %v329 = vrot.slane %v328, 1
  %v330 = vmax.f32 %v328, %v329
  %v331 = vpack.i.bf16 %v330, %v330
  %v333 = vsel %vm265, %v14, 4286644096
  %v335 = vunpack.i.l.bf16 %v333
  %v336 = vunpack.i.h.bf16 %v333
  %v337 = vmax.f32 %v335, %v336
  %v338 = vrot.slane %v337, 4
  %v339 = vmax.f32 %v337, %v338
  %v340 = vrot.slane %v339, 2
  %v341 = vmax.f32 %v339, %v340
  %v342 = vrot.slane %v341, 1
  %v343 = vmax.f32 %v341, %v342
  %v344 = vpack.i.bf16 %v343, %v343
  %v346 = vsel %vm265, %v15, 4286644096
  %v348 = vunpack.i.l.bf16 %v346
  %v349 = vunpack.i.h.bf16 %v346
  %v350 = vmax.f32 %v348, %v349
  %v351 = vrot.slane %v350, 4
  %v352 = vmax.f32 %v350, %v351
  %v353 = vrot.slane %v352, 2
  %v354 = vmax.f32 %v352, %v353
  %v355 = vrot.slane %v354, 1
  %v356 = vmax.f32 %v354, %v355
  %v357 = vpack.i.bf16 %v356, %v356
  %v359 = vsel %vm265, %v16, 4286644096
  %v361 = vunpack.i.l.bf16 %v359
  %v362 = vunpack.i.h.bf16 %v359
  %v363 = vmax.f32 %v361, %v362
  %v364 = vrot.slane %v363, 4
  %v365 = vmax.f32 %v363, %v364
  %v366 = vrot.slane %v365, 2
  %v367 = vmax.f32 %v365, %v366
  %v368 = vrot.slane %v367, 1
  %v369 = vmax.f32 %v367, %v368
  %v370 = vpack.i.bf16 %v369, %v369
  %v372 = vsel %vm265, %v17, 4286644096
  %v374 = vunpack.i.l.bf16 %v372
  %v375 = vunpack.i.h.bf16 %v372
  %v376 = vmax.f32 %v374, %v375
  %v377 = vrot.slane %v376, 4
  %v378 = vmax.f32 %v376, %v377
  %v379 = vrot.slane %v378, 2
  %v380 = vmax.f32 %v378, %v379
  %v381 = vrot.slane %v380, 1
  %v382 = vmax.f32 %v380, %v381
  %v383 = vpack.i.bf16 %v382, %v382
  %v385 = vsel %vm265, %v18, 4286644096
  %v387 = vunpack.i.l.bf16 %v385
  %v388 = vunpack.i.h.bf16 %v385
  %v389 = vmax.f32 %v387, %v388
  %v390 = vrot.slane %v389, 4
  %v391 = vmax.f32 %v389, %v390
  %v392 = vrot.slane %v391, 2
  %v393 = vmax.f32 %v391, %v392
  %v394 = vrot.slane %v393, 1
  %v395 = vmax.f32 %v393, %v394
  %v396 = vpack.i.bf16 %v395, %v395
  %v398 = vsel %vm265, %v19, 4286644096
  %v400 = vunpack.i.l.bf16 %v398
  %v401 = vunpack.i.h.bf16 %v398
  %v402 = vmax.f32 %v400, %v401
  %v403 = vrot.slane %v402, 4
  %v404 = vmax.f32 %v402, %v403
  %v405 = vrot.slane %v404, 2
  %v406 = vmax.f32 %v404, %v405
  %v407 = vrot.slane %v406, 1
  %v408 = vmax.f32 %v406, %v407
  %v409 = vpack.i.bf16 %v408, %v408
  %v411 = vsel %vm265, %v20, 4286644096
  %v413 = vunpack.i.l.bf16 %v411
  %v414 = vunpack.i.h.bf16 %v411
  %v415 = vmax.f32 %v413, %v414
  %v416 = vrot.slane %v415, 4
  %v417 = vmax.f32 %v415, %v416
  %v418 = vrot.slane %v417, 2
  %v419 = vmax.f32 %v417, %v418
  %v420 = vrot.slane %v419, 1
  %v421 = vmax.f32 %v419, %v420
  %v422 = vpack.i.bf16 %v421, %v421
  %v424 = vsel %vm265, %v21, 4286644096
  %v426 = vunpack.i.l.bf16 %v424
  %v427 = vunpack.i.h.bf16 %v424
  %v428 = vmax.f32 %v426, %v427
  %v429 = vrot.slane %v428, 4
  %v430 = vmax.f32 %v428, %v429
  %v431 = vrot.slane %v430, 2
  %v432 = vmax.f32 %v430, %v431
  %v433 = vrot.slane %v432, 1
  %v434 = vmax.f32 %v432, %v433
  %v435 = vpack.i.bf16 %v434, %v434
  %v437 = vsel %vm265, %v22, 4286644096
  %v439 = vunpack.i.l.bf16 %v437
  %v440 = vunpack.i.h.bf16 %v437
  %v441 = vmax.f32 %v439, %v440
  %v442 = vrot.slane %v441, 4
  %v443 = vmax.f32 %v441, %v442
  %v444 = vrot.slane %v443, 2
  %v445 = vmax.f32 %v443, %v444
  %v446 = vrot.slane %v445, 1
  %v447 = vmax.f32 %v445, %v446
  %v448 = vpack.i.bf16 %v447, %v447
  %v450 = vsel %vm265, %v23, 4286644096
  %v452 = vunpack.i.l.bf16 %v450
  %v453 = vunpack.i.h.bf16 %v450
  %v454 = vmax.f32 %v452, %v453
  %v455 = vrot.slane %v454, 4
  %v456 = vmax.f32 %v454, %v455
  %v457 = vrot.slane %v456, 2
  %v458 = vmax.f32 %v456, %v457
  %v459 = vrot.slane %v458, 1
  %v460 = vmax.f32 %v458, %v459
  %v461 = vpack.i.bf16 %v460, %v460
  %v463 = vsel %vm265, %v24, 4286644096
  %v465 = vunpack.i.l.bf16 %v463
  %v466 = vunpack.i.h.bf16 %v463
  %v467 = vmax.f32 %v465, %v466
  %v468 = vrot.slane %v467, 4
  %v469 = vmax.f32 %v467, %v468
  %v470 = vrot.slane %v469, 2
  %v471 = vmax.f32 %v469, %v470
  %v472 = vrot.slane %v471, 1
  %v473 = vmax.f32 %v471, %v472
  %v474 = vpack.i.bf16 %v473, %v473
  %v476 = vsel %vm265, %v25, 4286644096
  %v478 = vunpack.i.l.bf16 %v476
  %v479 = vunpack.i.h.bf16 %v476
  %v480 = vmax.f32 %v478, %v479
  %v481 = vrot.slane %v480, 4
  %v482 = vmax.f32 %v480, %v481
  %v483 = vrot.slane %v482, 2
  %v484 = vmax.f32 %v482, %v483
  %v485 = vrot.slane %v484, 1
  %v486 = vmax.f32 %v484, %v485
  %v487 = vpack.i.bf16 %v486, %v486
  %v489 = vsel %vm265, %v26, 4286644096
  %v491 = vunpack.i.l.bf16 %v489
  %v492 = vunpack.i.h.bf16 %v489
  %v493 = vmax.f32 %v491, %v492
  %v494 = vrot.slane %v493, 4
  %v495 = vmax.f32 %v493, %v494
  %v496 = vrot.slane %v495, 2
  %v497 = vmax.f32 %v495, %v496
  %v498 = vrot.slane %v497, 1
  %v499 = vmax.f32 %v497, %v498
  %v500 = vpack.i.bf16 %v499, %v499
  %v502 = vsel %vm265, %v27, 4286644096
  %v504 = vunpack.i.l.bf16 %v502
  %v505 = vunpack.i.h.bf16 %v502
  %v506 = vmax.f32 %v504, %v505
  %v507 = vrot.slane %v506, 4
  %v508 = vmax.f32 %v506, %v507
  %v509 = vrot.slane %v508, 2
  %v510 = vmax.f32 %v508, %v509
  %v511 = vrot.slane %v510, 1
  %v512 = vmax.f32 %v510, %v511
  %v513 = vpack.i.bf16 %v512, %v512
  %v515 = vsel %vm265, %v28, 4286644096
  %v517 = vunpack.i.l.bf16 %v515
  %v518 = vunpack.i.h.bf16 %v515
  %v519 = vmax.f32 %v517, %v518
  %v520 = vrot.slane %v519, 4
  %v521 = vmax.f32 %v519, %v520
  %v522 = vrot.slane %v521, 2
  %v523 = vmax.f32 %v521, %v522
  %v524 = vrot.slane %v523, 1
  %v525 = vmax.f32 %v523, %v524
  %v526 = vpack.i.bf16 %v525, %v525
  %v528 = vsel %vm265, %v29, 4286644096
  %v530 = vunpack.i.l.bf16 %v528
  %v531 = vunpack.i.h.bf16 %v528
  %v532 = vmax.f32 %v530, %v531
  %v533 = vrot.slane %v532, 4
  %v534 = vmax.f32 %v532, %v533
  %v535 = vrot.slane %v534, 2
  %v536 = vmax.f32 %v534, %v535
  %v537 = vrot.slane %v536, 1
  %v538 = vmax.f32 %v536, %v537
  %v539 = vpack.i.bf16 %v538, %v538
  %v541 = vsel %vm265, %v30, 4286644096
  %v543 = vunpack.i.l.bf16 %v541
  %v544 = vunpack.i.h.bf16 %v541
  %v545 = vmax.f32 %v543, %v544
  %v546 = vrot.slane %v545, 4
  %v547 = vmax.f32 %v545, %v546
  %v548 = vrot.slane %v547, 2
  %v549 = vmax.f32 %v547, %v548
  %v550 = vrot.slane %v549, 1
  %v551 = vmax.f32 %v549, %v550
  %v552 = vpack.i.bf16 %v551, %v551
  %v554 = vsel %vm265, %v31, 4286644096
  %v556 = vunpack.i.l.bf16 %v554
  %v557 = vunpack.i.h.bf16 %v554
  %v558 = vmax.f32 %v556, %v557
  %v559 = vrot.slane %v558, 4
  %v560 = vmax.f32 %v558, %v559
  %v561 = vrot.slane %v560, 2
  %v562 = vmax.f32 %v560, %v561
  %v563 = vrot.slane %v562, 1
  %v564 = vmax.f32 %v562, %v563
  %v565 = vpack.i.bf16 %v564, %v564
  %v567 = vsel %vm265, %v32, 4286644096
  %v569 = vunpack.i.l.bf16 %v567
  %v570 = vunpack.i.h.bf16 %v567
  %v571 = vmax.f32 %v569, %v570
  %v572 = vrot.slane %v571, 4
  %v573 = vmax.f32 %v571, %v572
  %v574 = vrot.slane %v573, 2
  %v575 = vmax.f32 %v573, %v574
  %v576 = vrot.slane %v575, 1
  %v577 = vmax.f32 %v575, %v576
  %v578 = vpack.i.bf16 %v577, %v577
  %v580 = vsel %vm265, %v33, 4286644096
  %v582 = vunpack.i.l.bf16 %v580
  %v583 = vunpack.i.h.bf16 %v580
  %v584 = vmax.f32 %v582, %v583
  %v585 = vrot.slane %v584, 4
  %v586 = vmax.f32 %v584, %v585
  %v587 = vrot.slane %v586, 2
  %v588 = vmax.f32 %v586, %v587
  %v589 = vrot.slane %v588, 1
  %v590 = vmax.f32 %v588, %v589
  %v591 = vpack.i.bf16 %v590, %v590
  %v593 = vsel %vm265, %v34, 4286644096
  %v595 = vunpack.i.l.bf16 %v593
  %v596 = vunpack.i.h.bf16 %v593
  %v597 = vmax.f32 %v595, %v596
  %v598 = vrot.slane %v597, 4
  %v599 = vmax.f32 %v597, %v598
  %v600 = vrot.slane %v599, 2
  %v601 = vmax.f32 %v599, %v600
  %v602 = vrot.slane %v601, 1
  %v603 = vmax.f32 %v601, %v602
  %v604 = vpack.i.bf16 %v603, %v603
  %v606 = vsel %vm265, %v35, 4286644096
  %v608 = vunpack.i.l.bf16 %v606
  %v609 = vunpack.i.h.bf16 %v606
  %v610 = vmax.f32 %v608, %v609
  %v611 = vrot.slane %v610, 4
  %v612 = vmax.f32 %v610, %v611
  %v613 = vrot.slane %v612, 2
  %v614 = vmax.f32 %v612, %v613
  %v615 = vrot.slane %v614, 1
  %v616 = vmax.f32 %v614, %v615
  %v617 = vpack.i.bf16 %v616, %v616
  %v619 = vsel %vm265, %v36, 4286644096
  %v621 = vunpack.i.l.bf16 %v619
  %v622 = vunpack.i.h.bf16 %v619
  %v623 = vmax.f32 %v621, %v622
  %v624 = vrot.slane %v623, 4
  %v625 = vmax.f32 %v623, %v624
  %v626 = vrot.slane %v625, 2
  %v627 = vmax.f32 %v625, %v626
  %v628 = vrot.slane %v627, 1
  %v629 = vmax.f32 %v627, %v628
  %v630 = vpack.i.bf16 %v629, %v629
  %v632 = vsel %vm265, %v37, 4286644096
  %v634 = vunpack.i.l.bf16 %v632
  %v635 = vunpack.i.h.bf16 %v632
  %v636 = vmax.f32 %v634, %v635
  %v637 = vrot.slane %v636, 4
  %v638 = vmax.f32 %v636, %v637
  %v639 = vrot.slane %v638, 2
  %v640 = vmax.f32 %v638, %v639
  %v641 = vrot.slane %v640, 1
  %v642 = vmax.f32 %v640, %v641
  %v643 = vpack.i.bf16 %v642, %v642
  %v645 = vsel %vm265, %v38, 4286644096
  %v647 = vunpack.i.l.bf16 %v645
  %v648 = vunpack.i.h.bf16 %v645
  %v649 = vmax.f32 %v647, %v648
  %v650 = vrot.slane %v649, 4
  %v651 = vmax.f32 %v649, %v650
  %v652 = vrot.slane %v651, 2
  %v653 = vmax.f32 %v651, %v652
  %v654 = vrot.slane %v653, 1
  %v655 = vmax.f32 %v653, %v654
  %v656 = vpack.i.bf16 %v655, %v655
  %v658 = vsel %vm265, %v39, 4286644096
  %v660 = vunpack.i.l.bf16 %v658
  %v661 = vunpack.i.h.bf16 %v658
  %v662 = vmax.f32 %v660, %v661
  %v663 = vrot.slane %v662, 4
  %v664 = vmax.f32 %v662, %v663
  %v665 = vrot.slane %v664, 2
  %v666 = vmax.f32 %v664, %v665
  %v667 = vrot.slane %v666, 1
  %v668 = vmax.f32 %v666, %v667
  %v669 = vpack.i.bf16 %v668, %v668
  %v671 = vsel %vm265, %v40, 4286644096
  %v673 = vunpack.i.l.bf16 %v671
  %v674 = vunpack.i.h.bf16 %v671
  %v675 = vmax.f32 %v673, %v674
  %v676 = vrot.slane %v675, 4
  %v677 = vmax.f32 %v675, %v676
  %v678 = vrot.slane %v677, 2
  %v679 = vmax.f32 %v677, %v678
  %v680 = vrot.slane %v679, 1
  %v681 = vmax.f32 %v679, %v680
  %v682 = vpack.i.bf16 %v681, %v681
  %v684 = vsel %vm265, %v41, 4286644096
  %v686 = vunpack.i.l.bf16 %v684
  %v687 = vunpack.i.h.bf16 %v684
  %v688 = vmax.f32 %v686, %v687
  %v689 = vrot.slane %v688, 4
  %v690 = vmax.f32 %v688, %v689
  %v691 = vrot.slane %v690, 2
  %v692 = vmax.f32 %v690, %v691
  %v693 = vrot.slane %v692, 1
  %v694 = vmax.f32 %v692, %v693
  %v695 = vpack.i.bf16 %v694, %v694
  %v697 = vsel %vm265, %v42, 4286644096
  %v699 = vunpack.i.l.bf16 %v697
  %v700 = vunpack.i.h.bf16 %v697
  %v701 = vmax.f32 %v699, %v700
  %v702 = vrot.slane %v701, 4
  %v703 = vmax.f32 %v701, %v702
  %v704 = vrot.slane %v703, 2
  %v705 = vmax.f32 %v703, %v704
  %v706 = vrot.slane %v705, 1
  %v707 = vmax.f32 %v705, %v706
  %v708 = vpack.i.bf16 %v707, %v707
  %v710 = vsel %vm265, %v43, 4286644096
  %v712 = vunpack.i.l.bf16 %v710
  %v713 = vunpack.i.h.bf16 %v710
  %v714 = vmax.f32 %v712, %v713
  %v715 = vrot.slane %v714, 4
  %v716 = vmax.f32 %v714, %v715
  %v717 = vrot.slane %v716, 2
  %v718 = vmax.f32 %v716, %v717
  %v719 = vrot.slane %v718, 1
  %v720 = vmax.f32 %v718, %v719
  %v721 = vpack.i.bf16 %v720, %v720
  %v723 = vsel %vm265, %v44, 4286644096
  %v725 = vunpack.i.l.bf16 %v723
  %v726 = vunpack.i.h.bf16 %v723
  %v727 = vmax.f32 %v725, %v726
  %v728 = vrot.slane %v727, 4
  %v729 = vmax.f32 %v727, %v728
  %v730 = vrot.slane %v729, 2
  %v731 = vmax.f32 %v729, %v730
  %v732 = vrot.slane %v731, 1
  %v733 = vmax.f32 %v731, %v732
  %v734 = vpack.i.bf16 %v733, %v733
  %v736 = vsel %vm265, %v45, 4286644096
  %v738 = vunpack.i.l.bf16 %v736
  %v739 = vunpack.i.h.bf16 %v736
  %v740 = vmax.f32 %v738, %v739
  %v741 = vrot.slane %v740, 4
  %v742 = vmax.f32 %v740, %v741
  %v743 = vrot.slane %v742, 2
  %v744 = vmax.f32 %v742, %v743
  %v745 = vrot.slane %v744, 1
  %v746 = vmax.f32 %v744, %v745
  %v747 = vpack.i.bf16 %v746, %v746
  %v749 = vsel %vm265, %v46, 4286644096
  %v751 = vunpack.i.l.bf16 %v749
  %v752 = vunpack.i.h.bf16 %v749
  %v753 = vmax.f32 %v751, %v752
  %v754 = vrot.slane %v753, 4
  %v755 = vmax.f32 %v753, %v754
  %v756 = vrot.slane %v755, 2
  %v757 = vmax.f32 %v755, %v756
  %v758 = vrot.slane %v757, 1
  %v759 = vmax.f32 %v757, %v758
  %v760 = vpack.i.bf16 %v759, %v759
  %v762 = vsel %vm265, %v47, 4286644096
  %v764 = vunpack.i.l.bf16 %v762
  %v765 = vunpack.i.h.bf16 %v762
  %v766 = vmax.f32 %v764, %v765
  %v767 = vrot.slane %v766, 4
  %v768 = vmax.f32 %v766, %v767
  %v769 = vrot.slane %v768, 2
  %v770 = vmax.f32 %v768, %v769
  %v771 = vrot.slane %v770, 1
  %v772 = vmax.f32 %v770, %v771
  %v773 = vpack.i.bf16 %v772, %v772
  %v775 = vsel %vm265, %v48, 4286644096
  %v777 = vunpack.i.l.bf16 %v775
  %v778 = vunpack.i.h.bf16 %v775
  %v779 = vmax.f32 %v777, %v778
  %v780 = vrot.slane %v779, 4
  %v781 = vmax.f32 %v779, %v780
  %v782 = vrot.slane %v781, 2
  %v783 = vmax.f32 %v781, %v782
  %v784 = vrot.slane %v783, 1
  %v785 = vmax.f32 %v783, %v784
  %v786 = vpack.i.bf16 %v785, %v785
  %v788 = vsel %vm265, %v49, 4286644096
  %v790 = vunpack.i.l.bf16 %v788
  %v791 = vunpack.i.h.bf16 %v788
  %v792 = vmax.f32 %v790, %v791
  %v793 = vrot.slane %v792, 4
  %v794 = vmax.f32 %v792, %v793
  %v795 = vrot.slane %v794, 2
  %v796 = vmax.f32 %v794, %v795
  %v797 = vrot.slane %v796, 1
  %v798 = vmax.f32 %v796, %v797
  %v799 = vpack.i.bf16 %v798, %v798
  %v801 = vsel %vm265, %v50, 4286644096
  %v803 = vunpack.i.l.bf16 %v801
  %v804 = vunpack.i.h.bf16 %v801
  %v805 = vmax.f32 %v803, %v804
  %v806 = vrot.slane %v805, 4
  %v807 = vmax.f32 %v805, %v806
  %v808 = vrot.slane %v807, 2
  %v809 = vmax.f32 %v807, %v808
  %v810 = vrot.slane %v809, 1
  %v811 = vmax.f32 %v809, %v810
  %v812 = vpack.i.bf16 %v811, %v811
  %v814 = vsel %vm265, %v51, 4286644096
  %v816 = vunpack.i.l.bf16 %v814
  %v817 = vunpack.i.h.bf16 %v814
  %v818 = vmax.f32 %v816, %v817
  %v819 = vrot.slane %v818, 4
  %v820 = vmax.f32 %v818, %v819
  %v821 = vrot.slane %v820, 2
  %v822 = vmax.f32 %v820, %v821
  %v823 = vrot.slane %v822, 1
  %v824 = vmax.f32 %v822, %v823
  %v825 = vpack.i.bf16 %v824, %v824
  %v827 = vsel %vm265, %v52, 4286644096
  %v829 = vunpack.i.l.bf16 %v827
  %v830 = vunpack.i.h.bf16 %v827
  %v831 = vmax.f32 %v829, %v830
  %v832 = vrot.slane %v831, 4
  %v833 = vmax.f32 %v831, %v832
  %v834 = vrot.slane %v833, 2
  %v835 = vmax.f32 %v833, %v834
  %v836 = vrot.slane %v835, 1
  %v837 = vmax.f32 %v835, %v836
  %v838 = vpack.i.bf16 %v837, %v837
  %v840 = vsel %vm265, %v53, 4286644096
  %v842 = vunpack.i.l.bf16 %v840
  %v843 = vunpack.i.h.bf16 %v840
  %v844 = vmax.f32 %v842, %v843
  %v845 = vrot.slane %v844, 4
  %v846 = vmax.f32 %v844, %v845
  %v847 = vrot.slane %v846, 2
  %v848 = vmax.f32 %v846, %v847
  %v849 = vrot.slane %v848, 1
  %v850 = vmax.f32 %v848, %v849
  %v851 = vpack.i.bf16 %v850, %v850
  %v853 = vsel %vm265, %v54, 4286644096
  %v855 = vunpack.i.l.bf16 %v853
  %v856 = vunpack.i.h.bf16 %v853
  %v857 = vmax.f32 %v855, %v856
  %v858 = vrot.slane %v857, 4
  %v859 = vmax.f32 %v857, %v858
  %v860 = vrot.slane %v859, 2
  %v861 = vmax.f32 %v859, %v860
  %v862 = vrot.slane %v861, 1
  %v863 = vmax.f32 %v861, %v862
  %v864 = vpack.i.bf16 %v863, %v863
  %v866 = vsel %vm265, %v55, 4286644096
  %v868 = vunpack.i.l.bf16 %v866
  %v869 = vunpack.i.h.bf16 %v866
  %v870 = vmax.f32 %v868, %v869
  %v871 = vrot.slane %v870, 4
  %v872 = vmax.f32 %v870, %v871
  %v873 = vrot.slane %v872, 2
  %v874 = vmax.f32 %v872, %v873
  %v875 = vrot.slane %v874, 1
  %v876 = vmax.f32 %v874, %v875
  %v877 = vpack.i.bf16 %v876, %v876
  %v879 = vsel %vm265, %v56, 4286644096
  %v881 = vunpack.i.l.bf16 %v879
  %v882 = vunpack.i.h.bf16 %v879
  %v883 = vmax.f32 %v881, %v882
  %v884 = vrot.slane %v883, 4
  %v885 = vmax.f32 %v883, %v884
  %v886 = vrot.slane %v885, 2
  %v887 = vmax.f32 %v885, %v886
  %v888 = vrot.slane %v887, 1
  %v889 = vmax.f32 %v887, %v888
  %v890 = vpack.i.bf16 %v889, %v889
  %v892 = vsel %vm265, %v57, 4286644096
  %v894 = vunpack.i.l.bf16 %v892
  %v895 = vunpack.i.h.bf16 %v892
  %v896 = vmax.f32 %v894, %v895
  %v897 = vrot.slane %v896, 4
  %v898 = vmax.f32 %v896, %v897
  %v899 = vrot.slane %v898, 2
  %v900 = vmax.f32 %v898, %v899
  %v901 = vrot.slane %v900, 1
  %v902 = vmax.f32 %v900, %v901
  %v903 = vpack.i.bf16 %v902, %v902
  %v905 = vsel %vm265, %v58, 4286644096
  %v907 = vunpack.i.l.bf16 %v905
  %v908 = vunpack.i.h.bf16 %v905
  %v909 = vmax.f32 %v907, %v908
  %v910 = vrot.slane %v909, 4
  %v911 = vmax.f32 %v909, %v910
  %v912 = vrot.slane %v911, 2
  %v913 = vmax.f32 %v911, %v912
  %v914 = vrot.slane %v913, 1
  %v915 = vmax.f32 %v913, %v914
  %v916 = vpack.i.bf16 %v915, %v915
  %v918 = vsel %vm265, %v59, 4286644096
  %v920 = vunpack.i.l.bf16 %v918
  %v921 = vunpack.i.h.bf16 %v918
  %v922 = vmax.f32 %v920, %v921
  %v923 = vrot.slane %v922, 4
  %v924 = vmax.f32 %v922, %v923
  %v925 = vrot.slane %v924, 2
  %v926 = vmax.f32 %v924, %v925
  %v927 = vrot.slane %v926, 1
  %v928 = vmax.f32 %v926, %v927
  %v929 = vpack.i.bf16 %v928, %v928
  %v931 = vsel %vm265, %v60, 4286644096
  %v933 = vunpack.i.l.bf16 %v931
  %v934 = vunpack.i.h.bf16 %v931
  %v935 = vmax.f32 %v933, %v934
  %v936 = vrot.slane %v935, 4
  %v937 = vmax.f32 %v935, %v936
  %v938 = vrot.slane %v937, 2
  %v939 = vmax.f32 %v937, %v938
  %v940 = vrot.slane %v939, 1
  %v941 = vmax.f32 %v939, %v940
  %v942 = vpack.i.bf16 %v941, %v941
  %v944 = vsel %vm265, %v61, 4286644096
  %v946 = vunpack.i.l.bf16 %v944
  %v947 = vunpack.i.h.bf16 %v944
  %v948 = vmax.f32 %v946, %v947
  %v949 = vrot.slane %v948, 4
  %v950 = vmax.f32 %v948, %v949
  %v951 = vrot.slane %v950, 2
  %v952 = vmax.f32 %v950, %v951
  %v953 = vrot.slane %v952, 1
  %v954 = vmax.f32 %v952, %v953
  %v955 = vpack.i.bf16 %v954, %v954
  %v957 = vsel %vm265, %v62, 4286644096
  %v959 = vunpack.i.l.bf16 %v957
  %v960 = vunpack.i.h.bf16 %v957
  %v961 = vmax.f32 %v959, %v960
  %v962 = vrot.slane %v961, 4
  %v963 = vmax.f32 %v961, %v962
  %v964 = vrot.slane %v963, 2
  %v965 = vmax.f32 %v963, %v964
  %v966 = vrot.slane %v965, 1
  %v967 = vmax.f32 %v965, %v966
  %v968 = vpack.i.bf16 %v967, %v967
  %v970 = vsel %vm265, %v63, 4286644096
  %v972 = vunpack.i.l.bf16 %v970
  %v973 = vunpack.i.h.bf16 %v970
  %v974 = vmax.f32 %v972, %v973
  %v975 = vrot.slane %v974, 4
  %v976 = vmax.f32 %v974, %v975
  %v977 = vrot.slane %v976, 2
  %v978 = vmax.f32 %v976, %v977
  %v979 = vrot.slane %v978, 1
  %v980 = vmax.f32 %v978, %v979
  %v981 = vpack.i.bf16 %v980, %v980
  %v983 = vsel %vm265, %v64, 4286644096
  %v985 = vunpack.i.l.bf16 %v983
  %v986 = vunpack.i.h.bf16 %v983
  %v987 = vmax.f32 %v985, %v986
  %v988 = vrot.slane %v987, 4
  %v989 = vmax.f32 %v987, %v988
  %v990 = vrot.slane %v989, 2
  %v991 = vmax.f32 %v989, %v990
  %v992 = vrot.slane %v991, 1
  %v993 = vmax.f32 %v991, %v992
  %v994 = vpack.i.bf16 %v993, %v993
  %v996 = vsel %vm265, %v65, 4286644096
  %v998 = vunpack.i.l.bf16 %v996
  %v999 = vunpack.i.h.bf16 %v996
  %v1000 = vmax.f32 %v998, %v999
  %v1001 = vrot.slane %v1000, 4
  %v1002 = vmax.f32 %v1000, %v1001
  %v1003 = vrot.slane %v1002, 2
  %v1004 = vmax.f32 %v1002, %v1003
  %v1005 = vrot.slane %v1004, 1
  %v1006 = vmax.f32 %v1004, %v1005
  %v1007 = vpack.i.bf16 %v1006, %v1006
  %v1009 = vsel %vm265, %v66, 4286644096
  %v1011 = vunpack.i.l.bf16 %v1009
  %v1012 = vunpack.i.h.bf16 %v1009
  %v1013 = vmax.f32 %v1011, %v1012
  %v1014 = vrot.slane %v1013, 4
  %v1015 = vmax.f32 %v1013, %v1014
  %v1016 = vrot.slane %v1015, 2
  %v1017 = vmax.f32 %v1015, %v1016
  %v1018 = vrot.slane %v1017, 1
  %v1019 = vmax.f32 %v1017, %v1018
  %v1020 = vpack.i.bf16 %v1019, %v1019
  %v1022 = vsel %vm265, %v67, 4286644096
  %v1024 = vunpack.i.l.bf16 %v1022
  %v1025 = vunpack.i.h.bf16 %v1022
  %v1026 = vmax.f32 %v1024, %v1025
  %v1027 = vrot.slane %v1026, 4
  %v1028 = vmax.f32 %v1026, %v1027
  %v1029 = vrot.slane %v1028, 2
  %v1030 = vmax.f32 %v1028, %v1029
  %v1031 = vrot.slane %v1030, 1
  %v1032 = vmax.f32 %v1030, %v1031
  %v1033 = vpack.i.bf16 %v1032, %v1032
  %v1035 = vsel %vm265, %v68, 4286644096
  %v1037 = vunpack.i.l.bf16 %v1035
  %v1038 = vunpack.i.h.bf16 %v1035
  %v1039 = vmax.f32 %v1037, %v1038
  %v1040 = vrot.slane %v1039, 4
  %v1041 = vmax.f32 %v1039, %v1040
  %v1042 = vrot.slane %v1041, 2
  %v1043 = vmax.f32 %v1041, %v1042
  %v1044 = vrot.slane %v1043, 1
  %v1045 = vmax.f32 %v1043, %v1044
  %v1046 = vpack.i.bf16 %v1045, %v1045
  %v1048 = vsel %vm265, %v69, 4286644096
  %v1050 = vunpack.i.l.bf16 %v1048
  %v1051 = vunpack.i.h.bf16 %v1048
  %v1052 = vmax.f32 %v1050, %v1051
  %v1053 = vrot.slane %v1052, 4
  %v1054 = vmax.f32 %v1052, %v1053
  %v1055 = vrot.slane %v1054, 2
  %v1056 = vmax.f32 %v1054, %v1055
  %v1057 = vrot.slane %v1056, 1
  %v1058 = vmax.f32 %v1056, %v1057
  %v1059 = vpack.i.bf16 %v1058, %v1058
  %v1061 = vsel %vm265, %v70, 4286644096
  %v1063 = vunpack.i.l.bf16 %v1061
  %v1064 = vunpack.i.h.bf16 %v1061
  %v1065 = vmax.f32 %v1063, %v1064
  %v1066 = vrot.slane %v1065, 4
  %v1067 = vmax.f32 %v1065, %v1066
  %v1068 = vrot.slane %v1067, 2
  %v1069 = vmax.f32 %v1067, %v1068
  %v1070 = vrot.slane %v1069, 1
  %v1071 = vmax.f32 %v1069, %v1070
  %v1072 = vpack.i.bf16 %v1071, %v1071
  %v1074 = vsel %vm265, %v71, 4286644096
  %v1076 = vunpack.i.l.bf16 %v1074
  %v1077 = vunpack.i.h.bf16 %v1074
  %v1078 = vmax.f32 %v1076, %v1077
  %v1079 = vrot.slane %v1078, 4
  %v1080 = vmax.f32 %v1078, %v1079
  %v1081 = vrot.slane %v1080, 2
  %v1082 = vmax.f32 %v1080, %v1081
  %v1083 = vrot.slane %v1082, 1
  %v1084 = vmax.f32 %v1082, %v1083
  %v1085 = vpack.i.bf16 %v1084, %v1084
  %v1087 = vsel %vm265, %v72, 4286644096
  %v1089 = vunpack.i.l.bf16 %v1087
  %v1090 = vunpack.i.h.bf16 %v1087
  %v1091 = vmax.f32 %v1089, %v1090
  %v1092 = vrot.slane %v1091, 4
  %v1093 = vmax.f32 %v1091, %v1092
  %v1094 = vrot.slane %v1093, 2
  %v1095 = vmax.f32 %v1093, %v1094
  %v1096 = vrot.slane %v1095, 1
  %v1097 = vmax.f32 %v1095, %v1096
  %v1098 = vpack.i.bf16 %v1097, %v1097
  %v1100 = vsel %vm265, %v73, 4286644096
  %v1102 = vunpack.i.l.bf16 %v1100
  %v1103 = vunpack.i.h.bf16 %v1100
  %v1104 = vmax.f32 %v1102, %v1103
  %v1105 = vrot.slane %v1104, 4
  %v1106 = vmax.f32 %v1104, %v1105
  %v1107 = vrot.slane %v1106, 2
  %v1108 = vmax.f32 %v1106, %v1107
  %v1109 = vrot.slane %v1108, 1
  %v1110 = vmax.f32 %v1108, %v1109
  %v1111 = vpack.i.bf16 %v1110, %v1110
  %v1113 = vsel %vm265, %v74, 4286644096
  %v1115 = vunpack.i.l.bf16 %v1113
  %v1116 = vunpack.i.h.bf16 %v1113
  %v1117 = vmax.f32 %v1115, %v1116
  %v1118 = vrot.slane %v1117, 4
  %v1119 = vmax.f32 %v1117, %v1118
  %v1120 = vrot.slane %v1119, 2
  %v1121 = vmax.f32 %v1119, %v1120
  %v1122 = vrot.slane %v1121, 1
  %v1123 = vmax.f32 %v1121, %v1122
  %v1124 = vpack.i.bf16 %v1123, %v1123
  %v1126 = vsel %vm265, %v75, 4286644096
  %v1128 = vunpack.i.l.bf16 %v1126
  %v1129 = vunpack.i.h.bf16 %v1126
  %v1130 = vmax.f32 %v1128, %v1129
  %v1131 = vrot.slane %v1130, 4
  %v1132 = vmax.f32 %v1130, %v1131
  %v1133 = vrot.slane %v1132, 2
  %v1134 = vmax.f32 %v1132, %v1133
  %v1135 = vrot.slane %v1134, 1
  %v1136 = vmax.f32 %v1134, %v1135
  %v1137 = vpack.i.bf16 %v1136, %v1136
  %v1139 = vsel %vm265, %v76, 4286644096
  %v1141 = vunpack.i.l.bf16 %v1139
  %v1142 = vunpack.i.h.bf16 %v1139
  %v1143 = vmax.f32 %v1141, %v1142
  %v1144 = vrot.slane %v1143, 4
  %v1145 = vmax.f32 %v1143, %v1144
  %v1146 = vrot.slane %v1145, 2
  %v1147 = vmax.f32 %v1145, %v1146
  %v1148 = vrot.slane %v1147, 1
  %v1149 = vmax.f32 %v1147, %v1148
  %v1150 = vpack.i.bf16 %v1149, %v1149
  %v1152 = vsel %vm265, %v77, 4286644096
  %v1154 = vunpack.i.l.bf16 %v1152
  %v1155 = vunpack.i.h.bf16 %v1152
  %v1156 = vmax.f32 %v1154, %v1155
  %v1157 = vrot.slane %v1156, 4
  %v1158 = vmax.f32 %v1156, %v1157
  %v1159 = vrot.slane %v1158, 2
  %v1160 = vmax.f32 %v1158, %v1159
  %v1161 = vrot.slane %v1160, 1
  %v1162 = vmax.f32 %v1160, %v1161
  %v1163 = vpack.i.bf16 %v1162, %v1162
  %v1165 = vsel %vm265, %v78, 4286644096
  %v1167 = vunpack.i.l.bf16 %v1165
  %v1168 = vunpack.i.h.bf16 %v1165
  %v1169 = vmax.f32 %v1167, %v1168
  %v1170 = vrot.slane %v1169, 4
  %v1171 = vmax.f32 %v1169, %v1170
  %v1172 = vrot.slane %v1171, 2
  %v1173 = vmax.f32 %v1171, %v1172
  %v1174 = vrot.slane %v1173, 1
  %v1175 = vmax.f32 %v1173, %v1174
  %v1176 = vpack.i.bf16 %v1175, %v1175
  %v1178 = vsel %vm265, %v79, 4286644096
  %v1180 = vunpack.i.l.bf16 %v1178
  %v1181 = vunpack.i.h.bf16 %v1178
  %v1182 = vmax.f32 %v1180, %v1181
  %v1183 = vrot.slane %v1182, 4
  %v1184 = vmax.f32 %v1182, %v1183
  %v1185 = vrot.slane %v1184, 2
  %v1186 = vmax.f32 %v1184, %v1185
  %v1187 = vrot.slane %v1186, 1
  %v1188 = vmax.f32 %v1186, %v1187
  %v1189 = vpack.i.bf16 %v1188, %v1188
  %v1191 = vsel %vm265, %v80, 4286644096
  %v1193 = vunpack.i.l.bf16 %v1191
  %v1194 = vunpack.i.h.bf16 %v1191
  %v1195 = vmax.f32 %v1193, %v1194
  %v1196 = vrot.slane %v1195, 4
  %v1197 = vmax.f32 %v1195, %v1196
  %v1198 = vrot.slane %v1197, 2
  %v1199 = vmax.f32 %v1197, %v1198
  %v1200 = vrot.slane %v1199, 1
  %v1201 = vmax.f32 %v1199, %v1200
  %v1202 = vpack.i.bf16 %v1201, %v1201
  %v1204 = vsel %vm265, %v81, 4286644096
  %v1206 = vunpack.i.l.bf16 %v1204
  %v1207 = vunpack.i.h.bf16 %v1204
  %v1208 = vmax.f32 %v1206, %v1207
  %v1209 = vrot.slane %v1208, 4
  %v1210 = vmax.f32 %v1208, %v1209
  %v1211 = vrot.slane %v1210, 2
  %v1212 = vmax.f32 %v1210, %v1211
  %v1213 = vrot.slane %v1212, 1
  %v1214 = vmax.f32 %v1212, %v1213
  %v1215 = vpack.i.bf16 %v1214, %v1214
  %v1217 = vsel %vm265, %v82, 4286644096
  %v1219 = vunpack.i.l.bf16 %v1217
  %v1220 = vunpack.i.h.bf16 %v1217
  %v1221 = vmax.f32 %v1219, %v1220
  %v1222 = vrot.slane %v1221, 4
  %v1223 = vmax.f32 %v1221, %v1222
  %v1224 = vrot.slane %v1223, 2
  %v1225 = vmax.f32 %v1223, %v1224
  %v1226 = vrot.slane %v1225, 1
  %v1227 = vmax.f32 %v1225, %v1226
  %v1228 = vpack.i.bf16 %v1227, %v1227
  %v1230 = vsel %vm265, %v83, 4286644096
  %v1232 = vunpack.i.l.bf16 %v1230
  %v1233 = vunpack.i.h.bf16 %v1230
  %v1234 = vmax.f32 %v1232, %v1233
  %v1235 = vrot.slane %v1234, 4
  %v1236 = vmax.f32 %v1234, %v1235
  %v1237 = vrot.slane %v1236, 2
  %v1238 = vmax.f32 %v1236, %v1237
  %v1239 = vrot.slane %v1238, 1
  %v1240 = vmax.f32 %v1238, %v1239
  %v1241 = vpack.i.bf16 %v1240, %v1240
  %v1243 = vsel %vm265, %v84, 4286644096
  %v1245 = vunpack.i.l.bf16 %v1243
  %v1246 = vunpack.i.h.bf16 %v1243
  %v1247 = vmax.f32 %v1245, %v1246
  %v1248 = vrot.slane %v1247, 4
  %v1249 = vmax.f32 %v1247, %v1248
  %v1250 = vrot.slane %v1249, 2
  %v1251 = vmax.f32 %v1249, %v1250
  %v1252 = vrot.slane %v1251, 1
  %v1253 = vmax.f32 %v1251, %v1252
  %v1254 = vpack.i.bf16 %v1253, %v1253
  %v1256 = vsel %vm265, %v85, 4286644096
  %v1258 = vunpack.i.l.bf16 %v1256
  %v1259 = vunpack.i.h.bf16 %v1256
  %v1260 = vmax.f32 %v1258, %v1259
  %v1261 = vrot.slane %v1260, 4
  %v1262 = vmax.f32 %v1260, %v1261
  %v1263 = vrot.slane %v1262, 2
  %v1264 = vmax.f32 %v1262, %v1263
  %v1265 = vrot.slane %v1264, 1
  %v1266 = vmax.f32 %v1264, %v1265
  %v1267 = vpack.i.bf16 %v1266, %v1266
  %v1269 = vsel %vm265, %v86, 4286644096
  %v1271 = vunpack.i.l.bf16 %v1269
  %v1272 = vunpack.i.h.bf16 %v1269
  %v1273 = vmax.f32 %v1271, %v1272
  %v1274 = vrot.slane %v1273, 4
  %v1275 = vmax.f32 %v1273, %v1274
  %v1276 = vrot.slane %v1275, 2
  %v1277 = vmax.f32 %v1275, %v1276
  %v1278 = vrot.slane %v1277, 1
  %v1279 = vmax.f32 %v1277, %v1278
  %v1280 = vpack.i.bf16 %v1279, %v1279
  %v1282 = vsel %vm265, %v87, 4286644096
  %v1284 = vunpack.i.l.bf16 %v1282
  %v1285 = vunpack.i.h.bf16 %v1282
  %v1286 = vmax.f32 %v1284, %v1285
  %v1287 = vrot.slane %v1286, 4
  %v1288 = vmax.f32 %v1286, %v1287
  %v1289 = vrot.slane %v1288, 2
  %v1290 = vmax.f32 %v1288, %v1289
  %v1291 = vrot.slane %v1290, 1
  %v1292 = vmax.f32 %v1290, %v1291
  %v1293 = vpack.i.bf16 %v1292, %v1292
  %v1295 = vsel %vm265, %v88, 4286644096
  %v1297 = vunpack.i.l.bf16 %v1295
  %v1298 = vunpack.i.h.bf16 %v1295
  %v1299 = vmax.f32 %v1297, %v1298
  %v1300 = vrot.slane %v1299, 4
  %v1301 = vmax.f32 %v1299, %v1300
  %v1302 = vrot.slane %v1301, 2
  %v1303 = vmax.f32 %v1301, %v1302
  %v1304 = vrot.slane %v1303, 1
  %v1305 = vmax.f32 %v1303, %v1304
  %v1306 = vpack.i.bf16 %v1305, %v1305
  %v1308 = vsel %vm265, %v89, 4286644096
  %v1310 = vunpack.i.l.bf16 %v1308
  %v1311 = vunpack.i.h.bf16 %v1308
  %v1312 = vmax.f32 %v1310, %v1311
  %v1313 = vrot.slane %v1312, 4
  %v1314 = vmax.f32 %v1312, %v1313
  %v1315 = vrot.slane %v1314, 2
  %v1316 = vmax.f32 %v1314, %v1315
  %v1317 = vrot.slane %v1316, 1
  %v1318 = vmax.f32 %v1316, %v1317
  %v1319 = vpack.i.bf16 %v1318, %v1318
  %v1321 = vsel %vm265, %v90, 4286644096
  %v1323 = vunpack.i.l.bf16 %v1321
  %v1324 = vunpack.i.h.bf16 %v1321
  %v1325 = vmax.f32 %v1323, %v1324
  %v1326 = vrot.slane %v1325, 4
  %v1327 = vmax.f32 %v1325, %v1326
  %v1328 = vrot.slane %v1327, 2
  %v1329 = vmax.f32 %v1327, %v1328
  %v1330 = vrot.slane %v1329, 1
  %v1331 = vmax.f32 %v1329, %v1330
  %v1332 = vpack.i.bf16 %v1331, %v1331
  %v1334 = vsel %vm265, %v91, 4286644096
  %v1336 = vunpack.i.l.bf16 %v1334
  %v1337 = vunpack.i.h.bf16 %v1334
  %v1338 = vmax.f32 %v1336, %v1337
  %v1339 = vrot.slane %v1338, 4
  %v1340 = vmax.f32 %v1338, %v1339
  %v1341 = vrot.slane %v1340, 2
  %v1342 = vmax.f32 %v1340, %v1341
  %v1343 = vrot.slane %v1342, 1
  %v1344 = vmax.f32 %v1342, %v1343
  %v1345 = vpack.i.bf16 %v1344, %v1344
  %v1347 = vsel %vm265, %v92, 4286644096
  %v1349 = vunpack.i.l.bf16 %v1347
  %v1350 = vunpack.i.h.bf16 %v1347
  %v1351 = vmax.f32 %v1349, %v1350
  %v1352 = vrot.slane %v1351, 4
  %v1353 = vmax.f32 %v1351, %v1352
  %v1354 = vrot.slane %v1353, 2
  %v1355 = vmax.f32 %v1353, %v1354
  %v1356 = vrot.slane %v1355, 1
  %v1357 = vmax.f32 %v1355, %v1356
  %v1358 = vpack.i.bf16 %v1357, %v1357
  %v1360 = vsel %vm265, %v93, 4286644096
  %v1362 = vunpack.i.l.bf16 %v1360
  %v1363 = vunpack.i.h.bf16 %v1360
  %v1364 = vmax.f32 %v1362, %v1363
  %v1365 = vrot.slane %v1364, 4
  %v1366 = vmax.f32 %v1364, %v1365
  %v1367 = vrot.slane %v1366, 2
  %v1368 = vmax.f32 %v1366, %v1367
  %v1369 = vrot.slane %v1368, 1
  %v1370 = vmax.f32 %v1368, %v1369
  %v1371 = vpack.i.bf16 %v1370, %v1370
  %v1373 = vsel %vm265, %v94, 4286644096
  %v1375 = vunpack.i.l.bf16 %v1373
  %v1376 = vunpack.i.h.bf16 %v1373
  %v1377 = vmax.f32 %v1375, %v1376
  %v1378 = vrot.slane %v1377, 4
  %v1379 = vmax.f32 %v1377, %v1378
  %v1380 = vrot.slane %v1379, 2
  %v1381 = vmax.f32 %v1379, %v1380
  %v1382 = vrot.slane %v1381, 1
  %v1383 = vmax.f32 %v1381, %v1382
  %v1384 = vpack.i.bf16 %v1383, %v1383
  %v1386 = vsel %vm265, %v95, 4286644096
  %v1388 = vunpack.i.l.bf16 %v1386
  %v1389 = vunpack.i.h.bf16 %v1386
  %v1390 = vmax.f32 %v1388, %v1389
  %v1391 = vrot.slane %v1390, 4
  %v1392 = vmax.f32 %v1390, %v1391
  %v1393 = vrot.slane %v1392, 2
  %v1394 = vmax.f32 %v1392, %v1393
  %v1395 = vrot.slane %v1394, 1
  %v1396 = vmax.f32 %v1394, %v1395
  %v1397 = vpack.i.bf16 %v1396, %v1396
  %v1399 = vsel %vm265, %v96, 4286644096
  %v1401 = vunpack.i.l.bf16 %v1399
  %v1402 = vunpack.i.h.bf16 %v1399
  %v1403 = vmax.f32 %v1401, %v1402
  %v1404 = vrot.slane %v1403, 4
  %v1405 = vmax.f32 %v1403, %v1404
  %v1406 = vrot.slane %v1405, 2
  %v1407 = vmax.f32 %v1405, %v1406
  %v1408 = vrot.slane %v1407, 1
  %v1409 = vmax.f32 %v1407, %v1408
  %v1410 = vpack.i.bf16 %v1409, %v1409
  %v1412 = vsel %vm265, %v97, 4286644096
  %v1414 = vunpack.i.l.bf16 %v1412
  %v1415 = vunpack.i.h.bf16 %v1412
  %v1416 = vmax.f32 %v1414, %v1415
  %v1417 = vrot.slane %v1416, 4
  %v1418 = vmax.f32 %v1416, %v1417
  %v1419 = vrot.slane %v1418, 2
  %v1420 = vmax.f32 %v1418, %v1419
  %v1421 = vrot.slane %v1420, 1
  %v1422 = vmax.f32 %v1420, %v1421
  %v1423 = vpack.i.bf16 %v1422, %v1422
  %v1425 = vsel %vm265, %v98, 4286644096
  %v1427 = vunpack.i.l.bf16 %v1425
  %v1428 = vunpack.i.h.bf16 %v1425
  %v1429 = vmax.f32 %v1427, %v1428
  %v1430 = vrot.slane %v1429, 4
  %v1431 = vmax.f32 %v1429, %v1430
  %v1432 = vrot.slane %v1431, 2
  %v1433 = vmax.f32 %v1431, %v1432
  %v1434 = vrot.slane %v1433, 1
  %v1435 = vmax.f32 %v1433, %v1434
  %v1436 = vpack.i.bf16 %v1435, %v1435
  %v1438 = vsel %vm265, %v99, 4286644096
  %v1440 = vunpack.i.l.bf16 %v1438
  %v1441 = vunpack.i.h.bf16 %v1438
  %v1442 = vmax.f32 %v1440, %v1441
  %v1443 = vrot.slane %v1442, 4
  %v1444 = vmax.f32 %v1442, %v1443
  %v1445 = vrot.slane %v1444, 2
  %v1446 = vmax.f32 %v1444, %v1445
  %v1447 = vrot.slane %v1446, 1
  %v1448 = vmax.f32 %v1446, %v1447
  %v1449 = vpack.i.bf16 %v1448, %v1448
  %v1451 = vsel %vm265, %v100, 4286644096
  %v1453 = vunpack.i.l.bf16 %v1451
  %v1454 = vunpack.i.h.bf16 %v1451
  %v1455 = vmax.f32 %v1453, %v1454
  %v1456 = vrot.slane %v1455, 4
  %v1457 = vmax.f32 %v1455, %v1456
  %v1458 = vrot.slane %v1457, 2
  %v1459 = vmax.f32 %v1457, %v1458
  %v1460 = vrot.slane %v1459, 1
  %v1461 = vmax.f32 %v1459, %v1460
  %v1462 = vpack.i.bf16 %v1461, %v1461
  %v1464 = vsel %vm265, %v101, 4286644096
  %v1466 = vunpack.i.l.bf16 %v1464
  %v1467 = vunpack.i.h.bf16 %v1464
  %v1468 = vmax.f32 %v1466, %v1467
  %v1469 = vrot.slane %v1468, 4
  %v1470 = vmax.f32 %v1468, %v1469
  %v1471 = vrot.slane %v1470, 2
  %v1472 = vmax.f32 %v1470, %v1471
  %v1473 = vrot.slane %v1472, 1
  %v1474 = vmax.f32 %v1472, %v1473
  %v1475 = vpack.i.bf16 %v1474, %v1474
  %v1477 = vsel %vm265, %v102, 4286644096
  %v1479 = vunpack.i.l.bf16 %v1477
  %v1480 = vunpack.i.h.bf16 %v1477
  %v1481 = vmax.f32 %v1479, %v1480
  %v1482 = vrot.slane %v1481, 4
  %v1483 = vmax.f32 %v1481, %v1482
  %v1484 = vrot.slane %v1483, 2
  %v1485 = vmax.f32 %v1483, %v1484
  %v1486 = vrot.slane %v1485, 1
  %v1487 = vmax.f32 %v1485, %v1486
  %v1488 = vpack.i.bf16 %v1487, %v1487
  %v1490 = vsel %vm265, %v103, 4286644096
  %v1492 = vunpack.i.l.bf16 %v1490
  %v1493 = vunpack.i.h.bf16 %v1490
  %v1494 = vmax.f32 %v1492, %v1493
  %v1495 = vrot.slane %v1494, 4
  %v1496 = vmax.f32 %v1494, %v1495
  %v1497 = vrot.slane %v1496, 2
  %v1498 = vmax.f32 %v1496, %v1497
  %v1499 = vrot.slane %v1498, 1
  %v1500 = vmax.f32 %v1498, %v1499
  %v1501 = vpack.i.bf16 %v1500, %v1500
  %v1503 = vsel %vm265, %v104, 4286644096
  %v1505 = vunpack.i.l.bf16 %v1503
  %v1506 = vunpack.i.h.bf16 %v1503
  %v1507 = vmax.f32 %v1505, %v1506
  %v1508 = vrot.slane %v1507, 4
  %v1509 = vmax.f32 %v1507, %v1508
  %v1510 = vrot.slane %v1509, 2
  %v1511 = vmax.f32 %v1509, %v1510
  %v1512 = vrot.slane %v1511, 1
  %v1513 = vmax.f32 %v1511, %v1512
  %v1514 = vpack.i.bf16 %v1513, %v1513
  %v1516 = vsel %vm265, %v105, 4286644096
  %v1518 = vunpack.i.l.bf16 %v1516
  %v1519 = vunpack.i.h.bf16 %v1516
  %v1520 = vmax.f32 %v1518, %v1519
  %v1521 = vrot.slane %v1520, 4
  %v1522 = vmax.f32 %v1520, %v1521
  %v1523 = vrot.slane %v1522, 2
  %v1524 = vmax.f32 %v1522, %v1523
  %v1525 = vrot.slane %v1524, 1
  %v1526 = vmax.f32 %v1524, %v1525
  %v1527 = vpack.i.bf16 %v1526, %v1526
  %v1529 = vsel %vm265, %v106, 4286644096
  %v1531 = vunpack.i.l.bf16 %v1529
  %v1532 = vunpack.i.h.bf16 %v1529
  %v1533 = vmax.f32 %v1531, %v1532
  %v1534 = vrot.slane %v1533, 4
  %v1535 = vmax.f32 %v1533, %v1534
  %v1536 = vrot.slane %v1535, 2
  %v1537 = vmax.f32 %v1535, %v1536
  %v1538 = vrot.slane %v1537, 1
  %v1539 = vmax.f32 %v1537, %v1538
  %v1540 = vpack.i.bf16 %v1539, %v1539
  %v1542 = vsel %vm265, %v107, 4286644096
  %v1544 = vunpack.i.l.bf16 %v1542
  %v1545 = vunpack.i.h.bf16 %v1542
  %v1546 = vmax.f32 %v1544, %v1545
  %v1547 = vrot.slane %v1546, 4
  %v1548 = vmax.f32 %v1546, %v1547
  %v1549 = vrot.slane %v1548, 2
  %v1550 = vmax.f32 %v1548, %v1549
  %v1551 = vrot.slane %v1550, 1
  %v1552 = vmax.f32 %v1550, %v1551
  %v1553 = vpack.i.bf16 %v1552, %v1552
  %v1555 = vsel %vm265, %v108, 4286644096
  %v1557 = vunpack.i.l.bf16 %v1555
  %v1558 = vunpack.i.h.bf16 %v1555
  %v1559 = vmax.f32 %v1557, %v1558
  %v1560 = vrot.slane %v1559, 4
  %v1561 = vmax.f32 %v1559, %v1560
  %v1562 = vrot.slane %v1561, 2
  %v1563 = vmax.f32 %v1561, %v1562
  %v1564 = vrot.slane %v1563, 1
  %v1565 = vmax.f32 %v1563, %v1564
  %v1566 = vpack.i.bf16 %v1565, %v1565
  %v1568 = vsel %vm265, %v109, 4286644096
  %v1570 = vunpack.i.l.bf16 %v1568
  %v1571 = vunpack.i.h.bf16 %v1568
  %v1572 = vmax.f32 %v1570, %v1571
  %v1573 = vrot.slane %v1572, 4
  %v1574 = vmax.f32 %v1572, %v1573
  %v1575 = vrot.slane %v1574, 2
  %v1576 = vmax.f32 %v1574, %v1575
  %v1577 = vrot.slane %v1576, 1
  %v1578 = vmax.f32 %v1576, %v1577
  %v1579 = vpack.i.bf16 %v1578, %v1578
  %v1581 = vsel %vm265, %v110, 4286644096
  %v1583 = vunpack.i.l.bf16 %v1581
  %v1584 = vunpack.i.h.bf16 %v1581
  %v1585 = vmax.f32 %v1583, %v1584
  %v1586 = vrot.slane %v1585, 4
  %v1587 = vmax.f32 %v1585, %v1586
  %v1588 = vrot.slane %v1587, 2
  %v1589 = vmax.f32 %v1587, %v1588
  %v1590 = vrot.slane %v1589, 1
  %v1591 = vmax.f32 %v1589, %v1590
  %v1592 = vpack.i.bf16 %v1591, %v1591
  %v1594 = vsel %vm265, %v111, 4286644096
  %v1596 = vunpack.i.l.bf16 %v1594
  %v1597 = vunpack.i.h.bf16 %v1594
  %v1598 = vmax.f32 %v1596, %v1597
  %v1599 = vrot.slane %v1598, 4
  %v1600 = vmax.f32 %v1598, %v1599
  %v1601 = vrot.slane %v1600, 2
  %v1602 = vmax.f32 %v1600, %v1601
  %v1603 = vrot.slane %v1602, 1
  %v1604 = vmax.f32 %v1602, %v1603
  %v1605 = vpack.i.bf16 %v1604, %v1604
  %v1607 = vsel %vm265, %v112, 4286644096
  %v1609 = vunpack.i.l.bf16 %v1607
  %v1610 = vunpack.i.h.bf16 %v1607
  %v1611 = vmax.f32 %v1609, %v1610
  %v1612 = vrot.slane %v1611, 4
  %v1613 = vmax.f32 %v1611, %v1612
  %v1614 = vrot.slane %v1613, 2
  %v1615 = vmax.f32 %v1613, %v1614
  %v1616 = vrot.slane %v1615, 1
  %v1617 = vmax.f32 %v1615, %v1616
  %v1618 = vpack.i.bf16 %v1617, %v1617
  %v1620 = vsel %vm265, %v113, 4286644096
  %v1622 = vunpack.i.l.bf16 %v1620
  %v1623 = vunpack.i.h.bf16 %v1620
  %v1624 = vmax.f32 %v1622, %v1623
  %v1625 = vrot.slane %v1624, 4
  %v1626 = vmax.f32 %v1624, %v1625
  %v1627 = vrot.slane %v1626, 2
  %v1628 = vmax.f32 %v1626, %v1627
  %v1629 = vrot.slane %v1628, 1
  %v1630 = vmax.f32 %v1628, %v1629
  %v1631 = vpack.i.bf16 %v1630, %v1630
  %v1633 = vsel %vm265, %v114, 4286644096
  %v1635 = vunpack.i.l.bf16 %v1633
  %v1636 = vunpack.i.h.bf16 %v1633
  %v1637 = vmax.f32 %v1635, %v1636
  %v1638 = vrot.slane %v1637, 4
  %v1639 = vmax.f32 %v1637, %v1638
  %v1640 = vrot.slane %v1639, 2
  %v1641 = vmax.f32 %v1639, %v1640
  %v1642 = vrot.slane %v1641, 1
  %v1643 = vmax.f32 %v1641, %v1642
  %v1644 = vpack.i.bf16 %v1643, %v1643
  %v1646 = vsel %vm265, %v115, 4286644096
  %v1648 = vunpack.i.l.bf16 %v1646
  %v1649 = vunpack.i.h.bf16 %v1646
  %v1650 = vmax.f32 %v1648, %v1649
  %v1651 = vrot.slane %v1650, 4
  %v1652 = vmax.f32 %v1650, %v1651
  %v1653 = vrot.slane %v1652, 2
  %v1654 = vmax.f32 %v1652, %v1653
  %v1655 = vrot.slane %v1654, 1
  %v1656 = vmax.f32 %v1654, %v1655
  %v1657 = vpack.i.bf16 %v1656, %v1656
  %v1659 = vsel %vm265, %v116, 4286644096
  %v1661 = vunpack.i.l.bf16 %v1659
  %v1662 = vunpack.i.h.bf16 %v1659
  %v1663 = vmax.f32 %v1661, %v1662
  %v1664 = vrot.slane %v1663, 4
  %v1665 = vmax.f32 %v1663, %v1664
  %v1666 = vrot.slane %v1665, 2
  %v1667 = vmax.f32 %v1665, %v1666
  %v1668 = vrot.slane %v1667, 1
  %v1669 = vmax.f32 %v1667, %v1668
  %v1670 = vpack.i.bf16 %v1669, %v1669
  %v1672 = vsel %vm265, %v117, 4286644096
  %v1674 = vunpack.i.l.bf16 %v1672
  %v1675 = vunpack.i.h.bf16 %v1672
  %v1676 = vmax.f32 %v1674, %v1675
  %v1677 = vrot.slane %v1676, 4
  %v1678 = vmax.f32 %v1676, %v1677
  %v1679 = vrot.slane %v1678, 2
  %v1680 = vmax.f32 %v1678, %v1679
  %v1681 = vrot.slane %v1680, 1
  %v1682 = vmax.f32 %v1680, %v1681
  %v1683 = vpack.i.bf16 %v1682, %v1682
  %v1685 = vsel %vm265, %v118, 4286644096
  %v1687 = vunpack.i.l.bf16 %v1685
  %v1688 = vunpack.i.h.bf16 %v1685
  %v1689 = vmax.f32 %v1687, %v1688
  %v1690 = vrot.slane %v1689, 4
  %v1691 = vmax.f32 %v1689, %v1690
  %v1692 = vrot.slane %v1691, 2
  %v1693 = vmax.f32 %v1691, %v1692
  %v1694 = vrot.slane %v1693, 1
  %v1695 = vmax.f32 %v1693, %v1694
  %v1696 = vpack.i.bf16 %v1695, %v1695
  %v1698 = vsel %vm265, %v119, 4286644096
  %v1700 = vunpack.i.l.bf16 %v1698
  %v1701 = vunpack.i.h.bf16 %v1698
  %v1702 = vmax.f32 %v1700, %v1701
  %v1703 = vrot.slane %v1702, 4
  %v1704 = vmax.f32 %v1702, %v1703
  %v1705 = vrot.slane %v1704, 2
  %v1706 = vmax.f32 %v1704, %v1705
  %v1707 = vrot.slane %v1706, 1
  %v1708 = vmax.f32 %v1706, %v1707
  %v1709 = vpack.i.bf16 %v1708, %v1708
  %v1711 = vsel %vm265, %v120, 4286644096
  %v1713 = vunpack.i.l.bf16 %v1711
  %v1714 = vunpack.i.h.bf16 %v1711
  %v1715 = vmax.f32 %v1713, %v1714
  %v1716 = vrot.slane %v1715, 4
  %v1717 = vmax.f32 %v1715, %v1716
  %v1718 = vrot.slane %v1717, 2
  %v1719 = vmax.f32 %v1717, %v1718
  %v1720 = vrot.slane %v1719, 1
  %v1721 = vmax.f32 %v1719, %v1720
  %v1722 = vpack.i.bf16 %v1721, %v1721
  %v1724 = vsel %vm265, %v121, 4286644096
  %v1726 = vunpack.i.l.bf16 %v1724
  %v1727 = vunpack.i.h.bf16 %v1724
  %v1728 = vmax.f32 %v1726, %v1727
  %v1729 = vrot.slane %v1728, 4
  %v1730 = vmax.f32 %v1728, %v1729
  %v1731 = vrot.slane %v1730, 2
  %v1732 = vmax.f32 %v1730, %v1731
  %v1733 = vrot.slane %v1732, 1
  %v1734 = vmax.f32 %v1732, %v1733
  %v1735 = vpack.i.bf16 %v1734, %v1734
  %v1737 = vsel %vm265, %v122, 4286644096
  %v1739 = vunpack.i.l.bf16 %v1737
  %v1740 = vunpack.i.h.bf16 %v1737
  %v1741 = vmax.f32 %v1739, %v1740
  %v1742 = vrot.slane %v1741, 4
  %v1743 = vmax.f32 %v1741, %v1742
  %v1744 = vrot.slane %v1743, 2
  %v1745 = vmax.f32 %v1743, %v1744
  %v1746 = vrot.slane %v1745, 1
  %v1747 = vmax.f32 %v1745, %v1746
  %v1748 = vpack.i.bf16 %v1747, %v1747
  %v1750 = vsel %vm265, %v123, 4286644096
  %v1752 = vunpack.i.l.bf16 %v1750
  %v1753 = vunpack.i.h.bf16 %v1750
  %v1754 = vmax.f32 %v1752, %v1753
  %v1755 = vrot.slane %v1754, 4
  %v1756 = vmax.f32 %v1754, %v1755
  %v1757 = vrot.slane %v1756, 2
  %v1758 = vmax.f32 %v1756, %v1757
  %v1759 = vrot.slane %v1758, 1
  %v1760 = vmax.f32 %v1758, %v1759
  %v1761 = vpack.i.bf16 %v1760, %v1760
  %v1763 = vsel %vm265, %v124, 4286644096
  %v1765 = vunpack.i.l.bf16 %v1763
  %v1766 = vunpack.i.h.bf16 %v1763
  %v1767 = vmax.f32 %v1765, %v1766
  %v1768 = vrot.slane %v1767, 4
  %v1769 = vmax.f32 %v1767, %v1768
  %v1770 = vrot.slane %v1769, 2
  %v1771 = vmax.f32 %v1769, %v1770
  %v1772 = vrot.slane %v1771, 1
  %v1773 = vmax.f32 %v1771, %v1772
  %v1774 = vpack.i.bf16 %v1773, %v1773
  %v1776 = vsel %vm265, %v125, 4286644096
  %v1778 = vunpack.i.l.bf16 %v1776
  %v1779 = vunpack.i.h.bf16 %v1776
  %v1780 = vmax.f32 %v1778, %v1779
  %v1781 = vrot.slane %v1780, 4
  %v1782 = vmax.f32 %v1780, %v1781
  %v1783 = vrot.slane %v1782, 2
  %v1784 = vmax.f32 %v1782, %v1783
  %v1785 = vrot.slane %v1784, 1
  %v1786 = vmax.f32 %v1784, %v1785
  %v1787 = vpack.i.bf16 %v1786, %v1786
  %v1789 = vsel %vm265, %v126, 4286644096
  %v1791 = vunpack.i.l.bf16 %v1789
  %v1792 = vunpack.i.h.bf16 %v1789
  %v1793 = vmax.f32 %v1791, %v1792
  %v1794 = vrot.slane %v1793, 4
  %v1795 = vmax.f32 %v1793, %v1794
  %v1796 = vrot.slane %v1795, 2
  %v1797 = vmax.f32 %v1795, %v1796
  %v1798 = vrot.slane %v1797, 1
  %v1799 = vmax.f32 %v1797, %v1798
  %v1800 = vpack.i.bf16 %v1799, %v1799
  %v1802 = vsel %vm265, %v127, 4286644096
  %v1804 = vunpack.i.l.bf16 %v1802
  %v1805 = vunpack.i.h.bf16 %v1802
  %v1806 = vmax.f32 %v1804, %v1805
  %v1807 = vrot.slane %v1806, 4
  %v1808 = vmax.f32 %v1806, %v1807
  %v1809 = vrot.slane %v1808, 2
  %v1810 = vmax.f32 %v1808, %v1809
  %v1811 = vrot.slane %v1810, 1
  %v1812 = vmax.f32 %v1810, %v1811
  %v1813 = vpack.i.bf16 %v1812, %v1812
  %v1815 = vsel %vm265, %v128, 4286644096
  %v1817 = vunpack.i.l.bf16 %v1815
  %v1818 = vunpack.i.h.bf16 %v1815
  %v1819 = vmax.f32 %v1817, %v1818
  %v1820 = vrot.slane %v1819, 4
  %v1821 = vmax.f32 %v1819, %v1820
  %v1822 = vrot.slane %v1821, 2
  %v1823 = vmax.f32 %v1821, %v1822
  %v1824 = vrot.slane %v1823, 1
  %v1825 = vmax.f32 %v1823, %v1824
  %v1826 = vpack.i.bf16 %v1825, %v1825
  %v1828 = vsel %vm265, %v129, 4286644096
  %v1830 = vunpack.i.l.bf16 %v1828
  %v1831 = vunpack.i.h.bf16 %v1828
  %v1832 = vmax.f32 %v1830, %v1831
  %v1833 = vrot.slane %v1832, 4
  %v1834 = vmax.f32 %v1832, %v1833
  %v1835 = vrot.slane %v1834, 2
  %v1836 = vmax.f32 %v1834, %v1835
  %v1837 = vrot.slane %v1836, 1
  %v1838 = vmax.f32 %v1836, %v1837
  %v1839 = vpack.i.bf16 %v1838, %v1838
  %v1841 = vsel %vm265, %v130, 4286644096
  %v1843 = vunpack.i.l.bf16 %v1841
  %v1844 = vunpack.i.h.bf16 %v1841
  %v1845 = vmax.f32 %v1843, %v1844
  %v1846 = vrot.slane %v1845, 4
  %v1847 = vmax.f32 %v1845, %v1846
  %v1848 = vrot.slane %v1847, 2
  %v1849 = vmax.f32 %v1847, %v1848
  %v1850 = vrot.slane %v1849, 1
  %v1851 = vmax.f32 %v1849, %v1850
  %v1852 = vpack.i.bf16 %v1851, %v1851
  %v1854 = vsel %vm265, %v131, 4286644096
  %v1856 = vunpack.i.l.bf16 %v1854
  %v1857 = vunpack.i.h.bf16 %v1854
  %v1858 = vmax.f32 %v1856, %v1857
  %v1859 = vrot.slane %v1858, 4
  %v1860 = vmax.f32 %v1858, %v1859
  %v1861 = vrot.slane %v1860, 2
  %v1862 = vmax.f32 %v1860, %v1861
  %v1863 = vrot.slane %v1862, 1
  %v1864 = vmax.f32 %v1862, %v1863
  %v1865 = vpack.i.bf16 %v1864, %v1864
  %v1867 = vsel %vm265, %v132, 4286644096
  %v1869 = vunpack.i.l.bf16 %v1867
  %v1870 = vunpack.i.h.bf16 %v1867
  %v1871 = vmax.f32 %v1869, %v1870
  %v1872 = vrot.slane %v1871, 4
  %v1873 = vmax.f32 %v1871, %v1872
  %v1874 = vrot.slane %v1873, 2
  %v1875 = vmax.f32 %v1873, %v1874
  %v1876 = vrot.slane %v1875, 1
  %v1877 = vmax.f32 %v1875, %v1876
  %v1878 = vpack.i.bf16 %v1877, %v1877
  %v1880 = vsel %vm265, %v133, 4286644096
  %v1882 = vunpack.i.l.bf16 %v1880
  %v1883 = vunpack.i.h.bf16 %v1880
  %v1884 = vmax.f32 %v1882, %v1883
  %v1885 = vrot.slane %v1884, 4
  %v1886 = vmax.f32 %v1884, %v1885
  %v1887 = vrot.slane %v1886, 2
  %v1888 = vmax.f32 %v1886, %v1887
  %v1889 = vrot.slane %v1888, 1
  %v1890 = vmax.f32 %v1888, %v1889
  %v1891 = vpack.i.bf16 %v1890, %v1890
  %v1893 = vsel %vm265, %v134, 4286644096
  %v1895 = vunpack.i.l.bf16 %v1893
  %v1896 = vunpack.i.h.bf16 %v1893
  %v1897 = vmax.f32 %v1895, %v1896
  %v1898 = vrot.slane %v1897, 4
  %v1899 = vmax.f32 %v1897, %v1898
  %v1900 = vrot.slane %v1899, 2
  %v1901 = vmax.f32 %v1899, %v1900
  %v1902 = vrot.slane %v1901, 1
  %v1903 = vmax.f32 %v1901, %v1902
  %v1904 = vpack.i.bf16 %v1903, %v1903
  %v1906 = vsel %vm265, %v135, 4286644096
  %v1908 = vunpack.i.l.bf16 %v1906
  %v1909 = vunpack.i.h.bf16 %v1906
  %v1910 = vmax.f32 %v1908, %v1909
  %v1911 = vrot.slane %v1910, 4
  %v1912 = vmax.f32 %v1910, %v1911
  %v1913 = vrot.slane %v1912, 2
  %v1914 = vmax.f32 %v1912, %v1913
  %v1915 = vrot.slane %v1914, 1
  %v1916 = vmax.f32 %v1914, %v1915
  %v1917 = vpack.i.bf16 %v1916, %v1916
  %v1919 = vsel %vm265, %v136, 4286644096
  %v1921 = vunpack.i.l.bf16 %v1919
  %v1922 = vunpack.i.h.bf16 %v1919
  %v1923 = vmax.f32 %v1921, %v1922
  %v1924 = vrot.slane %v1923, 4
  %v1925 = vmax.f32 %v1923, %v1924
  %v1926 = vrot.slane %v1925, 2
  %v1927 = vmax.f32 %v1925, %v1926
  %v1928 = vrot.slane %v1927, 1
  %v1929 = vmax.f32 %v1927, %v1928
  %v1930 = vpack.i.bf16 %v1929, %v1929
  %v1932 = vsel %vm265, %v137, 4286644096
  %v1934 = vunpack.i.l.bf16 %v1932
  %v1935 = vunpack.i.h.bf16 %v1932
  %v1936 = vmax.f32 %v1934, %v1935
  %v1937 = vrot.slane %v1936, 4
  %v1938 = vmax.f32 %v1936, %v1937
  %v1939 = vrot.slane %v1938, 2
  %v1940 = vmax.f32 %v1938, %v1939
  %v1941 = vrot.slane %v1940, 1
  %v1942 = vmax.f32 %v1940, %v1941
  %v1943 = vpack.i.bf16 %v1942, %v1942
  %v1945 = vsel %vm265, %v138, 4286644096
  %v1947 = vunpack.i.l.bf16 %v1945
  %v1948 = vunpack.i.h.bf16 %v1945
  %v1949 = vmax.f32 %v1947, %v1948
  %v1950 = vrot.slane %v1949, 4
  %v1951 = vmax.f32 %v1949, %v1950
  %v1952 = vrot.slane %v1951, 2
  %v1953 = vmax.f32 %v1951, %v1952
  %v1954 = vrot.slane %v1953, 1
  %v1955 = vmax.f32 %v1953, %v1954
  %v1956 = vpack.i.bf16 %v1955, %v1955
  %v1958 = vsel %vm265, %v139, 4286644096
  %v1960 = vunpack.i.l.bf16 %v1958
  %v1961 = vunpack.i.h.bf16 %v1958
  %v1962 = vmax.f32 %v1960, %v1961
  %v1963 = vrot.slane %v1962, 4
  %v1964 = vmax.f32 %v1962, %v1963
  %v1965 = vrot.slane %v1964, 2
  %v1966 = vmax.f32 %v1964, %v1965
  %v1967 = vrot.slane %v1966, 1
  %v1968 = vmax.f32 %v1966, %v1967
  %v1969 = vpack.i.bf16 %v1968, %v1968
  %v1971 = vsel %vm265, %v140, 4286644096
  %v1973 = vunpack.i.l.bf16 %v1971
  %v1974 = vunpack.i.h.bf16 %v1971
  %v1975 = vmax.f32 %v1973, %v1974
  %v1976 = vrot.slane %v1975, 4
  %v1977 = vmax.f32 %v1975, %v1976
  %v1978 = vrot.slane %v1977, 2
  %v1979 = vmax.f32 %v1977, %v1978
  %v1980 = vrot.slane %v1979, 1
  %v1981 = vmax.f32 %v1979, %v1980
  %v1982 = vpack.i.bf16 %v1981, %v1981
  %v1984 = vsel %vm265, %v141, 4286644096
  %v1986 = vunpack.i.l.bf16 %v1984
  %v1987 = vunpack.i.h.bf16 %v1984
  %v1988 = vmax.f32 %v1986, %v1987
  %v1989 = vrot.slane %v1988, 4
  %v1990 = vmax.f32 %v1988, %v1989
  %v1991 = vrot.slane %v1990, 2
  %v1992 = vmax.f32 %v1990, %v1991
  %v1993 = vrot.slane %v1992, 1
  %v1994 = vmax.f32 %v1992, %v1993
  %v1995 = vpack.i.bf16 %v1994, %v1994
  %v1997 = vsel %vm265, %v142, 4286644096
  %v1999 = vunpack.i.l.bf16 %v1997
  %v2000 = vunpack.i.h.bf16 %v1997
  %v2001 = vmax.f32 %v1999, %v2000
  %v2002 = vrot.slane %v2001, 4
  %v2003 = vmax.f32 %v2001, %v2002
  %v2004 = vrot.slane %v2003, 2
  %v2005 = vmax.f32 %v2003, %v2004
  %v2006 = vrot.slane %v2005, 1
  %v2007 = vmax.f32 %v2005, %v2006
  %v2008 = vpack.i.bf16 %v2007, %v2007
  %v2010 = vsel %vm265, %v143, 4286644096
  %v2012 = vunpack.i.l.bf16 %v2010
  %v2013 = vunpack.i.h.bf16 %v2010
  %v2014 = vmax.f32 %v2012, %v2013
  %v2015 = vrot.slane %v2014, 4
  %v2016 = vmax.f32 %v2014, %v2015
  %v2017 = vrot.slane %v2016, 2
  %v2018 = vmax.f32 %v2016, %v2017
  %v2019 = vrot.slane %v2018, 1
  %v2020 = vmax.f32 %v2018, %v2019
  %v2021 = vpack.i.bf16 %v2020, %v2020
  %v2023 = vsel %vm265, %v144, 4286644096
  %v2025 = vunpack.i.l.bf16 %v2023
  %v2026 = vunpack.i.h.bf16 %v2023
  %v2027 = vmax.f32 %v2025, %v2026
  %v2028 = vrot.slane %v2027, 4
  %v2029 = vmax.f32 %v2027, %v2028
  %v2030 = vrot.slane %v2029, 2
  %v2031 = vmax.f32 %v2029, %v2030
  %v2032 = vrot.slane %v2031, 1
  %v2033 = vmax.f32 %v2031, %v2032
  %v2034 = vpack.i.bf16 %v2033, %v2033
  %v2036 = vsel %vm265, %v145, 4286644096
  %v2038 = vunpack.i.l.bf16 %v2036
  %v2039 = vunpack.i.h.bf16 %v2036
  %v2040 = vmax.f32 %v2038, %v2039
  %v2041 = vrot.slane %v2040, 4
  %v2042 = vmax.f32 %v2040, %v2041
  %v2043 = vrot.slane %v2042, 2
  %v2044 = vmax.f32 %v2042, %v2043
  %v2045 = vrot.slane %v2044, 1
  %v2046 = vmax.f32 %v2044, %v2045
  %v2047 = vpack.i.bf16 %v2046, %v2046
  %v2049 = vsel %vm265, %v146, 4286644096
  %v2051 = vunpack.i.l.bf16 %v2049
  %v2052 = vunpack.i.h.bf16 %v2049
  %v2053 = vmax.f32 %v2051, %v2052
  %v2054 = vrot.slane %v2053, 4
  %v2055 = vmax.f32 %v2053, %v2054
  %v2056 = vrot.slane %v2055, 2
  %v2057 = vmax.f32 %v2055, %v2056
  %v2058 = vrot.slane %v2057, 1
  %v2059 = vmax.f32 %v2057, %v2058
  %v2060 = vpack.i.bf16 %v2059, %v2059
  %v2062 = vsel %vm265, %v147, 4286644096
  %v2064 = vunpack.i.l.bf16 %v2062
  %v2065 = vunpack.i.h.bf16 %v2062
  %v2066 = vmax.f32 %v2064, %v2065
  %v2067 = vrot.slane %v2066, 4
  %v2068 = vmax.f32 %v2066, %v2067
  %v2069 = vrot.slane %v2068, 2
  %v2070 = vmax.f32 %v2068, %v2069
  %v2071 = vrot.slane %v2070, 1
  %v2072 = vmax.f32 %v2070, %v2071
  %v2073 = vpack.i.bf16 %v2072, %v2072
  %v2075 = vsel %vm265, %v148, 4286644096
  %v2077 = vunpack.i.l.bf16 %v2075
  %v2078 = vunpack.i.h.bf16 %v2075
  %v2079 = vmax.f32 %v2077, %v2078
  %v2080 = vrot.slane %v2079, 4
  %v2081 = vmax.f32 %v2079, %v2080
  %v2082 = vrot.slane %v2081, 2
  %v2083 = vmax.f32 %v2081, %v2082
  %v2084 = vrot.slane %v2083, 1
  %v2085 = vmax.f32 %v2083, %v2084
  %v2086 = vpack.i.bf16 %v2085, %v2085
  %v2088 = vsel %vm265, %v149, 4286644096
  %v2090 = vunpack.i.l.bf16 %v2088
  %v2091 = vunpack.i.h.bf16 %v2088
  %v2092 = vmax.f32 %v2090, %v2091
  %v2093 = vrot.slane %v2092, 4
  %v2094 = vmax.f32 %v2092, %v2093
  %v2095 = vrot.slane %v2094, 2
  %v2096 = vmax.f32 %v2094, %v2095
  %v2097 = vrot.slane %v2096, 1
  %v2098 = vmax.f32 %v2096, %v2097
  %v2099 = vpack.i.bf16 %v2098, %v2098
  %v2101 = vsel %vm265, %v150, 4286644096
  %v2103 = vunpack.i.l.bf16 %v2101
  %v2104 = vunpack.i.h.bf16 %v2101
  %v2105 = vmax.f32 %v2103, %v2104
  %v2106 = vrot.slane %v2105, 4
  %v2107 = vmax.f32 %v2105, %v2106
  %v2108 = vrot.slane %v2107, 2
  %v2109 = vmax.f32 %v2107, %v2108
  %v2110 = vrot.slane %v2109, 1
  %v2111 = vmax.f32 %v2109, %v2110
  %v2112 = vpack.i.bf16 %v2111, %v2111
  %v2114 = vsel %vm265, %v151, 4286644096
  %v2116 = vunpack.i.l.bf16 %v2114
  %v2117 = vunpack.i.h.bf16 %v2114
  %v2118 = vmax.f32 %v2116, %v2117
  %v2119 = vrot.slane %v2118, 4
  %v2120 = vmax.f32 %v2118, %v2119
  %v2121 = vrot.slane %v2120, 2
  %v2122 = vmax.f32 %v2120, %v2121
  %v2123 = vrot.slane %v2122, 1
  %v2124 = vmax.f32 %v2122, %v2123
  %v2125 = vpack.i.bf16 %v2124, %v2124
  %v2127 = vsel %vm265, %v152, 4286644096
  %v2129 = vunpack.i.l.bf16 %v2127
  %v2130 = vunpack.i.h.bf16 %v2127
  %v2131 = vmax.f32 %v2129, %v2130
  %v2132 = vrot.slane %v2131, 4
  %v2133 = vmax.f32 %v2131, %v2132
  %v2134 = vrot.slane %v2133, 2
  %v2135 = vmax.f32 %v2133, %v2134
  %v2136 = vrot.slane %v2135, 1
  %v2137 = vmax.f32 %v2135, %v2136
  %v2138 = vpack.i.bf16 %v2137, %v2137
  %v2140 = vsel %vm265, %v153, 4286644096
  %v2142 = vunpack.i.l.bf16 %v2140
  %v2143 = vunpack.i.h.bf16 %v2140
  %v2144 = vmax.f32 %v2142, %v2143
  %v2145 = vrot.slane %v2144, 4
  %v2146 = vmax.f32 %v2144, %v2145
  %v2147 = vrot.slane %v2146, 2
  %v2148 = vmax.f32 %v2146, %v2147
  %v2149 = vrot.slane %v2148, 1
  %v2150 = vmax.f32 %v2148, %v2149
  %v2151 = vpack.i.bf16 %v2150, %v2150
  %v2153 = vsel %vm265, %v154, 4286644096
  %v2155 = vunpack.i.l.bf16 %v2153
  %v2156 = vunpack.i.h.bf16 %v2153
  %v2157 = vmax.f32 %v2155, %v2156
  %v2158 = vrot.slane %v2157, 4
  %v2159 = vmax.f32 %v2157, %v2158
  %v2160 = vrot.slane %v2159, 2
  %v2161 = vmax.f32 %v2159, %v2160
  %v2162 = vrot.slane %v2161, 1
  %v2163 = vmax.f32 %v2161, %v2162
  %v2164 = vpack.i.bf16 %v2163, %v2163
  %v2166 = vsel %vm265, %v155, 4286644096
  %v2168 = vunpack.i.l.bf16 %v2166
  %v2169 = vunpack.i.h.bf16 %v2166
  %v2170 = vmax.f32 %v2168, %v2169
  %v2171 = vrot.slane %v2170, 4
  %v2172 = vmax.f32 %v2170, %v2171
  %v2173 = vrot.slane %v2172, 2
  %v2174 = vmax.f32 %v2172, %v2173
  %v2175 = vrot.slane %v2174, 1
  %v2176 = vmax.f32 %v2174, %v2175
  %v2177 = vpack.i.bf16 %v2176, %v2176
  %v2179 = vsel %vm265, %v156, 4286644096
  %v2181 = vunpack.i.l.bf16 %v2179
  %v2182 = vunpack.i.h.bf16 %v2179
  %v2183 = vmax.f32 %v2181, %v2182
  %v2184 = vrot.slane %v2183, 4
  %v2185 = vmax.f32 %v2183, %v2184
  %v2186 = vrot.slane %v2185, 2
  %v2187 = vmax.f32 %v2185, %v2186
  %v2188 = vrot.slane %v2187, 1
  %v2189 = vmax.f32 %v2187, %v2188
  %v2190 = vpack.i.bf16 %v2189, %v2189
  %v2192 = vsel %vm265, %v157, 4286644096
  %v2194 = vunpack.i.l.bf16 %v2192
  %v2195 = vunpack.i.h.bf16 %v2192
  %v2196 = vmax.f32 %v2194, %v2195
  %v2197 = vrot.slane %v2196, 4
  %v2198 = vmax.f32 %v2196, %v2197
  %v2199 = vrot.slane %v2198, 2
  %v2200 = vmax.f32 %v2198, %v2199
  %v2201 = vrot.slane %v2200, 1
  %v2202 = vmax.f32 %v2200, %v2201
  %v2203 = vpack.i.bf16 %v2202, %v2202
  %v2205 = vsel %vm265, %v158, 4286644096
  %v2207 = vunpack.i.l.bf16 %v2205
  %v2208 = vunpack.i.h.bf16 %v2205
  %v2209 = vmax.f32 %v2207, %v2208
  %v2210 = vrot.slane %v2209, 4
  %v2211 = vmax.f32 %v2209, %v2210
  %v2212 = vrot.slane %v2211, 2
  %v2213 = vmax.f32 %v2211, %v2212
  %v2214 = vrot.slane %v2213, 1
  %v2215 = vmax.f32 %v2213, %v2214
  %v2216 = vpack.i.bf16 %v2215, %v2215
  %v2218 = vsel %vm265, %v159, 4286644096
  %v2220 = vunpack.i.l.bf16 %v2218
  %v2221 = vunpack.i.h.bf16 %v2218
  %v2222 = vmax.f32 %v2220, %v2221
  %v2223 = vrot.slane %v2222, 4
  %v2224 = vmax.f32 %v2222, %v2223
  %v2225 = vrot.slane %v2224, 2
  %v2226 = vmax.f32 %v2224, %v2225
  %v2227 = vrot.slane %v2226, 1
  %v2228 = vmax.f32 %v2226, %v2227
  %v2229 = vpack.i.bf16 %v2228, %v2228
  %v2231 = vsel %vm265, %v160, 4286644096
  %v2233 = vunpack.i.l.bf16 %v2231
  %v2234 = vunpack.i.h.bf16 %v2231
  %v2235 = vmax.f32 %v2233, %v2234
  %v2236 = vrot.slane %v2235, 4
  %v2237 = vmax.f32 %v2235, %v2236
  %v2238 = vrot.slane %v2237, 2
  %v2239 = vmax.f32 %v2237, %v2238
  %v2240 = vrot.slane %v2239, 1
  %v2241 = vmax.f32 %v2239, %v2240
  %v2242 = vpack.i.bf16 %v2241, %v2241
  %v2244 = vsel %vm265, %v161, 4286644096
  %v2246 = vunpack.i.l.bf16 %v2244
  %v2247 = vunpack.i.h.bf16 %v2244
  %v2248 = vmax.f32 %v2246, %v2247
  %v2249 = vrot.slane %v2248, 4
  %v2250 = vmax.f32 %v2248, %v2249
  %v2251 = vrot.slane %v2250, 2
  %v2252 = vmax.f32 %v2250, %v2251
  %v2253 = vrot.slane %v2252, 1
  %v2254 = vmax.f32 %v2252, %v2253
  %v2255 = vpack.i.bf16 %v2254, %v2254
  %v2257 = vsel %vm265, %v162, 4286644096
  %v2259 = vunpack.i.l.bf16 %v2257
  %v2260 = vunpack.i.h.bf16 %v2257
  %v2261 = vmax.f32 %v2259, %v2260
  %v2262 = vrot.slane %v2261, 4
  %v2263 = vmax.f32 %v2261, %v2262
  %v2264 = vrot.slane %v2263, 2
  %v2265 = vmax.f32 %v2263, %v2264
  %v2266 = vrot.slane %v2265, 1
  %v2267 = vmax.f32 %v2265, %v2266
  %v2268 = vpack.i.bf16 %v2267, %v2267
  %v2270 = vsel %vm265, %v163, 4286644096
  %v2272 = vunpack.i.l.bf16 %v2270
  %v2273 = vunpack.i.h.bf16 %v2270
  %v2274 = vmax.f32 %v2272, %v2273
  %v2275 = vrot.slane %v2274, 4
  %v2276 = vmax.f32 %v2274, %v2275
  %v2277 = vrot.slane %v2276, 2
  %v2278 = vmax.f32 %v2276, %v2277
  %v2279 = vrot.slane %v2278, 1
  %v2280 = vmax.f32 %v2278, %v2279
  %v2281 = vpack.i.bf16 %v2280, %v2280
  %v2283 = vsel %vm265, %v164, 4286644096
  %v2285 = vunpack.i.l.bf16 %v2283
  %v2286 = vunpack.i.h.bf16 %v2283
  %v2287 = vmax.f32 %v2285, %v2286
  %v2288 = vrot.slane %v2287, 4
  %v2289 = vmax.f32 %v2287, %v2288
  %v2290 = vrot.slane %v2289, 2
  %v2291 = vmax.f32 %v2289, %v2290
  %v2292 = vrot.slane %v2291, 1
  %v2293 = vmax.f32 %v2291, %v2292
  %v2294 = vpack.i.bf16 %v2293, %v2293
  %v2296 = vsel %vm265, %v165, 4286644096
  %v2298 = vunpack.i.l.bf16 %v2296
  %v2299 = vunpack.i.h.bf16 %v2296
  %v2300 = vmax.f32 %v2298, %v2299
  %v2301 = vrot.slane %v2300, 4
  %v2302 = vmax.f32 %v2300, %v2301
  %v2303 = vrot.slane %v2302, 2
  %v2304 = vmax.f32 %v2302, %v2303
  %v2305 = vrot.slane %v2304, 1
  %v2306 = vmax.f32 %v2304, %v2305
  %v2307 = vpack.i.bf16 %v2306, %v2306
  %v2309 = vsel %vm265, %v166, 4286644096
  %v2311 = vunpack.i.l.bf16 %v2309
  %v2312 = vunpack.i.h.bf16 %v2309
  %v2313 = vmax.f32 %v2311, %v2312
  %v2314 = vrot.slane %v2313, 4
  %v2315 = vmax.f32 %v2313, %v2314
  %v2316 = vrot.slane %v2315, 2
  %v2317 = vmax.f32 %v2315, %v2316
  %v2318 = vrot.slane %v2317, 1
  %v2319 = vmax.f32 %v2317, %v2318
  %v2320 = vpack.i.bf16 %v2319, %v2319
  %v2322 = vsel %vm265, %v167, 4286644096
  %v2324 = vunpack.i.l.bf16 %v2322
  %v2325 = vunpack.i.h.bf16 %v2322
  %v2326 = vmax.f32 %v2324, %v2325
  %v2327 = vrot.slane %v2326, 4
  %v2328 = vmax.f32 %v2326, %v2327
  %v2329 = vrot.slane %v2328, 2
  %v2330 = vmax.f32 %v2328, %v2329
  %v2331 = vrot.slane %v2330, 1
  %v2332 = vmax.f32 %v2330, %v2331
  %v2333 = vpack.i.bf16 %v2332, %v2332
  %v2335 = vsel %vm265, %v168, 4286644096
  %v2337 = vunpack.i.l.bf16 %v2335
  %v2338 = vunpack.i.h.bf16 %v2335
  %v2339 = vmax.f32 %v2337, %v2338
  %v2340 = vrot.slane %v2339, 4
  %v2341 = vmax.f32 %v2339, %v2340
  %v2342 = vrot.slane %v2341, 2
  %v2343 = vmax.f32 %v2341, %v2342
  %v2344 = vrot.slane %v2343, 1
  %v2345 = vmax.f32 %v2343, %v2344
  %v2346 = vpack.i.bf16 %v2345, %v2345
  %v2348 = vsel %vm265, %v169, 4286644096
  %v2350 = vunpack.i.l.bf16 %v2348
  %v2351 = vunpack.i.h.bf16 %v2348
  %v2352 = vmax.f32 %v2350, %v2351
  %v2353 = vrot.slane %v2352, 4
  %v2354 = vmax.f32 %v2352, %v2353
  %v2355 = vrot.slane %v2354, 2
  %v2356 = vmax.f32 %v2354, %v2355
  %v2357 = vrot.slane %v2356, 1
  %v2358 = vmax.f32 %v2356, %v2357
  %v2359 = vpack.i.bf16 %v2358, %v2358
  %v2361 = vsel %vm265, %v170, 4286644096
  %v2363 = vunpack.i.l.bf16 %v2361
  %v2364 = vunpack.i.h.bf16 %v2361
  %v2365 = vmax.f32 %v2363, %v2364
  %v2366 = vrot.slane %v2365, 4
  %v2367 = vmax.f32 %v2365, %v2366
  %v2368 = vrot.slane %v2367, 2
  %v2369 = vmax.f32 %v2367, %v2368
  %v2370 = vrot.slane %v2369, 1
  %v2371 = vmax.f32 %v2369, %v2370
  %v2372 = vpack.i.bf16 %v2371, %v2371
  %v2374 = vsel %vm265, %v171, 4286644096
  %v2376 = vunpack.i.l.bf16 %v2374
  %v2377 = vunpack.i.h.bf16 %v2374
  %v2378 = vmax.f32 %v2376, %v2377
  %v2379 = vrot.slane %v2378, 4
  %v2380 = vmax.f32 %v2378, %v2379
  %v2381 = vrot.slane %v2380, 2
  %v2382 = vmax.f32 %v2380, %v2381
  %v2383 = vrot.slane %v2382, 1
  %v2384 = vmax.f32 %v2382, %v2383
  %v2385 = vpack.i.bf16 %v2384, %v2384
  %v2387 = vsel %vm265, %v172, 4286644096
  %v2389 = vunpack.i.l.bf16 %v2387
  %v2390 = vunpack.i.h.bf16 %v2387
  %v2391 = vmax.f32 %v2389, %v2390
  %v2392 = vrot.slane %v2391, 4
  %v2393 = vmax.f32 %v2391, %v2392
  %v2394 = vrot.slane %v2393, 2
  %v2395 = vmax.f32 %v2393, %v2394
  %v2396 = vrot.slane %v2395, 1
  %v2397 = vmax.f32 %v2395, %v2396
  %v2398 = vpack.i.bf16 %v2397, %v2397
  %v2400 = vsel %vm265, %v173, 4286644096
  %v2402 = vunpack.i.l.bf16 %v2400
  %v2403 = vunpack.i.h.bf16 %v2400
  %v2404 = vmax.f32 %v2402, %v2403
  %v2405 = vrot.slane %v2404, 4
  %v2406 = vmax.f32 %v2404, %v2405
  %v2407 = vrot.slane %v2406, 2
  %v2408 = vmax.f32 %v2406, %v2407
  %v2409 = vrot.slane %v2408, 1
  %v2410 = vmax.f32 %v2408, %v2409
  %v2411 = vpack.i.bf16 %v2410, %v2410
  %v2413 = vsel %vm265, %v174, 4286644096
  %v2415 = vunpack.i.l.bf16 %v2413
  %v2416 = vunpack.i.h.bf16 %v2413
  %v2417 = vmax.f32 %v2415, %v2416
  %v2418 = vrot.slane %v2417, 4
  %v2419 = vmax.f32 %v2417, %v2418
  %v2420 = vrot.slane %v2419, 2
  %v2421 = vmax.f32 %v2419, %v2420
  %v2422 = vrot.slane %v2421, 1
  %v2423 = vmax.f32 %v2421, %v2422
  %v2424 = vpack.i.bf16 %v2423, %v2423
  %v2426 = vsel %vm265, %v175, 4286644096
  %v2428 = vunpack.i.l.bf16 %v2426
  %v2429 = vunpack.i.h.bf16 %v2426
  %v2430 = vmax.f32 %v2428, %v2429
  %v2431 = vrot.slane %v2430, 4
  %v2432 = vmax.f32 %v2430, %v2431
  %v2433 = vrot.slane %v2432, 2
  %v2434 = vmax.f32 %v2432, %v2433
  %v2435 = vrot.slane %v2434, 1
  %v2436 = vmax.f32 %v2434, %v2435
  %v2437 = vpack.i.bf16 %v2436, %v2436
  %v2439 = vsel %vm265, %v176, 4286644096
  %v2441 = vunpack.i.l.bf16 %v2439
  %v2442 = vunpack.i.h.bf16 %v2439
  %v2443 = vmax.f32 %v2441, %v2442
  %v2444 = vrot.slane %v2443, 4
  %v2445 = vmax.f32 %v2443, %v2444
  %v2446 = vrot.slane %v2445, 2
  %v2447 = vmax.f32 %v2445, %v2446
  %v2448 = vrot.slane %v2447, 1
  %v2449 = vmax.f32 %v2447, %v2448
  %v2450 = vpack.i.bf16 %v2449, %v2449
  %v2452 = vsel %vm265, %v177, 4286644096
  %v2454 = vunpack.i.l.bf16 %v2452
  %v2455 = vunpack.i.h.bf16 %v2452
  %v2456 = vmax.f32 %v2454, %v2455
  %v2457 = vrot.slane %v2456, 4
  %v2458 = vmax.f32 %v2456, %v2457
  %v2459 = vrot.slane %v2458, 2
  %v2460 = vmax.f32 %v2458, %v2459
  %v2461 = vrot.slane %v2460, 1
  %v2462 = vmax.f32 %v2460, %v2461
  %v2463 = vpack.i.bf16 %v2462, %v2462
  %v2465 = vsel %vm265, %v178, 4286644096
  %v2467 = vunpack.i.l.bf16 %v2465
  %v2468 = vunpack.i.h.bf16 %v2465
  %v2469 = vmax.f32 %v2467, %v2468
  %v2470 = vrot.slane %v2469, 4
  %v2471 = vmax.f32 %v2469, %v2470
  %v2472 = vrot.slane %v2471, 2
  %v2473 = vmax.f32 %v2471, %v2472
  %v2474 = vrot.slane %v2473, 1
  %v2475 = vmax.f32 %v2473, %v2474
  %v2476 = vpack.i.bf16 %v2475, %v2475
  %v2478 = vsel %vm265, %v179, 4286644096
  %v2480 = vunpack.i.l.bf16 %v2478
  %v2481 = vunpack.i.h.bf16 %v2478
  %v2482 = vmax.f32 %v2480, %v2481
  %v2483 = vrot.slane %v2482, 4
  %v2484 = vmax.f32 %v2482, %v2483
  %v2485 = vrot.slane %v2484, 2
  %v2486 = vmax.f32 %v2484, %v2485
  %v2487 = vrot.slane %v2486, 1
  %v2488 = vmax.f32 %v2486, %v2487
  %v2489 = vpack.i.bf16 %v2488, %v2488
  %v2491 = vsel %vm265, %v180, 4286644096
  %v2493 = vunpack.i.l.bf16 %v2491
  %v2494 = vunpack.i.h.bf16 %v2491
  %v2495 = vmax.f32 %v2493, %v2494
  %v2496 = vrot.slane %v2495, 4
  %v2497 = vmax.f32 %v2495, %v2496
  %v2498 = vrot.slane %v2497, 2
  %v2499 = vmax.f32 %v2497, %v2498
  %v2500 = vrot.slane %v2499, 1
  %v2501 = vmax.f32 %v2499, %v2500
  %v2502 = vpack.i.bf16 %v2501, %v2501
  %v2504 = vsel %vm265, %v181, 4286644096
  %v2506 = vunpack.i.l.bf16 %v2504
  %v2507 = vunpack.i.h.bf16 %v2504
  %v2508 = vmax.f32 %v2506, %v2507
  %v2509 = vrot.slane %v2508, 4
  %v2510 = vmax.f32 %v2508, %v2509
  %v2511 = vrot.slane %v2510, 2
  %v2512 = vmax.f32 %v2510, %v2511
  %v2513 = vrot.slane %v2512, 1
  %v2514 = vmax.f32 %v2512, %v2513
  %v2515 = vpack.i.bf16 %v2514, %v2514
  %v2517 = vsel %vm265, %v182, 4286644096
  %v2519 = vunpack.i.l.bf16 %v2517
  %v2520 = vunpack.i.h.bf16 %v2517
  %v2521 = vmax.f32 %v2519, %v2520
  %v2522 = vrot.slane %v2521, 4
  %v2523 = vmax.f32 %v2521, %v2522
  %v2524 = vrot.slane %v2523, 2
  %v2525 = vmax.f32 %v2523, %v2524
  %v2526 = vrot.slane %v2525, 1
  %v2527 = vmax.f32 %v2525, %v2526
  %v2528 = vpack.i.bf16 %v2527, %v2527
  %v2530 = vsel %vm265, %v183, 4286644096
  %v2532 = vunpack.i.l.bf16 %v2530
  %v2533 = vunpack.i.h.bf16 %v2530
  %v2534 = vmax.f32 %v2532, %v2533
  %v2535 = vrot.slane %v2534, 4
  %v2536 = vmax.f32 %v2534, %v2535
  %v2537 = vrot.slane %v2536, 2
  %v2538 = vmax.f32 %v2536, %v2537
  %v2539 = vrot.slane %v2538, 1
  %v2540 = vmax.f32 %v2538, %v2539
  %v2541 = vpack.i.bf16 %v2540, %v2540
  %v2543 = vsel %vm265, %v184, 4286644096
  %v2545 = vunpack.i.l.bf16 %v2543
  %v2546 = vunpack.i.h.bf16 %v2543
  %v2547 = vmax.f32 %v2545, %v2546
  %v2548 = vrot.slane %v2547, 4
  %v2549 = vmax.f32 %v2547, %v2548
  %v2550 = vrot.slane %v2549, 2
  %v2551 = vmax.f32 %v2549, %v2550
  %v2552 = vrot.slane %v2551, 1
  %v2553 = vmax.f32 %v2551, %v2552
  %v2554 = vpack.i.bf16 %v2553, %v2553
  %v2556 = vsel %vm265, %v185, 4286644096
  %v2558 = vunpack.i.l.bf16 %v2556
  %v2559 = vunpack.i.h.bf16 %v2556
  %v2560 = vmax.f32 %v2558, %v2559
  %v2561 = vrot.slane %v2560, 4
  %v2562 = vmax.f32 %v2560, %v2561
  %v2563 = vrot.slane %v2562, 2
  %v2564 = vmax.f32 %v2562, %v2563
  %v2565 = vrot.slane %v2564, 1
  %v2566 = vmax.f32 %v2564, %v2565
  %v2567 = vpack.i.bf16 %v2566, %v2566
  %v2569 = vsel %vm265, %v186, 4286644096
  %v2571 = vunpack.i.l.bf16 %v2569
  %v2572 = vunpack.i.h.bf16 %v2569
  %v2573 = vmax.f32 %v2571, %v2572
  %v2574 = vrot.slane %v2573, 4
  %v2575 = vmax.f32 %v2573, %v2574
  %v2576 = vrot.slane %v2575, 2
  %v2577 = vmax.f32 %v2575, %v2576
  %v2578 = vrot.slane %v2577, 1
  %v2579 = vmax.f32 %v2577, %v2578
  %v2580 = vpack.i.bf16 %v2579, %v2579
  %v2582 = vsel %vm265, %v187, 4286644096
  %v2584 = vunpack.i.l.bf16 %v2582
  %v2585 = vunpack.i.h.bf16 %v2582
  %v2586 = vmax.f32 %v2584, %v2585
  %v2587 = vrot.slane %v2586, 4
  %v2588 = vmax.f32 %v2586, %v2587
  %v2589 = vrot.slane %v2588, 2
  %v2590 = vmax.f32 %v2588, %v2589
  %v2591 = vrot.slane %v2590, 1
  %v2592 = vmax.f32 %v2590, %v2591
  %v2593 = vpack.i.bf16 %v2592, %v2592
  %v2595 = vsel %vm265, %v188, 4286644096
  %v2597 = vunpack.i.l.bf16 %v2595
  %v2598 = vunpack.i.h.bf16 %v2595
  %v2599 = vmax.f32 %v2597, %v2598
  %v2600 = vrot.slane %v2599, 4
  %v2601 = vmax.f32 %v2599, %v2600
  %v2602 = vrot.slane %v2601, 2
  %v2603 = vmax.f32 %v2601, %v2602
  %v2604 = vrot.slane %v2603, 1
  %v2605 = vmax.f32 %v2603, %v2604
  %v2606 = vpack.i.bf16 %v2605, %v2605
  %v2608 = vsel %vm265, %v189, 4286644096
  %v2610 = vunpack.i.l.bf16 %v2608
  %v2611 = vunpack.i.h.bf16 %v2608
  %v2612 = vmax.f32 %v2610, %v2611
  %v2613 = vrot.slane %v2612, 4
  %v2614 = vmax.f32 %v2612, %v2613
  %v2615 = vrot.slane %v2614, 2
  %v2616 = vmax.f32 %v2614, %v2615
  %v2617 = vrot.slane %v2616, 1
  %v2618 = vmax.f32 %v2616, %v2617
  %v2619 = vpack.i.bf16 %v2618, %v2618
  %v2621 = vsel %vm265, %v190, 4286644096
  %v2623 = vunpack.i.l.bf16 %v2621
  %v2624 = vunpack.i.h.bf16 %v2621
  %v2625 = vmax.f32 %v2623, %v2624
  %v2626 = vrot.slane %v2625, 4
  %v2627 = vmax.f32 %v2625, %v2626
  %v2628 = vrot.slane %v2627, 2
  %v2629 = vmax.f32 %v2627, %v2628
  %v2630 = vrot.slane %v2629, 1
  %v2631 = vmax.f32 %v2629, %v2630
  %v2632 = vpack.i.bf16 %v2631, %v2631
  %v2634 = vsel %vm265, %v191, 4286644096
  %v2636 = vunpack.i.l.bf16 %v2634
  %v2637 = vunpack.i.h.bf16 %v2634
  %v2638 = vmax.f32 %v2636, %v2637
  %v2639 = vrot.slane %v2638, 4
  %v2640 = vmax.f32 %v2638, %v2639
  %v2641 = vrot.slane %v2640, 2
  %v2642 = vmax.f32 %v2640, %v2641
  %v2643 = vrot.slane %v2642, 1
  %v2644 = vmax.f32 %v2642, %v2643
  %v2645 = vpack.i.bf16 %v2644, %v2644
  %v2647 = vsel %vm265, %v192, 4286644096
  %v2649 = vunpack.i.l.bf16 %v2647
  %v2650 = vunpack.i.h.bf16 %v2647
  %v2651 = vmax.f32 %v2649, %v2650
  %v2652 = vrot.slane %v2651, 4
  %v2653 = vmax.f32 %v2651, %v2652
  %v2654 = vrot.slane %v2653, 2
  %v2655 = vmax.f32 %v2653, %v2654
  %v2656 = vrot.slane %v2655, 1
  %v2657 = vmax.f32 %v2655, %v2656
  %v2658 = vpack.i.bf16 %v2657, %v2657
  %v2660 = vsel %vm265, %v193, 4286644096
  %v2662 = vunpack.i.l.bf16 %v2660
  %v2663 = vunpack.i.h.bf16 %v2660
  %v2664 = vmax.f32 %v2662, %v2663
  %v2665 = vrot.slane %v2664, 4
  %v2666 = vmax.f32 %v2664, %v2665
  %v2667 = vrot.slane %v2666, 2
  %v2668 = vmax.f32 %v2666, %v2667
  %v2669 = vrot.slane %v2668, 1
  %v2670 = vmax.f32 %v2668, %v2669
  %v2671 = vpack.i.bf16 %v2670, %v2670
  %v2673 = vsel %vm265, %v194, 4286644096
  %v2675 = vunpack.i.l.bf16 %v2673
  %v2676 = vunpack.i.h.bf16 %v2673
  %v2677 = vmax.f32 %v2675, %v2676
  %v2678 = vrot.slane %v2677, 4
  %v2679 = vmax.f32 %v2677, %v2678
  %v2680 = vrot.slane %v2679, 2
  %v2681 = vmax.f32 %v2679, %v2680
  %v2682 = vrot.slane %v2681, 1
  %v2683 = vmax.f32 %v2681, %v2682
  %v2684 = vpack.i.bf16 %v2683, %v2683
  %v2686 = vsel %vm265, %v195, 4286644096
  %v2688 = vunpack.i.l.bf16 %v2686
  %v2689 = vunpack.i.h.bf16 %v2686
  %v2690 = vmax.f32 %v2688, %v2689
  %v2691 = vrot.slane %v2690, 4
  %v2692 = vmax.f32 %v2690, %v2691
  %v2693 = vrot.slane %v2692, 2
  %v2694 = vmax.f32 %v2692, %v2693
  %v2695 = vrot.slane %v2694, 1
  %v2696 = vmax.f32 %v2694, %v2695
  %v2697 = vpack.i.bf16 %v2696, %v2696
  %v2699 = vsel %vm265, %v196, 4286644096
  %v2701 = vunpack.i.l.bf16 %v2699
  %v2702 = vunpack.i.h.bf16 %v2699
  %v2703 = vmax.f32 %v2701, %v2702
  %v2704 = vrot.slane %v2703, 4
  %v2705 = vmax.f32 %v2703, %v2704
  %v2706 = vrot.slane %v2705, 2
  %v2707 = vmax.f32 %v2705, %v2706
  %v2708 = vrot.slane %v2707, 1
  %v2709 = vmax.f32 %v2707, %v2708
  %v2710 = vpack.i.bf16 %v2709, %v2709
  %v2712 = vsel %vm265, %v197, 4286644096
  %v2714 = vunpack.i.l.bf16 %v2712
  %v2715 = vunpack.i.h.bf16 %v2712
  %v2716 = vmax.f32 %v2714, %v2715
  %v2717 = vrot.slane %v2716, 4
  %v2718 = vmax.f32 %v2716, %v2717
  %v2719 = vrot.slane %v2718, 2
  %v2720 = vmax.f32 %v2718, %v2719
  %v2721 = vrot.slane %v2720, 1
  %v2722 = vmax.f32 %v2720, %v2721
  %v2723 = vpack.i.bf16 %v2722, %v2722
  %v2725 = vsel %vm265, %v198, 4286644096
  %v2727 = vunpack.i.l.bf16 %v2725
  %v2728 = vunpack.i.h.bf16 %v2725
  %v2729 = vmax.f32 %v2727, %v2728
  %v2730 = vrot.slane %v2729, 4
  %v2731 = vmax.f32 %v2729, %v2730
  %v2732 = vrot.slane %v2731, 2
  %v2733 = vmax.f32 %v2731, %v2732
  %v2734 = vrot.slane %v2733, 1
  %v2735 = vmax.f32 %v2733, %v2734
  %v2736 = vpack.i.bf16 %v2735, %v2735
  %v2738 = vsel %vm265, %v199, 4286644096
  %v2740 = vunpack.i.l.bf16 %v2738
  %v2741 = vunpack.i.h.bf16 %v2738
  %v2742 = vmax.f32 %v2740, %v2741
  %v2743 = vrot.slane %v2742, 4
  %v2744 = vmax.f32 %v2742, %v2743
  %v2745 = vrot.slane %v2744, 2
  %v2746 = vmax.f32 %v2744, %v2745
  %v2747 = vrot.slane %v2746, 1
  %v2748 = vmax.f32 %v2746, %v2747
  %v2749 = vpack.i.bf16 %v2748, %v2748
  %v2751 = vsel %vm265, %v200, 4286644096
  %v2753 = vunpack.i.l.bf16 %v2751
  %v2754 = vunpack.i.h.bf16 %v2751
  %v2755 = vmax.f32 %v2753, %v2754
  %v2756 = vrot.slane %v2755, 4
  %v2757 = vmax.f32 %v2755, %v2756
  %v2758 = vrot.slane %v2757, 2
  %v2759 = vmax.f32 %v2757, %v2758
  %v2760 = vrot.slane %v2759, 1
  %v2761 = vmax.f32 %v2759, %v2760
  %v2762 = vpack.i.bf16 %v2761, %v2761
  %v2764 = vsel %vm265, %v201, 4286644096
  %v2766 = vunpack.i.l.bf16 %v2764
  %v2767 = vunpack.i.h.bf16 %v2764
  %v2768 = vmax.f32 %v2766, %v2767
  %v2769 = vrot.slane %v2768, 4
  %v2770 = vmax.f32 %v2768, %v2769
  %v2771 = vrot.slane %v2770, 2
  %v2772 = vmax.f32 %v2770, %v2771
  %v2773 = vrot.slane %v2772, 1
  %v2774 = vmax.f32 %v2772, %v2773
  %v2775 = vpack.i.bf16 %v2774, %v2774
  %v2777 = vsel %vm265, %v202, 4286644096
  %v2779 = vunpack.i.l.bf16 %v2777
  %v2780 = vunpack.i.h.bf16 %v2777
  %v2781 = vmax.f32 %v2779, %v2780
  %v2782 = vrot.slane %v2781, 4
  %v2783 = vmax.f32 %v2781, %v2782
  %v2784 = vrot.slane %v2783, 2
  %v2785 = vmax.f32 %v2783, %v2784
  %v2786 = vrot.slane %v2785, 1
  %v2787 = vmax.f32 %v2785, %v2786
  %v2788 = vpack.i.bf16 %v2787, %v2787
  %v2790 = vsel %vm265, %v203, 4286644096
  %v2792 = vunpack.i.l.bf16 %v2790
  %v2793 = vunpack.i.h.bf16 %v2790
  %v2794 = vmax.f32 %v2792, %v2793
  %v2795 = vrot.slane %v2794, 4
  %v2796 = vmax.f32 %v2794, %v2795
  %v2797 = vrot.slane %v2796, 2
  %v2798 = vmax.f32 %v2796, %v2797
  %v2799 = vrot.slane %v2798, 1
  %v2800 = vmax.f32 %v2798, %v2799
  %v2801 = vpack.i.bf16 %v2800, %v2800
  %v2803 = vsel %vm265, %v204, 4286644096
  %v2805 = vunpack.i.l.bf16 %v2803
  %v2806 = vunpack.i.h.bf16 %v2803
  %v2807 = vmax.f32 %v2805, %v2806
  %v2808 = vrot.slane %v2807, 4
  %v2809 = vmax.f32 %v2807, %v2808
  %v2810 = vrot.slane %v2809, 2
  %v2811 = vmax.f32 %v2809, %v2810
  %v2812 = vrot.slane %v2811, 1
  %v2813 = vmax.f32 %v2811, %v2812
  %v2814 = vpack.i.bf16 %v2813, %v2813
  %v2816 = vsel %vm265, %v205, 4286644096
  %v2818 = vunpack.i.l.bf16 %v2816
  %v2819 = vunpack.i.h.bf16 %v2816
  %v2820 = vmax.f32 %v2818, %v2819
  %v2821 = vrot.slane %v2820, 4
  %v2822 = vmax.f32 %v2820, %v2821
  %v2823 = vrot.slane %v2822, 2
  %v2824 = vmax.f32 %v2822, %v2823
  %v2825 = vrot.slane %v2824, 1
  %v2826 = vmax.f32 %v2824, %v2825
  %v2827 = vpack.i.bf16 %v2826, %v2826
  %v2829 = vsel %vm265, %v206, 4286644096
  %v2831 = vunpack.i.l.bf16 %v2829
  %v2832 = vunpack.i.h.bf16 %v2829
  %v2833 = vmax.f32 %v2831, %v2832
  %v2834 = vrot.slane %v2833, 4
  %v2835 = vmax.f32 %v2833, %v2834
  %v2836 = vrot.slane %v2835, 2
  %v2837 = vmax.f32 %v2835, %v2836
  %v2838 = vrot.slane %v2837, 1
  %v2839 = vmax.f32 %v2837, %v2838
  %v2840 = vpack.i.bf16 %v2839, %v2839
  %v2842 = vsel %vm265, %v207, 4286644096
  %v2844 = vunpack.i.l.bf16 %v2842
  %v2845 = vunpack.i.h.bf16 %v2842
  %v2846 = vmax.f32 %v2844, %v2845
  %v2847 = vrot.slane %v2846, 4
  %v2848 = vmax.f32 %v2846, %v2847
  %v2849 = vrot.slane %v2848, 2
  %v2850 = vmax.f32 %v2848, %v2849
  %v2851 = vrot.slane %v2850, 1
  %v2852 = vmax.f32 %v2850, %v2851
  %v2853 = vpack.i.bf16 %v2852, %v2852
  %v2855 = vsel %vm265, %v208, 4286644096
  %v2857 = vunpack.i.l.bf16 %v2855
  %v2858 = vunpack.i.h.bf16 %v2855
  %v2859 = vmax.f32 %v2857, %v2858
  %v2860 = vrot.slane %v2859, 4
  %v2861 = vmax.f32 %v2859, %v2860
  %v2862 = vrot.slane %v2861, 2
  %v2863 = vmax.f32 %v2861, %v2862
  %v2864 = vrot.slane %v2863, 1
  %v2865 = vmax.f32 %v2863, %v2864
  %v2866 = vpack.i.bf16 %v2865, %v2865
  %v2868 = vsel %vm265, %v209, 4286644096
  %v2870 = vunpack.i.l.bf16 %v2868
  %v2871 = vunpack.i.h.bf16 %v2868
  %v2872 = vmax.f32 %v2870, %v2871
  %v2873 = vrot.slane %v2872, 4
  %v2874 = vmax.f32 %v2872, %v2873
  %v2875 = vrot.slane %v2874, 2
  %v2876 = vmax.f32 %v2874, %v2875
  %v2877 = vrot.slane %v2876, 1
  %v2878 = vmax.f32 %v2876, %v2877
  %v2879 = vpack.i.bf16 %v2878, %v2878
  %v2881 = vsel %vm265, %v210, 4286644096
  %v2883 = vunpack.i.l.bf16 %v2881
  %v2884 = vunpack.i.h.bf16 %v2881
  %v2885 = vmax.f32 %v2883, %v2884
  %v2886 = vrot.slane %v2885, 4
  %v2887 = vmax.f32 %v2885, %v2886
  %v2888 = vrot.slane %v2887, 2
  %v2889 = vmax.f32 %v2887, %v2888
  %v2890 = vrot.slane %v2889, 1
  %v2891 = vmax.f32 %v2889, %v2890
  %v2892 = vpack.i.bf16 %v2891, %v2891
  %v2894 = vsel %vm265, %v211, 4286644096
  %v2896 = vunpack.i.l.bf16 %v2894
  %v2897 = vunpack.i.h.bf16 %v2894
  %v2898 = vmax.f32 %v2896, %v2897
  %v2899 = vrot.slane %v2898, 4
  %v2900 = vmax.f32 %v2898, %v2899
  %v2901 = vrot.slane %v2900, 2
  %v2902 = vmax.f32 %v2900, %v2901
  %v2903 = vrot.slane %v2902, 1
  %v2904 = vmax.f32 %v2902, %v2903
  %v2905 = vpack.i.bf16 %v2904, %v2904
  %v2907 = vsel %vm265, %v212, 4286644096
  %v2909 = vunpack.i.l.bf16 %v2907
  %v2910 = vunpack.i.h.bf16 %v2907
  %v2911 = vmax.f32 %v2909, %v2910
  %v2912 = vrot.slane %v2911, 4
  %v2913 = vmax.f32 %v2911, %v2912
  %v2914 = vrot.slane %v2913, 2
  %v2915 = vmax.f32 %v2913, %v2914
  %v2916 = vrot.slane %v2915, 1
  %v2917 = vmax.f32 %v2915, %v2916
  %v2918 = vpack.i.bf16 %v2917, %v2917
  %v2920 = vsel %vm265, %v213, 4286644096
  %v2922 = vunpack.i.l.bf16 %v2920
  %v2923 = vunpack.i.h.bf16 %v2920
  %v2924 = vmax.f32 %v2922, %v2923
  %v2925 = vrot.slane %v2924, 4
  %v2926 = vmax.f32 %v2924, %v2925
  %v2927 = vrot.slane %v2926, 2
  %v2928 = vmax.f32 %v2926, %v2927
  %v2929 = vrot.slane %v2928, 1
  %v2930 = vmax.f32 %v2928, %v2929
  %v2931 = vpack.i.bf16 %v2930, %v2930
  %v2933 = vsel %vm265, %v214, 4286644096
  %v2935 = vunpack.i.l.bf16 %v2933
  %v2936 = vunpack.i.h.bf16 %v2933
  %v2937 = vmax.f32 %v2935, %v2936
  %v2938 = vrot.slane %v2937, 4
  %v2939 = vmax.f32 %v2937, %v2938
  %v2940 = vrot.slane %v2939, 2
  %v2941 = vmax.f32 %v2939, %v2940
  %v2942 = vrot.slane %v2941, 1
  %v2943 = vmax.f32 %v2941, %v2942
  %v2944 = vpack.i.bf16 %v2943, %v2943
  %v2946 = vsel %vm265, %v215, 4286644096
  %v2948 = vunpack.i.l.bf16 %v2946
  %v2949 = vunpack.i.h.bf16 %v2946
  %v2950 = vmax.f32 %v2948, %v2949
  %v2951 = vrot.slane %v2950, 4
  %v2952 = vmax.f32 %v2950, %v2951
  %v2953 = vrot.slane %v2952, 2
  %v2954 = vmax.f32 %v2952, %v2953
  %v2955 = vrot.slane %v2954, 1
  %v2956 = vmax.f32 %v2954, %v2955
  %v2957 = vpack.i.bf16 %v2956, %v2956
  %v2959 = vsel %vm265, %v216, 4286644096
  %v2961 = vunpack.i.l.bf16 %v2959
  %v2962 = vunpack.i.h.bf16 %v2959
  %v2963 = vmax.f32 %v2961, %v2962
  %v2964 = vrot.slane %v2963, 4
  %v2965 = vmax.f32 %v2963, %v2964
  %v2966 = vrot.slane %v2965, 2
  %v2967 = vmax.f32 %v2965, %v2966
  %v2968 = vrot.slane %v2967, 1
  %v2969 = vmax.f32 %v2967, %v2968
  %v2970 = vpack.i.bf16 %v2969, %v2969
  %v2972 = vsel %vm265, %v217, 4286644096
  %v2974 = vunpack.i.l.bf16 %v2972
  %v2975 = vunpack.i.h.bf16 %v2972
  %v2976 = vmax.f32 %v2974, %v2975
  %v2977 = vrot.slane %v2976, 4
  %v2978 = vmax.f32 %v2976, %v2977
  %v2979 = vrot.slane %v2978, 2
  %v2980 = vmax.f32 %v2978, %v2979
  %v2981 = vrot.slane %v2980, 1
  %v2982 = vmax.f32 %v2980, %v2981
  %v2983 = vpack.i.bf16 %v2982, %v2982
  %v2985 = vsel %vm265, %v218, 4286644096
  %v2987 = vunpack.i.l.bf16 %v2985
  %v2988 = vunpack.i.h.bf16 %v2985
  %v2989 = vmax.f32 %v2987, %v2988
  %v2990 = vrot.slane %v2989, 4
  %v2991 = vmax.f32 %v2989, %v2990
  %v2992 = vrot.slane %v2991, 2
  %v2993 = vmax.f32 %v2991, %v2992
  %v2994 = vrot.slane %v2993, 1
  %v2995 = vmax.f32 %v2993, %v2994
  %v2996 = vpack.i.bf16 %v2995, %v2995
  %v2998 = vsel %vm265, %v219, 4286644096
  %v3000 = vunpack.i.l.bf16 %v2998
  %v3001 = vunpack.i.h.bf16 %v2998
  %v3002 = vmax.f32 %v3000, %v3001
  %v3003 = vrot.slane %v3002, 4
  %v3004 = vmax.f32 %v3002, %v3003
  %v3005 = vrot.slane %v3004, 2
  %v3006 = vmax.f32 %v3004, %v3005
  %v3007 = vrot.slane %v3006, 1
  %v3008 = vmax.f32 %v3006, %v3007
  %v3009 = vpack.i.bf16 %v3008, %v3008
  %v3011 = vsel %vm265, %v220, 4286644096
  %v3013 = vunpack.i.l.bf16 %v3011
  %v3014 = vunpack.i.h.bf16 %v3011
  %v3015 = vmax.f32 %v3013, %v3014
  %v3016 = vrot.slane %v3015, 4
  %v3017 = vmax.f32 %v3015, %v3016
  %v3018 = vrot.slane %v3017, 2
  %v3019 = vmax.f32 %v3017, %v3018
  %v3020 = vrot.slane %v3019, 1
  %v3021 = vmax.f32 %v3019, %v3020
  %v3022 = vpack.i.bf16 %v3021, %v3021
  %v3024 = vsel %vm265, %v221, 4286644096
  %v3026 = vunpack.i.l.bf16 %v3024
  %v3027 = vunpack.i.h.bf16 %v3024
  %v3028 = vmax.f32 %v3026, %v3027
  %v3029 = vrot.slane %v3028, 4
  %v3030 = vmax.f32 %v3028, %v3029
  %v3031 = vrot.slane %v3030, 2
  %v3032 = vmax.f32 %v3030, %v3031
  %v3033 = vrot.slane %v3032, 1
  %v3034 = vmax.f32 %v3032, %v3033
  %v3035 = vpack.i.bf16 %v3034, %v3034
  %v3037 = vsel %vm265, %v222, 4286644096
  %v3039 = vunpack.i.l.bf16 %v3037
  %v3040 = vunpack.i.h.bf16 %v3037
  %v3041 = vmax.f32 %v3039, %v3040
  %v3042 = vrot.slane %v3041, 4
  %v3043 = vmax.f32 %v3041, %v3042
  %v3044 = vrot.slane %v3043, 2
  %v3045 = vmax.f32 %v3043, %v3044
  %v3046 = vrot.slane %v3045, 1
  %v3047 = vmax.f32 %v3045, %v3046
  %v3048 = vpack.i.bf16 %v3047, %v3047
  %v3050 = vsel %vm265, %v223, 4286644096
  %v3052 = vunpack.i.l.bf16 %v3050
  %v3053 = vunpack.i.h.bf16 %v3050
  %v3054 = vmax.f32 %v3052, %v3053
  %v3055 = vrot.slane %v3054, 4
  %v3056 = vmax.f32 %v3054, %v3055
  %v3057 = vrot.slane %v3056, 2
  %v3058 = vmax.f32 %v3056, %v3057
  %v3059 = vrot.slane %v3058, 1
  %v3060 = vmax.f32 %v3058, %v3059
  %v3061 = vpack.i.bf16 %v3060, %v3060
  %v3063 = vsel %vm265, %v224, 4286644096
  %v3065 = vunpack.i.l.bf16 %v3063
  %v3066 = vunpack.i.h.bf16 %v3063
  %v3067 = vmax.f32 %v3065, %v3066
  %v3068 = vrot.slane %v3067, 4
  %v3069 = vmax.f32 %v3067, %v3068
  %v3070 = vrot.slane %v3069, 2
  %v3071 = vmax.f32 %v3069, %v3070
  %v3072 = vrot.slane %v3071, 1
  %v3073 = vmax.f32 %v3071, %v3072
  %v3074 = vpack.i.bf16 %v3073, %v3073
  %v3076 = vsel %vm265, %v225, 4286644096
  %v3078 = vunpack.i.l.bf16 %v3076
  %v3079 = vunpack.i.h.bf16 %v3076
  %v3080 = vmax.f32 %v3078, %v3079
  %v3081 = vrot.slane %v3080, 4
  %v3082 = vmax.f32 %v3080, %v3081
  %v3083 = vrot.slane %v3082, 2
  %v3084 = vmax.f32 %v3082, %v3083
  %v3085 = vrot.slane %v3084, 1
  %v3086 = vmax.f32 %v3084, %v3085
  %v3087 = vpack.i.bf16 %v3086, %v3086
  %v3089 = vsel %vm265, %v226, 4286644096
  %v3091 = vunpack.i.l.bf16 %v3089
  %v3092 = vunpack.i.h.bf16 %v3089
  %v3093 = vmax.f32 %v3091, %v3092
  %v3094 = vrot.slane %v3093, 4
  %v3095 = vmax.f32 %v3093, %v3094
  %v3096 = vrot.slane %v3095, 2
  %v3097 = vmax.f32 %v3095, %v3096
  %v3098 = vrot.slane %v3097, 1
  %v3099 = vmax.f32 %v3097, %v3098
  %v3100 = vpack.i.bf16 %v3099, %v3099
  %v3102 = vsel %vm265, %v227, 4286644096
  %v3104 = vunpack.i.l.bf16 %v3102
  %v3105 = vunpack.i.h.bf16 %v3102
  %v3106 = vmax.f32 %v3104, %v3105
  %v3107 = vrot.slane %v3106, 4
  %v3108 = vmax.f32 %v3106, %v3107
  %v3109 = vrot.slane %v3108, 2
  %v3110 = vmax.f32 %v3108, %v3109
  %v3111 = vrot.slane %v3110, 1
  %v3112 = vmax.f32 %v3110, %v3111
  %v3113 = vpack.i.bf16 %v3112, %v3112
  %v3115 = vsel %vm265, %v228, 4286644096
  %v3117 = vunpack.i.l.bf16 %v3115
  %v3118 = vunpack.i.h.bf16 %v3115
  %v3119 = vmax.f32 %v3117, %v3118
  %v3120 = vrot.slane %v3119, 4
  %v3121 = vmax.f32 %v3119, %v3120
  %v3122 = vrot.slane %v3121, 2
  %v3123 = vmax.f32 %v3121, %v3122
  %v3124 = vrot.slane %v3123, 1
  %v3125 = vmax.f32 %v3123, %v3124
  %v3126 = vpack.i.bf16 %v3125, %v3125
  %v3128 = vsel %vm265, %v229, 4286644096
  %v3130 = vunpack.i.l.bf16 %v3128
  %v3131 = vunpack.i.h.bf16 %v3128
  %v3132 = vmax.f32 %v3130, %v3131
  %v3133 = vrot.slane %v3132, 4
  %v3134 = vmax.f32 %v3132, %v3133
  %v3135 = vrot.slane %v3134, 2
  %v3136 = vmax.f32 %v3134, %v3135
  %v3137 = vrot.slane %v3136, 1
  %v3138 = vmax.f32 %v3136, %v3137
  %v3139 = vpack.i.bf16 %v3138, %v3138
  %v3141 = vsel %vm265, %v230, 4286644096
  %v3143 = vunpack.i.l.bf16 %v3141
  %v3144 = vunpack.i.h.bf16 %v3141
  %v3145 = vmax.f32 %v3143, %v3144
  %v3146 = vrot.slane %v3145, 4
  %v3147 = vmax.f32 %v3145, %v3146
  %v3148 = vrot.slane %v3147, 2
  %v3149 = vmax.f32 %v3147, %v3148
  %v3150 = vrot.slane %v3149, 1
  %v3151 = vmax.f32 %v3149, %v3150
  %v3152 = vpack.i.bf16 %v3151, %v3151
  %v3154 = vsel %vm265, %v231, 4286644096
  %v3156 = vunpack.i.l.bf16 %v3154
  %v3157 = vunpack.i.h.bf16 %v3154
  %v3158 = vmax.f32 %v3156, %v3157
  %v3159 = vrot.slane %v3158, 4
  %v3160 = vmax.f32 %v3158, %v3159
  %v3161 = vrot.slane %v3160, 2
  %v3162 = vmax.f32 %v3160, %v3161
  %v3163 = vrot.slane %v3162, 1
  %v3164 = vmax.f32 %v3162, %v3163
  %v3165 = vpack.i.bf16 %v3164, %v3164
  %v3167 = vsel %vm265, %v232, 4286644096
  %v3169 = vunpack.i.l.bf16 %v3167
  %v3170 = vunpack.i.h.bf16 %v3167
  %v3171 = vmax.f32 %v3169, %v3170
  %v3172 = vrot.slane %v3171, 4
  %v3173 = vmax.f32 %v3171, %v3172
  %v3174 = vrot.slane %v3173, 2
  %v3175 = vmax.f32 %v3173, %v3174
  %v3176 = vrot.slane %v3175, 1
  %v3177 = vmax.f32 %v3175, %v3176
  %v3178 = vpack.i.bf16 %v3177, %v3177
  %v3180 = vsel %vm265, %v233, 4286644096
  %v3182 = vunpack.i.l.bf16 %v3180
  %v3183 = vunpack.i.h.bf16 %v3180
  %v3184 = vmax.f32 %v3182, %v3183
  %v3185 = vrot.slane %v3184, 4
  %v3186 = vmax.f32 %v3184, %v3185
  %v3187 = vrot.slane %v3186, 2
  %v3188 = vmax.f32 %v3186, %v3187
  %v3189 = vrot.slane %v3188, 1
  %v3190 = vmax.f32 %v3188, %v3189
  %v3191 = vpack.i.bf16 %v3190, %v3190
  %v3193 = vsel %vm265, %v234, 4286644096
  %v3195 = vunpack.i.l.bf16 %v3193
  %v3196 = vunpack.i.h.bf16 %v3193
  %v3197 = vmax.f32 %v3195, %v3196
  %v3198 = vrot.slane %v3197, 4
  %v3199 = vmax.f32 %v3197, %v3198
  %v3200 = vrot.slane %v3199, 2
  %v3201 = vmax.f32 %v3199, %v3200
  %v3202 = vrot.slane %v3201, 1
  %v3203 = vmax.f32 %v3201, %v3202
  %v3204 = vpack.i.bf16 %v3203, %v3203
  %v3206 = vsel %vm265, %v235, 4286644096
  %v3208 = vunpack.i.l.bf16 %v3206
  %v3209 = vunpack.i.h.bf16 %v3206
  %v3210 = vmax.f32 %v3208, %v3209
  %v3211 = vrot.slane %v3210, 4
  %v3212 = vmax.f32 %v3210, %v3211
  %v3213 = vrot.slane %v3212, 2
  %v3214 = vmax.f32 %v3212, %v3213
  %v3215 = vrot.slane %v3214, 1
  %v3216 = vmax.f32 %v3214, %v3215
  %v3217 = vpack.i.bf16 %v3216, %v3216
  %v3219 = vsel %vm265, %v236, 4286644096
  %v3221 = vunpack.i.l.bf16 %v3219
  %v3222 = vunpack.i.h.bf16 %v3219
  %v3223 = vmax.f32 %v3221, %v3222
  %v3224 = vrot.slane %v3223, 4
  %v3225 = vmax.f32 %v3223, %v3224
  %v3226 = vrot.slane %v3225, 2
  %v3227 = vmax.f32 %v3225, %v3226
  %v3228 = vrot.slane %v3227, 1
  %v3229 = vmax.f32 %v3227, %v3228
  %v3230 = vpack.i.bf16 %v3229, %v3229
  %v3232 = vsel %vm265, %v237, 4286644096
  %v3234 = vunpack.i.l.bf16 %v3232
  %v3235 = vunpack.i.h.bf16 %v3232
  %v3236 = vmax.f32 %v3234, %v3235
  %v3237 = vrot.slane %v3236, 4
  %v3238 = vmax.f32 %v3236, %v3237
  %v3239 = vrot.slane %v3238, 2
  %v3240 = vmax.f32 %v3238, %v3239
  %v3241 = vrot.slane %v3240, 1
  %v3242 = vmax.f32 %v3240, %v3241
  %v3243 = vpack.i.bf16 %v3242, %v3242
  %v3245 = vsel %vm265, %v238, 4286644096
  %v3247 = vunpack.i.l.bf16 %v3245
  %v3248 = vunpack.i.h.bf16 %v3245
  %v3249 = vmax.f32 %v3247, %v3248
  %v3250 = vrot.slane %v3249, 4
  %v3251 = vmax.f32 %v3249, %v3250
  %v3252 = vrot.slane %v3251, 2
  %v3253 = vmax.f32 %v3251, %v3252
  %v3254 = vrot.slane %v3253, 1
  %v3255 = vmax.f32 %v3253, %v3254
  %v3256 = vpack.i.bf16 %v3255, %v3255
  %v3258 = vsel %vm265, %v239, 4286644096
  %v3260 = vunpack.i.l.bf16 %v3258
  %v3261 = vunpack.i.h.bf16 %v3258
  %v3262 = vmax.f32 %v3260, %v3261
  %v3263 = vrot.slane %v3262, 4
  %v3264 = vmax.f32 %v3262, %v3263
  %v3265 = vrot.slane %v3264, 2
  %v3266 = vmax.f32 %v3264, %v3265
  %v3267 = vrot.slane %v3266, 1
  %v3268 = vmax.f32 %v3266, %v3267
  %v3269 = vpack.i.bf16 %v3268, %v3268
  %v3271 = vsel %vm265, %v240, 4286644096
  %v3273 = vunpack.i.l.bf16 %v3271
  %v3274 = vunpack.i.h.bf16 %v3271
  %v3275 = vmax.f32 %v3273, %v3274
  %v3276 = vrot.slane %v3275, 4
  %v3277 = vmax.f32 %v3275, %v3276
  %v3278 = vrot.slane %v3277, 2
  %v3279 = vmax.f32 %v3277, %v3278
  %v3280 = vrot.slane %v3279, 1
  %v3281 = vmax.f32 %v3279, %v3280
  %v3282 = vpack.i.bf16 %v3281, %v3281
  %v3284 = vsel %vm265, %v241, 4286644096
  %v3286 = vunpack.i.l.bf16 %v3284
  %v3287 = vunpack.i.h.bf16 %v3284
  %v3288 = vmax.f32 %v3286, %v3287
  %v3289 = vrot.slane %v3288, 4
  %v3290 = vmax.f32 %v3288, %v3289
  %v3291 = vrot.slane %v3290, 2
  %v3292 = vmax.f32 %v3290, %v3291
  %v3293 = vrot.slane %v3292, 1
  %v3294 = vmax.f32 %v3292, %v3293
  %v3295 = vpack.i.bf16 %v3294, %v3294
  %v3297 = vsel %vm265, %v242, 4286644096
  %v3299 = vunpack.i.l.bf16 %v3297
  %v3300 = vunpack.i.h.bf16 %v3297
  %v3301 = vmax.f32 %v3299, %v3300
  %v3302 = vrot.slane %v3301, 4
  %v3303 = vmax.f32 %v3301, %v3302
  %v3304 = vrot.slane %v3303, 2
  %v3305 = vmax.f32 %v3303, %v3304
  %v3306 = vrot.slane %v3305, 1
  %v3307 = vmax.f32 %v3305, %v3306
  %v3308 = vpack.i.bf16 %v3307, %v3307
  %v3310 = vsel %vm265, %v243, 4286644096
  %v3312 = vunpack.i.l.bf16 %v3310
  %v3313 = vunpack.i.h.bf16 %v3310
  %v3314 = vmax.f32 %v3312, %v3313
  %v3315 = vrot.slane %v3314, 4
  %v3316 = vmax.f32 %v3314, %v3315
  %v3317 = vrot.slane %v3316, 2
  %v3318 = vmax.f32 %v3316, %v3317
  %v3319 = vrot.slane %v3318, 1
  %v3320 = vmax.f32 %v3318, %v3319
  %v3321 = vpack.i.bf16 %v3320, %v3320
  %v3323 = vsel %vm265, %v244, 4286644096
  %v3325 = vunpack.i.l.bf16 %v3323
  %v3326 = vunpack.i.h.bf16 %v3323
  %v3327 = vmax.f32 %v3325, %v3326
  %v3328 = vrot.slane %v3327, 4
  %v3329 = vmax.f32 %v3327, %v3328
  %v3330 = vrot.slane %v3329, 2
  %v3331 = vmax.f32 %v3329, %v3330
  %v3332 = vrot.slane %v3331, 1
  %v3333 = vmax.f32 %v3331, %v3332
  %v3334 = vpack.i.bf16 %v3333, %v3333
  %v3336 = vsel %vm265, %v245, 4286644096
  %v3338 = vunpack.i.l.bf16 %v3336
  %v3339 = vunpack.i.h.bf16 %v3336
  %v3340 = vmax.f32 %v3338, %v3339
  %v3341 = vrot.slane %v3340, 4
  %v3342 = vmax.f32 %v3340, %v3341
  %v3343 = vrot.slane %v3342, 2
  %v3344 = vmax.f32 %v3342, %v3343
  %v3345 = vrot.slane %v3344, 1
  %v3346 = vmax.f32 %v3344, %v3345
  %v3347 = vpack.i.bf16 %v3346, %v3346
  %v3349 = vsel %vm265, %v246, 4286644096
  %v3351 = vunpack.i.l.bf16 %v3349
  %v3352 = vunpack.i.h.bf16 %v3349
  %v3353 = vmax.f32 %v3351, %v3352
  %v3354 = vrot.slane %v3353, 4
  %v3355 = vmax.f32 %v3353, %v3354
  %v3356 = vrot.slane %v3355, 2
  %v3357 = vmax.f32 %v3355, %v3356
  %v3358 = vrot.slane %v3357, 1
  %v3359 = vmax.f32 %v3357, %v3358
  %v3360 = vpack.i.bf16 %v3359, %v3359
  %v3362 = vsel %vm265, %v247, 4286644096
  %v3364 = vunpack.i.l.bf16 %v3362
  %v3365 = vunpack.i.h.bf16 %v3362
  %v3366 = vmax.f32 %v3364, %v3365
  %v3367 = vrot.slane %v3366, 4
  %v3368 = vmax.f32 %v3366, %v3367
  %v3369 = vrot.slane %v3368, 2
  %v3370 = vmax.f32 %v3368, %v3369
  %v3371 = vrot.slane %v3370, 1
  %v3372 = vmax.f32 %v3370, %v3371
  %v3373 = vpack.i.bf16 %v3372, %v3372
  %v3375 = vsel %vm265, %v248, 4286644096
  %v3377 = vunpack.i.l.bf16 %v3375
  %v3378 = vunpack.i.h.bf16 %v3375
  %v3379 = vmax.f32 %v3377, %v3378
  %v3380 = vrot.slane %v3379, 4
  %v3381 = vmax.f32 %v3379, %v3380
  %v3382 = vrot.slane %v3381, 2
  %v3383 = vmax.f32 %v3381, %v3382
  %v3384 = vrot.slane %v3383, 1
  %v3385 = vmax.f32 %v3383, %v3384
  %v3386 = vpack.i.bf16 %v3385, %v3385
  %v3388 = vsel %vm265, %v249, 4286644096
  %v3390 = vunpack.i.l.bf16 %v3388
  %v3391 = vunpack.i.h.bf16 %v3388
  %v3392 = vmax.f32 %v3390, %v3391
  %v3393 = vrot.slane %v3392, 4
  %v3394 = vmax.f32 %v3392, %v3393
  %v3395 = vrot.slane %v3394, 2
  %v3396 = vmax.f32 %v3394, %v3395
  %v3397 = vrot.slane %v3396, 1
  %v3398 = vmax.f32 %v3396, %v3397
  %v3399 = vpack.i.bf16 %v3398, %v3398
  %v3401 = vsel %vm265, %v250, 4286644096
  %v3403 = vunpack.i.l.bf16 %v3401
  %v3404 = vunpack.i.h.bf16 %v3401
  %v3405 = vmax.f32 %v3403, %v3404
  %v3406 = vrot.slane %v3405, 4
  %v3407 = vmax.f32 %v3405, %v3406
  %v3408 = vrot.slane %v3407, 2
  %v3409 = vmax.f32 %v3407, %v3408
  %v3410 = vrot.slane %v3409, 1
  %v3411 = vmax.f32 %v3409, %v3410
  %v3412 = vpack.i.bf16 %v3411, %v3411
  %v3414 = vsel %vm265, %v251, 4286644096
  %v3416 = vunpack.i.l.bf16 %v3414
  %v3417 = vunpack.i.h.bf16 %v3414
  %v3418 = vmax.f32 %v3416, %v3417
  %v3419 = vrot.slane %v3418, 4
  %v3420 = vmax.f32 %v3418, %v3419
  %v3421 = vrot.slane %v3420, 2
  %v3422 = vmax.f32 %v3420, %v3421
  %v3423 = vrot.slane %v3422, 1
  %v3424 = vmax.f32 %v3422, %v3423
  %v3425 = vpack.i.bf16 %v3424, %v3424
  %v3427 = vsel %vm265, %v252, 4286644096
  %v3429 = vunpack.i.l.bf16 %v3427
  %v3430 = vunpack.i.h.bf16 %v3427
  %v3431 = vmax.f32 %v3429, %v3430
  %v3432 = vrot.slane %v3431, 4
  %v3433 = vmax.f32 %v3431, %v3432
  %v3434 = vrot.slane %v3433, 2
  %v3435 = vmax.f32 %v3433, %v3434
  %v3436 = vrot.slane %v3435, 1
  %v3437 = vmax.f32 %v3435, %v3436
  %v3438 = vpack.i.bf16 %v3437, %v3437
  %v3440 = vsel %vm265, %v253, 4286644096
  %v3442 = vunpack.i.l.bf16 %v3440
  %v3443 = vunpack.i.h.bf16 %v3440
  %v3444 = vmax.f32 %v3442, %v3443
  %v3445 = vrot.slane %v3444, 4
  %v3446 = vmax.f32 %v3444, %v3445
  %v3447 = vrot.slane %v3446, 2
  %v3448 = vmax.f32 %v3446, %v3447
  %v3449 = vrot.slane %v3448, 1
  %v3450 = vmax.f32 %v3448, %v3449
  %v3451 = vpack.i.bf16 %v3450, %v3450
  %v3453 = vsel %vm265, %v254, 4286644096
  %v3455 = vunpack.i.l.bf16 %v3453
  %v3456 = vunpack.i.h.bf16 %v3453
  %v3457 = vmax.f32 %v3455, %v3456
  %v3458 = vrot.slane %v3457, 4
  %v3459 = vmax.f32 %v3457, %v3458
  %v3460 = vrot.slane %v3459, 2
  %v3461 = vmax.f32 %v3459, %v3460
  %v3462 = vrot.slane %v3461, 1
  %v3463 = vmax.f32 %v3461, %v3462
  %v3464 = vpack.i.bf16 %v3463, %v3463
  %v3466 = vsel %vm265, %v255, 4286644096
  %v3468 = vunpack.i.l.bf16 %v3466
  %v3469 = vunpack.i.h.bf16 %v3466
  %v3470 = vmax.f32 %v3468, %v3469
  %v3471 = vrot.slane %v3470, 4
  %v3472 = vmax.f32 %v3470, %v3471
  %v3473 = vrot.slane %v3472, 2
  %v3474 = vmax.f32 %v3472, %v3473
  %v3475 = vrot.slane %v3474, 1
  %v3476 = vmax.f32 %v3474, %v3475
  %v3477 = vpack.i.bf16 %v3476, %v3476
  %v3479 = vsel %vm265, %v256, 4286644096
  %v3481 = vunpack.i.l.bf16 %v3479
  %v3482 = vunpack.i.h.bf16 %v3479
  %v3483 = vmax.f32 %v3481, %v3482
  %v3484 = vrot.slane %v3483, 4
  %v3485 = vmax.f32 %v3483, %v3484
  %v3486 = vrot.slane %v3485, 2
  %v3487 = vmax.f32 %v3485, %v3486
  %v3488 = vrot.slane %v3487, 1
  %v3489 = vmax.f32 %v3487, %v3488
  %v3490 = vpack.i.bf16 %v3489, %v3489
  %v3492 = vsel %vm265, %v257, 4286644096
  %v3494 = vunpack.i.l.bf16 %v3492
  %v3495 = vunpack.i.h.bf16 %v3492
  %v3496 = vmax.f32 %v3494, %v3495
  %v3497 = vrot.slane %v3496, 4
  %v3498 = vmax.f32 %v3496, %v3497
  %v3499 = vrot.slane %v3498, 2
  %v3500 = vmax.f32 %v3498, %v3499
  %v3501 = vrot.slane %v3500, 1
  %v3502 = vmax.f32 %v3500, %v3501
  %v3503 = vpack.i.bf16 %v3502, %v3502
  %v3505 = vsel %vm265, %v258, 4286644096
  %v3507 = vunpack.i.l.bf16 %v3505
  %v3508 = vunpack.i.h.bf16 %v3505
  %v3509 = vmax.f32 %v3507, %v3508
  %v3510 = vrot.slane %v3509, 4
  %v3511 = vmax.f32 %v3509, %v3510
  %v3512 = vrot.slane %v3511, 2
  %v3513 = vmax.f32 %v3511, %v3512
  %v3514 = vrot.slane %v3513, 1
  %v3515 = vmax.f32 %v3513, %v3514
  %v3516 = vpack.i.bf16 %v3515, %v3515
  %v3518 = vsel %vm265, %v259, 4286644096
  %v3520 = vunpack.i.l.bf16 %v3518
  %v3521 = vunpack.i.h.bf16 %v3518
  %v3522 = vmax.f32 %v3520, %v3521
  %v3523 = vrot.slane %v3522, 4
  %v3524 = vmax.f32 %v3522, %v3523
  %v3525 = vrot.slane %v3524, 2
  %v3526 = vmax.f32 %v3524, %v3525
  %v3527 = vrot.slane %v3526, 1
  %v3528 = vmax.f32 %v3526, %v3527
  %v3529 = vpack.i.bf16 %v3528, %v3528
  %v3531 = vsel %vm265, %v260, 4286644096
  %v3533 = vunpack.i.l.bf16 %v3531
  %v3534 = vunpack.i.h.bf16 %v3531
  %v3535 = vmax.f32 %v3533, %v3534
  %v3536 = vrot.slane %v3535, 4
  %v3537 = vmax.f32 %v3535, %v3536
  %v3538 = vrot.slane %v3537, 2
  %v3539 = vmax.f32 %v3537, %v3538
  %v3540 = vrot.slane %v3539, 1
  %v3541 = vmax.f32 %v3539, %v3540
  %v3542 = vpack.i.bf16 %v3541, %v3541
  %v3544 = vsel %vm265, %v261, 4286644096
  %v3546 = vunpack.i.l.bf16 %v3544
  %v3547 = vunpack.i.h.bf16 %v3544
  %v3548 = vmax.f32 %v3546, %v3547
  %v3549 = vrot.slane %v3548, 4
  %v3550 = vmax.f32 %v3548, %v3549
  %v3551 = vrot.slane %v3550, 2
  %v3552 = vmax.f32 %v3550, %v3551
  %v3553 = vrot.slane %v3552, 1
  %v3554 = vmax.f32 %v3552, %v3553
  %v3555 = vpack.i.bf16 %v3554, %v3554
  %v3557 = vsel %vm265, %v262, 4286644096
  %v3559 = vunpack.i.l.bf16 %v3557
  %v3560 = vunpack.i.h.bf16 %v3557
  %v3561 = vmax.f32 %v3559, %v3560
  %v3562 = vrot.slane %v3561, 4
  %v3563 = vmax.f32 %v3561, %v3562
  %v3564 = vrot.slane %v3563, 2
  %v3565 = vmax.f32 %v3563, %v3564
  %v3566 = vrot.slane %v3565, 1
  %v3567 = vmax.f32 %v3565, %v3566
  %v3568 = vpack.i.bf16 %v3567, %v3567
  %v3570 = vsel %vm265, %v263, 4286644096
  %v3572 = vunpack.i.l.bf16 %v3570
  %v3573 = vunpack.i.h.bf16 %v3570
  %v3574 = vmax.f32 %v3572, %v3573
  %v3575 = vrot.slane %v3574, 4
  %v3576 = vmax.f32 %v3574, %v3575
  %v3577 = vrot.slane %v3576, 2
  %v3578 = vmax.f32 %v3576, %v3577
  %v3579 = vrot.slane %v3578, 1
  %v3580 = vmax.f32 %v3578, %v3579
  %v3581 = vpack.i.bf16 %v3580, %v3580
  %v3583 = vsel %vm265, %v264, 4286644096
  %v3585 = vunpack.i.l.bf16 %v3583
  %v3586 = vunpack.i.h.bf16 %v3583
  %v3587 = vmax.f32 %v3585, %v3586
  %v3588 = vrot.slane %v3587, 4
  %v3589 = vmax.f32 %v3587, %v3588
  %v3590 = vrot.slane %v3589, 2
  %v3591 = vmax.f32 %v3589, %v3590
  %v3592 = vrot.slane %v3591, 1
  %v3593 = vmax.f32 %v3591, %v3592
  %v3594 = vpack.i.bf16 %v3593, %v3593
  %vm3595 = vcmask 64512
  %v3597 = vsel %vm3595, %v279, 4286644096
  %v3600 = vsel %vm3595, %v383, 4286644096
  %v3602 = vmax.bf16 %v3597, %v3600
  %v3604 = vsel %vm3595, %v292, 4286644096
  %v3607 = vsel %vm3595, %v396, 4286644096
  %v3609 = vmax.bf16 %v3604, %v3607
  %v3611 = vsel %vm3595, %v305, 4286644096
  %v3614 = vsel %vm3595, %v409, 4286644096
  %v3616 = vmax.bf16 %v3611, %v3614
  %v3618 = vsel %vm3595, %v318, 4286644096
  %v3621 = vsel %vm3595, %v422, 4286644096
  %v3623 = vmax.bf16 %v3618, %v3621
  %v3625 = vsel %vm3595, %v331, 4286644096
  %v3628 = vsel %vm3595, %v435, 4286644096
  %v3630 = vmax.bf16 %v3625, %v3628
  %v3632 = vsel %vm3595, %v344, 4286644096
  %v3635 = vsel %vm3595, %v448, 4286644096
  %v3637 = vmax.bf16 %v3632, %v3635
  %v3639 = vsel %vm3595, %v357, 4286644096
  %v3642 = vsel %vm3595, %v461, 4286644096
  %v3644 = vmax.bf16 %v3639, %v3642
  %v3646 = vsel %vm3595, %v370, 4286644096
  %v3649 = vsel %vm3595, %v474, 4286644096
  %v3651 = vmax.bf16 %v3646, %v3649
  %v3653 = vsel %vm3595, %v487, 4286644096
  %v3656 = vsel %vm3595, %v591, 4286644096
  %v3658 = vmax.bf16 %v3653, %v3656
  %v3660 = vsel %vm3595, %v500, 4286644096
  %v3663 = vsel %vm3595, %v604, 4286644096
  %v3665 = vmax.bf16 %v3660, %v3663
  %v3667 = vsel %vm3595, %v513, 4286644096
  %v3670 = vsel %vm3595, %v617, 4286644096
  %v3672 = vmax.bf16 %v3667, %v3670
  %v3674 = vsel %vm3595, %v526, 4286644096
  %v3677 = vsel %vm3595, %v630, 4286644096
  %v3679 = vmax.bf16 %v3674, %v3677
  %v3681 = vsel %vm3595, %v539, 4286644096
  %v3684 = vsel %vm3595, %v643, 4286644096
  %v3686 = vmax.bf16 %v3681, %v3684
  %v3688 = vsel %vm3595, %v552, 4286644096
  %v3691 = vsel %vm3595, %v656, 4286644096
  %v3693 = vmax.bf16 %v3688, %v3691
  %v3695 = vsel %vm3595, %v565, 4286644096
  %v3698 = vsel %vm3595, %v669, 4286644096
  %v3700 = vmax.bf16 %v3695, %v3698
  %v3702 = vsel %vm3595, %v578, 4286644096
  %v3705 = vsel %vm3595, %v682, 4286644096
  %v3707 = vmax.bf16 %v3702, %v3705
  %v3709 = vsel %vm3595, %v695, 4286644096
  %v3712 = vsel %vm3595, %v799, 4286644096
  %v3714 = vmax.bf16 %v3709, %v3712
  %v3716 = vsel %vm3595, %v708, 4286644096
  %v3719 = vsel %vm3595, %v812, 4286644096
  %v3721 = vmax.bf16 %v3716, %v3719
  %v3723 = vsel %vm3595, %v721, 4286644096
  %v3726 = vsel %vm3595, %v825, 4286644096
  %v3728 = vmax.bf16 %v3723, %v3726
  %v3730 = vsel %vm3595, %v734, 4286644096
  %v3733 = vsel %vm3595, %v838, 4286644096
  %v3735 = vmax.bf16 %v3730, %v3733
  %v3737 = vsel %vm3595, %v747, 4286644096
  %v3740 = vsel %vm3595, %v851, 4286644096
  %v3742 = vmax.bf16 %v3737, %v3740
  %v3744 = vsel %vm3595, %v760, 4286644096
  %v3747 = vsel %vm3595, %v864, 4286644096
  %v3749 = vmax.bf16 %v3744, %v3747
  %v3751 = vsel %vm3595, %v773, 4286644096
  %v3754 = vsel %vm3595, %v877, 4286644096
  %v3756 = vmax.bf16 %v3751, %v3754
  %v3758 = vsel %vm3595, %v786, 4286644096
  %v3761 = vsel %vm3595, %v890, 4286644096
  %v3763 = vmax.bf16 %v3758, %v3761
  %v3765 = vsel %vm3595, %v903, 4286644096
  %v3768 = vsel %vm3595, %v1007, 4286644096
  %v3770 = vmax.bf16 %v3765, %v3768
  %v3772 = vsel %vm3595, %v916, 4286644096
  %v3775 = vsel %vm3595, %v1020, 4286644096
  %v3777 = vmax.bf16 %v3772, %v3775
  %v3779 = vsel %vm3595, %v929, 4286644096
  %v3782 = vsel %vm3595, %v1033, 4286644096
  %v3784 = vmax.bf16 %v3779, %v3782
  %v3786 = vsel %vm3595, %v942, 4286644096
  %v3789 = vsel %vm3595, %v1046, 4286644096
  %v3791 = vmax.bf16 %v3786, %v3789
  %v3793 = vsel %vm3595, %v955, 4286644096
  %v3796 = vsel %vm3595, %v1059, 4286644096
  %v3798 = vmax.bf16 %v3793, %v3796
  %v3800 = vsel %vm3595, %v968, 4286644096
  %v3803 = vsel %vm3595, %v1072, 4286644096
  %v3805 = vmax.bf16 %v3800, %v3803
  %v3807 = vsel %vm3595, %v981, 4286644096
  %v3810 = vsel %vm3595, %v1085, 4286644096
  %v3812 = vmax.bf16 %v3807, %v3810
  %v3814 = vsel %vm3595, %v994, 4286644096
  %v3817 = vsel %vm3595, %v1098, 4286644096
  %v3819 = vmax.bf16 %v3814, %v3817
  %v3821 = vsel %vm3595, %v1111, 4286644096
  %v3824 = vsel %vm3595, %v1215, 4286644096
  %v3826 = vmax.bf16 %v3821, %v3824
  %v3828 = vsel %vm3595, %v1124, 4286644096
  %v3831 = vsel %vm3595, %v1228, 4286644096
  %v3833 = vmax.bf16 %v3828, %v3831
  %v3835 = vsel %vm3595, %v1137, 4286644096
  %v3838 = vsel %vm3595, %v1241, 4286644096
  %v3840 = vmax.bf16 %v3835, %v3838
  %v3842 = vsel %vm3595, %v1150, 4286644096
  %v3845 = vsel %vm3595, %v1254, 4286644096
  %v3847 = vmax.bf16 %v3842, %v3845
  %v3849 = vsel %vm3595, %v1163, 4286644096
  %v3852 = vsel %vm3595, %v1267, 4286644096
  %v3854 = vmax.bf16 %v3849, %v3852
  %v3856 = vsel %vm3595, %v1176, 4286644096
  %v3859 = vsel %vm3595, %v1280, 4286644096
  %v3861 = vmax.bf16 %v3856, %v3859
  %v3863 = vsel %vm3595, %v1189, 4286644096
  %v3866 = vsel %vm3595, %v1293, 4286644096
  %v3868 = vmax.bf16 %v3863, %v3866
  %v3870 = vsel %vm3595, %v1202, 4286644096
  %v3873 = vsel %vm3595, %v1306, 4286644096
  %v3875 = vmax.bf16 %v3870, %v3873
  %v3877 = vsel %vm3595, %v1319, 4286644096
  %v3880 = vsel %vm3595, %v1423, 4286644096
  %v3882 = vmax.bf16 %v3877, %v3880
  %v3884 = vsel %vm3595, %v1332, 4286644096
  %v3887 = vsel %vm3595, %v1436, 4286644096
  %v3889 = vmax.bf16 %v3884, %v3887
  %v3891 = vsel %vm3595, %v1345, 4286644096
  %v3894 = vsel %vm3595, %v1449, 4286644096
  %v3896 = vmax.bf16 %v3891, %v3894
  %v3898 = vsel %vm3595, %v1358, 4286644096
  %v3901 = vsel %vm3595, %v1462, 4286644096
  %v3903 = vmax.bf16 %v3898, %v3901
  %v3905 = vsel %vm3595, %v1371, 4286644096
  %v3908 = vsel %vm3595, %v1475, 4286644096
  %v3910 = vmax.bf16 %v3905, %v3908
  %v3912 = vsel %vm3595, %v1384, 4286644096
  %v3915 = vsel %vm3595, %v1488, 4286644096
  %v3917 = vmax.bf16 %v3912, %v3915
  %v3919 = vsel %vm3595, %v1397, 4286644096
  %v3922 = vsel %vm3595, %v1501, 4286644096
  %v3924 = vmax.bf16 %v3919, %v3922
  %v3926 = vsel %vm3595, %v1410, 4286644096
  %v3929 = vsel %vm3595, %v1514, 4286644096
  %v3931 = vmax.bf16 %v3926, %v3929
  %v3933 = vsel %vm3595, %v1527, 4286644096
  %v3936 = vsel %vm3595, %v1631, 4286644096
  %v3938 = vmax.bf16 %v3933, %v3936
  %v3940 = vsel %vm3595, %v1540, 4286644096
  %v3943 = vsel %vm3595, %v1644, 4286644096
  %v3945 = vmax.bf16 %v3940, %v3943
  %v3947 = vsel %vm3595, %v1553, 4286644096
  %v3950 = vsel %vm3595, %v1657, 4286644096
  %v3952 = vmax.bf16 %v3947, %v3950
  %v3954 = vsel %vm3595, %v1566, 4286644096
  %v3957 = vsel %vm3595, %v1670, 4286644096
  %v3959 = vmax.bf16 %v3954, %v3957
  %v3961 = vsel %vm3595, %v1579, 4286644096
  %v3964 = vsel %vm3595, %v1683, 4286644096
  %v3966 = vmax.bf16 %v3961, %v3964
  %v3968 = vsel %vm3595, %v1592, 4286644096
  %v3971 = vsel %vm3595, %v1696, 4286644096
  %v3973 = vmax.bf16 %v3968, %v3971
  %v3975 = vsel %vm3595, %v1605, 4286644096
  %v3978 = vsel %vm3595, %v1709, 4286644096
  %v3980 = vmax.bf16 %v3975, %v3978
  %v3982 = vsel %vm3595, %v1618, 4286644096
  %v3985 = vsel %vm3595, %v1722, 4286644096
  %v3987 = vmax.bf16 %v3982, %v3985
  %v3989 = vsel %vm3595, %v1735, 4286644096
  %v3992 = vsel %vm3595, %v1839, 4286644096
  %v3994 = vmax.bf16 %v3989, %v3992
  %v3996 = vsel %vm3595, %v1748, 4286644096
  %v3999 = vsel %vm3595, %v1852, 4286644096
  %v4001 = vmax.bf16 %v3996, %v3999
  %v4003 = vsel %vm3595, %v1761, 4286644096
  %v4006 = vsel %vm3595, %v1865, 4286644096
  %v4008 = vmax.bf16 %v4003, %v4006
  %v4010 = vsel %vm3595, %v1774, 4286644096
  %v4013 = vsel %vm3595, %v1878, 4286644096
  %v4015 = vmax.bf16 %v4010, %v4013
  %v4017 = vsel %vm3595, %v1787, 4286644096
  %v4020 = vsel %vm3595, %v1891, 4286644096
  %v4022 = vmax.bf16 %v4017, %v4020
  %v4024 = vsel %vm3595, %v1800, 4286644096
  %v4027 = vsel %vm3595, %v1904, 4286644096
  %v4029 = vmax.bf16 %v4024, %v4027
  %v4031 = vsel %vm3595, %v1813, 4286644096
  %v4034 = vsel %vm3595, %v1917, 4286644096
  %v4036 = vmax.bf16 %v4031, %v4034
  %v4038 = vsel %vm3595, %v1826, 4286644096
  %v4041 = vsel %vm3595, %v1930, 4286644096
  %v4043 = vmax.bf16 %v4038, %v4041
  %v4045 = vsel %vm3595, %v1943, 4286644096
  %v4048 = vsel %vm3595, %v2047, 4286644096
  %v4050 = vmax.bf16 %v4045, %v4048
  %v4052 = vsel %vm3595, %v1956, 4286644096
  %v4055 = vsel %vm3595, %v2060, 4286644096
  %v4057 = vmax.bf16 %v4052, %v4055
  %v4059 = vsel %vm3595, %v1969, 4286644096
  %v4062 = vsel %vm3595, %v2073, 4286644096
  %v4064 = vmax.bf16 %v4059, %v4062
  %v4066 = vsel %vm3595, %v1982, 4286644096
  %v4069 = vsel %vm3595, %v2086, 4286644096
  %v4071 = vmax.bf16 %v4066, %v4069
  %v4073 = vsel %vm3595, %v1995, 4286644096
  %v4076 = vsel %vm3595, %v2099, 4286644096
  %v4078 = vmax.bf16 %v4073, %v4076
  %v4080 = vsel %vm3595, %v2008, 4286644096
  %v4083 = vsel %vm3595, %v2112, 4286644096
  %v4085 = vmax.bf16 %v4080, %v4083
  %v4087 = vsel %vm3595, %v2021, 4286644096
  %v4090 = vsel %vm3595, %v2125, 4286644096
  %v4092 = vmax.bf16 %v4087, %v4090
  %v4094 = vsel %vm3595, %v2034, 4286644096
  %v4097 = vsel %vm3595, %v2138, 4286644096
  %v4099 = vmax.bf16 %v4094, %v4097
  %v4101 = vsel %vm3595, %v2151, 4286644096
  %v4104 = vsel %vm3595, %v2255, 4286644096
  %v4106 = vmax.bf16 %v4101, %v4104
  %v4108 = vsel %vm3595, %v2164, 4286644096
  %v4111 = vsel %vm3595, %v2268, 4286644096
  %v4113 = vmax.bf16 %v4108, %v4111
  %v4115 = vsel %vm3595, %v2177, 4286644096
  %v4118 = vsel %vm3595, %v2281, 4286644096
  %v4120 = vmax.bf16 %v4115, %v4118
  %v4122 = vsel %vm3595, %v2190, 4286644096
  %v4125 = vsel %vm3595, %v2294, 4286644096
  %v4127 = vmax.bf16 %v4122, %v4125
  %v4129 = vsel %vm3595, %v2203, 4286644096
  %v4132 = vsel %vm3595, %v2307, 4286644096
  %v4134 = vmax.bf16 %v4129, %v4132
  %v4136 = vsel %vm3595, %v2216, 4286644096
  %v4139 = vsel %vm3595, %v2320, 4286644096
  %v4141 = vmax.bf16 %v4136, %v4139
  %v4143 = vsel %vm3595, %v2229, 4286644096
  %v4146 = vsel %vm3595, %v2333, 4286644096
  %v4148 = vmax.bf16 %v4143, %v4146
  %v4150 = vsel %vm3595, %v2242, 4286644096
  %v4153 = vsel %vm3595, %v2346, 4286644096
  %v4155 = vmax.bf16 %v4150, %v4153
  %v4157 = vsel %vm3595, %v2359, 4286644096
  %v4160 = vsel %vm3595, %v2463, 4286644096
  %v4162 = vmax.bf16 %v4157, %v4160
  %v4164 = vsel %vm3595, %v2372, 4286644096
  %v4167 = vsel %vm3595, %v2476, 4286644096
  %v4169 = vmax.bf16 %v4164, %v4167
  %v4171 = vsel %vm3595, %v2385, 4286644096
  %v4174 = vsel %vm3595, %v2489, 4286644096
  %v4176 = vmax.bf16 %v4171, %v4174
  %v4178 = vsel %vm3595, %v2398, 4286644096
  %v4181 = vsel %vm3595, %v2502, 4286644096
  %v4183 = vmax.bf16 %v4178, %v4181
  %v4185 = vsel %vm3595, %v2411, 4286644096
  %v4188 = vsel %vm3595, %v2515, 4286644096
  %v4190 = vmax.bf16 %v4185, %v4188
  %v4192 = vsel %vm3595, %v2424, 4286644096
  %v4195 = vsel %vm3595, %v2528, 4286644096
  %v4197 = vmax.bf16 %v4192, %v4195
  %v4199 = vsel %vm3595, %v2437, 4286644096
  %v4202 = vsel %vm3595, %v2541, 4286644096
  %v4204 = vmax.bf16 %v4199, %v4202
  %v4206 = vsel %vm3595, %v2450, 4286644096
  %v4209 = vsel %vm3595, %v2554, 4286644096
  %v4211 = vmax.bf16 %v4206, %v4209
  %v4213 = vsel %vm3595, %v2567, 4286644096
  %v4216 = vsel %vm3595, %v2671, 4286644096
  %v4218 = vmax.bf16 %v4213, %v4216
  %v4220 = vsel %vm3595, %v2580, 4286644096
  %v4223 = vsel %vm3595, %v2684, 4286644096
  %v4225 = vmax.bf16 %v4220, %v4223
  %v4227 = vsel %vm3595, %v2593, 4286644096
  %v4230 = vsel %vm3595, %v2697, 4286644096
  %v4232 = vmax.bf16 %v4227, %v4230
  %v4234 = vsel %vm3595, %v2606, 4286644096
  %v4237 = vsel %vm3595, %v2710, 4286644096
  %v4239 = vmax.bf16 %v4234, %v4237
  %v4241 = vsel %vm3595, %v2619, 4286644096
  %v4244 = vsel %vm3595, %v2723, 4286644096
  %v4246 = vmax.bf16 %v4241, %v4244
  %v4248 = vsel %vm3595, %v2632, 4286644096
  %v4251 = vsel %vm3595, %v2736, 4286644096
  %v4253 = vmax.bf16 %v4248, %v4251
  %v4255 = vsel %vm3595, %v2645, 4286644096
  %v4258 = vsel %vm3595, %v2749, 4286644096
  %v4260 = vmax.bf16 %v4255, %v4258
  %v4262 = vsel %vm3595, %v2658, 4286644096
  %v4265 = vsel %vm3595, %v2762, 4286644096
  %v4267 = vmax.bf16 %v4262, %v4265
  %v4269 = vsel %vm3595, %v2775, 4286644096
  %v4272 = vsel %vm3595, %v2879, 4286644096
  %v4274 = vmax.bf16 %v4269, %v4272
  %v4276 = vsel %vm3595, %v2788, 4286644096
  %v4279 = vsel %vm3595, %v2892, 4286644096
  %v4281 = vmax.bf16 %v4276, %v4279
  %v4283 = vsel %vm3595, %v2801, 4286644096
  %v4286 = vsel %vm3595, %v2905, 4286644096
  %v4288 = vmax.bf16 %v4283, %v4286
  %v4290 = vsel %vm3595, %v2814, 4286644096
  %v4293 = vsel %vm3595, %v2918, 4286644096
  %v4295 = vmax.bf16 %v4290, %v4293
  %v4297 = vsel %vm3595, %v2827, 4286644096
  %v4300 = vsel %vm3595, %v2931, 4286644096
  %v4302 = vmax.bf16 %v4297, %v4300
  %v4304 = vsel %vm3595, %v2840, 4286644096
  %v4307 = vsel %vm3595, %v2944, 4286644096
  %v4309 = vmax.bf16 %v4304, %v4307
  %v4311 = vsel %vm3595, %v2853, 4286644096
  %v4314 = vsel %vm3595, %v2957, 4286644096
  %v4316 = vmax.bf16 %v4311, %v4314
  %v4318 = vsel %vm3595, %v2866, 4286644096
  %v4321 = vsel %vm3595, %v2970, 4286644096
  %v4323 = vmax.bf16 %v4318, %v4321
  %v4325 = vsel %vm3595, %v2983, 4286644096
  %v4328 = vsel %vm3595, %v3087, 4286644096
  %v4330 = vmax.bf16 %v4325, %v4328
  %v4332 = vsel %vm3595, %v2996, 4286644096
  %v4335 = vsel %vm3595, %v3100, 4286644096
  %v4337 = vmax.bf16 %v4332, %v4335
  %v4339 = vsel %vm3595, %v3009, 4286644096
  %v4342 = vsel %vm3595, %v3113, 4286644096
  %v4344 = vmax.bf16 %v4339, %v4342
  %v4346 = vsel %vm3595, %v3022, 4286644096
  %v4349 = vsel %vm3595, %v3126, 4286644096
  %v4351 = vmax.bf16 %v4346, %v4349
  %v4353 = vsel %vm3595, %v3035, 4286644096
  %v4356 = vsel %vm3595, %v3139, 4286644096
  %v4358 = vmax.bf16 %v4353, %v4356
  %v4360 = vsel %vm3595, %v3048, 4286644096
  %v4363 = vsel %vm3595, %v3152, 4286644096
  %v4365 = vmax.bf16 %v4360, %v4363
  %v4367 = vsel %vm3595, %v3061, 4286644096
  %v4370 = vsel %vm3595, %v3165, 4286644096
  %v4372 = vmax.bf16 %v4367, %v4370
  %v4374 = vsel %vm3595, %v3074, 4286644096
  %v4377 = vsel %vm3595, %v3178, 4286644096
  %v4379 = vmax.bf16 %v4374, %v4377
  %v4381 = vsel %vm3595, %v3191, 4286644096
  %v4384 = vsel %vm3595, %v3295, 4286644096
  %v4386 = vmax.bf16 %v4381, %v4384
  %v4388 = vsel %vm3595, %v3204, 4286644096
  %v4391 = vsel %vm3595, %v3308, 4286644096
  %v4393 = vmax.bf16 %v4388, %v4391
  %v4395 = vsel %vm3595, %v3217, 4286644096
  %v4398 = vsel %vm3595, %v3321, 4286644096
  %v4400 = vmax.bf16 %v4395, %v4398
  %v4402 = vsel %vm3595, %v3230, 4286644096
  %v4405 = vsel %vm3595, %v3334, 4286644096
  %v4407 = vmax.bf16 %v4402, %v4405
  %v4409 = vsel %vm3595, %v3243, 4286644096
  %v4412 = vsel %vm3595, %v3347, 4286644096
  %v4414 = vmax.bf16 %v4409, %v4412
  %v4416 = vsel %vm3595, %v3256, 4286644096
  %v4419 = vsel %vm3595, %v3360, 4286644096
  %v4421 = vmax.bf16 %v4416, %v4419
  %v4423 = vsel %vm3595, %v3269, 4286644096
  %v4426 = vsel %vm3595, %v3373, 4286644096
  %v4428 = vmax.bf16 %v4423, %v4426
  %v4430 = vsel %vm3595, %v3282, 4286644096
  %v4433 = vsel %vm3595, %v3386, 4286644096
  %v4435 = vmax.bf16 %v4430, %v4433
  %v4437 = vsel %vm3595, %v3399, 4286644096
  %v4440 = vsel %vm3595, %v3503, 4286644096
  %v4442 = vmax.bf16 %v4437, %v4440
  %v4444 = vsel %vm3595, %v3412, 4286644096
  %v4447 = vsel %vm3595, %v3516, 4286644096
  %v4449 = vmax.bf16 %v4444, %v4447
  %v4451 = vsel %vm3595, %v3425, 4286644096
  %v4454 = vsel %vm3595, %v3529, 4286644096
  %v4456 = vmax.bf16 %v4451, %v4454
  %v4458 = vsel %vm3595, %v3438, 4286644096
  %v4461 = vsel %vm3595, %v3542, 4286644096
  %v4463 = vmax.bf16 %v4458, %v4461
  %v4465 = vsel %vm3595, %v3451, 4286644096
  %v4468 = vsel %vm3595, %v3555, 4286644096
  %v4470 = vmax.bf16 %v4465, %v4468
  %v4472 = vsel %vm3595, %v3464, 4286644096
  %v4475 = vsel %vm3595, %v3568, 4286644096
  %v4477 = vmax.bf16 %v4472, %v4475
  %v4479 = vsel %vm3595, %v3477, 4286644096
  %v4482 = vsel %vm3595, %v3581, 4286644096
  %v4484 = vmax.bf16 %v4479, %v4482
  %v4486 = vsel %vm3595, %v3490, 4286644096
  %v4489 = vsel %vm3595, %v3594, 4286644096
  %v4491 = vmax.bf16 %v4486, %v4489
  %v4620 = vunpack.c.l.b16 %v3602
  %v4621 = vunpack.c.l.b16 %v3609
  %v4622 = vunpack.c.l.b16 %v3616
  %v4623 = vunpack.c.l.b16 %v3623
  %v4624 = vunpack.c.l.b16 %v3630
  %v4625 = vunpack.c.l.b16 %v3637
  %v4626 = vunpack.c.l.b16 %v3644
  %v4627 = vunpack.c.l.b16 %v3651
  %v4628 = vunpack.c.l.b16 %v3658
  %v4629 = vunpack.c.l.b16 %v3665
  %v4630 = vunpack.c.l.b16 %v3672
  %v4631 = vunpack.c.l.b16 %v3679
  %v4632 = vunpack.c.l.b16 %v3686
  %v4633 = vunpack.c.l.b16 %v3693
  %v4634 = vunpack.c.l.b16 %v3700
  %v4635 = vunpack.c.l.b16 %v3707
  %v4636 = vunpack.c.l.b16 %v3714
  %v4637 = vunpack.c.l.b16 %v3721
  %v4638 = vunpack.c.l.b16 %v3728
  %v4639 = vunpack.c.l.b16 %v3735
  %v4640 = vunpack.c.l.b16 %v3742
  %v4641 = vunpack.c.l.b16 %v3749
  %v4642 = vunpack.c.l.b16 %v3756
  %v4643 = vunpack.c.l.b16 %v3763
  %v4644 = vunpack.c.l.b16 %v3770
  %v4645 = vunpack.c.l.b16 %v3777
  %v4646 = vunpack.c.l.b16 %v3784
  %v4647 = vunpack.c.l.b16 %v3791
  %v4648 = vunpack.c.l.b16 %v3798
  %v4649 = vunpack.c.l.b16 %v3805
  %v4650 = vunpack.c.l.b16 %v3812
  %v4651 = vunpack.c.l.b16 %v3819
  %v4652 = vunpack.c.l.b16 %v3826
  %v4653 = vunpack.c.l.b16 %v3833
  %v4654 = vunpack.c.l.b16 %v3840
  %v4655 = vunpack.c.l.b16 %v3847
  %v4656 = vunpack.c.l.b16 %v3854
  %v4657 = vunpack.c.l.b16 %v3861
  %v4658 = vunpack.c.l.b16 %v3868
  %v4659 = vunpack.c.l.b16 %v3875
  %v4660 = vunpack.c.l.b16 %v3882
  %v4661 = vunpack.c.l.b16 %v3889
  %v4662 = vunpack.c.l.b16 %v3896
  %v4663 = vunpack.c.l.b16 %v3903
  %v4664 = vunpack.c.l.b16 %v3910
  %v4665 = vunpack.c.l.b16 %v3917
  %v4666 = vunpack.c.l.b16 %v3924
  %v4667 = vunpack.c.l.b16 %v3931
  %v4668 = vunpack.c.l.b16 %v3938
  %v4669 = vunpack.c.l.b16 %v3945
  %v4670 = vunpack.c.l.b16 %v3952
  %v4671 = vunpack.c.l.b16 %v3959
  %v4672 = vunpack.c.l.b16 %v3966
  %v4673 = vunpack.c.l.b16 %v3973
  %v4674 = vunpack.c.l.b16 %v3980
  %v4675 = vunpack.c.l.b16 %v3987
  %v4676 = vunpack.c.l.b16 %v3994
  %v4677 = vunpack.c.l.b16 %v4001
  %v4678 = vunpack.c.l.b16 %v4008
  %v4679 = vunpack.c.l.b16 %v4015
  %v4680 = vunpack.c.l.b16 %v4022
  %v4681 = vunpack.c.l.b16 %v4029
  %v4682 = vunpack.c.l.b16 %v4036
  %v4683 = vunpack.c.l.b16 %v4043
  %v4684 = vunpack.c.l.b16 %v4050
  %v4685 = vunpack.c.l.b16 %v4057
  %v4686 = vunpack.c.l.b16 %v4064
  %v4687 = vunpack.c.l.b16 %v4071
  %v4688 = vunpack.c.l.b16 %v4078
  %v4689 = vunpack.c.l.b16 %v4085
  %v4690 = vunpack.c.l.b16 %v4092
  %v4691 = vunpack.c.l.b16 %v4099
  %v4692 = vunpack.c.l.b16 %v4106
  %v4693 = vunpack.c.l.b16 %v4113
  %v4694 = vunpack.c.l.b16 %v4120
  %v4695 = vunpack.c.l.b16 %v4127
  %v4696 = vunpack.c.l.b16 %v4134
  %v4697 = vunpack.c.l.b16 %v4141
  %v4698 = vunpack.c.l.b16 %v4148
  %v4699 = vunpack.c.l.b16 %v4155
  %v4700 = vunpack.c.l.b16 %v4162
  %v4701 = vunpack.c.l.b16 %v4169
  %v4702 = vunpack.c.l.b16 %v4176
  %v4703 = vunpack.c.l.b16 %v4183
  %v4704 = vunpack.c.l.b16 %v4190
  %v4705 = vunpack.c.l.b16 %v4197
  %v4706 = vunpack.c.l.b16 %v4204
  %v4707 = vunpack.c.l.b16 %v4211
  %v4708 = vunpack.c.l.b16 %v4218
  %v4709 = vunpack.c.l.b16 %v4225
  %v4710 = vunpack.c.l.b16 %v4232
  %v4711 = vunpack.c.l.b16 %v4239
  %v4712 = vunpack.c.l.b16 %v4246
  %v4713 = vunpack.c.l.b16 %v4253
  %v4714 = vunpack.c.l.b16 %v4260
  %v4715 = vunpack.c.l.b16 %v4267
  %v4716 = vunpack.c.l.b16 %v4274
  %v4717 = vunpack.c.l.b16 %v4281
  %v4718 = vunpack.c.l.b16 %v4288
  %v4719 = vunpack.c.l.b16 %v4295
  %v4720 = vunpack.c.l.b16 %v4302
  %v4721 = vunpack.c.l.b16 %v4309
  %v4722 = vunpack.c.l.b16 %v4316
  %v4723 = vunpack.c.l.b16 %v4323
  %v4724 = vunpack.c.l.b16 %v4330
  %v4725 = vunpack.c.l.b16 %v4337
  %v4726 = vunpack.c.l.b16 %v4344
  %v4727 = vunpack.c.l.b16 %v4351
  %v4728 = vunpack.c.l.b16 %v4358
  %v4729 = vunpack.c.l.b16 %v4365
  %v4730 = vunpack.c.l.b16 %v4372
  %v4731 = vunpack.c.l.b16 %v4379
  %v4732 = vunpack.c.l.b16 %v4386
  %v4733 = vunpack.c.l.b16 %v4393
  %v4734 = vunpack.c.l.b16 %v4400
  %v4735 = vunpack.c.l.b16 %v4407
  %v4736 = vunpack.c.l.b16 %v4414
  %v4737 = vunpack.c.l.b16 %v4421
  %v4738 = vunpack.c.l.b16 %v4428
  %v4739 = vunpack.c.l.b16 %v4435
  %v4740 = vunpack.c.l.b16 %v4442
  %v4741 = vunpack.c.l.b16 %v4449
  %v4742 = vunpack.c.l.b16 %v4456
  %v4743 = vunpack.c.l.b16 %v4463
  %v4744 = vunpack.c.l.b16 %v4470
  %v4745 = vunpack.c.l.b16 %v4477
  %v4746 = vunpack.c.l.b16 %v4484
  %v4747 = vunpack.c.l.b16 %v4491
  %v4748 = vpack.c.b16 %v4620, %v4620
  %v4749 = vpack.c.b16 %v4621, %v4621
  %v4750 = vpack.c.b16 %v4622, %v4622
  %v4751 = vpack.c.b16 %v4623, %v4623
  %v4752 = vpack.c.b16 %v4624, %v4624
  %v4753 = vpack.c.b16 %v4625, %v4625
  %v4754 = vpack.c.b16 %v4626, %v4626
  %v4755 = vpack.c.b16 %v4627, %v4627
  %v4756 = vpack.c.b16 %v4628, %v4628
  %v4757 = vpack.c.b16 %v4629, %v4629
  %v4758 = vpack.c.b16 %v4630, %v4630
  %v4759 = vpack.c.b16 %v4631, %v4631
  %v4760 = vpack.c.b16 %v4632, %v4632
  %v4761 = vpack.c.b16 %v4633, %v4633
  %v4762 = vpack.c.b16 %v4634, %v4634
  %v4763 = vpack.c.b16 %v4635, %v4635
  %v4764 = vpack.c.b16 %v4636, %v4636
  %v4765 = vpack.c.b16 %v4637, %v4637
  %v4766 = vpack.c.b16 %v4638, %v4638
  %v4767 = vpack.c.b16 %v4639, %v4639
  %v4768 = vpack.c.b16 %v4640, %v4640
  %v4769 = vpack.c.b16 %v4641, %v4641
  %v4770 = vpack.c.b16 %v4642, %v4642
  %v4771 = vpack.c.b16 %v4643, %v4643
  %v4772 = vpack.c.b16 %v4644, %v4644
  %v4773 = vpack.c.b16 %v4645, %v4645
  %v4774 = vpack.c.b16 %v4646, %v4646
  %v4775 = vpack.c.b16 %v4647, %v4647
  %v4776 = vpack.c.b16 %v4648, %v4648
  %v4777 = vpack.c.b16 %v4649, %v4649
  %v4778 = vpack.c.b16 %v4650, %v4650
  %v4779 = vpack.c.b16 %v4651, %v4651
  %v4780 = vpack.c.b16 %v4652, %v4652
  %v4781 = vpack.c.b16 %v4653, %v4653
  %v4782 = vpack.c.b16 %v4654, %v4654
  %v4783 = vpack.c.b16 %v4655, %v4655
  %v4784 = vpack.c.b16 %v4656, %v4656
  %v4785 = vpack.c.b16 %v4657, %v4657
  %v4786 = vpack.c.b16 %v4658, %v4658
  %v4787 = vpack.c.b16 %v4659, %v4659
  %v4788 = vpack.c.b16 %v4660, %v4660
  %v4789 = vpack.c.b16 %v4661, %v4661
  %v4790 = vpack.c.b16 %v4662, %v4662
  %v4791 = vpack.c.b16 %v4663, %v4663
  %v4792 = vpack.c.b16 %v4664, %v4664
  %v4793 = vpack.c.b16 %v4665, %v4665
  %v4794 = vpack.c.b16 %v4666, %v4666
  %v4795 = vpack.c.b16 %v4667, %v4667
  %v4796 = vpack.c.b16 %v4668, %v4668
  %v4797 = vpack.c.b16 %v4669, %v4669
  %v4798 = vpack.c.b16 %v4670, %v4670
  %v4799 = vpack.c.b16 %v4671, %v4671
  %v4800 = vpack.c.b16 %v4672, %v4672
  %v4801 = vpack.c.b16 %v4673, %v4673
  %v4802 = vpack.c.b16 %v4674, %v4674
  %v4803 = vpack.c.b16 %v4675, %v4675
  %v4804 = vpack.c.b16 %v4676, %v4676
  %v4805 = vpack.c.b16 %v4677, %v4677
  %v4806 = vpack.c.b16 %v4678, %v4678
  %v4807 = vpack.c.b16 %v4679, %v4679
  %v4808 = vpack.c.b16 %v4680, %v4680
  %v4809 = vpack.c.b16 %v4681, %v4681
  %v4810 = vpack.c.b16 %v4682, %v4682
  %v4811 = vpack.c.b16 %v4683, %v4683
  %v4812 = vpack.c.b16 %v4684, %v4684
  %v4813 = vpack.c.b16 %v4685, %v4685
  %v4814 = vpack.c.b16 %v4686, %v4686
  %v4815 = vpack.c.b16 %v4687, %v4687
  %v4816 = vpack.c.b16 %v4688, %v4688
  %v4817 = vpack.c.b16 %v4689, %v4689
  %v4818 = vpack.c.b16 %v4690, %v4690
  %v4819 = vpack.c.b16 %v4691, %v4691
  %v4820 = vpack.c.b16 %v4692, %v4692
  %v4821 = vpack.c.b16 %v4693, %v4693
  %v4822 = vpack.c.b16 %v4694, %v4694
  %v4823 = vpack.c.b16 %v4695, %v4695
  %v4824 = vpack.c.b16 %v4696, %v4696
  %v4825 = vpack.c.b16 %v4697, %v4697
  %v4826 = vpack.c.b16 %v4698, %v4698
  %v4827 = vpack.c.b16 %v4699, %v4699
  %v4828 = vpack.c.b16 %v4700, %v4700
  %v4829 = vpack.c.b16 %v4701, %v4701
  %v4830 = vpack.c.b16 %v4702, %v4702
  %v4831 = vpack.c.b16 %v4703, %v4703
  %v4832 = vpack.c.b16 %v4704, %v4704
  %v4833 = vpack.c.b16 %v4705, %v4705
  %v4834 = vpack.c.b16 %v4706, %v4706
  %v4835 = vpack.c.b16 %v4707, %v4707
  %v4836 = vpack.c.b16 %v4708, %v4708
  %v4837 = vpack.c.b16 %v4709, %v4709
  %v4838 = vpack.c.b16 %v4710, %v4710
  %v4839 = vpack.c.b16 %v4711, %v4711
  %v4840 = vpack.c.b16 %v4712, %v4712
  %v4841 = vpack.c.b16 %v4713, %v4713
  %v4842 = vpack.c.b16 %v4714, %v4714
  %v4843 = vpack.c.b16 %v4715, %v4715
  %v4844 = vpack.c.b16 %v4716, %v4716
  %v4845 = vpack.c.b16 %v4717, %v4717
  %v4846 = vpack.c.b16 %v4718, %v4718
  %v4847 = vpack.c.b16 %v4719, %v4719
  %v4848 = vpack.c.b16 %v4720, %v4720
  %v4849 = vpack.c.b16 %v4721, %v4721
  %v4850 = vpack.c.b16 %v4722, %v4722
  %v4851 = vpack.c.b16 %v4723, %v4723
  %v4852 = vpack.c.b16 %v4724, %v4724
  %v4853 = vpack.c.b16 %v4725, %v4725
  %v4854 = vpack.c.b16 %v4726, %v4726
  %v4855 = vpack.c.b16 %v4727, %v4727
  %v4856 = vpack.c.b16 %v4728, %v4728
  %v4857 = vpack.c.b16 %v4729, %v4729
  %v4858 = vpack.c.b16 %v4730, %v4730
  %v4859 = vpack.c.b16 %v4731, %v4731
  %v4860 = vpack.c.b16 %v4732, %v4732
  %v4861 = vpack.c.b16 %v4733, %v4733
  %v4862 = vpack.c.b16 %v4734, %v4734
  %v4863 = vpack.c.b16 %v4735, %v4735
  %v4864 = vpack.c.b16 %v4736, %v4736
  %v4865 = vpack.c.b16 %v4737, %v4737
  %v4866 = vpack.c.b16 %v4738, %v4738
  %v4867 = vpack.c.b16 %v4739, %v4739
  %v4868 = vpack.c.b16 %v4740, %v4740
  %v4869 = vpack.c.b16 %v4741, %v4741
  %v4870 = vpack.c.b16 %v4742, %v4742
  %v4871 = vpack.c.b16 %v4743, %v4743
  %v4872 = vpack.c.b16 %v4744, %v4744
  %v4873 = vpack.c.b16 %v4745, %v4745
  %v4874 = vpack.c.b16 %v4746, %v4746
  %v4875 = vpack.c.b16 %v4747, %v4747
  %v4876 = vunpack.c.l.b16 %v4748
  %v4877 = vunpack.c.l.b16 %v4749
  %v4878 = vunpack.c.l.b16 %v4750
  %v4879 = vunpack.c.l.b16 %v4751
  %v4880 = vunpack.c.l.b16 %v4752
  %v4881 = vunpack.c.l.b16 %v4753
  %v4882 = vunpack.c.l.b16 %v4754
  %v4883 = vunpack.c.l.b16 %v4755
  %v4884 = vunpack.c.l.b16 %v4756
  %v4885 = vunpack.c.l.b16 %v4757
  %v4886 = vunpack.c.l.b16 %v4758
  %v4887 = vunpack.c.l.b16 %v4759
  %v4888 = vunpack.c.l.b16 %v4760
  %v4889 = vunpack.c.l.b16 %v4761
  %v4890 = vunpack.c.l.b16 %v4762
  %v4891 = vunpack.c.l.b16 %v4763
  %v4892 = vunpack.c.l.b16 %v4764
  %v4893 = vunpack.c.l.b16 %v4765
  %v4894 = vunpack.c.l.b16 %v4766
  %v4895 = vunpack.c.l.b16 %v4767
  %v4896 = vunpack.c.l.b16 %v4768
  %v4897 = vunpack.c.l.b16 %v4769
  %v4898 = vunpack.c.l.b16 %v4770
  %v4899 = vunpack.c.l.b16 %v4771
  %v4900 = vunpack.c.l.b16 %v4772
  %v4901 = vunpack.c.l.b16 %v4773
  %v4902 = vunpack.c.l.b16 %v4774
  %v4903 = vunpack.c.l.b16 %v4775
  %v4904 = vunpack.c.l.b16 %v4776
  %v4905 = vunpack.c.l.b16 %v4777
  %v4906 = vunpack.c.l.b16 %v4778
  %v4907 = vunpack.c.l.b16 %v4779
  %v4908 = vunpack.c.l.b16 %v4780
  %v4909 = vunpack.c.l.b16 %v4781
  %v4910 = vunpack.c.l.b16 %v4782
  %v4911 = vunpack.c.l.b16 %v4783
  %v4912 = vunpack.c.l.b16 %v4784
  %v4913 = vunpack.c.l.b16 %v4785
  %v4914 = vunpack.c.l.b16 %v4786
  %v4915 = vunpack.c.l.b16 %v4787
  %v4916 = vunpack.c.l.b16 %v4788
  %v4917 = vunpack.c.l.b16 %v4789
  %v4918 = vunpack.c.l.b16 %v4790
  %v4919 = vunpack.c.l.b16 %v4791
  %v4920 = vunpack.c.l.b16 %v4792
  %v4921 = vunpack.c.l.b16 %v4793
  %v4922 = vunpack.c.l.b16 %v4794
  %v4923 = vunpack.c.l.b16 %v4795
  %v4924 = vunpack.c.l.b16 %v4796
  %v4925 = vunpack.c.l.b16 %v4797
  %v4926 = vunpack.c.l.b16 %v4798
  %v4927 = vunpack.c.l.b16 %v4799
  %v4928 = vunpack.c.l.b16 %v4800
  %v4929 = vunpack.c.l.b16 %v4801
  %v4930 = vunpack.c.l.b16 %v4802
  %v4931 = vunpack.c.l.b16 %v4803
  %v4932 = vunpack.c.l.b16 %v4804
  %v4933 = vunpack.c.l.b16 %v4805
  %v4934 = vunpack.c.l.b16 %v4806
  %v4935 = vunpack.c.l.b16 %v4807
  %v4936 = vunpack.c.l.b16 %v4808
  %v4937 = vunpack.c.l.b16 %v4809
  %v4938 = vunpack.c.l.b16 %v4810
  %v4939 = vunpack.c.l.b16 %v4811
  %v4940 = vunpack.c.l.b16 %v4812
  %v4941 = vunpack.c.l.b16 %v4813
  %v4942 = vunpack.c.l.b16 %v4814
  %v4943 = vunpack.c.l.b16 %v4815
  %v4944 = vunpack.c.l.b16 %v4816
  %v4945 = vunpack.c.l.b16 %v4817
  %v4946 = vunpack.c.l.b16 %v4818
  %v4947 = vunpack.c.l.b16 %v4819
  %v4948 = vunpack.c.l.b16 %v4820
  %v4949 = vunpack.c.l.b16 %v4821
  %v4950 = vunpack.c.l.b16 %v4822
  %v4951 = vunpack.c.l.b16 %v4823
  %v4952 = vunpack.c.l.b16 %v4824
  %v4953 = vunpack.c.l.b16 %v4825
  %v4954 = vunpack.c.l.b16 %v4826
  %v4955 = vunpack.c.l.b16 %v4827
  %v4956 = vunpack.c.l.b16 %v4828
  %v4957 = vunpack.c.l.b16 %v4829
  %v4958 = vunpack.c.l.b16 %v4830
  %v4959 = vunpack.c.l.b16 %v4831
  %v4960 = vunpack.c.l.b16 %v4832
  %v4961 = vunpack.c.l.b16 %v4833
  %v4962 = vunpack.c.l.b16 %v4834
  %v4963 = vunpack.c.l.b16 %v4835
  %v4964 = vunpack.c.l.b16 %v4836
  %v4965 = vunpack.c.l.b16 %v4837
  %v4966 = vunpack.c.l.b16 %v4838
  %v4967 = vunpack.c.l.b16 %v4839
  %v4968 = vunpack.c.l.b16 %v4840
  %v4969 = vunpack.c.l.b16 %v4841
  %v4970 = vunpack.c.l.b16 %v4842
  %v4971 = vunpack.c.l.b16 %v4843
  %v4972 = vunpack.c.l.b16 %v4844
  %v4973 = vunpack.c.l.b16 %v4845
  %v4974 = vunpack.c.l.b16 %v4846
  %v4975 = vunpack.c.l.b16 %v4847
  %v4976 = vunpack.c.l.b16 %v4848
  %v4977 = vunpack.c.l.b16 %v4849
  %v4978 = vunpack.c.l.b16 %v4850
  %v4979 = vunpack.c.l.b16 %v4851
  %v4980 = vunpack.c.l.b16 %v4852
  %v4981 = vunpack.c.l.b16 %v4853
  %v4982 = vunpack.c.l.b16 %v4854
  %v4983 = vunpack.c.l.b16 %v4855
  %v4984 = vunpack.c.l.b16 %v4856
  %v4985 = vunpack.c.l.b16 %v4857
  %v4986 = vunpack.c.l.b16 %v4858
  %v4987 = vunpack.c.l.b16 %v4859
  %v4988 = vunpack.c.l.b16 %v4860
  %v4989 = vunpack.c.l.b16 %v4861
  %v4990 = vunpack.c.l.b16 %v4862
  %v4991 = vunpack.c.l.b16 %v4863
  %v4992 = vunpack.c.l.b16 %v4864
  %v4993 = vunpack.c.l.b16 %v4865
  %v4994 = vunpack.c.l.b16 %v4866
  %v4995 = vunpack.c.l.b16 %v4867
  %v4996 = vunpack.c.l.b16 %v4868
  %v4997 = vunpack.c.l.b16 %v4869
  %v4998 = vunpack.c.l.b16 %v4870
  %v4999 = vunpack.c.l.b16 %v4871
  %v5000 = vunpack.c.l.b16 %v4872
  %v5001 = vunpack.c.l.b16 %v4873
  %v5002 = vunpack.c.l.b16 %v4874
  %v5003 = vunpack.c.l.b16 %v4875
  %vm5004 = vcmask 1041409
  %v5005 = vsel %vm5004, %v4877, %v4876
  %vm5006 = vcmask 1042434
  %v5007 = vsel %vm5006, %v4878, %v5005
  %vm5008 = vcmask 1043459
  %v5009 = vsel %vm5008, %v4879, %v5007
  %vm5010 = vcmask 1044484
  %v5011 = vsel %vm5010, %v4880, %v5009
  %vm5012 = vcmask 1045509
  %v5013 = vsel %vm5012, %v4881, %v5011
  %vm5014 = vcmask 1046534
  %v5015 = vsel %vm5014, %v4882, %v5013
  %vm5016 = vcmask 1047559
  %v5017 = vsel %vm5016, %v4883, %v5015
  %v5018 = vsel %vm5004, %v4885, %v4884
  %v5019 = vsel %vm5006, %v4886, %v5018
  %v5020 = vsel %vm5008, %v4887, %v5019
  %v5021 = vsel %vm5010, %v4888, %v5020
  %v5022 = vsel %vm5012, %v4889, %v5021
  %v5023 = vsel %vm5014, %v4890, %v5022
  %v5024 = vsel %vm5016, %v4891, %v5023
  %v5025 = vsel %vm5004, %v4893, %v4892
  %v5026 = vsel %vm5006, %v4894, %v5025
  %v5027 = vsel %vm5008, %v4895, %v5026
  %v5028 = vsel %vm5010, %v4896, %v5027
  %v5029 = vsel %vm5012, %v4897, %v5028
  %v5030 = vsel %vm5014, %v4898, %v5029
  %v5031 = vsel %vm5016, %v4899, %v5030
  %v5032 = vsel %vm5004, %v4901, %v4900
  %v5033 = vsel %vm5006, %v4902, %v5032
  %v5034 = vsel %vm5008, %v4903, %v5033
  %v5035 = vsel %vm5010, %v4904, %v5034
  %v5036 = vsel %vm5012, %v4905, %v5035
  %v5037 = vsel %vm5014, %v4906, %v5036
  %v5038 = vsel %vm5016, %v4907, %v5037
  %v5039 = vsel %vm5004, %v4909, %v4908
  %v5040 = vsel %vm5006, %v4910, %v5039
  %v5041 = vsel %vm5008, %v4911, %v5040
  %v5042 = vsel %vm5010, %v4912, %v5041
  %v5043 = vsel %vm5012, %v4913, %v5042
  %v5044 = vsel %vm5014, %v4914, %v5043
  %v5045 = vsel %vm5016, %v4915, %v5044
  %v5046 = vsel %vm5004, %v4917, %v4916
  %v5047 = vsel %vm5006, %v4918, %v5046
  %v5048 = vsel %vm5008, %v4919, %v5047
  %v5049 = vsel %vm5010, %v4920, %v5048
  %v5050 = vsel %vm5012, %v4921, %v5049
  %v5051 = vsel %vm5014, %v4922, %v5050
  %v5052 = vsel %vm5016, %v4923, %v5051
  %v5053 = vsel %vm5004, %v4925, %v4924
  %v5054 = vsel %vm5006, %v4926, %v5053
  %v5055 = vsel %vm5008, %v4927, %v5054
  %v5056 = vsel %vm5010, %v4928, %v5055
  %v5057 = vsel %vm5012, %v4929, %v5056
  %v5058 = vsel %vm5014, %v4930, %v5057
  %v5059 = vsel %vm5016, %v4931, %v5058
  %v5060 = vsel %vm5004, %v4933, %v4932
  %v5061 = vsel %vm5006, %v4934, %v5060
  %v5062 = vsel %vm5008, %v4935, %v5061
  %v5063 = vsel %vm5010, %v4936, %v5062
  %v5064 = vsel %vm5012, %v4937, %v5063
  %v5065 = vsel %vm5014, %v4938, %v5064
  %v5066 = vsel %vm5016, %v4939, %v5065
  %v5067 = vsel %vm5004, %v4941, %v4940
  %v5068 = vsel %vm5006, %v4942, %v5067
  %v5069 = vsel %vm5008, %v4943, %v5068
  %v5070 = vsel %vm5010, %v4944, %v5069
  %v5071 = vsel %vm5012, %v4945, %v5070
  %v5072 = vsel %vm5014, %v4946, %v5071
  %v5073 = vsel %vm5016, %v4947, %v5072
  %v5074 = vsel %vm5004, %v4949, %v4948
  %v5075 = vsel %vm5006, %v4950, %v5074
  %v5076 = vsel %vm5008, %v4951, %v5075
  %v5077 = vsel %vm5010, %v4952, %v5076
  %v5078 = vsel %vm5012, %v4953, %v5077
  %v5079 = vsel %vm5014, %v4954, %v5078
  %v5080 = vsel %vm5016, %v4955, %v5079
  %v5081 = vsel %vm5004, %v4957, %v4956
  %v5082 = vsel %vm5006, %v4958, %v5081
  %v5083 = vsel %vm5008, %v4959, %v5082
  %v5084 = vsel %vm5010, %v4960, %v5083
  %v5085 = vsel %vm5012, %v4961, %v5084
  %v5086 = vsel %vm5014, %v4962, %v5085
  %v5087 = vsel %vm5016, %v4963, %v5086
  %v5088 = vsel %vm5004, %v4965, %v4964
  %v5089 = vsel %vm5006, %v4966, %v5088
  %v5090 = vsel %vm5008, %v4967, %v5089
  %v5091 = vsel %vm5010, %v4968, %v5090
  %v5092 = vsel %vm5012, %v4969, %v5091
  %v5093 = vsel %vm5014, %v4970, %v5092
  %v5094 = vsel %vm5016, %v4971, %v5093
  %v5095 = vsel %vm5004, %v4973, %v4972
  %v5096 = vsel %vm5006, %v4974, %v5095
  %v5097 = vsel %vm5008, %v4975, %v5096
  %v5098 = vsel %vm5010, %v4976, %v5097
  %v5099 = vsel %vm5012, %v4977, %v5098
  %v5100 = vsel %vm5014, %v4978, %v5099
  %v5101 = vsel %vm5016, %v4979, %v5100
  %v5102 = vsel %vm5004, %v4981, %v4980
  %v5103 = vsel %vm5006, %v4982, %v5102
  %v5104 = vsel %vm5008, %v4983, %v5103
  %v5105 = vsel %vm5010, %v4984, %v5104
  %v5106 = vsel %vm5012, %v4985, %v5105
  %v5107 = vsel %vm5014, %v4986, %v5106
  %v5108 = vsel %vm5016, %v4987, %v5107
  %v5109 = vsel %vm5004, %v4989, %v4988
  %v5110 = vsel %vm5006, %v4990, %v5109
  %v5111 = vsel %vm5008, %v4991, %v5110
  %v5112 = vsel %vm5010, %v4992, %v5111
  %v5113 = vsel %vm5012, %v4993, %v5112
  %v5114 = vsel %vm5014, %v4994, %v5113
  %v5115 = vsel %vm5016, %v4995, %v5114
  %v5116 = vsel %vm5004, %v4997, %v4996
  %v5117 = vsel %vm5006, %v4998, %v5116
  %v5118 = vsel %vm5008, %v4999, %v5117
  %v5119 = vsel %vm5010, %v5000, %v5118
  %v5120 = vsel %vm5012, %v5001, %v5119
  %v5121 = vsel %vm5014, %v5002, %v5120
  %v5122 = vsel %vm5016, %v5003, %v5121
  %v5123 = vpack.c.b16 %v5017, %v5017
  %v5124 = vpack.c.b16 %v5024, %v5024
  %v5125 = vpack.c.b16 %v5031, %v5031
  %v5126 = vpack.c.b16 %v5038, %v5038
  %v5127 = vpack.c.b16 %v5045, %v5045
  %v5128 = vpack.c.b16 %v5052, %v5052
  %v5129 = vpack.c.b16 %v5059, %v5059
  %v5130 = vpack.c.b16 %v5066, %v5066
  %v5131 = vpack.c.b16 %v5073, %v5073
  %v5132 = vpack.c.b16 %v5080, %v5080
  %v5133 = vpack.c.b16 %v5087, %v5087
  %v5134 = vpack.c.b16 %v5094, %v5094
  %v5135 = vpack.c.b16 %v5101, %v5101
  %v5136 = vpack.c.b16 %v5108, %v5108
  %v5137 = vpack.c.b16 %v5115, %v5115
  %v5138 = vpack.c.b16 %v5122, %v5122
  %vm5155 = vcmask 60416
  %5156 = vst.msk [vmem:[%s1] sm:$0xf] %vm5155, %v5123
  %5157 = vst.msk [vmem:[%s1 + $0x4] sm:$0xf] %vm5155, %v5124
  %5158 = vst.msk [vmem:[%s1 + $0x8] sm:$0xf] %vm5155, %v5125
  %5159 = vst.msk [vmem:[%s1 + $0xc] sm:$0xf] %vm5155, %v5126
  %5160 = vst.msk [vmem:[%s1 + $0x10] sm:$0xf] %vm5155, %v5127
  %5161 = vst.msk [vmem:[%s1 + $0x14] sm:$0xf] %vm5155, %v5128
  %5162 = vst.msk [vmem:[%s1 + $0x18] sm:$0xf] %vm5155, %v5129
  %5163 = vst.msk [vmem:[%s1 + $0x1c] sm:$0xf] %vm5155, %v5130
  %5164 = vst.msk [vmem:[%s1 + $0x20] sm:$0xf] %vm5155, %v5131
  %5165 = vst.msk [vmem:[%s1 + $0x24] sm:$0xf] %vm5155, %v5132
  %5166 = vst.msk [vmem:[%s1 + $0x28] sm:$0xf] %vm5155, %v5133
  %5167 = vst.msk [vmem:[%s1 + $0x2c] sm:$0xf] %vm5155, %v5134
  %5168 = vst.msk [vmem:[%s1 + $0x30] sm:$0xf] %vm5155, %v5135
  %5169 = vst.msk [vmem:[%s1 + $0x34] sm:$0xf] %vm5155, %v5136
  %5170 = vst.msk [vmem:[%s1 + $0x38] sm:$0xf] %vm5155, %v5137
  %5171 = vst.msk [vmem:[%s1 + $0x3c] sm:$0xf] %vm5155, %v5138
  // Predicated region
  $region6: #{darknet_forward.15} parent=0 // pred_check
    _
  $region7: #{darknet_forward.15} parent=0 // pred_check_branch
    %5173 = sbr.rel (0) target = $region9
  $region8: #{darknet_forward.15} parent=0 // pred_region
    _
  $region9: #{darknet_forward.15} parent=0 // pred_fallthru
    _
  // Predicated region
  $region10: #{darknet_forward.15} parent=0 // pred_check
    _
  $region11: #{darknet_forward.15} parent=0 // pred_check_branch
    %5175 = sbr.rel (0) target = $region13
  $region12: #{darknet_forward.15} parent=0 // pred_region
    _
  $region13: #{darknet_forward.15} parent=0 // pred_fallthru
    _

// kernel: darknet_forward.24
$region0: #{darknet_forward.24}
  #allocation0 [shape = 'u32[]', space=smem, size = 0x4, offset = 0x4, fixed_abs, tag = 'smem constant byte address 0x4 - core index']
  #allocation1 [shape = 'u32[144,128]{1,0:T(1,128)}', space=vmem, size = 0x12000, scoped, tag = 'internal scratch']
  #allocation2 [shape = 'f32[32,128]{1,0:T(8,128)}', space=vmem, size = 0x4000, scoped, tag = 'scratch operand']
  %s0 = inlined_call_operand.vmem [shape: bf16[32,128], index: 0, kind: input, shape index: {}]
  %s1 = inlined_call_operand.vmem [shape: bf16[128,128], index: 1, kind: input, shape index: {}]
  %s2 = inlined_call_operand.vmem [shape: f32[32,128], index: 2, kind: output, shape index: {0}]
  %s3 = inlined_call_operand.vmem [shape: f32[1,8,128], index: 3, kind: output, shape index: {1}]
  %s4 = inlined_call_operand.vmem [shape: f32[1,8,128], index: 4, kind: output, shape index: {2}]
  %5 = xla_tuple %s2, %s3, %s4
  %s6 = sld [smem:[#allocation0]]
  $region42: #{darknet_forward.24} parent=0
    _
  %s8 = ssub.s32 1, %s6
  %s9 = scalar_select 0, %s8, %s6
  // Predicated region
  $region2: #{darknet_forward.24} parent=0 // pred_check
    _
  $region3: #{darknet_forward.24} parent=0 // pred_check_branch
    %11 = sbr.rel (0) target = $region5
  $region4: #{darknet_forward.24} parent=0 // pred_region
    _
  $region5: #{darknet_forward.24} parent=0 // pred_fallthru
    _
  // Predicated region
  $region6: #{darknet_forward.24} parent=0 // pred_check
    _
  $region7: #{darknet_forward.24} parent=0 // pred_check_branch
    %13 = sbr.rel (0) target = $region9
  $region8: #{darknet_forward.24} parent=0 // pred_region
    _
  $region9: #{darknet_forward.24} parent=0 // pred_fallthru
    _
  %p15 = scmp.eq.s32.totalorder 0, 0
  // Predicated region
  $region10: #{darknet_forward.24} parent=0 // pred_check
    %p16 = pneg %p15
  $region11: #{darknet_forward.24} parent=0 // pred_check_branch
    %18 = sbr.rel (%p16) target = $region13
  $region12: #{darknet_forward.24} parent=0 // pred_region
    %19 = vst [vmem:[#allocation2] sm:$0xff] 0.0
    %20 = vst [vmem:[#allocation2 + $0x8] sm:$0xff] 0.0
    %21 = vst [vmem:[#allocation2 + $0x10] sm:$0xff] 0.0
    %22 = vst [vmem:[#allocation2 + $0x18] sm:$0xff] 0.0
  $region13: #{darknet_forward.24} parent=0 // pred_fallthru
    _
  %v23 = vld [vmem:[#allocation2] sm:$0xff]
  %v24 = vld [vmem:[#allocation2 + $0x8] sm:$0xff]
  %v25 = vld [vmem:[#allocation2 + $0x10] sm:$0xff]
  %v26 = vld [vmem:[#allocation2 + $0x18] sm:$0xff]
  %v27 = vld [vmem:[%s0] sm:$0xf]
  %v28 = vld [vmem:[%s0 + $0x4] sm:$0xf]
  %v29 = vld [vmem:[%s0 + $0x8] sm:$0xf]
  %v30 = vld [vmem:[%s0 + $0xc] sm:$0xf]
  %v31 = vld [vmem:[%s1] sm:$0xf]
  %v32 = vld [vmem:[%s1 + $0x4] sm:$0xf]
  %v33 = vld [vmem:[%s1 + $0x8] sm:$0xf]
  %v34 = vld [vmem:[%s1 + $0xc] sm:$0xf]
  %v35 = vld [vmem:[%s1 + $0x10] sm:$0xf]
  %v36 = vld [vmem:[%s1 + $0x14] sm:$0xf]
  %v37 = vld [vmem:[%s1 + $0x18] sm:$0xf]
  %v38 = vld [vmem:[%s1 + $0x1c] sm:$0xf]
  %v39 = vld [vmem:[%s1 + $0x20] sm:$0xf]
  %v40 = vld [vmem:[%s1 + $0x24] sm:$0xf]
  %v41 = vld [vmem:[%s1 + $0x28] sm:$0xf]
  %v42 = vld [vmem:[%s1 + $0x2c] sm:$0xf]
  %v43 = vld [vmem:[%s1 + $0x30] sm:$0xf]
  %v44 = vld [vmem:[%s1 + $0x34] sm:$0xf]
  %v45 = vld [vmem:[%s1 + $0x38] sm:$0xf]
  %v46 = vld [vmem:[%s1 + $0x3c] sm:$0xf]
  %v51 = vunpack.c.l.b16 %v27
  %v52 = vunpack.c.l.b16 %v28
  %v53 = vunpack.c.l.b16 %v29
  %v54 = vunpack.c.l.b16 %v30
  %v55 = vpack.c.b16 %v52, %v51
  %v56 = vpack.c.b16 %v54, %v53
  %v75 = vunpack.c.l.b16 %v31
  %v76 = vunpack.c.l.b16 %v32
  %v77 = vunpack.c.l.b16 %v33
  %v78 = vunpack.c.l.b16 %v34
  %v79 = vunpack.c.l.b16 %v35
  %v80 = vunpack.c.l.b16 %v36
  %v81 = vunpack.c.l.b16 %v37
  %v82 = vunpack.c.l.b16 %v38
  %v83 = vunpack.c.l.b16 %v39
  %v84 = vunpack.c.l.b16 %v40
  %v85 = vunpack.c.l.b16 %v41
  %v86 = vunpack.c.l.b16 %v42
  %v87 = vunpack.c.l.b16 %v43
  %v88 = vunpack.c.l.b16 %v44
  %v89 = vunpack.c.l.b16 %v45
  %v90 = vunpack.c.l.b16 %v46
  %v91 = vpack.c.b16 %v76, %v75
  %v92 = vpack.c.b16 %v78, %v77
  %v93 = vpack.c.b16 %v80, %v79
  %v94 = vpack.c.b16 %v82, %v81
  %v95 = vpack.c.b16 %v84, %v83
  %v96 = vpack.c.b16 %v86, %v85
  %v97 = vpack.c.b16 %v88, %v87
  %v98 = vpack.c.b16 %v90, %v89
  %107 = vmatprep.subr.bf16.mxu0 0
  %108 = vmatpush1.bf16.msra.mxu0 %v91
  %109 = vmatprep.subr.bf16.mxu0 0
  %110 = vmatpush1.bf16.msra.mxu0 %v92
  %111 = vmatprep.subr.bf16.mxu0 0
  %112 = vmatpush1.bf16.msra.mxu0 %v93
  %113 = vmatprep.subr.bf16.mxu0 0
  %114 = vmatpush1.bf16.msra.mxu0 %v94
  %115 = vmatprep.subr.bf16.mxu0 0
  %116 = vmatpush1.bf16.msra.mxu0 %v95
  %117 = vmatprep.subr.bf16.mxu0 0
  %118 = vmatpush1.bf16.msra.mxu0 %v96
  %119 = vmatprep.subr.bf16.mxu0 0
  %120 = vmatpush1.bf16.msra.mxu0 %v97
  %121 = vmatprep.subr.bf16.mxu0 0
  %122 = vmatpush1.bf16.msra.mxu0 %v98
  %123 = vmatprep.subr.bf16.mxu0 0
  %124 = vmatpush1.bf16.msra.mxu0 0
  %125 = vmatprep.subr.bf16.mxu0 0
  %126 = vmatpush1.bf16.msra.mxu0 0
  %127 = vmatprep.subr.bf16.mxu0 0
  %128 = vmatpush1.bf16.msra.mxu0 0
  %129 = vmatprep.subr.bf16.mxu0 0
  %130 = vmatpush1.bf16.msra.mxu0 0
  %131 = vmatprep.subr.bf16.mxu0 0
  %132 = vmatpush1.bf16.msra.mxu0 0
  %133 = vmatprep.subr.bf16.mxu0 0
  %134 = vmatpush1.bf16.msra.mxu0 0
  %135 = vmatprep.subr.bf16.mxu0 0
  %136 = vmatpush1.bf16.msra.mxu0 0
  %137 = vmatprep.subr.bf16.mxu0 0
  %138 = vmatpush1.bf16.msra.mxu0 0
  %139 = vmatprep.mubr.bf16.mxu0 0
  %140 = vmatmul.mubr.bf16.gmra.mrb[0].mxu0 %v55
  %v141 = vpop.f32.mrb[0].mxu0
  %v142 = vadd.f32 0.0, %v141
  %v143 = vpop.f32.mrb[0].mxu0
  %v144 = vpop.f32.mrb[0].mxu0
  %v145 = vadd.f32 0.0, %v144
  %v146 = vpop.f32.mrb[0].mxu0
  %147 = vmatprep.mubr.bf16.mxu0 0
  %148 = vmatmul.mubr.bf16.gmra.mrb[0].mxu0 %v56
  %v149 = vpop.f32.mrb[0].mxu0
  %v150 = vadd.f32 0.0, %v149
  %v151 = vpop.f32.mrb[0].mxu0
  %v152 = vpop.f32.mrb[0].mxu0
  %v153 = vadd.f32 0.0, %v152
  %v154 = vpop.f32.mrb[0].mxu0
  %155 = vdwg.mxu0
  %v156 = vadd.f32 %v23, %v142
  %v157 = vadd.f32 %v24, %v145
  %v158 = vadd.f32 %v25, %v150
  %v159 = vadd.f32 %v26, %v153
  %160 = vst [vmem:[#allocation2] sm:$0xff] %v156
  %161 = vst [vmem:[#allocation2 + $0x8] sm:$0xff] %v157
  %162 = vst [vmem:[#allocation2 + $0x10] sm:$0xff] %v158
  %163 = vst [vmem:[#allocation2 + $0x18] sm:$0xff] %v159
  // Predicated region
  $region14: #{darknet_forward.24} parent=0 // pred_check
    %p164 = pneg %p15
  $region15: #{darknet_forward.24} parent=0 // pred_check_branch
    %166 = sbr.rel (%p164) target = $region17
  $region16: #{darknet_forward.24} parent=0 // pred_region
    %v167 = vld [vmem:[#allocation2] sm:$0xff]
    %v168 = vld [vmem:[#allocation2 + $0x8] sm:$0xff]
    %v169 = vld [vmem:[#allocation2 + $0x10] sm:$0xff]
    %v170 = vld [vmem:[#allocation2 + $0x18] sm:$0xff]
    %171 = vst [vmem:[%s2] sm:$0xff] %v167
    %172 = vst [vmem:[%s2 + $0x8] sm:$0xff] %v168
    %173 = vst [vmem:[%s2 + $0x10] sm:$0xff] %v169
    %174 = vst [vmem:[%s2 + $0x18] sm:$0xff] %v170
    %v175 = vadd.f32 %v167, %v168
    %v176 = vadd.f32 %v175, %v169
    %v177 = vadd.f32 %v176, %v170
    %v178 = vrot.slane %v177, 4
    %v179 = vadd.f32 %v177, %v178
    %v180 = vrot.slane %v179, 2
    %v181 = vadd.f32 %v179, %v180
    %v182 = vrot.slane %v181, 1
    %v183 = vadd.f32 %v181, %v182
    %v184 = vmul.f32 %v167, %v167
    %v185 = vmul.f32 %v168, %v168
    %v186 = vmul.f32 %v169, %v169
    %v187 = vmul.f32 %v170, %v170
    %v188 = vadd.f32 %v184, %v185
    %v189 = vadd.f32 %v188, %v186
    %v190 = vadd.f32 %v189, %v187
    %v191 = vrot.slane %v190, 4
    %v192 = vadd.f32 %v190, %v191
    %v193 = vrot.slane %v192, 2
    %v194 = vadd.f32 %v192, %v193
    %v195 = vrot.slane %v194, 1
    %v196 = vadd.f32 %v194, %v195
    %197 = vst [vmem:[%s3] sm:$0xff] %v183
    %198 = vst [vmem:[%s4] sm:$0xff] %v196
  $region17: #{darknet_forward.24} parent=0 // pred_fallthru
    _
  // Predicated region
  $region18: #{darknet_forward.24} parent=0 // pred_check
    _
  $region19: #{darknet_forward.24} parent=0 // pred_check_branch
    %200 = sbr.rel (0) target = $region21
  $region20: #{darknet_forward.24} parent=0 // pred_region
    _
  $region21: #{darknet_forward.24} parent=0 // pred_fallthru
    _
  // Predicated region
  $region22: #{darknet_forward.24} parent=0 // pred_check
    _
  $region23: #{darknet_forward.24} parent=0 // pred_check_branch
    %202 = sbr.rel (0) target = $region25
  $region24: #{darknet_forward.24} parent=0 // pred_region
    _
  $region25: #{darknet_forward.24} parent=0 // pred_fallthru
    _
  // Predicated region
  $region26: #{darknet_forward.24} parent=0 // pred_check
    _
  $region27: #{darknet_forward.24} parent=0 // pred_check_branch
    %204 = sbr.rel (0) target = $region29
  $region28: #{darknet_forward.24} parent=0 // pred_region
    _
  $region29: #{darknet_forward.24} parent=0 // pred_fallthru
    _
  // Predicated region
  $region30: #{darknet_forward.24} parent=0 // pred_check
    _
  $region31: #{darknet_forward.24} parent=0 // pred_check_branch
    %206 = sbr.rel (0) target = $region33
  $region32: #{darknet_forward.24} parent=0 // pred_region
    _
  $region33: #{darknet_forward.24} parent=0 // pred_fallthru
    _
  // Predicated region
  $region34: #{darknet_forward.24} parent=0 // pred_check
    _
  $region35: #{darknet_forward.24} parent=0 // pred_check_branch
    %208 = sbr.rel (0) target = $region37
  $region36: #{darknet_forward.24} parent=0 // pred_region
    _
  $region37: #{darknet_forward.24} parent=0 // pred_fallthru
    _
  // Predicated region
  $region38: #{darknet_forward.24} parent=0 // pred_check
    _
  $region39: #{darknet_forward.24} parent=0 // pred_check_branch
    %210 = sbr.rel (0) target = $region41
  $region40: #{darknet_forward.24} parent=0 // pred_region
    _
  $region41: #{darknet_forward.24} parent=0 // pred_fallthru
    _

// kernel: darknet_forward.25
$region0: #{darknet_forward.25}
  #allocation0 [shape = 'u32[]', space=smem, size = 0x4, offset = 0x4, fixed_abs, tag = 'smem constant byte address 0x4 - core index']
  #allocation1 [shape = 'u32[144,128]{1,0:T(1,128)}', space=vmem, size = 0x12000, scoped, tag = 'internal scratch']
  %s0 = inlined_call_operand.vmem [shape: f32[32,128], index: 0, kind: input, shape index: {}]
  %s1 = inlined_call_operand.vmem [shape: f32[1,128], index: 1, kind: input, shape index: {}]
  %s2 = inlined_call_operand.vmem [shape: f32[1,128], index: 2, kind: input, shape index: {}]
  %s3 = inlined_call_operand.vmem [shape: bf16[32,128], index: 3, kind: output, shape index: {}]
  %s4 = sld [smem:[#allocation0]]
  $region22: #{darknet_forward.25} parent=0
    _
  %s6 = ssub.s32 1, %s4
  %s7 = scalar_select 0, %s6, %s4
  // Predicated region
  $region2: #{darknet_forward.25} parent=0 // pred_check
    _
  $region3: #{darknet_forward.25} parent=0 // pred_check_branch
    %9 = sbr.rel (0) target = $region5
  $region4: #{darknet_forward.25} parent=0 // pred_region
    _
  $region5: #{darknet_forward.25} parent=0 // pred_fallthru
    _
  // Predicated region
  $region6: #{darknet_forward.25} parent=0 // pred_check
    _
  $region7: #{darknet_forward.25} parent=0 // pred_check_branch
    %11 = sbr.rel (0) target = $region9
  $region8: #{darknet_forward.25} parent=0 // pred_region
    _
  $region9: #{darknet_forward.25} parent=0 // pred_fallthru
    _
  // Predicated region
  $region10: #{darknet_forward.25} parent=0 // pred_check
    _
  $region11: #{darknet_forward.25} parent=0 // pred_check_branch
    %13 = sbr.rel (0) target = $region13
  $region12: #{darknet_forward.25} parent=0 // pred_region
    _
  $region13: #{darknet_forward.25} parent=0 // pred_fallthru
    _
  %v14 = vld [vmem:[%s0] sm:$0xff]
  %v15 = vld [vmem:[%s0 + $0x8] sm:$0xff]
  %v16 = vld [vmem:[%s0 + $0x10] sm:$0xff]
  %v17 = vld [vmem:[%s0 + $0x18] sm:$0xff]
  %v18 = vld [vmem:[%s1] sm:$0x1]
  %v20 = vlaneseq
  %v21 = vshrl.u32 %v20, 7
  %v22 = vsub.s32 0, %v21
  %v23 = vrot.slane %v18, %v22
  %v25 = vmul.f32 %v14, %v23
  %v26 = vmul.f32 %v15, %v23
  %v27 = vmul.f32 %v16, %v23
  %v28 = vmul.f32 %v17, %v23
  %v29 = vld [vmem:[%s2] sm:$0x1]
  %v31 = vlaneseq
  %v32 = vshrl.u32 %v31, 7
  %v33 = vsub.s32 0, %v32
  %v34 = vrot.slane %v29, %v33
  %v36 = vadd.f32 %v25, %v34
  %v37 = vadd.f32 %v26, %v34
  %v38 = vadd.f32 %v27, %v34
  %v39 = vadd.f32 %v28, %v34
  %v40 = vmax.f32 %v36, 0.0
  %v41 = vmax.f32 %v37, 0.0
  %v42 = vmax.f32 %v38, 0.0
  %v43 = vmax.f32 %v39, 0.0
  %v44 = vpack.c.bf16 %v41, %v40
  %v45 = vpack.c.bf16 %v43, %v42
  %v48 = vunpack.c.l.b16 %v44
  %v49 = vunpack.c.h.b16 %v44
  %v50 = vunpack.c.l.b16 %v45
  %v51 = vunpack.c.h.b16 %v45
  %v52 = vpack.c.b16 %v48, %v48
  %v53 = vpack.c.b16 %v49, %v49
  %v54 = vpack.c.b16 %v50, %v50
  %v55 = vpack.c.b16 %v51, %v51
  %60 = vst [vmem:[%s3] sm:$0xf] %v52
  %61 = vst [vmem:[%s3 + $0x4] sm:$0xf] %v53
  %62 = vst [vmem:[%s3 + $0x8] sm:$0xf] %v54
  %63 = vst [vmem:[%s3 + $0xc] sm:$0xf] %v55
  // Predicated region
  $region14: #{darknet_forward.25} parent=0 // pred_check
    _
  $region15: #{darknet_forward.25} parent=0 // pred_check_branch
    %65 = sbr.rel (0) target = $region17
  $region16: #{darknet_forward.25} parent=0 // pred_region
    _
  $region17: #{darknet_forward.25} parent=0 // pred_fallthru
    _
  // Predicated region
  $region18: #{darknet_forward.25} parent=0 // pred_check
    _
  $region19: #{darknet_forward.25} parent=0 // pred_check_branch
    %67 = sbr.rel (0) target = $region21
  $region20: #{darknet_forward.25} parent=0 // pred_region
    _
  $region21: #{darknet_forward.25} parent=0 // pred_fallthru
    _

</llo_original>
